<compile_context>
chip_gen: v5e
topology: v5e:2x2
jax: 0.10.0
libtpu: 0.0.40
codegen_flags: <defaults>
</compile_context>

<pallas_src>
import functools
import math

import numpy as np
import jax
import jax.numpy as jnp
from jax.experimental import pallas as pl
from jax.experimental.pallas import tpu as pltpu

PADDING = 9
N_LAYERS = 4

# ----------------------------------------------------------------------------
# exact-GELU helpers (usable inside Pallas kernels)
# ----------------------------------------------------------------------------
_ERF_P = 0.3275911
_ERF_A1 = 0.254829592
_ERF_A2 = -0.284496736
_ERF_A3 = 1.421413741
_ERF_A4 = -1.453152027
_ERF_A5 = 1.061405429


def _erf_approx(x):
    # Abramowitz & Stegun 7.1.26 (abs err ~1.5e-7). The 1/(1+p|x|) term uses
    # the EUP reciprocal (approx) so it does not occupy VALU issue slots.
    s = jnp.where(x >= 0, 1.0, -1.0).astype(x.dtype)
    a = jnp.abs(x)
    t = pl.reciprocal(1.0 + _ERF_P * a, approx=True)
    poly = t * (_ERF_A1 + t * (_ERF_A2 + t * (_ERF_A3 + t * (_ERF_A4 + t * _ERF_A5))))
    return s * (1.0 - poly * jnp.exp(-a * a))


def _gelu(x):
    # torch.nn.functional.gelu (default, exact): 0.5*x*(1+erf(x/sqrt(2)))
    return 0.5 * x * (1.0 + _erf_approx(x * (1.0 / math.sqrt(2.0))))


# ----------------------------------------------------------------------------
# The single fused kernel: one grid step == `bt` batch elements.
# ----------------------------------------------------------------------------
def _fno_forward_kernel(x_ref, mask_ref, f4_ref, g2_ref,
                        fc0w_ref, fc0b_ref,
                        w4_ref, wc_ref, bc_ref,
                        fc1w_ref, fc1b_ref, fc2w_ref, fc2b_ref,
                        o_ref, rhs_ref, *, n_layers, bt, width, n_modes):
    f32 = jnp.float32
    bf16 = jnp.bfloat16
    BW = bt * width
    two_m = 2 * n_modes

    # ---- fc0 (channel lift) per folded batch element; then the bottom/right
    # zero padding that the reference applies AFTER fc0 is realised as a
    # multiplicative lane mask on the flattened padded grid.
    fc0w = fc0w_ref[...]                                          # (width, Cin) bf16
    parts = []
    for b in range(bt):
        xb = x_ref[b].astype(bf16)                                # (Cin, Np)
        parts.append(jnp.dot(fc0w, xb, preferred_element_type=f32)
                     + fc0b_ref[...])
    a = jnp.concatenate(parts, axis=0) * mask_ref[...]            # (BW, Np) f32

    # ---- stage the static inverse-DFT operator [Gr ; Gi] into the fused-RHS
    # scratch (bottom BW rows are refreshed with the activation each layer).
    rhs_ref[pl.ds(0, two_m), :] = g2_ref[...]

    f4 = f4_ref[...]                                              # (Np, 4M) bf16

    for l in range(n_layers):
        a_bf = a.astype(bf16)
        rhs_ref[pl.ds(two_m, BW), :] = a_bf                       # conv operand

        # truncated rfft2 as ONE lane-dense dot: xf = [xr | xr | xi | xi]
        xf = jnp.dot(a_bf, f4, preferred_element_type=f32)        # (BW, 4M)

        # per-mode complex channel mixing, lane-packed.  Weights are
        # pre-combined to [wr | wi | -wi | wr]; one multiply + Cin-sum +
        # halves-add yields [o_r | o_i] per folded batch element.
        w4 = w4_ref[l]                                            # (Co, Ci, 4M) f32
        o_parts = []
        for b in range(bt):
            xfb = xf[b * width:(b + 1) * width]                   # (Ci, 4M)
            s = jnp.sum(xfb[None, :, :] * w4, axis=1)             # (Co, 4M)
            o_parts.append(s[:, :two_m] + s[:, two_m:])           # (Co, 2M)
        o = jnp.concatenate(o_parts, axis=0)                      # (BW, 2M)

        # fused irfft2 + 1x1 conv: one MXU launch against RHS = [Gr;Gi ; a]
        lhs = jnp.concatenate([o, wc_ref[l]], axis=1).astype(bf16)   # (BW, 2M+BW)
        y = jnp.dot(lhs, rhs_ref[...], preferred_element_type=f32) + bc_ref[l]
        a = _gelu(y) if l < n_layers - 1 else y

    # ---- fc1 + GELU + fc2 on the full padded grid (crop happens outside),
    # lane-dense (1, Np) stores per folded batch element.
    fc1w = fc1w_ref[...]
    fc2w = fc2w_ref[...]
    for b in range(bt):
        ab = a[b * width:(b + 1) * width].astype(bf16)            # (width, Np)
        h1 = jnp.dot(fc1w, ab, preferred_element_type=f32) + fc1b_ref[...]
        h1 = _gelu(h1)
        ob = jnp.dot(fc2w, h1.astype(bf16), preferred_element_type=f32) + fc2b_ref[...]
        o_ref[b] = ob.astype(o_ref.dtype)                         # (1, Np)


# ----------------------------------------------------------------------------
# Packed DFT basis matrices on the flattened padded grid (kept modes only),
# lane-padded from Hp*Wp to Npadp, plus the post-fc0 pad mask.
# ----------------------------------------------------------------------------
def _make_dft_basis(Hp, Wp, m1, m2, S, Npadp):
    Npad = Hp * Wp
    kx = np.concatenate([np.arange(m1), np.arange(Hp - m1, Hp)])   # kept row freqs
    ky = np.arange(m2)                                             # kept col freqs (rfft)
    KX = np.repeat(kx, m2).astype(np.float64)                      # (M,)  M = 2*m1*m2
    KY = np.tile(ky, 2 * m1).astype(np.float64)
    hh = np.repeat(np.arange(Hp), Wp).astype(np.float64)           # (Npad,)
    ww = np.tile(np.arange(Wp), Hp).astype(np.float64)

    theta = 2.0 * np.pi * (np.outer(hh, KX) / Hp + np.outer(ww, KY) / Wp)  # (Npad, M)
    Fr = np.cos(theta)                                             # forward:  e^{-i theta}
    Fi = -np.sin(theta)

    # inverse rfft2 with Hermitian doubling of non-DC / non-Nyquist columns
    cmul = np.where((KY == 0) | ((Wp % 2 == 0) & (KY == Wp // 2)), 1.0, 2.0)
    Gr = (cmul[None, :] * np.cos(theta)).T / (Hp * Wp)             # (M, Npad)
    Gi = (-cmul[None, :] * np.sin(theta)).T / (Hp * Wp)

    # pack: forward F4 = [Fr | Fr | Fi | Fi]  (one dot -> [xr | xr | xi | xi])
    #       inverse G2 = [Gr ; Gi]            (one dot with [o_r | o_i])
    F4 = np.concatenate([Fr, Fr, Fi, Fi], axis=1)                  # (Npad, 4M)
    G2 = np.concatenate([Gr, Gi], axis=0)                          # (2M, Npad)

    # lane-pad the flattened grid axis to Npadp; zero the dummy rows/cols so
    # dummy lanes can never leak into the spectrum / real positions.
    F4p = np.zeros((Npadp, F4.shape[1]))
    F4p[:Npad] = F4
    G2p = np.zeros((G2.shape[0], Npadp))
    G2p[:, :Npad] = G2

    mask2d = np.zeros((Hp, Wp), np.float64)
    mask2d[:S, :S] = 1.0
    maskp = np.zeros((1, Npadp), np.float64)
    maskp[0, :Npad] = mask2d.reshape(-1)

    return (jnp.asarray(F4p, jnp.bfloat16),
            jnp.asarray(G2p, jnp.bfloat16),
            jnp.asarray(maskp, jnp.float32))


# ----------------------------------------------------------------------------
# One-time parameter preparation (hoisted out of the jitted forward)
# ----------------------------------------------------------------------------
def prepare_params(params, modes1, modes2):
    width = params["fc0_w"].shape[0]
    M = 2 * modes1 * modes2
    w4_l, wc_l, bc_l = [], [], []
    for lp in params["layers"]:
        wr = jnp.concatenate([lp["w1r"], lp["w2r"]], axis=2)       # (Ci,Co,2m1,m2)
        wi = jnp.concatenate([lp["w1i"], lp["w2i"]], axis=2)
        wr = jnp.transpose(wr, (1, 0, 2, 3)).reshape(width, width, M)   # (Co,Ci,M)
        wi = jnp.transpose(wi, (1, 0, 2, 3)).reshape(width, width, M)
        # lane-packed complex mixing weights (minus sign baked in)
        w4_l.append(jnp.concatenate([wr, wi, -wi, wr], axis=-1))   # (Co,Ci,4M)
        wc_l.append(lp["cw"][:, :, 0, 0])                          # (Co, Ci)
        bc_l.append(lp["cb"])                                      # (Co,)
    return {
        "fc0_w": params["fc0_w"].astype(jnp.bfloat16),             # (width, Cin)
        "fc0_b": params["fc0_b"].reshape(width, 1).astype(jnp.float32),
        "W4": jnp.stack(w4_l).astype(jnp.float32),                 # (L,Co,Ci,4M)
        "WC": jnp.stack(wc_l).astype(jnp.float32),                 # (L,Co,Ci)
        "BC": jnp.stack(bc_l).astype(jnp.float32),                 # (L,Co)
        "fc1_w": params["fc1_w"].astype(jnp.bfloat16),             # (128, width)
        "fc1_b": params["fc1_b"].reshape(-1, 1).astype(jnp.float32),
        "fc2_w": params["fc2_w"].astype(jnp.bfloat16),             # (1, 128)
        "fc2_b": params["fc2_b"].reshape(-1, 1).astype(jnp.float32),
    }


# ----------------------------------------------------------------------------
# Deterministic parameter init (torch layouts)
# ----------------------------------------------------------------------------
def init_params(key, in_channels, width, m1, m2, fc_hidden=128, out_channels=1):
    keys = iter(jax.random.split(key, 8 + 8 * N_LAYERS))
    nk = lambda: next(keys)
    normal = lambda k, shape, s: jax.random.normal(k, shape, jnp.float32) * s
    unif = lambda k, shape, s: jax.random.uniform(k, shape, jnp.float32) * s

    p = {
        "fc0_w": normal(nk(), (width, in_channels), 1.0 / math.sqrt(in_channels)),
        "fc0_b": normal(nk(), (width,), 0.05),
        "fc1_w": normal(nk(), (fc_hidden, width), 1.0 / math.sqrt(width)),
        "fc1_b": normal(nk(), (fc_hidden,), 0.05),
        "fc2_w": normal(nk(), (out_channels, fc_hidden), 1.0 / math.sqrt(fc_hidden)),
        "fc2_b": normal(nk(), (out_channels,), 0.05),
        "layers": [],
    }
    spec_scale = 1.0 / (width * width)
    for _ in range(N_LAYERS):
        p["layers"].append({
            "w1r": unif(nk(), (width, width, m1, m2), spec_scale),
            "w1i": unif(nk(), (width, width, m1, m2), spec_scale),
            "w2r": unif(nk(), (width, width, m1, m2), spec_scale),
            "w2i": unif(nk(), (width, width, m1, m2), spec_scale),
            "cw": normal(nk(), (width, width, 1, 1), 1.0 / math.sqrt(width)),
            "cb": normal(nk(), (width,), 0.05),
        })
    return p


def _pick_batch_tile(B, requested):
    """Batch elements folded per grid step; keep >= 2 grid steps for v7x."""
    if requested is not None:
        if B % requested != 0:
            raise ValueError(f"batch_tile {requested} must divide batch {B}")
        return requested
    bt = 1
    for d in range(1, min(8, B) + 1):
        if B % d == 0 and (B // d) >= 2:
            bt = d
    return bt


# ----------------------------------------------------------------------------
# Full FNO2dObserver forward built around the single fused Pallas kernel
# ----------------------------------------------------------------------------
def make_forward(modes1, modes2, width, use_v_plane, S, batch_tile=None):
    Hp = S + PADDING
    Wp = S + PADDING
    Npad = Hp * Wp
    Npadp = ((Npad + 127) // 128) * 128            # lane-dense padded grid length
    n_modes = 2 * modes1 * modes2
    F4, G2, mask = _make_dft_basis(Hp, Wp, modes1, modes2, S, Npadp)

    def forward(p_plane, v_plane, pp):
        B, Sx, Sy, _ = p_plane.shape
        assert Sx == S and Sy == S, "basis was built for a square S x S input"
        bt = _pick_batch_tile(B, batch_tile)

        # FNO2dObserver.get_grid + channel concat (channels-last)
        gridx = jnp.broadcast_to(
            jnp.linspace(0.0, 1.0, Sx, dtype=jnp.float32)[None, :, None, None],
            (B, Sx, Sy, 1))
        gridy = jnp.broadcast_to(
            jnp.linspace(0.0, 1.0, Sy, dtype=jnp.float32)[None, None, :, None],
            (B, Sx, Sy, 1))
        if use_v_plane:
            xcl = jnp.concatenate([p_plane, v_plane, gridx, gridy], axis=-1)
        else:
            xcl = jnp.concatenate([p_plane, gridx, gridy], axis=-1)
        Cin = xcl.shape[-1]

        # channel-major, spatially padded, flattened, lane-padded to Npadp
        # (pad-region values are irrelevant: the in-kernel mask zeros them
        # right after fc0, matching the reference's F.pad-with-zeros)
        xcm = jnp.transpose(xcl, (0, 3, 1, 2)).astype(jnp.float32)        # (B,Cin,S,S)
        xcm = jnp.pad(xcm, ((0, 0), (0, 0), (0, PADDING), (0, PADDING)))  # (B,Cin,Hp,Wp)
        x_in = xcm.reshape(B, Cin, Npad)
        x_in = jnp.pad(x_in, ((0, 0), (0, 0), (0, Npadp - Npad)))         # (B,Cin,Npadp)

        # Bt-dependent weight prep: block-diagonal 1x1-conv weight so the conv
        # can be fused into the shared inverse-DFT dot, and tiled conv bias.
        eye = jnp.eye(bt, dtype=jnp.float32)
        wc_bd = jnp.einsum("ab,lij->laibj", eye, pp["WC"]).reshape(
            N_LAYERS, bt * width, bt * width)
        bc_bd = jnp.tile(pp["BC"], (1, bt)).reshape(N_LAYERS, bt * width, 1)

        kern = functools.partial(_fno_forward_kernel, n_layers=N_LAYERS,
                                 bt=bt, width=width, n_modes=n_modes)

        def full_spec(a):
            return pl.BlockSpec(a.shape, lambda b, _n=a.ndim: (0,) * _n)

        args = (x_in, mask,
                F4, G2,
                pp["fc0_w"], pp["fc0_b"],
                pp["W4"], wc_bd, bc_bd,
                pp["fc1_w"], pp["fc1_b"], pp["fc2_w"], pp["fc2_b"])

        in_specs = ([pl.BlockSpec((bt, Cin, Npadp), lambda b: (b, 0, 0))]
                    + [full_spec(a) for a in args[1:]])

        out = pl.pallas_call(
            kern,
            out_shape=jax.ShapeDtypeStruct((B, 1, Npadp), jnp.float32),
            grid=(B // bt,),
            in_specs=in_specs,
            out_specs=pl.BlockSpec((bt, 1, Npadp), lambda b: (b, 0, 0)),
            scratch_shapes=[
                # fused RHS: rows [0, 2M) = [Gr;Gi], rows [2M, 2M+bt*width) = a
                pltpu.VMEM((2 * n_modes + bt * width, Npadp), jnp.bfloat16),
            ],
            compiler_params=pltpu.CompilerParams(
                dimension_semantics=("parallel",),
            ),
        )(*args)

        # crop the padded grid and restore the (B, S, S, 1) channels-last layout
        out = out[:, 0, :Npad].reshape(B, Hp, Wp)[:, :Sx, :Sy]
        return out[..., None]

    return forward


# ----------------------------------------------------------------------------
# Pure-numpy (float64, np.fft) reference matching the PyTorch semantics
# ----------------------------------------------------------------------------
_np_erf = np.vectorize(math.erf)


def _np_gelu(x):
    return 0.5 * x * (1.0 + _np_erf(x / np.sqrt(2.0)))


def reference_forward(p_plane, v_plane, params, modes1, modes2, width, use_v_plane):
    P = jax.tree_util.tree_map(lambda a: np.asarray(a, np.float64), params)
    p_plane = np.asarray(p_plane, np.float64)
    v_plane = np.asarray(v_plane, np.float64)
    B, Sx, Sy, _ = p_plane.shape
    gridx = np.broadcast_to(np.linspace(0, 1, Sx)[None, :, None, None], (B, Sx, Sy, 1))
    gridy = np.broadcast_to(np.linspace(0, 1, Sy)[None, None, :, None], (B, Sx, Sy, 1))
    if use_v_plane:
        x = np.concatenate([p_plane, v_plane, gridx, gridy], axis=-1)
    else:
        x = np.concatenate([p_plane, gridx, gridy], axis=-1)

    x = x @ P["fc0_w"].T + P["fc0_b"]
    x = x.transpose(0, 3, 1, 2)
    x = np.pad(x, ((0, 0), (0, 0), (0, PADDING), (0, PADDING)))
    Hp, Wp = x.shape[-2:]
    for l in range(N_LAYERS):
        lp = P["layers"][l]
        w1 = lp["w1r"] + 1j * lp["w1i"]
        w2 = lp["w2r"] + 1j * lp["w2i"]
        x_ft = np.fft.rfft2(x, axes=(-2, -1))
        out_ft = np.zeros((B, width, Hp, Wp // 2 + 1), dtype=np.complex128)
        out_ft[:, :, :modes1, :modes2] = np.einsum(
            "bixy,ioxy->boxy", x_ft[:, :, :modes1, :modes2], w1)
        out_ft[:, :, -modes1:, :modes2] = np.einsum(
            "bixy,ioxy->boxy", x_ft[:, :, -modes1:, :modes2], w2)
        x1 = np.fft.irfft2(out_ft, s=(Hp, Wp), axes=(-2, -1))
        x2 = (np.einsum("oi,bihw->bohw", lp["cw"][:, :, 0, 0], x)
              + lp["cb"][None, :, None, None])
        x = x1 + x2
        if l < N_LAYERS - 1:
            x = _np_gelu(x)
    x = x[:, :, :Sx, :Sy]
    x = x.transpose(0, 2, 3, 1)
    x = _np_gelu(x @ P["fc1_w"].T + P["fc1_b"])
    x = x @ P["fc2_w"].T + P["fc2_b"]
    return x


# ----------------------------------------------------------------------------
if __name__ == "__main__":
    B, S = 2, 16
    modes1 = modes2 = 4
    width = 16
    use_v_plane = False
    in_channels = 4 if use_v_plane else 3

    key = jax.random.PRNGKey(0)
    kp, kv, kparam = jax.random.split(key, 3)
    p_plane = jax.random.normal(kp, (B, S, S, 1), jnp.float32)
    v_plane = jax.random.normal(kv, (B, S, S, 1), jnp.float32)
    params = init_params(kparam, in_channels, width, modes1, modes2)
    prepped = prepare_params(params, modes1, modes2)

    forward = jax.jit(make_forward(modes1, modes2, width, use_v_plane, S))
    out = jax.block_until_ready(forward(p_plane, v_plane, prepped))
    assert out.shape == (B, S, S, 1), out.shape

    ref = reference_forward(p_plane, v_plane, params, modes1, modes2, width, use_v_plane)
    err = float(np.max(np.abs(np.asarray(out, np.float64) - ref)))
    scale = float(np.max(np.abs(ref))) + 1e-12
    # Tolerance sized for bf16 MXU operands with f32 accumulation; structural
    # bugs (misaligned padding / wrong mixing / wrong DFT) show up as O(1) errors.
    if not np.isfinite(err) or err > 3e-2 * scale + 1e-3:
        raise AssertionError(
            f"Pallas FNO output mismatch: max_abs_err={err:.3e}, ref_scale={scale:.3e}")
    print("KERNEL_OK")
</pallas_src>

<mosaic_0001>
module attributes {stable_mosaic.version = 11 : i64} {
  func.func @_fno_forward_kernel(%arg0: i32, %arg1: memref<1x3x640xf32, #tpu.memory_space<vmem>>, %arg2: memref<1x640xf32, #tpu.memory_space<vmem>>, %arg3: memref<640x128xbf16, #tpu.memory_space<vmem>>, %arg4: memref<64x640xbf16, #tpu.memory_space<vmem>>, %arg5: memref<16x3xbf16, #tpu.memory_space<vmem>>, %arg6: memref<16x1xf32, #tpu.memory_space<vmem>>, %arg7: memref<4x16x16x128xf32, #tpu.memory_space<vmem>>, %arg8: memref<4x16x16xf32, #tpu.memory_space<vmem>>, %arg9: memref<4x16x1xf32, #tpu.memory_space<vmem>>, %arg10: memref<128x16xbf16, #tpu.memory_space<vmem>>, %arg11: memref<128x1xf32, #tpu.memory_space<vmem>>, %arg12: memref<1x128xbf16, #tpu.memory_space<vmem>>, %arg13: memref<1x1xf32, #tpu.memory_space<vmem>>, %arg14: memref<1x1x640xf32, #tpu.memory_space<vmem>>, %arg15: memref<80x640xbf16, #tpu.memory_space<vmem>>) attributes {dimension_semantics = [#tpu.dimension_semantics<parallel>], iteration_bounds = array<i64: 2>, scalar_prefetch = 0 : i64, scratch_operands = 1 : i64, tpu.core_type = #tpu.core_type<tc>, window_params = [{transform_indices = @transform_0, window_bounds = array<i64: 1, 3, 640>}, {pipeline_mode = #tpu.pipeline_mode<synchronous>, transform_indices = @transform_1, window_bounds = array<i64: 1, 640>}, {pipeline_mode = #tpu.pipeline_mode<synchronous>, transform_indices = @transform_2, window_bounds = array<i64: 640, 128>}, {pipeline_mode = #tpu.pipeline_mode<synchronous>, transform_indices = @transform_3, window_bounds = array<i64: 64, 640>}, {pipeline_mode = #tpu.pipeline_mode<synchronous>, transform_indices = @transform_4, window_bounds = array<i64: 16, 3>}, {pipeline_mode = #tpu.pipeline_mode<synchronous>, transform_indices = @transform_5, window_bounds = array<i64: 16, 1>}, {pipeline_mode = #tpu.pipeline_mode<synchronous>, transform_indices = @transform_6, window_bounds = array<i64: 4, 16, 16, 128>}, {pipeline_mode = #tpu.pipeline_mode<synchronous>, transform_indices = @transform_7, window_bounds = array<i64: 4, 16, 16>}, {pipeline_mode = #tpu.pipeline_mode<synchronous>, transform_indices = @transform_8, window_bounds = array<i64: 4, 16, 1>}, {pipeline_mode = #tpu.pipeline_mode<synchronous>, transform_indices = @transform_9, window_bounds = array<i64: 128, 16>}, {pipeline_mode = #tpu.pipeline_mode<synchronous>, transform_indices = @transform_10, window_bounds = array<i64: 128, 1>}, {pipeline_mode = #tpu.pipeline_mode<synchronous>, transform_indices = @transform_11, window_bounds = array<i64: 1, 128>}, {pipeline_mode = #tpu.pipeline_mode<synchronous>, transform_indices = @transform_12, window_bounds = array<i64: 1, 1>}, {transform_indices = @transform_13, window_bounds = array<i64: 1, 1, 640>}]} {
    %c0 = arith.constant 0 : index
    %c0_0 = arith.constant 0 : index
    %0 = vector.load %arg5[%c0, %c0_0] : memref<16x3xbf16, #tpu.memory_space<vmem>>, vector<16x3xbf16>
    %c0_1 = arith.constant 0 : index
    %c0_2 = arith.constant 0 : index
    %c0_3 = arith.constant 0 : index
    %1 = vector.load %arg1[%c0_1, %c0_2, %c0_3] : memref<1x3x640xf32, #tpu.memory_space<vmem>>, vector<1x3x640xf32>
    %2 = vector.shape_cast %1 : vector<1x3x640xf32> to vector<3x640xf32>
    %3 = arith.truncf %2 : vector<3x640xf32> to vector<3x640xbf16>
    %cst = arith.constant dense<0.000000e+00> : vector<16x640xf32>
    %4 = tpu.matmul %0, %3, %cst {dimension_numbers = #tpu.dot_dimension_numbers<[1], [0], [0], [1], [0, 0, 1, 1], [], []>} : vector<16x3xbf16>, vector<3x640xbf16>, vector<16x640xf32> -> vector<16x640xf32>
    %c0_4 = arith.constant 0 : index
    %c0_5 = arith.constant 0 : index
    %5 = vector.load %arg6[%c0_4, %c0_5] : memref<16x1xf32, #tpu.memory_space<vmem>>, vector<16x1xf32>
    %6 = vector.broadcast %5 : vector<16x1xf32> to vector<16x640xf32>
    %7 = arith.addf %4, %6 : vector<16x640xf32>
    %c0_6 = arith.constant 0 : index
    %c0_7 = arith.constant 0 : index
    %8 = vector.load %arg2[%c0_6, %c0_7] : memref<1x640xf32, #tpu.memory_space<vmem>>, vector<1x640xf32>
    %9 = vector.broadcast %8 : vector<1x640xf32> to vector<16x640xf32>
    %10 = arith.mulf %7, %9 : vector<16x640xf32>
    %c0_8 = arith.constant 0 : index
    %c0_9 = arith.constant 0 : index
    %11 = vector.load %arg4[%c0_8, %c0_9] : memref<64x640xbf16, #tpu.memory_space<vmem>>, vector<64x640xbf16>
    %c0_10 = arith.constant 0 : index
    %c0_11 = arith.constant 0 : index
    %12 = vector.load %arg15[%c0_10, %c0_11] : memref<80x640xbf16, #tpu.memory_space<vmem>>, vector<64x640xbf16>
    tpu.vector_store %arg15[%c0_10, %c0_11], %11 {strides = array<i32>} : memref<80x640xbf16, #tpu.memory_space<vmem>>, vector<64x640xbf16>,
    %c0_12 = arith.constant 0 : index
    %c0_13 = arith.constant 0 : index
    %13 = vector.load %arg3[%c0_12, %c0_13] : memref<640x128xbf16, #tpu.memory_space<vmem>>, vector<640x128xbf16>
    %14 = arith.truncf %10 : vector<16x640xf32> to vector<16x640xbf16>
    %c64 = arith.constant 64 : index
    %c0_14 = arith.constant 0 : index
    %15 = vector.load %arg15[%c64, %c0_14] : memref<80x640xbf16, #tpu.memory_space<vmem>>, vector<16x640xbf16>
    tpu.vector_store %arg15[%c64, %c0_14], %14 {strides = array<i32>} : memref<80x640xbf16, #tpu.memory_space<vmem>>, vector<16x640xbf16>,
    %cst_15 = arith.constant dense<0.000000e+00> : vector<16x128xf32>
    %16 = tpu.matmul %14, %13, %cst_15 {dimension_numbers = #tpu.dot_dimension_numbers<[1], [0], [0], [1], [0, 0, 1, 1], [], []>} : vector<16x640xbf16>, vector<640x128xbf16>, vector<16x128xf32> -> vector<16x128xf32>
    %c0_16 = arith.constant 0 : index
    %c0_17 = arith.constant 0 : index
    %c0_18 = arith.constant 0 : index
    %c0_19 = arith.constant 0 : index
    %17 = vector.load %arg7[%c0_16, %c0_17, %c0_18, %c0_19] : memref<4x16x16x128xf32, #tpu.memory_space<vmem>>, vector<1x16x16x128xf32>
    %18 = vector.shape_cast %17 : vector<1x16x16x128xf32> to vector<16x16x128xf32>
    %19 = vector.shape_cast %16 : vector<16x128xf32> to vector<1x16x128xf32>
    %20 = vector.broadcast %19 : vector<1x16x128xf32> to vector<16x16x128xf32>
    %21 = arith.mulf %20, %18 : vector<16x16x128xf32>
    %cst_20 = arith.constant dense<0.000000e+00> : vector<16x128xf32>
    %22 = vector.multi_reduction <add>, %21, %cst_20 [1] : vector<16x16x128xf32> to vector<16x128xf32>
    %23 = vector.extract_strided_slice %22 {offsets = [0, 0], sizes = [16, 64], strides = [1, 1]} : vector<16x128xf32> to vector<16x64xf32>
    %24 = vector.extract_strided_slice %22 {offsets = [0, 64], sizes = [16, 64], strides = [1, 1]} : vector<16x128xf32> to vector<16x64xf32>
    %25 = arith.addf %23, %24 : vector<16x64xf32>
    %c0_21 = arith.constant 0 : index
    %c0_22 = arith.constant 0 : index
    %c0_23 = arith.constant 0 : index
    %26 = vector.load %arg8[%c0_21, %c0_22, %c0_23] : memref<4x16x16xf32, #tpu.memory_space<vmem>>, vector<1x16x16xf32>
    %27 = vector.shape_cast %26 : vector<1x16x16xf32> to vector<16x16xf32>
    %28 = tpu.concatenate %25, %27 in 1 : vector<16x64xf32>, vector<16x16xf32> -> vector<16x80xf32>
    %29 = arith.truncf %28 : vector<16x80xf32> to vector<16x80xbf16>
    %c0_24 = arith.constant 0 : index
    %c0_25 = arith.constant 0 : index
    %30 = vector.load %arg15[%c0_24, %c0_25] : memref<80x640xbf16, #tpu.memory_space<vmem>>, vector<80x640xbf16>
    %cst_26 = arith.constant dense<0.000000e+00> : vector<16x640xf32>
    %31 = tpu.matmul %29, %30, %cst_26 {dimension_numbers = #tpu.dot_dimension_numbers<[1], [0], [0], [1], [0, 0, 1, 1], [], []>} : vector<16x80xbf16>, vector<80x640xbf16>, vector<16x640xf32> -> vector<16x640xf32>
    %c0_27 = arith.constant 0 : index
    %c0_28 = arith.constant 0 : index
    %c0_29 = arith.constant 0 : index
    %32 = vector.load %arg9[%c0_27, %c0_28, %c0_29] : memref<4x16x1xf32, #tpu.memory_space<vmem>>, vector<1x16x1xf32>
    %33 = vector.shape_cast %32 : vector<1x16x1xf32> to vector<16x1xf32>
    %34 = vector.broadcast %33 : vector<16x1xf32> to vector<16x640xf32>
    %35 = arith.addf %31, %34 : vector<16x640xf32>
    %cst_30 = arith.constant 5.000000e-01 : f32
    %36 = vector.broadcast %cst_30 : f32 to vector<16x640xf32>
    %37 = arith.mulf %36, %35 : vector<16x640xf32>
    %cst_31 = arith.constant 0.707106769 : f32
    %38 = vector.broadcast %cst_31 : f32 to vector<16x640xf32>
    %39 = arith.mulf %35, %38 : vector<16x640xf32>
    %cst_32 = arith.constant 0.000000e+00 : f32
    %40 = vector.broadcast %cst_32 : f32 to vector<16x640xf32>
    %41 = arith.cmpf oge, %39, %40 : vector<16x640xf32>
    %cst_33 = arith.constant 1.000000e+00 : f32
    %cst_34 = arith.constant -1.000000e+00 : f32
    %42 = vector.broadcast %cst_33 : f32 to vector<16x640xf32>
    %43 = vector.broadcast %cst_34 : f32 to vector<16x640xf32>
    %44 = arith.select %41, %42, %43 : vector<16x640xi1>, vector<16x640xf32>
    %45 = math.absf %39 : vector<16x640xf32>
    %cst_35 = arith.constant 0.327591091 : f32
    %46 = vector.broadcast %cst_35 : f32 to vector<16x640xf32>
    %47 = arith.mulf %46, %45 : vector<16x640xf32>
    %cst_36 = arith.constant 1.000000e+00 : f32
    %48 = vector.broadcast %cst_36 : f32 to vector<16x640xf32>
    %49 = arith.addf %48, %47 : vector<16x640xf32>
    %50 = tpu.reciprocal %49 {approx = true} : vector<16x640xf32> -> vector<16x640xf32>
    %cst_37 = arith.constant 1.06140542 : f32
    %51 = vector.broadcast %cst_37 : f32 to vector<16x640xf32>
    %52 = arith.mulf %50, %51 : vector<16x640xf32>
    %cst_38 = arith.constant -1.45315206 : f32
    %53 = vector.broadcast %cst_38 : f32 to vector<16x640xf32>
    %54 = arith.addf %53, %52 : vector<16x640xf32>
    %55 = arith.mulf %50, %54 : vector<16x640xf32>
    %cst_39 = arith.constant 1.42141378 : f32
    %56 = vector.broadcast %cst_39 : f32 to vector<16x640xf32>
    %57 = arith.addf %56, %55 : vector<16x640xf32>
    %58 = arith.mulf %50, %57 : vector<16x640xf32>
    %cst_40 = arith.constant -0.284496725 : f32
    %59 = vector.broadcast %cst_40 : f32 to vector<16x640xf32>
    %60 = arith.addf %59, %58 : vector<16x640xf32>
    %61 = arith.mulf %50, %60 : vector<16x640xf32>
    %cst_41 = arith.constant 0.254829586 : f32
    %62 = vector.broadcast %cst_41 : f32 to vector<16x640xf32>
    %63 = arith.addf %62, %61 : vector<16x640xf32>
    %64 = arith.mulf %50, %63 : vector<16x640xf32>
    %cst_42 = arith.constant 0.000000e+00 : f32
    %65 = vector.broadcast %cst_42 : f32 to vector<16x640xf32>
    %66 = arith.subf %65, %45 : vector<16x640xf32>
    %67 = arith.mulf %66, %45 : vector<16x640xf32>
    %68 = math.exp %67 : vector<16x640xf32>
    %69 = arith.mulf %64, %68 : vector<16x640xf32>
    %cst_43 = arith.constant 1.000000e+00 : f32
    %70 = vector.broadcast %cst_43 : f32 to vector<16x640xf32>
    %71 = arith.subf %70, %69 : vector<16x640xf32>
    %72 = arith.mulf %44, %71 : vector<16x640xf32>
    %cst_44 = arith.constant 1.000000e+00 : f32
    %73 = vector.broadcast %cst_44 : f32 to vector<16x640xf32>
    %74 = arith.addf %73, %72 : vector<16x640xf32>
    %75 = arith.mulf %37, %74 : vector<16x640xf32>
    %76 = arith.truncf %75 : vector<16x640xf32> to vector<16x640xbf16>
    %c64_45 = arith.constant 64 : index
    %c0_46 = arith.constant 0 : index
    %77 = vector.load %arg15[%c64_45, %c0_46] : memref<80x640xbf16, #tpu.memory_space<vmem>>, vector<16x640xbf16>
    tpu.vector_store %arg15[%c64_45, %c0_46], %76 {strides = array<i32>} : memref<80x640xbf16, #tpu.memory_space<vmem>>, vector<16x640xbf16>,
    %cst_47 = arith.constant dense<0.000000e+00> : vector<16x128xf32>
    %78 = tpu.matmul %76, %13, %cst_47 {dimension_numbers = #tpu.dot_dimension_numbers<[1], [0], [0], [1], [0, 0, 1, 1], [], []>} : vector<16x640xbf16>, vector<640x128xbf16>, vector<16x128xf32> -> vector<16x128xf32>
    %c1 = arith.constant 1 : index
    %c0_48 = arith.constant 0 : index
    %c0_49 = arith.constant 0 : index
    %c0_50 = arith.constant 0 : index
    %79 = vector.load %arg7[%c1, %c0_48, %c0_49, %c0_50] : memref<4x16x16x128xf32, #tpu.memory_space<vmem>>, vector<1x16x16x128xf32>
    %80 = vector.shape_cast %79 : vector<1x16x16x128xf32> to vector<16x16x128xf32>
    %81 = vector.shape_cast %78 : vector<16x128xf32> to vector<1x16x128xf32>
    %82 = vector.broadcast %81 : vector<1x16x128xf32> to vector<16x16x128xf32>
    %83 = arith.mulf %82, %80 : vector<16x16x128xf32>
    %cst_51 = arith.constant dense<0.000000e+00> : vector<16x128xf32>
    %84 = vector.multi_reduction <add>, %83, %cst_51 [1] : vector<16x16x128xf32> to vector<16x128xf32>
    %85 = vector.extract_strided_slice %84 {offsets = [0, 0], sizes = [16, 64], strides = [1, 1]} : vector<16x128xf32> to vector<16x64xf32>
    %86 = vector.extract_strided_slice %84 {offsets = [0, 64], sizes = [16, 64], strides = [1, 1]} : vector<16x128xf32> to vector<16x64xf32>
    %87 = arith.addf %85, %86 : vector<16x64xf32>
    %c1_52 = arith.constant 1 : index
    %c0_53 = arith.constant 0 : index
    %c0_54 = arith.constant 0 : index
    %88 = vector.load %arg8[%c1_52, %c0_53, %c0_54] : memref<4x16x16xf32, #tpu.memory_space<vmem>>, vector<1x16x16xf32>
    %89 = vector.shape_cast %88 : vector<1x16x16xf32> to vector<16x16xf32>
    %90 = tpu.concatenate %87, %89 in 1 : vector<16x64xf32>, vector<16x16xf32> -> vector<16x80xf32>
    %91 = arith.truncf %90 : vector<16x80xf32> to vector<16x80xbf16>
    %c0_55 = arith.constant 0 : index
    %c0_56 = arith.constant 0 : index
    %92 = vector.load %arg15[%c0_55, %c0_56] : memref<80x640xbf16, #tpu.memory_space<vmem>>, vector<80x640xbf16>
    %cst_57 = arith.constant dense<0.000000e+00> : vector<16x640xf32>
    %93 = tpu.matmul %91, %92, %cst_57 {dimension_numbers = #tpu.dot_dimension_numbers<[1], [0], [0], [1], [0, 0, 1, 1], [], []>} : vector<16x80xbf16>, vector<80x640xbf16>, vector<16x640xf32> -> vector<16x640xf32>
    %c1_58 = arith.constant 1 : index
    %c0_59 = arith.constant 0 : index
    %c0_60 = arith.constant 0 : index
    %94 = vector.load %arg9[%c1_58, %c0_59, %c0_60] : memref<4x16x1xf32, #tpu.memory_space<vmem>>, vector<1x16x1xf32>
    %95 = vector.shape_cast %94 : vector<1x16x1xf32> to vector<16x1xf32>
    %96 = vector.broadcast %95 : vector<16x1xf32> to vector<16x640xf32>
    %97 = arith.addf %93, %96 : vector<16x640xf32>
    %cst_61 = arith.constant 5.000000e-01 : f32
    %98 = vector.broadcast %cst_61 : f32 to vector<16x640xf32>
    %99 = arith.mulf %98, %97 : vector<16x640xf32>
    %cst_62 = arith.constant 0.707106769 : f32
    %100 = vector.broadcast %cst_62 : f32 to vector<16x640xf32>
    %101 = arith.mulf %97, %100 : vector<16x640xf32>
    %cst_63 = arith.constant 0.000000e+00 : f32
    %102 = vector.broadcast %cst_63 : f32 to vector<16x640xf32>
    %103 = arith.cmpf oge, %101, %102 : vector<16x640xf32>
    %cst_64 = arith.constant 1.000000e+00 : f32
    %cst_65 = arith.constant -1.000000e+00 : f32
    %104 = vector.broadcast %cst_64 : f32 to vector<16x640xf32>
    %105 = vector.broadcast %cst_65 : f32 to vector<16x640xf32>
    %106 = arith.select %103, %104, %105 : vector<16x640xi1>, vector<16x640xf32>
    %107 = math.absf %101 : vector<16x640xf32>
    %cst_66 = arith.constant 0.327591091 : f32
    %108 = vector.broadcast %cst_66 : f32 to vector<16x640xf32>
    %109 = arith.mulf %108, %107 : vector<16x640xf32>
    %cst_67 = arith.constant 1.000000e+00 : f32
    %110 = vector.broadcast %cst_67 : f32 to vector<16x640xf32>
    %111 = arith.addf %110, %109 : vector<16x640xf32>
    %112 = tpu.reciprocal %111 {approx = true} : vector<16x640xf32> -> vector<16x640xf32>
    %cst_68 = arith.constant 1.06140542 : f32
    %113 = vector.broadcast %cst_68 : f32 to vector<16x640xf32>
    %114 = arith.mulf %112, %113 : vector<16x640xf32>
    %cst_69 = arith.constant -1.45315206 : f32
    %115 = vector.broadcast %cst_69 : f32 to vector<16x640xf32>
    %116 = arith.addf %115, %114 : vector<16x640xf32>
    %117 = arith.mulf %112, %116 : vector<16x640xf32>
    %cst_70 = arith.constant 1.42141378 : f32
    %118 = vector.broadcast %cst_70 : f32 to vector<16x640xf32>
    %119 = arith.addf %118, %117 : vector<16x640xf32>
    %120 = arith.mulf %112, %119 : vector<16x640xf32>
    %cst_71 = arith.constant -0.284496725 : f32
    %121 = vector.broadcast %cst_71 : f32 to vector<16x640xf32>
    %122 = arith.addf %121, %120 : vector<16x640xf32>
    %123 = arith.mulf %112, %122 : vector<16x640xf32>
    %cst_72 = arith.constant 0.254829586 : f32
    %124 = vector.broadcast %cst_72 : f32 to vector<16x640xf32>
    %125 = arith.addf %124, %123 : vector<16x640xf32>
    %126 = arith.mulf %112, %125 : vector<16x640xf32>
    %cst_73 = arith.constant 0.000000e+00 : f32
    %127 = vector.broadcast %cst_73 : f32 to vector<16x640xf32>
    %128 = arith.subf %127, %107 : vector<16x640xf32>
    %129 = arith.mulf %128, %107 : vector<16x640xf32>
    %130 = math.exp %129 : vector<16x640xf32>
    %131 = arith.mulf %126, %130 : vector<16x640xf32>
    %cst_74 = arith.constant 1.000000e+00 : f32
    %132 = vector.broadcast %cst_74 : f32 to vector<16x640xf32>
    %133 = arith.subf %132, %131 : vector<16x640xf32>
    %134 = arith.mulf %106, %133 : vector<16x640xf32>
    %cst_75 = arith.constant 1.000000e+00 : f32
    %135 = vector.broadcast %cst_75 : f32 to vector<16x640xf32>
    %136 = arith.addf %135, %134 : vector<16x640xf32>
    %137 = arith.mulf %99, %136 : vector<16x640xf32>
    %138 = arith.truncf %137 : vector<16x640xf32> to vector<16x640xbf16>
    %c64_76 = arith.constant 64 : index
    %c0_77 = arith.constant 0 : index
    %139 = vector.load %arg15[%c64_76, %c0_77] : memref<80x640xbf16, #tpu.memory_space<vmem>>, vector<16x640xbf16>
    tpu.vector_store %arg15[%c64_76, %c0_77], %138 {strides = array<i32>} : memref<80x640xbf16, #tpu.memory_space<vmem>>, vector<16x640xbf16>,
    %cst_78 = arith.constant dense<0.000000e+00> : vector<16x128xf32>
    %140 = tpu.matmul %138, %13, %cst_78 {dimension_numbers = #tpu.dot_dimension_numbers<[1], [0], [0], [1], [0, 0, 1, 1], [], []>} : vector<16x640xbf16>, vector<640x128xbf16>, vector<16x128xf32> -> vector<16x128xf32>
    %c2 = arith.constant 2 : index
    %c0_79 = arith.constant 0 : index
    %c0_80 = arith.constant 0 : index
    %c0_81 = arith.constant 0 : index
    %141 = vector.load %arg7[%c2, %c0_79, %c0_80, %c0_81] : memref<4x16x16x128xf32, #tpu.memory_space<vmem>>, vector<1x16x16x128xf32>
    %142 = vector.shape_cast %141 : vector<1x16x16x128xf32> to vector<16x16x128xf32>
    %143 = vector.shape_cast %140 : vector<16x128xf32> to vector<1x16x128xf32>
    %144 = vector.broadcast %143 : vector<1x16x128xf32> to vector<16x16x128xf32>
    %145 = arith.mulf %144, %142 : vector<16x16x128xf32>
    %cst_82 = arith.constant dense<0.000000e+00> : vector<16x128xf32>
    %146 = vector.multi_reduction <add>, %145, %cst_82 [1] : vector<16x16x128xf32> to vector<16x128xf32>
    %147 = vector.extract_strided_slice %146 {offsets = [0, 0], sizes = [16, 64], strides = [1, 1]} : vector<16x128xf32> to vector<16x64xf32>
    %148 = vector.extract_strided_slice %146 {offsets = [0, 64], sizes = [16, 64], strides = [1, 1]} : vector<16x128xf32> to vector<16x64xf32>
    %149 = arith.addf %147, %148 : vector<16x64xf32>
    %c2_83 = arith.constant 2 : index
    %c0_84 = arith.constant 0 : index
    %c0_85 = arith.constant 0 : index
    %150 = vector.load %arg8[%c2_83, %c0_84, %c0_85] : memref<4x16x16xf32, #tpu.memory_space<vmem>>, vector<1x16x16xf32>
    %151 = vector.shape_cast %150 : vector<1x16x16xf32> to vector<16x16xf32>
    %152 = tpu.concatenate %149, %151 in 1 : vector<16x64xf32>, vector<16x16xf32> -> vector<16x80xf32>
    %153 = arith.truncf %152 : vector<16x80xf32> to vector<16x80xbf16>
    %c0_86 = arith.constant 0 : index
    %c0_87 = arith.constant 0 : index
    %154 = vector.load %arg15[%c0_86, %c0_87] : memref<80x640xbf16, #tpu.memory_space<vmem>>, vector<80x640xbf16>
    %cst_88 = arith.constant dense<0.000000e+00> : vector<16x640xf32>
    %155 = tpu.matmul %153, %154, %cst_88 {dimension_numbers = #tpu.dot_dimension_numbers<[1], [0], [0], [1], [0, 0, 1, 1], [], []>} : vector<16x80xbf16>, vector<80x640xbf16>, vector<16x640xf32> -> vector<16x640xf32>
    %c2_89 = arith.constant 2 : index
    %c0_90 = arith.constant 0 : index
    %c0_91 = arith.constant 0 : index
    %156 = vector.load %arg9[%c2_89, %c0_90, %c0_91] : memref<4x16x1xf32, #tpu.memory_space<vmem>>, vector<1x16x1xf32>
    %157 = vector.shape_cast %156 : vector<1x16x1xf32> to vector<16x1xf32>
    %158 = vector.broadcast %157 : vector<16x1xf32> to vector<16x640xf32>
    %159 = arith.addf %155, %158 : vector<16x640xf32>
    %cst_92 = arith.constant 5.000000e-01 : f32
    %160 = vector.broadcast %cst_92 : f32 to vector<16x640xf32>
    %161 = arith.mulf %160, %159 : vector<16x640xf32>
    %cst_93 = arith.constant 0.707106769 : f32
    %162 = vector.broadcast %cst_93 : f32 to vector<16x640xf32>
    %163 = arith.mulf %159, %162 : vector<16x640xf32>
    %cst_94 = arith.constant 0.000000e+00 : f32
    %164 = vector.broadcast %cst_94 : f32 to vector<16x640xf32>
    %165 = arith.cmpf oge, %163, %164 : vector<16x640xf32>
    %cst_95 = arith.constant 1.000000e+00 : f32
    %cst_96 = arith.constant -1.000000e+00 : f32
    %166 = vector.broadcast %cst_95 : f32 to vector<16x640xf32>
    %167 = vector.broadcast %cst_96 : f32 to vector<16x640xf32>
    %168 = arith.select %165, %166, %167 : vector<16x640xi1>, vector<16x640xf32>
    %169 = math.absf %163 : vector<16x640xf32>
    %cst_97 = arith.constant 0.327591091 : f32
    %170 = vector.broadcast %cst_97 : f32 to vector<16x640xf32>
    %171 = arith.mulf %170, %169 : vector<16x640xf32>
    %cst_98 = arith.constant 1.000000e+00 : f32
    %172 = vector.broadcast %cst_98 : f32 to vector<16x640xf32>
    %173 = arith.addf %172, %171 : vector<16x640xf32>
    %174 = tpu.reciprocal %173 {approx = true} : vector<16x640xf32> -> vector<16x640xf32>
    %cst_99 = arith.constant 1.06140542 : f32
    %175 = vector.broadcast %cst_99 : f32 to vector<16x640xf32>
    %176 = arith.mulf %174, %175 : vector<16x640xf32>
    %cst_100 = arith.constant -1.45315206 : f32
    %177 = vector.broadcast %cst_100 : f32 to vector<16x640xf32>
    %178 = arith.addf %177, %176 : vector<16x640xf32>
    %179 = arith.mulf %174, %178 : vector<16x640xf32>
    %cst_101 = arith.constant 1.42141378 : f32
    %180 = vector.broadcast %cst_101 : f32 to vector<16x640xf32>
    %181 = arith.addf %180, %179 : vector<16x640xf32>
    %182 = arith.mulf %174, %181 : vector<16x640xf32>
    %cst_102 = arith.constant -0.284496725 : f32
    %183 = vector.broadcast %cst_102 : f32 to vector<16x640xf32>
    %184 = arith.addf %183, %182 : vector<16x640xf32>
    %185 = arith.mulf %174, %184 : vector<16x640xf32>
    %cst_103 = arith.constant 0.254829586 : f32
    %186 = vector.broadcast %cst_103 : f32 to vector<16x640xf32>
    %187 = arith.addf %186, %185 : vector<16x640xf32>
    %188 = arith.mulf %174, %187 : vector<16x640xf32>
    %cst_104 = arith.constant 0.000000e+00 : f32
    %189 = vector.broadcast %cst_104 : f32 to vector<16x640xf32>
    %190 = arith.subf %189, %169 : vector<16x640xf32>
    %191 = arith.mulf %190, %169 : vector<16x640xf32>
    %192 = math.exp %191 : vector<16x640xf32>
    %193 = arith.mulf %188, %192 : vector<16x640xf32>
    %cst_105 = arith.constant 1.000000e+00 : f32
    %194 = vector.broadcast %cst_105 : f32 to vector<16x640xf32>
    %195 = arith.subf %194, %193 : vector<16x640xf32>
    %196 = arith.mulf %168, %195 : vector<16x640xf32>
    %cst_106 = arith.constant 1.000000e+00 : f32
    %197 = vector.broadcast %cst_106 : f32 to vector<16x640xf32>
    %198 = arith.addf %197, %196 : vector<16x640xf32>
    %199 = arith.mulf %161, %198 : vector<16x640xf32>
    %200 = arith.truncf %199 : vector<16x640xf32> to vector<16x640xbf16>
    %c64_107 = arith.constant 64 : index
    %c0_108 = arith.constant 0 : index
    %201 = vector.load %arg15[%c64_107, %c0_108] : memref<80x640xbf16, #tpu.memory_space<vmem>>, vector<16x640xbf16>
    tpu.vector_store %arg15[%c64_107, %c0_108], %200 {strides = array<i32>} : memref<80x640xbf16, #tpu.memory_space<vmem>>, vector<16x640xbf16>,
    %cst_109 = arith.constant dense<0.000000e+00> : vector<16x128xf32>
    %202 = tpu.matmul %200, %13, %cst_109 {dimension_numbers = #tpu.dot_dimension_numbers<[1], [0], [0], [1], [0, 0, 1, 1], [], []>} : vector<16x640xbf16>, vector<640x128xbf16>, vector<16x128xf32> -> vector<16x128xf32>
    %c3 = arith.constant 3 : index
    %c0_110 = arith.constant 0 : index
    %c0_111 = arith.constant 0 : index
    %c0_112 = arith.constant 0 : index
    %203 = vector.load %arg7[%c3, %c0_110, %c0_111, %c0_112] : memref<4x16x16x128xf32, #tpu.memory_space<vmem>>, vector<1x16x16x128xf32>
    %204 = vector.shape_cast %203 : vector<1x16x16x128xf32> to vector<16x16x128xf32>
    %205 = vector.shape_cast %202 : vector<16x128xf32> to vector<1x16x128xf32>
    %206 = vector.broadcast %205 : vector<1x16x128xf32> to vector<16x16x128xf32>
    %207 = arith.mulf %206, %204 : vector<16x16x128xf32>
    %cst_113 = arith.constant dense<0.000000e+00> : vector<16x128xf32>
    %208 = vector.multi_reduction <add>, %207, %cst_113 [1] : vector<16x16x128xf32> to vector<16x128xf32>
    %209 = vector.extract_strided_slice %208 {offsets = [0, 0], sizes = [16, 64], strides = [1, 1]} : vector<16x128xf32> to vector<16x64xf32>
    %210 = vector.extract_strided_slice %208 {offsets = [0, 64], sizes = [16, 64], strides = [1, 1]} : vector<16x128xf32> to vector<16x64xf32>
    %211 = arith.addf %209, %210 : vector<16x64xf32>
    %c3_114 = arith.constant 3 : index
    %c0_115 = arith.constant 0 : index
    %c0_116 = arith.constant 0 : index
    %212 = vector.load %arg8[%c3_114, %c0_115, %c0_116] : memref<4x16x16xf32, #tpu.memory_space<vmem>>, vector<1x16x16xf32>
    %213 = vector.shape_cast %212 : vector<1x16x16xf32> to vector<16x16xf32>
    %214 = tpu.concatenate %211, %213 in 1 : vector<16x64xf32>, vector<16x16xf32> -> vector<16x80xf32>
    %215 = arith.truncf %214 : vector<16x80xf32> to vector<16x80xbf16>
    %c0_117 = arith.constant 0 : index
    %c0_118 = arith.constant 0 : index
    %216 = vector.load %arg15[%c0_117, %c0_118] : memref<80x640xbf16, #tpu.memory_space<vmem>>, vector<80x640xbf16>
    %cst_119 = arith.constant dense<0.000000e+00> : vector<16x640xf32>
    %217 = tpu.matmul %215, %216, %cst_119 {dimension_numbers = #tpu.dot_dimension_numbers<[1], [0], [0], [1], [0, 0, 1, 1], [], []>} : vector<16x80xbf16>, vector<80x640xbf16>, vector<16x640xf32> -> vector<16x640xf32>
    %c3_120 = arith.constant 3 : index
    %c0_121 = arith.constant 0 : index
    %c0_122 = arith.constant 0 : index
    %218 = vector.load %arg9[%c3_120, %c0_121, %c0_122] : memref<4x16x1xf32, #tpu.memory_space<vmem>>, vector<1x16x1xf32>
    %219 = vector.shape_cast %218 : vector<1x16x1xf32> to vector<16x1xf32>
    %220 = vector.broadcast %219 : vector<16x1xf32> to vector<16x640xf32>
    %221 = arith.addf %217, %220 : vector<16x640xf32>
    %c0_123 = arith.constant 0 : index
    %c0_124 = arith.constant 0 : index
    %222 = vector.load %arg10[%c0_123, %c0_124] : memref<128x16xbf16, #tpu.memory_space<vmem>>, vector<128x16xbf16>
    %c0_125 = arith.constant 0 : index
    %c0_126 = arith.constant 0 : index
    %223 = vector.load %arg12[%c0_125, %c0_126] : memref<1x128xbf16, #tpu.memory_space<vmem>>, vector<1x128xbf16>
    %224 = arith.truncf %221 : vector<16x640xf32> to vector<16x640xbf16>
    %cst_127 = arith.constant dense<0.000000e+00> : vector<128x640xf32>
    %225 = tpu.matmul %222, %224, %cst_127 {dimension_numbers = #tpu.dot_dimension_numbers<[1], [0], [0], [1], [0, 0, 1, 1], [], []>} : vector<128x16xbf16>, vector<16x640xbf16>, vector<128x640xf32> -> vector<128x640xf32>
    %c0_128 = arith.constant 0 : index
    %c0_129 = arith.constant 0 : index
    %226 = vector.load %arg11[%c0_128, %c0_129] : memref<128x1xf32, #tpu.memory_space<vmem>>, vector<128x1xf32>
    %227 = vector.broadcast %226 : vector<128x1xf32> to vector<128x640xf32>
    %228 = arith.addf %225, %227 : vector<128x640xf32>
    %cst_130 = arith.constant 5.000000e-01 : f32
    %229 = vector.broadcast %cst_130 : f32 to vector<128x640xf32>
    %230 = arith.mulf %229, %228 : vector<128x640xf32>
    %cst_131 = arith.constant 0.707106769 : f32
    %231 = vector.broadcast %cst_131 : f32 to vector<128x640xf32>
    %232 = arith.mulf %228, %231 : vector<128x640xf32>
    %cst_132 = arith.constant 0.000000e+00 : f32
    %233 = vector.broadcast %cst_132 : f32 to vector<128x640xf32>
    %234 = arith.cmpf oge, %232, %233 : vector<128x640xf32>
    %cst_133 = arith.constant 1.000000e+00 : f32
    %cst_134 = arith.constant -1.000000e+00 : f32
    %235 = vector.broadcast %cst_133 : f32 to vector<128x640xf32>
    %236 = vector.broadcast %cst_134 : f32 to vector<128x640xf32>
    %237 = arith.select %234, %235, %236 : vector<128x640xi1>, vector<128x640xf32>
    %238 = math.absf %232 : vector<128x640xf32>
    %cst_135 = arith.constant 0.327591091 : f32
    %239 = vector.broadcast %cst_135 : f32 to vector<128x640xf32>
    %240 = arith.mulf %239, %238 : vector<128x640xf32>
    %cst_136 = arith.constant 1.000000e+00 : f32
    %241 = vector.broadcast %cst_136 : f32 to vector<128x640xf32>
    %242 = arith.addf %241, %240 : vector<128x640xf32>
    %243 = tpu.reciprocal %242 {approx = true} : vector<128x640xf32> -> vector<128x640xf32>
    %cst_137 = arith.constant 1.06140542 : f32
    %244 = vector.broadcast %cst_137 : f32 to vector<128x640xf32>
    %245 = arith.mulf %243, %244 : vector<128x640xf32>
    %cst_138 = arith.constant -1.45315206 : f32
    %246 = vector.broadcast %cst_138 : f32 to vector<128x640xf32>
    %247 = arith.addf %246, %245 : vector<128x640xf32>
    %248 = arith.mulf %243, %247 : vector<128x640xf32>
    %cst_139 = arith.constant 1.42141378 : f32
    %249 = vector.broadcast %cst_139 : f32 to vector<128x640xf32>
    %250 = arith.addf %249, %248 : vector<128x640xf32>
    %251 = arith.mulf %243, %250 : vector<128x640xf32>
    %cst_140 = arith.constant -0.284496725 : f32
    %252 = vector.broadcast %cst_140 : f32 to vector<128x640xf32>
    %253 = arith.addf %252, %251 : vector<128x640xf32>
    %254 = arith.mulf %243, %253 : vector<128x640xf32>
    %cst_141 = arith.constant 0.254829586 : f32
    %255 = vector.broadcast %cst_141 : f32 to vector<128x640xf32>
    %256 = arith.addf %255, %254 : vector<128x640xf32>
    %257 = arith.mulf %243, %256 : vector<128x640xf32>
    %cst_142 = arith.constant 0.000000e+00 : f32
    %258 = vector.broadcast %cst_142 : f32 to vector<128x640xf32>
    %259 = arith.subf %258, %238 : vector<128x640xf32>
    %260 = arith.mulf %259, %238 : vector<128x640xf32>
    %261 = math.exp %260 : vector<128x640xf32>
    %262 = arith.mulf %257, %261 : vector<128x640xf32>
    %cst_143 = arith.constant 1.000000e+00 : f32
    %263 = vector.broadcast %cst_143 : f32 to vector<128x640xf32>
    %264 = arith.subf %263, %262 : vector<128x640xf32>
    %265 = arith.mulf %237, %264 : vector<128x640xf32>
    %cst_144 = arith.constant 1.000000e+00 : f32
    %266 = vector.broadcast %cst_144 : f32 to vector<128x640xf32>
    %267 = arith.addf %266, %265 : vector<128x640xf32>
    %268 = arith.mulf %230, %267 : vector<128x640xf32>
    %269 = arith.truncf %268 : vector<128x640xf32> to vector<128x640xbf16>
    %cst_145 = arith.constant dense<0.000000e+00> : vector<1x640xf32>
    %270 = tpu.matmul %223, %269, %cst_145 {dimension_numbers = #tpu.dot_dimension_numbers<[1], [0], [0], [1], [0, 0, 1, 1], [], []>} : vector<1x128xbf16>, vector<128x640xbf16>, vector<1x640xf32> -> vector<1x640xf32>
    %c0_146 = arith.constant 0 : index
    %c0_147 = arith.constant 0 : index
    %271 = vector.load %arg13[%c0_146, %c0_147] : memref<1x1xf32, #tpu.memory_space<vmem>>, vector<1x1xf32>
    %272 = vector.broadcast %271 : vector<1x1xf32> to vector<1x640xf32>
    %273 = arith.addf %270, %272 : vector<1x640xf32>
    %c0_148 = arith.constant 0 : index
    %c0_149 = arith.constant 0 : index
    %c0_150 = arith.constant 0 : index
    %274 = vector.load %arg14[%c0_148, %c0_149, %c0_150] : memref<1x1x640xf32, #tpu.memory_space<vmem>>, vector<1x1x640xf32>
    %275 = vector.shape_cast %274 : vector<1x1x640xf32> to vector<1x640xf32>
    %276 = vector.shape_cast %273 : vector<1x640xf32> to vector<1x1x640xf32>
    tpu.vector_store %arg14[%c0_148, %c0_149, %c0_150], %276 {strides = array<i32>} : memref<1x1x640xf32, #tpu.memory_space<vmem>>, vector<1x1x640xf32>,
    return
  }
  func.func @transform_0(%arg0: i32) -> (i32, i32, i32) {
    %c0_i32 = arith.constant 0 : i32
    %c0_i32_0 = arith.constant 0 : i32
    %c0_i32_1 = arith.constant 0 : i32
    return %arg0, %c0_i32, %c0_i32_0 : i32, i32, i32
  }
  func.func @transform_1(%arg0: i32) -> (i32, i32) {
    %c0_i32 = arith.constant 0 : i32
    %c0_i32_0 = arith.constant 0 : i32
    %c0_i32_1 = arith.constant 0 : i32
    return %c0_i32, %c0_i32_0 : i32, i32
  }
  func.func @transform_2(%arg0: i32) -> (i32, i32) {
    %c0_i32 = arith.constant 0 : i32
    %c0_i32_0 = arith.constant 0 : i32
    %c0_i32_1 = arith.constant 0 : i32
    return %c0_i32, %c0_i32_0 : i32, i32
  }
  func.func @transform_3(%arg0: i32) -> (i32, i32) {
    %c0_i32 = arith.constant 0 : i32
    %c0_i32_0 = arith.constant 0 : i32
    %c0_i32_1 = arith.constant 0 : i32
    return %c0_i32, %c0_i32_0 : i32, i32
  }
  func.func @transform_4(%arg0: i32) -> (i32, i32) {
    %c0_i32 = arith.constant 0 : i32
    %c0_i32_0 = arith.constant 0 : i32
    %c0_i32_1 = arith.constant 0 : i32
    return %c0_i32, %c0_i32_0 : i32, i32
  }
  func.func @transform_5(%arg0: i32) -> (i32, i32) {
    %c0_i32 = arith.constant 0 : i32
    %c0_i32_0 = arith.constant 0 : i32
    %c0_i32_1 = arith.constant 0 : i32
    return %c0_i32, %c0_i32_0 : i32, i32
  }
  func.func @transform_6(%arg0: i32) -> (i32, i32, i32, i32) {
    %c0_i32 = arith.constant 0 : i32
    %c0_i32_0 = arith.constant 0 : i32
    %c0_i32_1 = arith.constant 0 : i32
    %c0_i32_2 = arith.constant 0 : i32
    %c0_i32_3 = arith.constant 0 : i32
    return %c0_i32, %c0_i32_0, %c0_i32_1, %c0_i32_2 : i32, i32, i32, i32
  }
  func.func @transform_7(%arg0: i32) -> (i32, i32, i32) {
    %c0_i32 = arith.constant 0 : i32
    %c0_i32_0 = arith.constant 0 : i32
    %c0_i32_1 = arith.constant 0 : i32
    %c0_i32_2 = arith.constant 0 : i32
    return %c0_i32, %c0_i32_0, %c0_i32_1 : i32, i32, i32
  }
  func.func @transform_8(%arg0: i32) -> (i32, i32, i32) {
    %c0_i32 = arith.constant 0 : i32
    %c0_i32_0 = arith.constant 0 : i32
    %c0_i32_1 = arith.constant 0 : i32
    %c0_i32_2 = arith.constant 0 : i32
    return %c0_i32, %c0_i32_0, %c0_i32_1 : i32, i32, i32
  }
  func.func @transform_9(%arg0: i32) -> (i32, i32) {
    %c0_i32 = arith.constant 0 : i32
    %c0_i32_0 = arith.constant 0 : i32
    %c0_i32_1 = arith.constant 0 : i32
    return %c0_i32, %c0_i32_0 : i32, i32
  }
  func.func @transform_10(%arg0: i32) -> (i32, i32) {
    %c0_i32 = arith.constant 0 : i32
    %c0_i32_0 = arith.constant 0 : i32
    %c0_i32_1 = arith.constant 0 : i32
    return %c0_i32, %c0_i32_0 : i32, i32
  }
  func.func @transform_11(%arg0: i32) -> (i32, i32) {
    %c0_i32 = arith.constant 0 : i32
    %c0_i32_0 = arith.constant 0 : i32
    %c0_i32_1 = arith.constant 0 : i32
    return %c0_i32, %c0_i32_0 : i32, i32
  }
  func.func @transform_12(%arg0: i32) -> (i32, i32) {
    %c0_i32 = arith.constant 0 : i32
    %c0_i32_0 = arith.constant 0 : i32
    %c0_i32_1 = arith.constant 0 : i32
    return %c0_i32, %c0_i32_0 : i32, i32
  }
  func.func @transform_13(%arg0: i32) -> (i32, i32, i32) {
    %c0_i32 = arith.constant 0 : i32
    %c0_i32_0 = arith.constant 0 : i32
    %c0_i32_1 = arith.constant 0 : i32
    return %arg0, %c0_i32, %c0_i32_0 : i32, i32, i32
  }
}

</mosaic_0001>

<llo_original>
// kernel: squeeze.1
$region0: #{squeeze.1}
  %s0 = inlined_call_operand.vmem [shape: f32[2,625], index: 0, kind: input, shape index: {}]
  %s1 = inlined_call_operand.vmem [shape: f32[2,25,25], index: 1, kind: output, shape index: {}]
  $region1: #{squeeze.1} parent=0
    #allocation0 [shape = 'u8[20480]{0}', space=vmem, size = 0x5000, scoped, tag = 'scoped mem for input reshape']
    %s3 = ssub.s32 4, 1
    %s4 = scalar_lea.vmem %s0, 8
    %v5 = vld [vmem:[%s4] sm:%s3]
    %s6 = scalar_lea.vmem [#allocation0], 32
    %7 = vst [vmem:[%s6] sm:%s3] %v5
    %s8 = scalar_lea.vmem %s0, 6
    %v9 = vld [vmem:[%s8] sm:%s3]
    %s10 = scalar_lea.vmem [#allocation0], 24
    %11 = vst [vmem:[%s10] sm:%s3] %v9
    %s12 = scalar_lea.vmem %s0, 4
    %v13 = vld [vmem:[%s12] sm:%s3]
    %s14 = scalar_lea.vmem [#allocation0], 16
    %15 = vst [vmem:[%s14] sm:%s3] %v13
    %s16 = scalar_lea.vmem %s0, 2
    %v17 = vld [vmem:[%s16] sm:%s3]
    %s18 = scalar_lea.vmem [#allocation0], 8
    %19 = vst [vmem:[%s18] sm:%s3] %v17
    %v20 = vld [vmem:[%s0] sm:%s3]
    %21 = vst [vmem:[#allocation0] sm:%s3] %v20
    %v22 = vld [vmem:[#allocation0] sm:$0x3]
    %vm23 = vcmask 203776
    %24 = vst.msk [vmem:[%s1] sm:$0x1] %vm23, %v22
    %s25 = scalar_lea.vmem %s1, 31
    %26 = vst.msk [vmem:[%s25] sm:$0x2] %vm23, %v22
    %s27 = scalar_lea.vmem [#allocation0], 32
    %v28 = vld [vmem:[%s27] sm:$0x3]
    %29 = vrot.lane.b32.xlu0 %v28, 115
    %v30 = vpop.permute.xlu0 %29
    %vm31 = vcmask 203776
    %s32 = scalar_lea.vmem %s1, 21
    %33 = vst.msk [vmem:[%s32] sm:$0x1] %vm31, %v30
    %s34 = scalar_lea.vmem %s1, 52
    %35 = vst.msk [vmem:[%s34] sm:$0x2] %vm31, %v30
    %s36 = scalar_lea.vmem [#allocation0], 24
    %v37 = vld [vmem:[%s36] sm:$0x3]
    %38 = vrot.lane.b32.xlu0 %v37, 112
    %v39 = vpop.permute.xlu0 %38
    %vm40 = vcmask 203776
    %s41 = scalar_lea.vmem %s1, 16
    %42 = vst.msk [vmem:[%s41] sm:$0x1] %vm40, %v39
    %s43 = scalar_lea.vmem %s1, 47
    %44 = vst.msk [vmem:[%s43] sm:$0x2] %vm40, %v39
    %s45 = scalar_lea.vmem [#allocation0], 16
    %v46 = vld [vmem:[%s45] sm:$0x3]
    %47 = vrot.lane.b32.xlu0 %v46, 109
    %v48 = vpop.permute.xlu0 %47
    %vm49 = vcmask 203776
    %s50 = scalar_lea.vmem %s1, 11
    %51 = vst.msk [vmem:[%s50] sm:$0x1] %vm49, %v48
    %s52 = scalar_lea.vmem %s1, 42
    %53 = vst.msk [vmem:[%s52] sm:$0x2] %vm49, %v48
    %s54 = scalar_lea.vmem [#allocation0], 8
    %v55 = vld [vmem:[%s54] sm:$0x3]
    %56 = vrot.lane.b32.xlu0 %v55, 106
    %v57 = vpop.permute.xlu0 %56
    %vm58 = vcmask 203776
    %s59 = scalar_lea.vmem %s1, 6
    %60 = vst.msk [vmem:[%s59] sm:$0x1] %vm58, %v57
    %s61 = scalar_lea.vmem %s1, 37
    %62 = vst.msk [vmem:[%s61] sm:$0x2] %vm58, %v57
    %v63 = vld [vmem:[#allocation0] sm:$0x3]
    %64 = vrot.lane.b32.xlu0 %v63, 103
    %v65 = vpop.permute.xlu0 %64
    %vm66 = vcmask 203776
    %s67 = scalar_lea.vmem %s1, 1
    %68 = vst.msk [vmem:[%s67] sm:$0x1] %vm66, %v65
    %s69 = scalar_lea.vmem %s1, 32
    %70 = vst.msk [vmem:[%s69] sm:$0x2] %vm66, %v65
    %s71 = scalar_lea.vmem [#allocation0], 32
    %v72 = vld [vmem:[%s71] sm:$0x3]
    %73 = vrot.lane.b32.xlu0 %v72, 90
    %v74 = vpop.permute.xlu0 %73
    %vm75 = vcmask 203776
    %s76 = scalar_lea.vmem %s1, 22
    %77 = vst.msk [vmem:[%s76] sm:$0x1] %vm75, %v74
    %s78 = scalar_lea.vmem %s1, 53
    %79 = vst.msk [vmem:[%s78] sm:$0x2] %vm75, %v74
    %s80 = scalar_lea.vmem [#allocation0], 24
    %v81 = vld [vmem:[%s80] sm:$0x3]
    %82 = vrot.lane.b32.xlu0 %v81, 87
    %v83 = vpop.permute.xlu0 %82
    %vm84 = vcmask 203776
    %s85 = scalar_lea.vmem %s1, 17
    %86 = vst.msk [vmem:[%s85] sm:$0x1] %vm84, %v83
    %s87 = scalar_lea.vmem %s1, 48
    %88 = vst.msk [vmem:[%s87] sm:$0x2] %vm84, %v83
    %s89 = scalar_lea.vmem [#allocation0], 16
    %v90 = vld [vmem:[%s89] sm:$0x3]
    %91 = vrot.lane.b32.xlu0 %v90, 84
    %v92 = vpop.permute.xlu0 %91
    %vm93 = vcmask 203776
    %s94 = scalar_lea.vmem %s1, 12
    %95 = vst.msk [vmem:[%s94] sm:$0x1] %vm93, %v92
    %s96 = scalar_lea.vmem %s1, 43
    %97 = vst.msk [vmem:[%s96] sm:$0x2] %vm93, %v92
    %s98 = scalar_lea.vmem [#allocation0], 8
    %v99 = vld [vmem:[%s98] sm:$0x3]
    %100 = vrot.lane.b32.xlu0 %v99, 81
    %v101 = vpop.permute.xlu0 %100
    %vm102 = vcmask 203776
    %s103 = scalar_lea.vmem %s1, 7
    %104 = vst.msk [vmem:[%s103] sm:$0x1] %vm102, %v101
    %s105 = scalar_lea.vmem %s1, 38
    %106 = vst.msk [vmem:[%s105] sm:$0x2] %vm102, %v101
    %v107 = vld [vmem:[#allocation0] sm:$0x3]
    %108 = vrot.lane.b32.xlu0 %v107, 78
    %v109 = vpop.permute.xlu0 %108
    %vm110 = vcmask 203776
    %s111 = scalar_lea.vmem %s1, 2
    %112 = vst.msk [vmem:[%s111] sm:$0x1] %vm110, %v109
    %s113 = scalar_lea.vmem %s1, 33
    %114 = vst.msk [vmem:[%s113] sm:$0x2] %vm110, %v109
    %s115 = scalar_lea.vmem [#allocation0], 32
    %v116 = vld [vmem:[%s115] sm:$0x3]
    %117 = vrot.lane.b32.xlu0 %v116, 65
    %v118 = vpop.permute.xlu0 %117
    %vm119 = vcmask 203776
    %s120 = scalar_lea.vmem %s1, 23
    %121 = vst.msk [vmem:[%s120] sm:$0x1] %vm119, %v118
    %s122 = scalar_lea.vmem %s1, 54
    %123 = vst.msk [vmem:[%s122] sm:$0x2] %vm119, %v118
    %s124 = scalar_lea.vmem [#allocation0], 24
    %v125 = vld [vmem:[%s124] sm:$0x3]
    %126 = vrot.lane.b32.xlu0 %v125, 62
    %v127 = vpop.permute.xlu0 %126
    %vm128 = vcmask 203776
    %s129 = scalar_lea.vmem %s1, 18
    %130 = vst.msk [vmem:[%s129] sm:$0x1] %vm128, %v127
    %s131 = scalar_lea.vmem %s1, 49
    %132 = vst.msk [vmem:[%s131] sm:$0x2] %vm128, %v127
    %s133 = scalar_lea.vmem [#allocation0], 16
    %v134 = vld [vmem:[%s133] sm:$0x3]
    %135 = vrot.lane.b32.xlu0 %v134, 59
    %v136 = vpop.permute.xlu0 %135
    %vm137 = vcmask 203776
    %s138 = scalar_lea.vmem %s1, 13
    %139 = vst.msk [vmem:[%s138] sm:$0x1] %vm137, %v136
    %s140 = scalar_lea.vmem %s1, 44
    %141 = vst.msk [vmem:[%s140] sm:$0x2] %vm137, %v136
    %s142 = scalar_lea.vmem [#allocation0], 8
    %v143 = vld [vmem:[%s142] sm:$0x3]
    %144 = vrot.lane.b32.xlu0 %v143, 56
    %v145 = vpop.permute.xlu0 %144
    %vm146 = vcmask 203776
    %s147 = scalar_lea.vmem %s1, 8
    %148 = vst.msk [vmem:[%s147] sm:$0x1] %vm146, %v145
    %s149 = scalar_lea.vmem %s1, 39
    %150 = vst.msk [vmem:[%s149] sm:$0x2] %vm146, %v145
    %v151 = vld [vmem:[#allocation0] sm:$0x3]
    %152 = vrot.lane.b32.xlu0 %v151, 53
    %v153 = vpop.permute.xlu0 %152
    %vm154 = vcmask 203776
    %s155 = scalar_lea.vmem %s1, 3
    %156 = vst.msk [vmem:[%s155] sm:$0x1] %vm154, %v153
    %s157 = scalar_lea.vmem %s1, 34
    %158 = vst.msk [vmem:[%s157] sm:$0x2] %vm154, %v153
    %s159 = scalar_lea.vmem [#allocation0], 32
    %v160 = vld [vmem:[%s159] sm:$0x3]
    %161 = vrot.lane.b32.xlu0 %v160, 40
    %v162 = vpop.permute.xlu0 %161
    %vm163 = vcmask 203776
    %s164 = scalar_lea.vmem %s1, 24
    %165 = vst.msk [vmem:[%s164] sm:$0x1] %vm163, %v162
    %s166 = scalar_lea.vmem %s1, 55
    %167 = vst.msk [vmem:[%s166] sm:$0x2] %vm163, %v162
    %s168 = scalar_lea.vmem [#allocation0], 24
    %v169 = vld [vmem:[%s168] sm:$0x3]
    %170 = vrot.lane.b32.xlu0 %v169, 37
    %v171 = vpop.permute.xlu0 %170
    %vm172 = vcmask 203776
    %s173 = scalar_lea.vmem %s1, 19
    %174 = vst.msk [vmem:[%s173] sm:$0x1] %vm172, %v171
    %s175 = scalar_lea.vmem %s1, 50
    %176 = vst.msk [vmem:[%s175] sm:$0x2] %vm172, %v171
    %s177 = scalar_lea.vmem [#allocation0], 16
    %v178 = vld [vmem:[%s177] sm:$0x3]
    %179 = vrot.lane.b32.xlu0 %v178, 34
    %v180 = vpop.permute.xlu0 %179
    %vm181 = vcmask 203776
    %s182 = scalar_lea.vmem %s1, 14
    %183 = vst.msk [vmem:[%s182] sm:$0x1] %vm181, %v180
    %s184 = scalar_lea.vmem %s1, 45
    %185 = vst.msk [vmem:[%s184] sm:$0x2] %vm181, %v180
    %s186 = scalar_lea.vmem [#allocation0], 8
    %v187 = vld [vmem:[%s186] sm:$0x3]
    %188 = vrot.lane.b32.xlu0 %v187, 31
    %v189 = vpop.permute.xlu0 %188
    %vm190 = vcmask 203776
    %s191 = scalar_lea.vmem %s1, 9
    %192 = vst.msk [vmem:[%s191] sm:$0x1] %vm190, %v189
    %s193 = scalar_lea.vmem %s1, 40
    %194 = vst.msk [vmem:[%s193] sm:$0x2] %vm190, %v189
    %v195 = vld [vmem:[#allocation0] sm:$0x3]
    %196 = vrot.lane.b32.xlu0 %v195, 28
    %v197 = vpop.permute.xlu0 %196
    %vm198 = vcmask 203776
    %s199 = scalar_lea.vmem %s1, 4
    %200 = vst.msk [vmem:[%s199] sm:$0x1] %vm198, %v197
    %s201 = scalar_lea.vmem %s1, 35
    %202 = vst.msk [vmem:[%s201] sm:$0x2] %vm198, %v197
    %s203 = scalar_lea.vmem [#allocation0], 24
    %v204 = vld [vmem:[%s203] sm:$0x3]
    %s205 = scalar_lea.vmem [#allocation0], 32
    %v206 = vld [vmem:[%s205] sm:$0x3]
    %vm207 = vcmask 949248
    %v208 = vsel %vm207, %v206, %v204
    %209 = vrot.lane.b32.xlu0 %v208, 12
    %v210 = vpop.permute.xlu0 %209
    %vm211 = vcmask 97280
    %s212 = scalar_lea.vmem %s1, 20
    %213 = vst.msk [vmem:[%s212] sm:$0x1] %vm211, %v210
    %s214 = scalar_lea.vmem %s1, 51
    %215 = vst.msk [vmem:[%s214] sm:$0x2] %vm211, %v210
    %vm216 = vcmask 203872
    %s217 = scalar_lea.vmem %s1, 20
    %218 = vst.msk [vmem:[%s217] sm:$0x1] %vm216, %v210
    %s219 = scalar_lea.vmem %s1, 51
    %220 = vst.msk [vmem:[%s219] sm:$0x2] %vm216, %v210
    %s221 = scalar_lea.vmem [#allocation0], 16
    %v222 = vld [vmem:[%s221] sm:$0x3]
    %s223 = scalar_lea.vmem [#allocation0], 24
    %v224 = vld [vmem:[%s223] sm:$0x3]
    %vm225 = vcmask 973824
    %v226 = vsel %vm225, %v224, %v222
    %227 = vrot.lane.b32.xlu0 %v226, 9
    %v228 = vpop.permute.xlu0 %227
    %vm229 = vcmask 72704
    %s230 = scalar_lea.vmem %s1, 15
    %231 = vst.msk [vmem:[%s230] sm:$0x1] %vm229, %v228
    %s232 = scalar_lea.vmem %s1, 46
    %233 = vst.msk [vmem:[%s232] sm:$0x2] %vm229, %v228
    %vm234 = vcmask 203848
    %s235 = scalar_lea.vmem %s1, 15
    %236 = vst.msk [vmem:[%s235] sm:$0x1] %vm234, %v228
    %s237 = scalar_lea.vmem %s1, 46
    %238 = vst.msk [vmem:[%s237] sm:$0x2] %vm234, %v228
    %s239 = scalar_lea.vmem [#allocation0], 8
    %v240 = vld [vmem:[%s239] sm:$0x3]
    %s241 = scalar_lea.vmem [#allocation0], 16
    %v242 = vld [vmem:[%s241] sm:$0x3]
    %vm243 = vcmask 998400
    %v244 = vsel %vm243, %v242, %v240
    %245 = vrot.lane.b32.xlu0 %v244, 6
    %v246 = vpop.permute.xlu0 %245
    %vm247 = vcmask 48128
    %s248 = scalar_lea.vmem %s1, 10
    %249 = vst.msk [vmem:[%s248] sm:$0x1] %vm247, %v246
    %s250 = scalar_lea.vmem %s1, 41
    %251 = vst.msk [vmem:[%s250] sm:$0x2] %vm247, %v246
    %vm252 = vcmask 203824
    %s253 = scalar_lea.vmem %s1, 10
    %254 = vst.msk [vmem:[%s253] sm:$0x1] %vm252, %v246
    %s255 = scalar_lea.vmem %s1, 41
    %256 = vst.msk [vmem:[%s255] sm:$0x2] %vm252, %v246
    %v257 = vld [vmem:[#allocation0] sm:$0x3]
    %s258 = scalar_lea.vmem [#allocation0], 8
    %v259 = vld [vmem:[%s258] sm:$0x3]
    %vm260 = vcmask 1022976
    %v261 = vsel %vm260, %v259, %v257
    %262 = vrot.lane.b32.xlu0 %v261, 3
    %v263 = vpop.permute.xlu0 %262
    %vm264 = vcmask 23552
    %s265 = scalar_lea.vmem %s1, 5
    %266 = vst.msk [vmem:[%s265] sm:$0x1] %vm264, %v263
    %s267 = scalar_lea.vmem %s1, 36
    %268 = vst.msk [vmem:[%s267] sm:$0x2] %vm264, %v263
    %vm269 = vcmask 203800
    %s270 = scalar_lea.vmem %s1, 5
    %271 = vst.msk [vmem:[%s270] sm:$0x1] %vm269, %v263
    %s272 = scalar_lea.vmem %s1, 36
    %273 = vst.msk [vmem:[%s272] sm:$0x2] %vm269, %v263

// kernel: forward.1
$region0: #{forward.1}
  #allocation0 [shape = 'u32[]', space=smem, size = 0x4, offset = 0x4, fixed_abs, tag = 'smem constant byte address 0x4 - core index']
  #allocation1 [shape = 'u32[72,128]{1,0:T(1,128)}', space=vmem, size = 0x9000, scoped, tag = 'internal scratch']
  #allocation2 [shape = 'bf16[80,640]{1,0:T(8,128)(2,1)}', space=vmem, size = 0x19000, scoped, tag = 'scratch operand']
  #allocation3 [shape = 'f32[1,1]{1,0:T(1,128)S(1)}', space=vmem, size = 0x200, scoped, tag = 'scoped memory for forward.1']
  %s0 = inlined_call_operand.vmem [shape: f32[2,3,640], index: 0, kind: input, shape index: {}]
  %s1 = inlined_call_operand.vmem [shape: f32[1,640], index: 1, kind: input, shape index: {}]
  %s2 = inlined_call_operand.hbm [shape: bf16[640,128], index: 2, kind: input, shape index: {}]
  %s3 = inlined_call_operand.vmem [shape: bf16[64,640], index: 3, kind: input, shape index: {}]
  %s4 = inlined_call_operand.vmem [shape: bf16[16,3], index: 4, kind: input, shape index: {}]
  %s5 = inlined_call_operand.vmem [shape: f32[16,1], index: 5, kind: input, shape index: {}]
  %s6 = inlined_call_operand.vmem [shape: f32[4,16,16,128], index: 6, kind: input, shape index: {}]
  %s7 = inlined_call_operand.vmem [shape: f32[4,16,16], index: 7, kind: input, shape index: {}]
  %s8 = inlined_call_operand.vmem [shape: f32[4,16,1], index: 8, kind: input, shape index: {}]
  %s9 = inlined_call_operand.vmem [shape: bf16[128,16], index: 9, kind: input, shape index: {}]
  %s10 = inlined_call_operand.vmem [shape: f32[128,1], index: 10, kind: input, shape index: {}]
  %s11 = inlined_call_operand.vmem [shape: bf16[1,128], index: 11, kind: input, shape index: {}]
  %s12 = inlined_call_operand.<no memory space> [shape: f32[1,1], index: 12, kind: input, shape index: {}]
  %s13 = inlined_call_operand.vmem [shape: f32[2,1,640], index: 13, kind: output, shape index: {}]
  %s14 = sld [smem:[#allocation0]]
  $region89: #{forward.1} parent=0
    _
  %s16 = ssub.s32 1, %s14
  %s17 = scalar_select 0, %s16, %s14
  %v18 = vstv %s12
  %19 = vst [vmem:[#allocation3] sm:$0x1] %v18
  $region1: #{forward.1} parent=0
    #allocation4 [shape = 'u8[163840]{0}', space=vmem, size = 0x28000, scoped, tag = 'input window, operand 2, single buffered']
    #allocation5 [shape = 's32[2]{0}', space=sflag, size = 0x8, scoped, tag = 'scoped memory for forward.1']
    %20 = vsyncpa [#allocation5], 0
    loop: start=0, step=1, limit=4
    $region2: #{forward.1} parent=1 // loop_pre_header
      _
    $region3: #{forward.1} parent=1 // loop_header
      %s22 = sphi 0, %s26
      %p23 = scmp.ge.s32.totalorder %s22, 4
      %s32 = sphi 0, %s34
      %s35 = sphi 0, %s32
      %s36 = sphi 0, %s35
      %s52 = sphi 0, %s36
      %s56 = sphi 0, %s56
      %s58 = sphi 0, %s56
      %s59 = sphi 0, %s58
      %s73 = sphi 0, %s59
      %s77 = sphi 0, %s77
      %s79 = sphi 0, %s77
      %s80 = sphi 0, %s79
      %s94 = sphi 0, %s80
      %s98 = sphi 0, %s98
      %s100 = sphi 0, %s98
      %s101 = sphi 0, %s100
      %s115 = sphi 0, %s101
      %s119 = sphi 0, %s119
      %s121 = sphi 0, %s119
      %s122 = sphi 0, %s121
      %s136 = sphi 0, %s122
      %s140 = sphi 0, %s140
      %s142 = sphi 0, %s140
      %s143 = sphi 0, %s142
      %s157 = sphi 0, %s143
      %s161 = sphi 0, %s161
      %s163 = sphi 0, %s161
      %s164 = sphi 0, %s163
      %s178 = sphi 0, %s164
      %s182 = sphi 0, %s182
      %s184 = sphi 0, %s182
      %s185 = sphi 0, %s184
      %s199 = sphi 0, %s185
      %s203 = sphi 0, %s203
      %s205 = sphi 0, %s203
      %s206 = sphi 0, %s205
      %s220 = sphi 0, %s206
      %s224 = sphi 0, %s224
      %s226 = sphi 0, %s224
      %s227 = sphi 0, %s226
      %s241 = sphi 0, %s227
      %s245 = sphi 0, %s245
      %s247 = sphi 0, %s245
      %s248 = sphi 0, %s247
      %s262 = sphi 0, %s248
      %s266 = sphi 0, %s266
      %s268 = sphi 0, %s266
      %s269 = sphi 0, %s268
      %s283 = sphi 0, %s269
      %s287 = sphi 0, %s287
      %s289 = sphi 0, %s287
      %s290 = sphi 0, %s289
      %s304 = sphi 0, %s290
      %s310 = sphi 0, %s312
      %s313 = sphi 0, %s310
      %s314 = sphi 0, %s313
      %s330 = sphi 0, %s314
    $region4: #{forward.1} parent=1 // loop_header_branch
      %25 = sbr.rel (%p23) target = $region8
    $region5: #{forward.1} parent=1 // loop_body
      %s27 = ssub.s32 %s22, 1
      %s28 = ssub.s32 %s22, 2
      %s29 = sadd.s32 %s22, 1
      %s30 = ssub.s32 %s22, %s29
      %p31 = scmp.eq.s32.totalorder %s30, 0
      %s33 = sadd.s32 %s32, 1
      %s34 = scalar_select %p31, %s32, %s33
      %p37 = pneg %p31
      %p38 = scmp.eq.s32.totalorder %s22, 1
      %p39 = por %p37, %p38
      %p40 = scmp.ne.s32.totalorder %s32, %s35
      %p41 = scmp.eq.s32.totalorder %s22, 0
      %p42 = por %p40, %p41
      %p43 = scmp.ne.s32.totalorder %s32, %s35
      %p44 = scmp.eq.s32.totalorder %s27, 1
      %p45 = por %p43, %p44
      %p46 = scmp.ne.s32.totalorder %s35, %s36
      %p47 = scmp.eq.s32.totalorder %s27, 0
      %p48 = por %p46, %p47
      %p49 = scmp.ne.s32.totalorder %s35, %s36
      %p50 = scmp.eq.s32.totalorder %s28, 1
      %p51 = por %p49, %p50
      %p53 = scmp.ne.s32.totalorder %s36, %s52
      %p54 = scmp.eq.s32.totalorder %s28, 0
      %p55 = por %p53, %p54
      %s57 = sadd.s32 %s56, 1
      %p60 = scmp.eq.s32.totalorder %s22, 1
      %p61 = scmp.ne.s32.totalorder %s56, %s58
      %p62 = scmp.eq.s32.totalorder %s22, 0
      %p63 = por %p61, %p62
      %p64 = scmp.ne.s32.totalorder %s56, %s58
      %p65 = scmp.eq.s32.totalorder %s27, 1
      %p66 = por %p64, %p65
      %p67 = scmp.ne.s32.totalorder %s58, %s59
      %p68 = scmp.eq.s32.totalorder %s27, 0
      %p69 = por %p67, %p68
      %p70 = scmp.ne.s32.totalorder %s58, %s59
      %p71 = scmp.eq.s32.totalorder %s28, 1
      %p72 = por %p70, %p71
      %p74 = scmp.ne.s32.totalorder %s59, %s73
      %p75 = scmp.eq.s32.totalorder %s28, 0
      %p76 = por %p74, %p75
      %s78 = sadd.s32 %s77, 1
      %p81 = scmp.eq.s32.totalorder %s22, 1
      %p82 = scmp.ne.s32.totalorder %s77, %s79
      %p83 = scmp.eq.s32.totalorder %s22, 0
      %p84 = por %p82, %p83
      %p85 = scmp.ne.s32.totalorder %s77, %s79
      %p86 = scmp.eq.s32.totalorder %s27, 1
      %p87 = por %p85, %p86
      %p88 = scmp.ne.s32.totalorder %s79, %s80
      %p89 = scmp.eq.s32.totalorder %s27, 0
      %p90 = por %p88, %p89
      %p91 = scmp.ne.s32.totalorder %s79, %s80
      %p92 = scmp.eq.s32.totalorder %s28, 1
      %p93 = por %p91, %p92
      %p95 = scmp.ne.s32.totalorder %s80, %s94
      %p96 = scmp.eq.s32.totalorder %s28, 0
      %p97 = por %p95, %p96
      %s99 = sadd.s32 %s98, 1
      %p102 = scmp.eq.s32.totalorder %s22, 1
      %p103 = scmp.ne.s32.totalorder %s98, %s100
      %p104 = scmp.eq.s32.totalorder %s22, 0
      %p105 = por %p103, %p104
      %p106 = scmp.ne.s32.totalorder %s98, %s100
      %p107 = scmp.eq.s32.totalorder %s27, 1
      %p108 = por %p106, %p107
      %p109 = scmp.ne.s32.totalorder %s100, %s101
      %p110 = scmp.eq.s32.totalorder %s27, 0
      %p111 = por %p109, %p110
      %p112 = scmp.ne.s32.totalorder %s100, %s101
      %p113 = scmp.eq.s32.totalorder %s28, 1
      %p114 = por %p112, %p113
      %p116 = scmp.ne.s32.totalorder %s101, %s115
      %p117 = scmp.eq.s32.totalorder %s28, 0
      %p118 = por %p116, %p117
      %s120 = sadd.s32 %s119, 1
      %p123 = scmp.eq.s32.totalorder %s22, 1
      %p124 = scmp.ne.s32.totalorder %s119, %s121
      %p125 = scmp.eq.s32.totalorder %s22, 0
      %p126 = por %p124, %p125
      %p127 = scmp.ne.s32.totalorder %s119, %s121
      %p128 = scmp.eq.s32.totalorder %s27, 1
      %p129 = por %p127, %p128
      %p130 = scmp.ne.s32.totalorder %s121, %s122
      %p131 = scmp.eq.s32.totalorder %s27, 0
      %p132 = por %p130, %p131
      %p133 = scmp.ne.s32.totalorder %s121, %s122
      %p134 = scmp.eq.s32.totalorder %s28, 1
      %p135 = por %p133, %p134
      %p137 = scmp.ne.s32.totalorder %s122, %s136
      %p138 = scmp.eq.s32.totalorder %s28, 0
      %p139 = por %p137, %p138
      %s141 = sadd.s32 %s140, 1
      %p144 = scmp.eq.s32.totalorder %s22, 1
      %p145 = scmp.ne.s32.totalorder %s140, %s142
      %p146 = scmp.eq.s32.totalorder %s22, 0
      %p147 = por %p145, %p146
      %p148 = scmp.ne.s32.totalorder %s140, %s142
      %p149 = scmp.eq.s32.totalorder %s27, 1
      %p150 = por %p148, %p149
      %p151 = scmp.ne.s32.totalorder %s142, %s143
      %p152 = scmp.eq.s32.totalorder %s27, 0
      %p153 = por %p151, %p152
      %p154 = scmp.ne.s32.totalorder %s142, %s143
      %p155 = scmp.eq.s32.totalorder %s28, 1
      %p156 = por %p154, %p155
      %p158 = scmp.ne.s32.totalorder %s143, %s157
      %p159 = scmp.eq.s32.totalorder %s28, 0
      %p160 = por %p158, %p159
      %s162 = sadd.s32 %s161, 1
      %p165 = scmp.eq.s32.totalorder %s22, 1
      %p166 = scmp.ne.s32.totalorder %s161, %s163
      %p167 = scmp.eq.s32.totalorder %s22, 0
      %p168 = por %p166, %p167
      %p169 = scmp.ne.s32.totalorder %s161, %s163
      %p170 = scmp.eq.s32.totalorder %s27, 1
      %p171 = por %p169, %p170
      %p172 = scmp.ne.s32.totalorder %s163, %s164
      %p173 = scmp.eq.s32.totalorder %s27, 0
      %p174 = por %p172, %p173
      %p175 = scmp.ne.s32.totalorder %s163, %s164
      %p176 = scmp.eq.s32.totalorder %s28, 1
      %p177 = por %p175, %p176
      %p179 = scmp.ne.s32.totalorder %s164, %s178
      %p180 = scmp.eq.s32.totalorder %s28, 0
      %p181 = por %p179, %p180
      %s183 = sadd.s32 %s182, 1
      %p186 = scmp.eq.s32.totalorder %s22, 1
      %p187 = scmp.ne.s32.totalorder %s182, %s184
      %p188 = scmp.eq.s32.totalorder %s22, 0
      %p189 = por %p187, %p188
      %p190 = scmp.ne.s32.totalorder %s182, %s184
      %p191 = scmp.eq.s32.totalorder %s27, 1
      %p192 = por %p190, %p191
      %p193 = scmp.ne.s32.totalorder %s184, %s185
      %p194 = scmp.eq.s32.totalorder %s27, 0
      %p195 = por %p193, %p194
      %p196 = scmp.ne.s32.totalorder %s184, %s185
      %p197 = scmp.eq.s32.totalorder %s28, 1
      %p198 = por %p196, %p197
      %p200 = scmp.ne.s32.totalorder %s185, %s199
      %p201 = scmp.eq.s32.totalorder %s28, 0
      %p202 = por %p200, %p201
      %s204 = sadd.s32 %s203, 1
      %p207 = scmp.eq.s32.totalorder %s22, 1
      %p208 = scmp.ne.s32.totalorder %s203, %s205
      %p209 = scmp.eq.s32.totalorder %s22, 0
      %p210 = por %p208, %p209
      %p211 = scmp.ne.s32.totalorder %s203, %s205
      %p212 = scmp.eq.s32.totalorder %s27, 1
      %p213 = por %p211, %p212
      %p214 = scmp.ne.s32.totalorder %s205, %s206
      %p215 = scmp.eq.s32.totalorder %s27, 0
      %p216 = por %p214, %p215
      %p217 = scmp.ne.s32.totalorder %s205, %s206
      %p218 = scmp.eq.s32.totalorder %s28, 1
      %p219 = por %p217, %p218
      %p221 = scmp.ne.s32.totalorder %s206, %s220
      %p222 = scmp.eq.s32.totalorder %s28, 0
      %p223 = por %p221, %p222
      %s225 = sadd.s32 %s224, 1
      %p228 = scmp.eq.s32.totalorder %s22, 1
      %p229 = scmp.ne.s32.totalorder %s224, %s226
      %p230 = scmp.eq.s32.totalorder %s22, 0
      %p231 = por %p229, %p230
      %p232 = scmp.ne.s32.totalorder %s224, %s226
      %p233 = scmp.eq.s32.totalorder %s27, 1
      %p234 = por %p232, %p233
      %p235 = scmp.ne.s32.totalorder %s226, %s227
      %p236 = scmp.eq.s32.totalorder %s27, 0
      %p237 = por %p235, %p236
      %p238 = scmp.ne.s32.totalorder %s226, %s227
      %p239 = scmp.eq.s32.totalorder %s28, 1
      %p240 = por %p238, %p239
      %p242 = scmp.ne.s32.totalorder %s227, %s241
      %p243 = scmp.eq.s32.totalorder %s28, 0
      %p244 = por %p242, %p243
      %s246 = sadd.s32 %s245, 1
      %p249 = scmp.eq.s32.totalorder %s22, 1
      %p250 = scmp.ne.s32.totalorder %s245, %s247
      %p251 = scmp.eq.s32.totalorder %s22, 0
      %p252 = por %p250, %p251
      %p253 = scmp.ne.s32.totalorder %s245, %s247
      %p254 = scmp.eq.s32.totalorder %s27, 1
      %p255 = por %p253, %p254
      %p256 = scmp.ne.s32.totalorder %s247, %s248
      %p257 = scmp.eq.s32.totalorder %s27, 0
      %p258 = por %p256, %p257
      %p259 = scmp.ne.s32.totalorder %s247, %s248
      %p260 = scmp.eq.s32.totalorder %s28, 1
      %p261 = por %p259, %p260
      %p263 = scmp.ne.s32.totalorder %s248, %s262
      %p264 = scmp.eq.s32.totalorder %s28, 0
      %p265 = por %p263, %p264
      %s267 = sadd.s32 %s266, 1
      %p270 = scmp.eq.s32.totalorder %s22, 1
      %p271 = scmp.ne.s32.totalorder %s266, %s268
      %p272 = scmp.eq.s32.totalorder %s22, 0
      %p273 = por %p271, %p272
      %p274 = scmp.ne.s32.totalorder %s266, %s268
      %p275 = scmp.eq.s32.totalorder %s27, 1
      %p276 = por %p274, %p275
      %p277 = scmp.ne.s32.totalorder %s268, %s269
      %p278 = scmp.eq.s32.totalorder %s27, 0
      %p279 = por %p277, %p278
      %p280 = scmp.ne.s32.totalorder %s268, %s269
      %p281 = scmp.eq.s32.totalorder %s28, 1
      %p282 = por %p280, %p281
      %p284 = scmp.ne.s32.totalorder %s269, %s283
      %p285 = scmp.eq.s32.totalorder %s28, 0
      %p286 = por %p284, %p285
      %s288 = sadd.s32 %s287, 1
      %p291 = scmp.eq.s32.totalorder %s22, 1
      %p292 = scmp.ne.s32.totalorder %s287, %s289
      %p293 = scmp.eq.s32.totalorder %s22, 0
      %p294 = por %p292, %p293
      %p295 = scmp.ne.s32.totalorder %s287, %s289
      %p296 = scmp.eq.s32.totalorder %s27, 1
      %p297 = por %p295, %p296
      %p298 = scmp.ne.s32.totalorder %s289, %s290
      %p299 = scmp.eq.s32.totalorder %s27, 0
      %p300 = por %p298, %p299
      %p301 = scmp.ne.s32.totalorder %s289, %s290
      %p302 = scmp.eq.s32.totalorder %s28, 1
      %p303 = por %p301, %p302
      %p305 = scmp.ne.s32.totalorder %s290, %s304
      %p306 = scmp.eq.s32.totalorder %s28, 0
      %p307 = por %p305, %p306
      %s308 = ssub.s32 %s22, %s29
      %p309 = scmp.eq.s32.totalorder %s308, 0
      %s311 = sadd.s32 %s310, 1
      %s312 = scalar_select %p309, %s310, %s311
      %p315 = pneg %p309
      %p316 = scmp.eq.s32.totalorder %s22, 1
      %p317 = por %p315, %p316
      %p318 = scmp.ne.s32.totalorder %s310, %s313
      %p319 = scmp.eq.s32.totalorder %s22, 0
      %p320 = por %p318, %p319
      %p321 = scmp.ne.s32.totalorder %s310, %s313
      %p322 = scmp.eq.s32.totalorder %s27, 1
      %p323 = por %p321, %p322
      %p324 = scmp.ne.s32.totalorder %s313, %s314
      %p325 = scmp.eq.s32.totalorder %s27, 0
      %p326 = por %p324, %p325
      %p327 = scmp.ne.s32.totalorder %s313, %s314
      %p328 = scmp.eq.s32.totalorder %s28, 1
      %p329 = por %p327, %p328
      %p331 = scmp.ne.s32.totalorder %s314, %s330
      %p332 = scmp.eq.s32.totalorder %s28, 0
      %p333 = por %p331, %p332
      %p334 = scmp.le.s32.totalorder 1, %s22
      %p335 = scmp.lt.s32.totalorder %s22, 3
      %p336 = pnand %p334, %p335
      %p337 = pneg %p336
      // Predicated region
      $region9: #{forward.1} parent=5 // pred_check
        _
      $region10: #{forward.1} parent=5 // pred_check_branch
        %339 = sbr.rel (%p336) target = $region12
      $region11: #{forward.1} parent=5 // pred_region
        %s340 = ssub.s32 %s22, 1
        // Predicated region
        $region13: #{forward.1} parent=11 // pred_check
          %p341 = pneg %p69
        $region14: #{forward.1} parent=11 // pred_check_branch
          %343 = sbr.rel (%p341) target = $region16
        $region15: #{forward.1} parent=11 // pred_region
          _
        $region16: #{forward.1} parent=11 // pred_fallthru
          _
        // Predicated region
        $region17: #{forward.1} parent=11 // pred_check
          %p344 = pneg %p90
        $region18: #{forward.1} parent=11 // pred_check_branch
          %346 = sbr.rel (%p344) target = $region20
        $region19: #{forward.1} parent=11 // pred_region
          %348 = vsyncadd [#allocation5], 0
          %s349 = sshll.u32 %s2, 4
          %s350 = int_to_ptr.hbm [resolvable:$true] %s349
          %s351 = sshll.u32 [#allocation4], 4
          %s352 = int_to_ptr.vmem [resolvable:$true] %s351
          %357 = dma.hbm_to_vmem [thread:$0]  %s350, 5120, %s352, [#allocation5], 64, 64, 4
        $region20: #{forward.1} parent=11 // pred_fallthru
          _
        // Predicated region
        $region21: #{forward.1} parent=11 // pred_check
          %p358 = pneg %p111
        $region22: #{forward.1} parent=11 // pred_check_branch
          %360 = sbr.rel (%p358) target = $region24
        $region23: #{forward.1} parent=11 // pred_region
          _
        $region24: #{forward.1} parent=11 // pred_fallthru
          _
        // Predicated region
        $region25: #{forward.1} parent=11 // pred_check
          %p361 = pneg %p132
        $region26: #{forward.1} parent=11 // pred_check_branch
          %363 = sbr.rel (%p361) target = $region28
        $region27: #{forward.1} parent=11 // pred_region
          _
        $region28: #{forward.1} parent=11 // pred_fallthru
          _
        // Predicated region
        $region29: #{forward.1} parent=11 // pred_check
          %p364 = pneg %p153
        $region30: #{forward.1} parent=11 // pred_check_branch
          %366 = sbr.rel (%p364) target = $region32
        $region31: #{forward.1} parent=11 // pred_region
          _
        $region32: #{forward.1} parent=11 // pred_fallthru
          _
        // Predicated region
        $region33: #{forward.1} parent=11 // pred_check
          %p367 = pneg %p174
        $region34: #{forward.1} parent=11 // pred_check_branch
          %369 = sbr.rel (%p367) target = $region36
        $region35: #{forward.1} parent=11 // pred_region
          _
        $region36: #{forward.1} parent=11 // pred_fallthru
          _
        // Predicated region
        $region37: #{forward.1} parent=11 // pred_check
          %p370 = pneg %p195
        $region38: #{forward.1} parent=11 // pred_check_branch
          %372 = sbr.rel (%p370) target = $region40
        $region39: #{forward.1} parent=11 // pred_region
          _
        $region40: #{forward.1} parent=11 // pred_fallthru
          _
        // Predicated region
        $region41: #{forward.1} parent=11 // pred_check
          %p373 = pneg %p216
        $region42: #{forward.1} parent=11 // pred_check_branch
          %375 = sbr.rel (%p373) target = $region44
        $region43: #{forward.1} parent=11 // pred_region
          _
        $region44: #{forward.1} parent=11 // pred_fallthru
          _
        // Predicated region
        $region45: #{forward.1} parent=11 // pred_check
          %p376 = pneg %p237
        $region46: #{forward.1} parent=11 // pred_check_branch
          %378 = sbr.rel (%p376) target = $region48
        $region47: #{forward.1} parent=11 // pred_region
          _
        $region48: #{forward.1} parent=11 // pred_fallthru
          _
        // Predicated region
        $region49: #{forward.1} parent=11 // pred_check
          %p379 = pneg %p258
        $region50: #{forward.1} parent=11 // pred_check_branch
          %381 = sbr.rel (%p379) target = $region52
        $region51: #{forward.1} parent=11 // pred_region
          _
        $region52: #{forward.1} parent=11 // pred_fallthru
          _
        // Predicated region
        $region53: #{forward.1} parent=11 // pred_check
          %p382 = pneg %p279
        $region54: #{forward.1} parent=11 // pred_check_branch
          %384 = sbr.rel (%p382) target = $region56
        $region55: #{forward.1} parent=11 // pred_region
          _
        $region56: #{forward.1} parent=11 // pred_fallthru
          _
        // Predicated region
        $region57: #{forward.1} parent=11 // pred_check
          %p385 = pneg %p300
        $region58: #{forward.1} parent=11 // pred_check_branch
          %387 = sbr.rel (%p385) target = $region60
        $region59: #{forward.1} parent=11 // pred_region
          _
        $region60: #{forward.1} parent=11 // pred_fallthru
          _
      $region12: #{forward.1} parent=5 // pred_fallthru
        _
      %p388 = scmp.lt.s32.totalorder %s22, 2
      // Predicated region
      $region61: #{forward.1} parent=5 // pred_check
        %p389 = pneg %p388
      $region62: #{forward.1} parent=5 // pred_check_branch
        %391 = sbr.rel (%p389) target = $region64
      $region63: #{forward.1} parent=5 // pred_region
        // Predicated region
        $region65: #{forward.1} parent=63 // pred_check
          %p392 = pneg %p42
        $region66: #{forward.1} parent=63 // pred_check_branch
          %394 = sbr.rel (%p392) target = $region68
        $region67: #{forward.1} parent=63 // pred_region
          %p395 = scmp.lt.s32.totalorder %s22, 1
          %s396 = scalar_select %p395, %s22, 1
          %s397 = smul.addr %s396, 5
          %s398 = smul.addr %s397, 4
          %s399 = scalar_lea.vmem %s0, %s398
        $region68: #{forward.1} parent=63 // pred_fallthru
          _
      $region64: #{forward.1} parent=5 // pred_fallthru
        _
      %p400 = scmp.le.s32.totalorder 1, %s22
      %p401 = scmp.lt.s32.totalorder %s22, 3
      %p402 = pnand %p400, %p401
      %p403 = pneg %p402
      // Predicated region
      $region69: #{forward.1} parent=5 // pred_check
        _
      $region70: #{forward.1} parent=5 // pred_check_branch
        %405 = sbr.rel (%p402) target = $region72
      $region71: #{forward.1} parent=5 // pred_region
        %s406 = ssub.s32 %s22, 1
        // Predicated region
        $region73: #{forward.1} parent=71 // pred_check
          %p407 = pneg %p90
        $region74: #{forward.1} parent=71 // pred_check_branch
          %409 = sbr.rel (%p407) target = $region76
        $region75: #{forward.1} parent=71 // pred_region
          %411 = dma.done [#allocation5], 5120
        $region76: #{forward.1} parent=71 // pred_fallthru
          _
        %p412 = scmp.lt.s32.totalorder %s27, 1
        %s413 = scalar_select %p412, %s27, 1
        %s414 = smul.addr %s413, 5
        %s415 = smul.addr %s414, 4
        %s416 = scalar_lea.vmem %s0, %s415
        %p417 = pneg %p48
        %p418 = pneg %p45
        %p419 = pneg %p69
        %p420 = pneg %p66
        %p421 = pneg %p90
        %p422 = pneg %p87
        %p423 = pneg %p111
        %p424 = pneg %p108
        %p425 = pneg %p132
        %p426 = pneg %p129
        %p427 = pneg %p153
        %p428 = pneg %p150
        %p429 = pneg %p174
        %p430 = pneg %p171
        %p431 = pneg %p195
        %p432 = pneg %p192
        %p433 = pneg %p216
        %p434 = pneg %p213
        %p435 = pneg %p237
        %p436 = pneg %p234
        %p437 = pneg %p258
        %p438 = pneg %p255
        %p439 = pneg %p279
        %p440 = pneg %p276
        %p441 = pneg %p300
        %p442 = pneg %p297
        %p443 = pneg %p326
        %p444 = pneg %p323
        %p445 = scmp.lt.s32.totalorder %s27, 1
        %s446 = scalar_select %p445, %s27, 1
        %s447 = smul.addr %s446, 5
        %s448 = scalar_lea.vmem %s13, %s447
        %p449 = scmp.lt.s32.totalorder %s27, 1
        %s450 = scalar_select %p449, %s27, 1
        %s451 = smul.addr %s450, 5
        %s452 = smul.addr %s451, 4
        %s453 = scalar_lea.vmem %s0, %s452
        %p454 = scmp.lt.s32.totalorder %s27, 1
        %s455 = scalar_select %p454, %s27, 1
        %s456 = smul.addr %s455, 5
        %s457 = scalar_lea.vmem %s13, %s456
        %v459 = vld [vmem:[%s4] sm:$0xf]
        %v460 = vld [vmem:[%s4 + $0x4] sm:$0xf]
        %v461 = vld [vmem:[%s453] sm:$0x77]
        %v462 = vld [vmem:[%s453 + $0x8] sm:$0x77]
        %v463 = vld [vmem:[%s453 + $0x10] sm:$0x7]
        %467 = vst [vmem:[#allocation1] ss:$2 sm:$0xff] %v461
        %s468 = scalar_lea.vmem [#allocation1], 16
        %469 = vst [vmem:[%s468] ss:$2 sm:$0xff] %v462
        %s470 = scalar_lea.vmem [#allocation1], 32
        %471 = vst [vmem:[%s470] ss:$2 sm:$0xff] %v463
        %v472 = vld.sshfl [vmem:[#allocation1] sm:$0xff pattern:$0x75316420]
        %v473 = vld.sshfl [vmem:[#allocation1 + $0x8] sm:$0xff pattern:$0x75316420]
        %v474 = vld.sshfl [vmem:[#allocation1 + $0x10] sm:$0xff pattern:$0x75316420]
        %v475 = vld.sshfl [vmem:[#allocation1 + $0x18] sm:$0xff pattern:$0x75316420]
        %v476 = vld.sshfl [vmem:[#allocation1 + $0x20] sm:$0xff pattern:$0x75316420]
        %v482 = vpack.c.bf16 %v472, %v472
        %v483 = vpack.c.bf16 %v473, %v473
        %v484 = vpack.c.bf16 %v474, %v474
        %v485 = vpack.c.bf16 %v475, %v475
        %v486 = vpack.c.bf16 %v476, %v476
        %v487 = vld [vmem:[%s5] sm:$0xff]
        %v488 = vld [vmem:[%s5 + $0x8] sm:$0xff]
        %490 = vset.pattern.permute.xlu0 0
        %491 = vperm.xlu0 %490, %v487
        %v492 = vpop.permute.xlu0 %491
        %495 = vset.pattern.permute.xlu0 0
        %496 = vperm.xlu0 %495, %v488
        %v497 = vpop.permute.xlu0 %496
        %v501 = vunpack.c.l.b16 %v459
        %v502 = vunpack.c.l.b16 %v460
        %v503 = vpack.c.b16 %v502, %v501
        %vm504 = vcmask 23552
        %v506 = vsel %vm504, %v503, 0
        %vm508 = vcmask 1040384
        %vm509 = vcmask 1041408
        %v510 = vsel %vm508, 4294967295, 65535
        %v511 = vsel %vm509, %v510, 0
        %v513 = vand.u32 %v482, %v511
        %v516 = vand.u32 %v483, %v511
        %v519 = vand.u32 %v484, %v511
        %v522 = vand.u32 %v485, %v511
        %v525 = vand.u32 %v486, %v511
        %527 = vmatpush.bf16.msra.mxu0 0
        %528 = vmatpush.bf16.msra.mxu0 0
        %529 = vmatpush.bf16.msra.mxu0 0
        %530 = vmatpush.bf16.msra.mxu0 0
        %531 = vmatpush.bf16.msra.mxu0 0
        %532 = vmatpush.bf16.msra.mxu0 0
        %533 = vmatpush.bf16.msra.mxu0 0
        %534 = vmatpush.bf16.msra.mxu0 %v513
        %535 = vmatmul.bf16.gmra.mxu0 %v506
        %v536 = vpop.f32.mrf.mxu0
        %v537 = vadd.f32 %v492, %v536
        %v538 = vpop.f32.mrf.mxu0
        %v539 = vadd.f32 %v497, %v538
        %540 = vdwg.mxu0
        %541 = vmatpush.bf16.msra.mxu0 0
        %542 = vmatpush.bf16.msra.mxu0 0
        %543 = vmatpush.bf16.msra.mxu0 0
        %544 = vmatpush.bf16.msra.mxu0 0
        %545 = vmatpush.bf16.msra.mxu0 0
        %546 = vmatpush.bf16.msra.mxu0 0
        %547 = vmatpush.bf16.msra.mxu0 0
        %548 = vmatpush.bf16.msra.mxu0 %v516
        %549 = vmatmul.bf16.gmra.mxu0 %v506
        %v550 = vpop.f32.mrf.mxu0
        %v551 = vadd.f32 %v492, %v550
        %v552 = vpop.f32.mrf.mxu0
        %v553 = vadd.f32 %v497, %v552
        %554 = vdwg.mxu0
        %555 = vmatpush.bf16.msra.mxu0 0
        %556 = vmatpush.bf16.msra.mxu0 0
        %557 = vmatpush.bf16.msra.mxu0 0
        %558 = vmatpush.bf16.msra.mxu0 0
        %559 = vmatpush.bf16.msra.mxu0 0
        %560 = vmatpush.bf16.msra.mxu0 0
        %561 = vmatpush.bf16.msra.mxu0 0
        %562 = vmatpush.bf16.msra.mxu0 %v519
        %563 = vmatmul.bf16.gmra.mxu0 %v506
        %v564 = vpop.f32.mrf.mxu0
        %v565 = vadd.f32 %v492, %v564
        %v566 = vpop.f32.mrf.mxu0
        %v567 = vadd.f32 %v497, %v566
        %568 = vdwg.mxu0
        %569 = vmatpush.bf16.msra.mxu0 0
        %570 = vmatpush.bf16.msra.mxu0 0
        %571 = vmatpush.bf16.msra.mxu0 0
        %572 = vmatpush.bf16.msra.mxu0 0
        %573 = vmatpush.bf16.msra.mxu0 0
        %574 = vmatpush.bf16.msra.mxu0 0
        %575 = vmatpush.bf16.msra.mxu0 0
        %576 = vmatpush.bf16.msra.mxu0 %v522
        %577 = vmatmul.bf16.gmra.mxu0 %v506
        %v578 = vpop.f32.mrf.mxu0
        %v579 = vadd.f32 %v492, %v578
        %v580 = vpop.f32.mrf.mxu0
        %v581 = vadd.f32 %v497, %v580
        %582 = vdwg.mxu0
        %583 = vmatpush.bf16.msra.mxu0 0
        %584 = vmatpush.bf16.msra.mxu0 0
        %585 = vmatpush.bf16.msra.mxu0 0
        %586 = vmatpush.bf16.msra.mxu0 0
        %587 = vmatpush.bf16.msra.mxu0 0
        %588 = vmatpush.bf16.msra.mxu0 0
        %589 = vmatpush.bf16.msra.mxu0 0
        %590 = vmatpush.bf16.msra.mxu0 %v525
        %591 = vmatmul.bf16.gmra.mxu0 %v506
        %v592 = vpop.f32.mrf.mxu0
        %v593 = vadd.f32 %v492, %v592
        %v594 = vpop.f32.mrf.mxu0
        %v595 = vadd.f32 %v497, %v594
        %596 = vdwg.mxu0
        %v597 = vld [vmem:[%s1] sm:$0x1f]
        %v599 = vperm.slane %v597, 0
        %v600 = vperm.slane %v597, 1
        %v601 = vperm.slane %v597, 2
        %v602 = vperm.slane %v597, 3
        %v603 = vperm.slane %v597, 4
        %v609 = vmul.f32 %v537, %v599
        %v610 = vmul.f32 %v551, %v600
        %v611 = vmul.f32 %v565, %v601
        %v612 = vmul.f32 %v579, %v602
        %v613 = vmul.f32 %v593, %v603
        %v614 = vmul.f32 %v539, %v599
        %v615 = vmul.f32 %v553, %v600
        %v616 = vmul.f32 %v567, %v601
        %v617 = vmul.f32 %v581, %v602
        %v618 = vmul.f32 %v595, %v603
        %v619 = vld [vmem:[%s3] sm:$0xff]
        %v620 = vld [vmem:[%s3 + $0x8] sm:$0xff]
        %v621 = vld [vmem:[%s3 + $0x10] sm:$0xf]
        %v622 = vld [vmem:[%s3 + $0x14] sm:$0xff]
        %v623 = vld [vmem:[%s3 + $0x1c] sm:$0xff]
        %v624 = vld [vmem:[%s3 + $0x24] sm:$0xf]
        %v625 = vld [vmem:[%s3 + $0x28] sm:$0xff]
        %v626 = vld [vmem:[%s3 + $0x30] sm:$0xff]
        %v627 = vld [vmem:[%s3 + $0x38] sm:$0xf]
        %v628 = vld [vmem:[%s3 + $0x3c] sm:$0xff]
        %v629 = vld [vmem:[%s3 + $0x44] sm:$0xff]
        %v630 = vld [vmem:[%s3 + $0x4c] sm:$0xf]
        %v631 = vld [vmem:[%s3 + $0x50] sm:$0xff]
        %v632 = vld [vmem:[%s3 + $0x58] sm:$0xff]
        %v633 = vld [vmem:[%s3 + $0x60] sm:$0xf]
        %v634 = vld [vmem:[%s3 + $0x64] sm:$0xff]
        %v635 = vld [vmem:[%s3 + $0x6c] sm:$0xff]
        %v636 = vld [vmem:[%s3 + $0x74] sm:$0xf]
        %v637 = vld [vmem:[%s3 + $0x78] sm:$0xff]
        %v638 = vld [vmem:[%s3 + $0x80] sm:$0xff]
        %v639 = vld [vmem:[%s3 + $0x88] sm:$0xf]
        %v640 = vld [vmem:[%s3 + $0x8c] sm:$0xff]
        %v641 = vld [vmem:[%s3 + $0x94] sm:$0xff]
        %v642 = vld [vmem:[%s3 + $0x9c] sm:$0xf]
        %643 = vst [vmem:[#allocation2] sm:$0xff] %v619
        %644 = vst [vmem:[#allocation2 + $0x8] sm:$0xff] %v620
        %645 = vst [vmem:[#allocation2 + $0x10] sm:$0xf] %v621
        %646 = vst [vmem:[#allocation2 + $0x14] sm:$0xff] %v622
        %647 = vst [vmem:[#allocation2 + $0x1c] sm:$0xff] %v623
        %648 = vst [vmem:[#allocation2 + $0x24] sm:$0xf] %v624
        %649 = vst [vmem:[#allocation2 + $0x28] sm:$0xff] %v625
        %650 = vst [vmem:[#allocation2 + $0x30] sm:$0xff] %v626
        %651 = vst [vmem:[#allocation2 + $0x38] sm:$0xf] %v627
        %652 = vst [vmem:[#allocation2 + $0x3c] sm:$0xff] %v628
        %653 = vst [vmem:[#allocation2 + $0x44] sm:$0xff] %v629
        %654 = vst [vmem:[#allocation2 + $0x4c] sm:$0xf] %v630
        %655 = vst [vmem:[#allocation2 + $0x50] sm:$0xff] %v631
        %656 = vst [vmem:[#allocation2 + $0x58] sm:$0xff] %v632
        %657 = vst [vmem:[#allocation2 + $0x60] sm:$0xf] %v633
        %658 = vst [vmem:[#allocation2 + $0x64] sm:$0xff] %v634
        %659 = vst [vmem:[#allocation2 + $0x6c] sm:$0xff] %v635
        %660 = vst [vmem:[#allocation2 + $0x74] sm:$0xf] %v636
        %661 = vst [vmem:[#allocation2 + $0x78] sm:$0xff] %v637
        %662 = vst [vmem:[#allocation2 + $0x80] sm:$0xff] %v638
        %663 = vst [vmem:[#allocation2 + $0x88] sm:$0xf] %v639
        %664 = vst [vmem:[#allocation2 + $0x8c] sm:$0xff] %v640
        %665 = vst [vmem:[#allocation2 + $0x94] sm:$0xff] %v641
        %666 = vst [vmem:[#allocation2 + $0x9c] sm:$0xf] %v642
        %v667 = vld [vmem:[#allocation4] sm:$0xf]
        %v668 = vld [vmem:[#allocation4 + $0x4] sm:$0xf]
        %v669 = vld [vmem:[#allocation4 + $0x8] sm:$0xf]
        %v670 = vld [vmem:[#allocation4 + $0xc] sm:$0xf]
        %v671 = vld [vmem:[#allocation4 + $0x10] sm:$0xf]
        %v672 = vld [vmem:[#allocation4 + $0x14] sm:$0xf]
        %v673 = vld [vmem:[#allocation4 + $0x18] sm:$0xf]
        %v674 = vld [vmem:[#allocation4 + $0x1c] sm:$0xf]
        %v675 = vld [vmem:[#allocation4 + $0x20] sm:$0xf]
        %v676 = vld [vmem:[#allocation4 + $0x24] sm:$0xf]
        %v677 = vld [vmem:[#allocation4 + $0x28] sm:$0xf]
        %v678 = vld [vmem:[#allocation4 + $0x2c] sm:$0xf]
        %v679 = vld [vmem:[#allocation4 + $0x30] sm:$0xf]
        %v680 = vld [vmem:[#allocation4 + $0x34] sm:$0xf]
        %v681 = vld [vmem:[#allocation4 + $0x38] sm:$0xf]
        %v682 = vld [vmem:[#allocation4 + $0x3c] sm:$0xf]
        %v683 = vld [vmem:[#allocation4 + $0x40] sm:$0xf]
        %v684 = vld [vmem:[#allocation4 + $0x44] sm:$0xf]
        %v685 = vld [vmem:[#allocation4 + $0x48] sm:$0xf]
        %v686 = vld [vmem:[#allocation4 + $0x4c] sm:$0xf]
        %v687 = vld [vmem:[#allocation4 + $0x50] sm:$0xf]
        %v688 = vld [vmem:[#allocation4 + $0x54] sm:$0xf]
        %v689 = vld [vmem:[#allocation4 + $0x58] sm:$0xf]
        %v690 = vld [vmem:[#allocation4 + $0x5c] sm:$0xf]
        %v691 = vld [vmem:[#allocation4 + $0x60] sm:$0xf]
        %v692 = vld [vmem:[#allocation4 + $0x64] sm:$0xf]
        %v693 = vld [vmem:[#allocation4 + $0x68] sm:$0xf]
        %v694 = vld [vmem:[#allocation4 + $0x6c] sm:$0xf]
        %v695 = vld [vmem:[#allocation4 + $0x70] sm:$0xf]
        %v696 = vld [vmem:[#allocation4 + $0x74] sm:$0xf]
        %v697 = vld [vmem:[#allocation4 + $0x78] sm:$0xf]
        %v698 = vld [vmem:[#allocation4 + $0x7c] sm:$0xf]
        %v699 = vld [vmem:[#allocation4 + $0x80] sm:$0xf]
        %v700 = vld [vmem:[#allocation4 + $0x84] sm:$0xf]
        %v701 = vld [vmem:[#allocation4 + $0x88] sm:$0xf]
        %v702 = vld [vmem:[#allocation4 + $0x8c] sm:$0xf]
        %v703 = vld [vmem:[#allocation4 + $0x90] sm:$0xf]
        %v704 = vld [vmem:[#allocation4 + $0x94] sm:$0xf]
        %v705 = vld [vmem:[#allocation4 + $0x98] sm:$0xf]
        %v706 = vld [vmem:[#allocation4 + $0x9c] sm:$0xf]
        %v707 = vld [vmem:[#allocation4 + $0xa0] sm:$0xf]
        %v708 = vld [vmem:[#allocation4 + $0xa4] sm:$0xf]
        %v709 = vld [vmem:[#allocation4 + $0xa8] sm:$0xf]
        %v710 = vld [vmem:[#allocation4 + $0xac] sm:$0xf]
        %v711 = vld [vmem:[#allocation4 + $0xb0] sm:$0xf]
        %v712 = vld [vmem:[#allocation4 + $0xb4] sm:$0xf]
        %v713 = vld [vmem:[#allocation4 + $0xb8] sm:$0xf]
        %v714 = vld [vmem:[#allocation4 + $0xbc] sm:$0xf]
        %v715 = vld [vmem:[#allocation4 + $0xc0] sm:$0xf]
        %v716 = vld [vmem:[#allocation4 + $0xc4] sm:$0xf]
        %v717 = vld [vmem:[#allocation4 + $0xc8] sm:$0xf]
        %v718 = vld [vmem:[#allocation4 + $0xcc] sm:$0xf]
        %v719 = vld [vmem:[#allocation4 + $0xd0] sm:$0xf]
        %v720 = vld [vmem:[#allocation4 + $0xd4] sm:$0xf]
        %v721 = vld [vmem:[#allocation4 + $0xd8] sm:$0xf]
        %v722 = vld [vmem:[#allocation4 + $0xdc] sm:$0xf]
        %v723 = vld [vmem:[#allocation4 + $0xe0] sm:$0xf]
        %v724 = vld [vmem:[#allocation4 + $0xe4] sm:$0xf]
        %v725 = vld [vmem:[#allocation4 + $0xe8] sm:$0xf]
        %v726 = vld [vmem:[#allocation4 + $0xec] sm:$0xf]
        %v727 = vld [vmem:[#allocation4 + $0xf0] sm:$0xf]
        %v728 = vld [vmem:[#allocation4 + $0xf4] sm:$0xf]
        %v729 = vld [vmem:[#allocation4 + $0xf8] sm:$0xf]
        %v730 = vld [vmem:[#allocation4 + $0xfc] sm:$0xf]
        %v731 = vld [vmem:[#allocation4 + $0x100] sm:$0xf]
        %v732 = vld [vmem:[#allocation4 + $0x104] sm:$0xf]
        %v733 = vld [vmem:[#allocation4 + $0x108] sm:$0xf]
        %v734 = vld [vmem:[#allocation4 + $0x10c] sm:$0xf]
        %v735 = vld [vmem:[#allocation4 + $0x110] sm:$0xf]
        %v736 = vld [vmem:[#allocation4 + $0x114] sm:$0xf]
        %v737 = vld [vmem:[#allocation4 + $0x118] sm:$0xf]
        %v738 = vld [vmem:[#allocation4 + $0x11c] sm:$0xf]
        %v739 = vld [vmem:[#allocation4 + $0x120] sm:$0xf]
        %v740 = vld [vmem:[#allocation4 + $0x124] sm:$0xf]
        %v741 = vld [vmem:[#allocation4 + $0x128] sm:$0xf]
        %v742 = vld [vmem:[#allocation4 + $0x12c] sm:$0xf]
        %v743 = vld [vmem:[#allocation4 + $0x130] sm:$0xf]
        %v744 = vld [vmem:[#allocation4 + $0x134] sm:$0xf]
        %v745 = vld [vmem:[#allocation4 + $0x138] sm:$0xf]
        %v746 = vld [vmem:[#allocation4 + $0x13c] sm:$0xf]
        %v747 = vpack.c.bf16 %v610, %v609
        %v748 = vpack.c.bf16 %v612, %v611
        %v749 = vpack.c.bf16 %v613, %v613
        %v750 = vpack.c.bf16 %v615, %v614
        %v751 = vpack.c.bf16 %v617, %v616
        %v752 = vpack.c.bf16 %v618, %v618
        %753 = vst [vmem:[#allocation2 + $0xa0] sm:$0xff] %v747
        %754 = vst [vmem:[#allocation2 + $0xa8] sm:$0xff] %v748
        %755 = vst [vmem:[#allocation2 + $0xb0] sm:$0xf] %v749
        %756 = vst [vmem:[#allocation2 + $0xb4] sm:$0xff] %v750
        %757 = vst [vmem:[#allocation2 + $0xbc] sm:$0xff] %v751
        %758 = vst [vmem:[#allocation2 + $0xc4] sm:$0xf] %v752
        %v765 = vunpack.c.l.b16 %v747
        %v766 = vunpack.c.h.b16 %v747
        %v767 = vunpack.c.l.b16 %v748
        %v768 = vunpack.c.h.b16 %v748
        %v769 = vunpack.c.l.b16 %v749
        %v770 = vunpack.c.l.b16 %v750
        %v771 = vunpack.c.h.b16 %v750
        %v772 = vunpack.c.l.b16 %v751
        %v773 = vunpack.c.h.b16 %v751
        %v774 = vunpack.c.l.b16 %v752
        %v775 = vpack.c.b16 %v770, %v765
        %v776 = vpack.c.b16 %v771, %v766
        %v777 = vpack.c.b16 %v772, %v767
        %v778 = vpack.c.b16 %v773, %v768
        %v779 = vpack.c.b16 %v774, %v769
        %v865 = vunpack.c.l.b16 %v667
        %v866 = vunpack.c.l.b16 %v668
        %v867 = vunpack.c.l.b16 %v669
        %v868 = vunpack.c.l.b16 %v670
        %v869 = vunpack.c.l.b16 %v671
        %v870 = vunpack.c.l.b16 %v672
        %v871 = vunpack.c.l.b16 %v673
        %v872 = vunpack.c.l.b16 %v674
        %v873 = vunpack.c.l.b16 %v675
        %v874 = vunpack.c.l.b16 %v676
        %v875 = vunpack.c.l.b16 %v677
        %v876 = vunpack.c.l.b16 %v678
        %v877 = vunpack.c.l.b16 %v679
        %v878 = vunpack.c.l.b16 %v680
        %v879 = vunpack.c.l.b16 %v681
        %v880 = vunpack.c.l.b16 %v682
        %v881 = vunpack.c.l.b16 %v683
        %v882 = vunpack.c.l.b16 %v684
        %v883 = vunpack.c.l.b16 %v685
        %v884 = vunpack.c.l.b16 %v686
        %v885 = vunpack.c.l.b16 %v687
        %v886 = vunpack.c.l.b16 %v688
        %v887 = vunpack.c.l.b16 %v689
        %v888 = vunpack.c.l.b16 %v690
        %v889 = vunpack.c.l.b16 %v691
        %v890 = vunpack.c.l.b16 %v692
        %v891 = vunpack.c.l.b16 %v693
        %v892 = vunpack.c.l.b16 %v694
        %v893 = vunpack.c.l.b16 %v695
        %v894 = vunpack.c.l.b16 %v696
        %v895 = vunpack.c.l.b16 %v697
        %v896 = vunpack.c.l.b16 %v698
        %v897 = vunpack.c.l.b16 %v699
        %v898 = vunpack.c.l.b16 %v700
        %v899 = vunpack.c.l.b16 %v701
        %v900 = vunpack.c.l.b16 %v702
        %v901 = vunpack.c.l.b16 %v703
        %v902 = vunpack.c.l.b16 %v704
        %v903 = vunpack.c.l.b16 %v705
        %v904 = vunpack.c.l.b16 %v706
        %v905 = vunpack.c.l.b16 %v707
        %v906 = vunpack.c.l.b16 %v708
        %v907 = vunpack.c.l.b16 %v709
        %v908 = vunpack.c.l.b16 %v710
        %v909 = vunpack.c.l.b16 %v711
        %v910 = vunpack.c.l.b16 %v712
        %v911 = vunpack.c.l.b16 %v713
        %v912 = vunpack.c.l.b16 %v714
        %v913 = vunpack.c.l.b16 %v715
        %v914 = vunpack.c.l.b16 %v716
        %v915 = vunpack.c.l.b16 %v717
        %v916 = vunpack.c.l.b16 %v718
        %v917 = vunpack.c.l.b16 %v719
        %v918 = vunpack.c.l.b16 %v720
        %v919 = vunpack.c.l.b16 %v721
        %v920 = vunpack.c.l.b16 %v722
        %v921 = vunpack.c.l.b16 %v723
        %v922 = vunpack.c.l.b16 %v724
        %v923 = vunpack.c.l.b16 %v725
        %v924 = vunpack.c.l.b16 %v726
        %v925 = vunpack.c.l.b16 %v727
        %v926 = vunpack.c.l.b16 %v728
        %v927 = vunpack.c.l.b16 %v729
        %v928 = vunpack.c.l.b16 %v730
        %v929 = vunpack.c.l.b16 %v731
        %v930 = vunpack.c.l.b16 %v732
        %v931 = vunpack.c.l.b16 %v733
        %v932 = vunpack.c.l.b16 %v734
        %v933 = vunpack.c.l.b16 %v735
        %v934 = vunpack.c.l.b16 %v736
        %v935 = vunpack.c.l.b16 %v737
        %v936 = vunpack.c.l.b16 %v738
        %v937 = vunpack.c.l.b16 %v739
        %v938 = vunpack.c.l.b16 %v740
        %v939 = vunpack.c.l.b16 %v741
        %v940 = vunpack.c.l.b16 %v742
        %v941 = vunpack.c.l.b16 %v743
        %v942 = vunpack.c.l.b16 %v744
        %v943 = vunpack.c.l.b16 %v745
        %v944 = vunpack.c.l.b16 %v746
        %v945 = vpack.c.b16 %v866, %v865
        %v946 = vpack.c.b16 %v868, %v867
        %v947 = vpack.c.b16 %v870, %v869
        %v948 = vpack.c.b16 %v872, %v871
        %v949 = vpack.c.b16 %v874, %v873
        %v950 = vpack.c.b16 %v876, %v875
        %v951 = vpack.c.b16 %v878, %v877
        %v952 = vpack.c.b16 %v880, %v879
        %v953 = vpack.c.b16 %v882, %v881
        %v954 = vpack.c.b16 %v884, %v883
        %v955 = vpack.c.b16 %v886, %v885
        %v956 = vpack.c.b16 %v888, %v887
        %v957 = vpack.c.b16 %v890, %v889
        %v958 = vpack.c.b16 %v892, %v891
        %v959 = vpack.c.b16 %v894, %v893
        %v960 = vpack.c.b16 %v896, %v895
        %v961 = vpack.c.b16 %v898, %v897
        %v962 = vpack.c.b16 %v900, %v899
        %v963 = vpack.c.b16 %v902, %v901
        %v964 = vpack.c.b16 %v904, %v903
        %v965 = vpack.c.b16 %v906, %v905
        %v966 = vpack.c.b16 %v908, %v907
        %v967 = vpack.c.b16 %v910, %v909
        %v968 = vpack.c.b16 %v912, %v911
        %v969 = vpack.c.b16 %v914, %v913
        %v970 = vpack.c.b16 %v916, %v915
        %v971 = vpack.c.b16 %v918, %v917
        %v972 = vpack.c.b16 %v920, %v919
        %v973 = vpack.c.b16 %v922, %v921
        %v974 = vpack.c.b16 %v924, %v923
        %v975 = vpack.c.b16 %v926, %v925
        %v976 = vpack.c.b16 %v928, %v927
        %v977 = vpack.c.b16 %v930, %v929
        %v978 = vpack.c.b16 %v932, %v931
        %v979 = vpack.c.b16 %v934, %v933
        %v980 = vpack.c.b16 %v936, %v935
        %v981 = vpack.c.b16 %v938, %v937
        %v982 = vpack.c.b16 %v940, %v939
        %v983 = vpack.c.b16 %v942, %v941
        %v984 = vpack.c.b16 %v944, %v943
        %1025 = vmatpush.bf16.msra.mxu0 %v952
        %1026 = vmatpush.bf16.msra.mxu0 %v951
        %1027 = vmatpush.bf16.msra.mxu0 %v950
        %1028 = vmatpush.bf16.msra.mxu0 %v949
        %1029 = vmatpush.bf16.msra.mxu0 %v948
        %1030 = vmatpush.bf16.msra.mxu0 %v947
        %1031 = vmatpush.bf16.msra.mxu0 %v946
        %1032 = vmatpush.bf16.msra.mxu0 %v945
        %1033 = vmatmul.bf16.gmra.mxu0 %v775
        %v1034 = vpop.f32.mrf.mxu0
        %v1035 = vadd.f32 0.0, %v1034
        %v1036 = vpop.f32.mrf.mxu0
        %v1037 = vadd.f32 0.0, %v1036
        %1038 = vdwg.mxu0
        %1039 = vmatpush.bf16.msra.mxu0 %v960
        %1040 = vmatpush.bf16.msra.mxu0 %v959
        %1041 = vmatpush.bf16.msra.mxu0 %v958
        %1042 = vmatpush.bf16.msra.mxu0 %v957
        %1043 = vmatpush.bf16.msra.mxu0 %v956
        %1044 = vmatpush.bf16.msra.mxu0 %v955
        %1045 = vmatpush.bf16.msra.mxu0 %v954
        %1046 = vmatpush.bf16.msra.mxu0 %v953
        %1047 = vmatmul.bf16.gmra.mxu0 %v776
        %v1048 = vpop.f32.mrf.mxu0
        %v1049 = vadd.f32 %v1035, %v1048
        %v1050 = vpop.f32.mrf.mxu0
        %v1051 = vadd.f32 %v1037, %v1050
        %1052 = vdwg.mxu0
        %1053 = vmatpush.bf16.msra.mxu0 %v968
        %1054 = vmatpush.bf16.msra.mxu0 %v967
        %1055 = vmatpush.bf16.msra.mxu0 %v966
        %1056 = vmatpush.bf16.msra.mxu0 %v965
        %1057 = vmatpush.bf16.msra.mxu0 %v964
        %1058 = vmatpush.bf16.msra.mxu0 %v963
        %1059 = vmatpush.bf16.msra.mxu0 %v962
        %1060 = vmatpush.bf16.msra.mxu0 %v961
        %1061 = vmatmul.bf16.gmra.mxu0 %v777
        %v1062 = vpop.f32.mrf.mxu0
        %v1063 = vadd.f32 %v1049, %v1062
        %v1064 = vpop.f32.mrf.mxu0
        %v1065 = vadd.f32 %v1051, %v1064
        %1066 = vdwg.mxu0
        %1067 = vmatpush.bf16.msra.mxu0 %v976
        %1068 = vmatpush.bf16.msra.mxu0 %v975
        %1069 = vmatpush.bf16.msra.mxu0 %v974
        %1070 = vmatpush.bf16.msra.mxu0 %v973
        %1071 = vmatpush.bf16.msra.mxu0 %v972
        %1072 = vmatpush.bf16.msra.mxu0 %v971
        %1073 = vmatpush.bf16.msra.mxu0 %v970
        %1074 = vmatpush.bf16.msra.mxu0 %v969
        %1075 = vmatmul.bf16.gmra.mxu0 %v778
        %v1076 = vpop.f32.mrf.mxu0
        %v1077 = vadd.f32 %v1063, %v1076
        %v1078 = vpop.f32.mrf.mxu0
        %v1079 = vadd.f32 %v1065, %v1078
        %1080 = vdwg.mxu0
        %1081 = vmatpush.bf16.msra.mxu0 %v984
        %1082 = vmatpush.bf16.msra.mxu0 %v983
        %1083 = vmatpush.bf16.msra.mxu0 %v982
        %1084 = vmatpush.bf16.msra.mxu0 %v981
        %1085 = vmatpush.bf16.msra.mxu0 %v980
        %1086 = vmatpush.bf16.msra.mxu0 %v979
        %1087 = vmatpush.bf16.msra.mxu0 %v978
        %1088 = vmatpush.bf16.msra.mxu0 %v977
        %1089 = vmatmul.bf16.gmra.mxu0 %v779
        %v1090 = vpop.f32.mrf.mxu0
        %v1091 = vadd.f32 %v1077, %v1090
        %v1092 = vpop.f32.mrf.mxu0
        %v1093 = vadd.f32 %v1079, %v1092
        %1094 = vdwg.mxu0
        %v1095 = vld [vmem:[%s6] sm:$0xff]
        %v1096 = vld [vmem:[%s6 + $0x8] sm:$0xff]
        %v1097 = vld [vmem:[%s6 + $0x10] sm:$0xff]
        %v1098 = vld [vmem:[%s6 + $0x18] sm:$0xff]
        %v1099 = vld [vmem:[%s6 + $0x20] sm:$0xff]
        %v1100 = vld [vmem:[%s6 + $0x28] sm:$0xff]
        %v1101 = vld [vmem:[%s6 + $0x30] sm:$0xff]
        %v1102 = vld [vmem:[%s6 + $0x38] sm:$0xff]
        %v1103 = vld [vmem:[%s6 + $0x40] sm:$0xff]
        %v1104 = vld [vmem:[%s6 + $0x48] sm:$0xff]
        %v1105 = vld [vmem:[%s6 + $0x50] sm:$0xff]
        %v1106 = vld [vmem:[%s6 + $0x58] sm:$0xff]
        %v1107 = vld [vmem:[%s6 + $0x60] sm:$0xff]
        %v1108 = vld [vmem:[%s6 + $0x68] sm:$0xff]
        %v1109 = vld [vmem:[%s6 + $0x70] sm:$0xff]
        %v1110 = vld [vmem:[%s6 + $0x78] sm:$0xff]
        %v1111 = vld [vmem:[%s6 + $0x80] sm:$0xff]
        %v1112 = vld [vmem:[%s6 + $0x88] sm:$0xff]
        %v1113 = vld [vmem:[%s6 + $0x90] sm:$0xff]
        %v1114 = vld [vmem:[%s6 + $0x98] sm:$0xff]
        %v1115 = vld [vmem:[%s6 + $0xa0] sm:$0xff]
        %v1116 = vld [vmem:[%s6 + $0xa8] sm:$0xff]
        %v1117 = vld [vmem:[%s6 + $0xb0] sm:$0xff]
        %v1118 = vld [vmem:[%s6 + $0xb8] sm:$0xff]
        %v1119 = vld [vmem:[%s6 + $0xc0] sm:$0xff]
        %v1120 = vld [vmem:[%s6 + $0xc8] sm:$0xff]
        %v1121 = vld [vmem:[%s6 + $0xd0] sm:$0xff]
        %v1122 = vld [vmem:[%s6 + $0xd8] sm:$0xff]
        %v1123 = vld [vmem:[%s6 + $0xe0] sm:$0xff]
        %v1124 = vld [vmem:[%s6 + $0xe8] sm:$0xff]
        %v1125 = vld [vmem:[%s6 + $0xf0] sm:$0xff]
        %v1126 = vld [vmem:[%s6 + $0xf8] sm:$0xff]
        %v1127 = vmul.f32 %v1091, %v1095
        %v1128 = vmul.f32 %v1093, %v1096
        %v1129 = vmul.f32 %v1091, %v1097
        %v1130 = vmul.f32 %v1093, %v1098
        %v1131 = vmul.f32 %v1091, %v1099
        %v1132 = vmul.f32 %v1093, %v1100
        %v1133 = vmul.f32 %v1091, %v1101
        %v1134 = vmul.f32 %v1093, %v1102
        %v1135 = vmul.f32 %v1091, %v1103
        %v1136 = vmul.f32 %v1093, %v1104
        %v1137 = vmul.f32 %v1091, %v1105
        %v1138 = vmul.f32 %v1093, %v1106
        %v1139 = vmul.f32 %v1091, %v1107
        %v1140 = vmul.f32 %v1093, %v1108
        %v1141 = vmul.f32 %v1091, %v1109
        %v1142 = vmul.f32 %v1093, %v1110
        %v1143 = vmul.f32 %v1091, %v1111
        %v1144 = vmul.f32 %v1093, %v1112
        %v1145 = vmul.f32 %v1091, %v1113
        %v1146 = vmul.f32 %v1093, %v1114
        %v1147 = vmul.f32 %v1091, %v1115
        %v1148 = vmul.f32 %v1093, %v1116
        %v1149 = vmul.f32 %v1091, %v1117
        %v1150 = vmul.f32 %v1093, %v1118
        %v1151 = vmul.f32 %v1091, %v1119
        %v1152 = vmul.f32 %v1093, %v1120
        %v1153 = vmul.f32 %v1091, %v1121
        %v1154 = vmul.f32 %v1093, %v1122
        %v1155 = vmul.f32 %v1091, %v1123
        %v1156 = vmul.f32 %v1093, %v1124
        %v1157 = vmul.f32 %v1091, %v1125
        %v1158 = vmul.f32 %v1093, %v1126
        %v1159 = vadd.f32 %v1127, %v1128
        %v1160 = vrot.slane %v1159, 4
        %v1161 = vadd.f32 %v1159, %v1160
        %v1162 = vrot.slane %v1161, 2
        %v1163 = vadd.f32 %v1161, %v1162
        %v1164 = vrot.slane %v1163, 1
        %v1165 = vadd.f32 %v1163, %v1164
        %v1166 = vadd.f32 %v1129, %v1130
        %v1167 = vrot.slane %v1166, 4
        %v1168 = vadd.f32 %v1166, %v1167
        %v1169 = vrot.slane %v1168, 2
        %v1170 = vadd.f32 %v1168, %v1169
        %v1171 = vrot.slane %v1170, 1
        %v1172 = vadd.f32 %v1170, %v1171
        %v1173 = vadd.f32 %v1131, %v1132
        %v1174 = vrot.slane %v1173, 4
        %v1175 = vadd.f32 %v1173, %v1174
        %v1176 = vrot.slane %v1175, 2
        %v1177 = vadd.f32 %v1175, %v1176
        %v1178 = vrot.slane %v1177, 1
        %v1179 = vadd.f32 %v1177, %v1178
        %v1180 = vadd.f32 %v1133, %v1134
        %v1181 = vrot.slane %v1180, 4
        %v1182 = vadd.f32 %v1180, %v1181
        %v1183 = vrot.slane %v1182, 2
        %v1184 = vadd.f32 %v1182, %v1183
        %v1185 = vrot.slane %v1184, 1
        %v1186 = vadd.f32 %v1184, %v1185
        %v1187 = vadd.f32 %v1135, %v1136
        %v1188 = vrot.slane %v1187, 4
        %v1189 = vadd.f32 %v1187, %v1188
        %v1190 = vrot.slane %v1189, 2
        %v1191 = vadd.f32 %v1189, %v1190
        %v1192 = vrot.slane %v1191, 1
        %v1193 = vadd.f32 %v1191, %v1192
        %v1194 = vadd.f32 %v1137, %v1138
        %v1195 = vrot.slane %v1194, 4
        %v1196 = vadd.f32 %v1194, %v1195
        %v1197 = vrot.slane %v1196, 2
        %v1198 = vadd.f32 %v1196, %v1197
        %v1199 = vrot.slane %v1198, 1
        %v1200 = vadd.f32 %v1198, %v1199
        %v1201 = vadd.f32 %v1139, %v1140
        %v1202 = vrot.slane %v1201, 4
        %v1203 = vadd.f32 %v1201, %v1202
        %v1204 = vrot.slane %v1203, 2
        %v1205 = vadd.f32 %v1203, %v1204
        %v1206 = vrot.slane %v1205, 1
        %v1207 = vadd.f32 %v1205, %v1206
        %v1208 = vadd.f32 %v1141, %v1142
        %v1209 = vrot.slane %v1208, 4
        %v1210 = vadd.f32 %v1208, %v1209
        %v1211 = vrot.slane %v1210, 2
        %v1212 = vadd.f32 %v1210, %v1211
        %v1213 = vrot.slane %v1212, 1
        %v1214 = vadd.f32 %v1212, %v1213
        %v1215 = vadd.f32 %v1143, %v1144
        %v1216 = vrot.slane %v1215, 4
        %v1217 = vadd.f32 %v1215, %v1216
        %v1218 = vrot.slane %v1217, 2
        %v1219 = vadd.f32 %v1217, %v1218
        %v1220 = vrot.slane %v1219, 1
        %v1221 = vadd.f32 %v1219, %v1220
        %v1222 = vadd.f32 %v1145, %v1146
        %v1223 = vrot.slane %v1222, 4
        %v1224 = vadd.f32 %v1222, %v1223
        %v1225 = vrot.slane %v1224, 2
        %v1226 = vadd.f32 %v1224, %v1225
        %v1227 = vrot.slane %v1226, 1
        %v1228 = vadd.f32 %v1226, %v1227
        %v1229 = vadd.f32 %v1147, %v1148
        %v1230 = vrot.slane %v1229, 4
        %v1231 = vadd.f32 %v1229, %v1230
        %v1232 = vrot.slane %v1231, 2
        %v1233 = vadd.f32 %v1231, %v1232
        %v1234 = vrot.slane %v1233, 1
        %v1235 = vadd.f32 %v1233, %v1234
        %v1236 = vadd.f32 %v1149, %v1150
        %v1237 = vrot.slane %v1236, 4
        %v1238 = vadd.f32 %v1236, %v1237
        %v1239 = vrot.slane %v1238, 2
        %v1240 = vadd.f32 %v1238, %v1239
        %v1241 = vrot.slane %v1240, 1
        %v1242 = vadd.f32 %v1240, %v1241
        %v1243 = vadd.f32 %v1151, %v1152
        %v1244 = vrot.slane %v1243, 4
        %v1245 = vadd.f32 %v1243, %v1244
        %v1246 = vrot.slane %v1245, 2
        %v1247 = vadd.f32 %v1245, %v1246
        %v1248 = vrot.slane %v1247, 1
        %v1249 = vadd.f32 %v1247, %v1248
        %v1250 = vadd.f32 %v1153, %v1154
        %v1251 = vrot.slane %v1250, 4
        %v1252 = vadd.f32 %v1250, %v1251
        %v1253 = vrot.slane %v1252, 2
        %v1254 = vadd.f32 %v1252, %v1253
        %v1255 = vrot.slane %v1254, 1
        %v1256 = vadd.f32 %v1254, %v1255
        %v1257 = vadd.f32 %v1155, %v1156
        %v1258 = vrot.slane %v1257, 4
        %v1259 = vadd.f32 %v1257, %v1258
        %v1260 = vrot.slane %v1259, 2
        %v1261 = vadd.f32 %v1259, %v1260
        %v1262 = vrot.slane %v1261, 1
        %v1263 = vadd.f32 %v1261, %v1262
        %v1264 = vadd.f32 %v1157, %v1158
        %v1265 = vrot.slane %v1264, 4
        %v1266 = vadd.f32 %v1264, %v1265
        %v1267 = vrot.slane %v1266, 2
        %v1268 = vadd.f32 %v1266, %v1267
        %v1269 = vrot.slane %v1268, 1
        %v1270 = vadd.f32 %v1268, %v1269
        %1287 = vrot.lane.b32.xlu0 %v1165, 64
        %v1288 = vpop.permute.xlu0 %1287
        %1289 = vrot.lane.b32.xlu0 %v1172, 64
        %v1290 = vpop.permute.xlu0 %1289
        %1291 = vrot.lane.b32.xlu0 %v1179, 64
        %v1292 = vpop.permute.xlu0 %1291
        %1293 = vrot.lane.b32.xlu0 %v1186, 64
        %v1294 = vpop.permute.xlu0 %1293
        %1295 = vrot.lane.b32.xlu0 %v1193, 64
        %v1296 = vpop.permute.xlu0 %1295
        %1297 = vrot.lane.b32.xlu0 %v1200, 64
        %v1298 = vpop.permute.xlu0 %1297
        %1299 = vrot.lane.b32.xlu0 %v1207, 64
        %v1300 = vpop.permute.xlu0 %1299
        %1301 = vrot.lane.b32.xlu0 %v1214, 64
        %v1302 = vpop.permute.xlu0 %1301
        %1303 = vrot.lane.b32.xlu0 %v1221, 64
        %v1304 = vpop.permute.xlu0 %1303
        %1305 = vrot.lane.b32.xlu0 %v1228, 64
        %v1306 = vpop.permute.xlu0 %1305
        %1307 = vrot.lane.b32.xlu0 %v1235, 64
        %v1308 = vpop.permute.xlu0 %1307
        %1309 = vrot.lane.b32.xlu0 %v1242, 64
        %v1310 = vpop.permute.xlu0 %1309
        %1311 = vrot.lane.b32.xlu0 %v1249, 64
        %v1312 = vpop.permute.xlu0 %1311
        %1313 = vrot.lane.b32.xlu0 %v1256, 64
        %v1314 = vpop.permute.xlu0 %1313
        %1315 = vrot.lane.b32.xlu0 %v1263, 64
        %v1316 = vpop.permute.xlu0 %1315
        %1317 = vrot.lane.b32.xlu0 %v1270, 64
        %v1318 = vpop.permute.xlu0 %1317
        %v1335 = vadd.f32 %v1165, %v1288
        %v1336 = vadd.f32 %v1172, %v1290
        %v1337 = vadd.f32 %v1179, %v1292
        %v1338 = vadd.f32 %v1186, %v1294
        %v1339 = vadd.f32 %v1193, %v1296
        %v1340 = vadd.f32 %v1200, %v1298
        %v1341 = vadd.f32 %v1207, %v1300
        %v1342 = vadd.f32 %v1214, %v1302
        %v1343 = vadd.f32 %v1221, %v1304
        %v1344 = vadd.f32 %v1228, %v1306
        %v1345 = vadd.f32 %v1235, %v1308
        %v1346 = vadd.f32 %v1242, %v1310
        %v1347 = vadd.f32 %v1249, %v1312
        %v1348 = vadd.f32 %v1256, %v1314
        %v1349 = vadd.f32 %v1263, %v1316
        %v1350 = vadd.f32 %v1270, %v1318
        %v1351 = vld [vmem:[%s7] sm:$0xff]
        %v1352 = vld [vmem:[%s7 + $0x8] sm:$0xff]
        %v1369 = vrot.slane %v1336, 7
        %vm1370 = vcmask 1041409
        %v1371 = vsel %vm1370, %v1369, %v1335
        %v1372 = vrot.slane %v1337, 6
        %vm1373 = vcmask 1042434
        %v1374 = vsel %vm1373, %v1372, %v1371
        %v1375 = vrot.slane %v1338, 5
        %vm1376 = vcmask 1043459
        %v1377 = vsel %vm1376, %v1375, %v1374
        %v1378 = vrot.slane %v1339, 4
        %vm1379 = vcmask 1044484
        %v1380 = vsel %vm1379, %v1378, %v1377
        %v1381 = vrot.slane %v1340, 3
        %vm1382 = vcmask 1045509
        %v1383 = vsel %vm1382, %v1381, %v1380
        %v1384 = vrot.slane %v1341, 2
        %vm1385 = vcmask 1046534
        %v1386 = vsel %vm1385, %v1384, %v1383
        %v1387 = vrot.slane %v1342, 1
        %vm1388 = vcmask 1047559
        %v1389 = vsel %vm1388, %v1387, %v1386
        %v1390 = vrot.slane %v1344, 7
        %v1391 = vsel %vm1370, %v1390, %v1343
        %v1392 = vrot.slane %v1345, 6
        %v1393 = vsel %vm1373, %v1392, %v1391
        %v1394 = vrot.slane %v1346, 5
        %v1395 = vsel %vm1376, %v1394, %v1393
        %v1396 = vrot.slane %v1347, 4
        %v1397 = vsel %vm1379, %v1396, %v1395
        %v1398 = vrot.slane %v1348, 3
        %v1399 = vsel %vm1382, %v1398, %v1397
        %v1400 = vrot.slane %v1349, 2
        %v1401 = vsel %vm1385, %v1400, %v1399
        %v1402 = vrot.slane %v1350, 1
        %v1403 = vsel %vm1388, %v1402, %v1401
        %1408 = vrot.lane.b32.xlu0 %v1351, 64
        %v1409 = vpop.permute.xlu0 %1408
        %1410 = vrot.lane.b32.xlu0 %v1352, 64
        %v1411 = vpop.permute.xlu0 %1410
        %vm1414 = vcmask 523264
        %v1415 = vsel %vm1414, %v1389, %v1409
        %v1416 = vsel %vm1414, %v1403, %v1411
        %v1417 = vpack.c.bf16 %v1416, %v1415
        %v1418 = vld [vmem:[#allocation2] sm:$0xff]
        %v1419 = vld [vmem:[#allocation2 + $0x8] sm:$0xff]
        %v1420 = vld [vmem:[#allocation2 + $0x10] sm:$0xf]
        %v1421 = vld [vmem:[#allocation2 + $0x14] sm:$0xff]
        %v1422 = vld [vmem:[#allocation2 + $0x1c] sm:$0xff]
        %v1423 = vld [vmem:[#allocation2 + $0x24] sm:$0xf]
        %v1424 = vld [vmem:[#allocation2 + $0x28] sm:$0xff]
        %v1425 = vld [vmem:[#allocation2 + $0x30] sm:$0xff]
        %v1426 = vld [vmem:[#allocation2 + $0x38] sm:$0xf]
        %v1427 = vld [vmem:[#allocation2 + $0x3c] sm:$0xff]
        %v1428 = vld [vmem:[#allocation2 + $0x44] sm:$0xff]
        %v1429 = vld [vmem:[#allocation2 + $0x4c] sm:$0xf]
        %v1430 = vld [vmem:[#allocation2 + $0x50] sm:$0xff]
        %v1431 = vld [vmem:[#allocation2 + $0x58] sm:$0xff]
        %v1432 = vld [vmem:[#allocation2 + $0x60] sm:$0xf]
        %v1433 = vld [vmem:[#allocation2 + $0x64] sm:$0xff]
        %v1434 = vld [vmem:[#allocation2 + $0x6c] sm:$0xff]
        %v1435 = vld [vmem:[#allocation2 + $0x74] sm:$0xf]
        %v1436 = vld [vmem:[#allocation2 + $0x78] sm:$0xff]
        %v1437 = vld [vmem:[#allocation2 + $0x80] sm:$0xff]
        %v1438 = vld [vmem:[#allocation2 + $0x88] sm:$0xf]
        %v1439 = vld [vmem:[#allocation2 + $0x8c] sm:$0xff]
        %v1440 = vld [vmem:[#allocation2 + $0x94] sm:$0xff]
        %v1441 = vld [vmem:[#allocation2 + $0x9c] sm:$0xf]
        %v1442 = vld [vmem:[#allocation2 + $0xa0] sm:$0xff]
        %v1443 = vld [vmem:[#allocation2 + $0xa8] sm:$0xff]
        %v1444 = vld [vmem:[#allocation2 + $0xb0] sm:$0xf]
        %v1445 = vld [vmem:[#allocation2 + $0xb4] sm:$0xff]
        %v1446 = vld [vmem:[#allocation2 + $0xbc] sm:$0xff]
        %v1447 = vld [vmem:[#allocation2 + $0xc4] sm:$0xf]
        %v1448 = vld [vmem:[%s8] sm:$0xff]
        %v1449 = vld [vmem:[%s8 + $0x8] sm:$0xff]
        %1451 = vset.pattern.permute.xlu0 0
        %1452 = vperm.xlu0 %1451, %v1448
        %v1453 = vpop.permute.xlu0 %1452
        %1456 = vset.pattern.permute.xlu0 0
        %1457 = vperm.xlu0 %1456, %v1449
        %v1458 = vpop.permute.xlu0 %1457
        %v1490 = vunpack.c.l.b16 %v1418
        %v1491 = vunpack.c.h.b16 %v1418
        %v1492 = vunpack.c.l.b16 %v1419
        %v1493 = vunpack.c.h.b16 %v1419
        %v1494 = vunpack.c.l.b16 %v1420
        %v1495 = vunpack.c.l.b16 %v1421
        %v1496 = vunpack.c.h.b16 %v1421
        %v1497 = vunpack.c.l.b16 %v1422
        %v1498 = vunpack.c.h.b16 %v1422
        %v1499 = vunpack.c.l.b16 %v1423
        %v1500 = vunpack.c.l.b16 %v1424
        %v1501 = vunpack.c.h.b16 %v1424
        %v1502 = vunpack.c.l.b16 %v1425
        %v1503 = vunpack.c.h.b16 %v1425
        %v1504 = vunpack.c.l.b16 %v1426
        %v1505 = vunpack.c.l.b16 %v1427
        %v1506 = vunpack.c.h.b16 %v1427
        %v1507 = vunpack.c.l.b16 %v1428
        %v1508 = vunpack.c.h.b16 %v1428
        %v1509 = vunpack.c.l.b16 %v1429
        %v1510 = vunpack.c.l.b16 %v1430
        %v1511 = vunpack.c.h.b16 %v1430
        %v1512 = vunpack.c.l.b16 %v1431
        %v1513 = vunpack.c.h.b16 %v1431
        %v1514 = vunpack.c.l.b16 %v1432
        %v1515 = vunpack.c.l.b16 %v1433
        %v1516 = vunpack.c.h.b16 %v1433
        %v1517 = vunpack.c.l.b16 %v1434
        %v1518 = vunpack.c.h.b16 %v1434
        %v1519 = vunpack.c.l.b16 %v1435
        %v1520 = vunpack.c.l.b16 %v1436
        %v1521 = vunpack.c.h.b16 %v1436
        %v1522 = vunpack.c.l.b16 %v1437
        %v1523 = vunpack.c.h.b16 %v1437
        %v1524 = vunpack.c.l.b16 %v1438
        %v1525 = vunpack.c.l.b16 %v1439
        %v1526 = vunpack.c.h.b16 %v1439
        %v1527 = vunpack.c.l.b16 %v1440
        %v1528 = vunpack.c.h.b16 %v1440
        %v1529 = vunpack.c.l.b16 %v1441
        %v1530 = vunpack.c.l.b16 %v1442
        %v1531 = vunpack.c.h.b16 %v1442
        %v1532 = vunpack.c.l.b16 %v1443
        %v1533 = vunpack.c.h.b16 %v1443
        %v1534 = vunpack.c.l.b16 %v1444
        %v1535 = vunpack.c.l.b16 %v1445
        %v1536 = vunpack.c.h.b16 %v1445
        %v1537 = vunpack.c.l.b16 %v1446
        %v1538 = vunpack.c.h.b16 %v1446
        %v1539 = vunpack.c.l.b16 %v1447
        %v1540 = vpack.c.b16 %v1495, %v1490
        %v1541 = vpack.c.b16 %v1496, %v1491
        %v1542 = vpack.c.b16 %v1497, %v1492
        %v1543 = vpack.c.b16 %v1498, %v1493
        %v1544 = vpack.c.b16 %v1499, %v1494
        %v1545 = vpack.c.b16 %v1505, %v1500
        %v1546 = vpack.c.b16 %v1506, %v1501
        %v1547 = vpack.c.b16 %v1507, %v1502
        %v1548 = vpack.c.b16 %v1508, %v1503
        %v1549 = vpack.c.b16 %v1509, %v1504
        %v1550 = vpack.c.b16 %v1515, %v1510
        %v1551 = vpack.c.b16 %v1516, %v1511
        %v1552 = vpack.c.b16 %v1517, %v1512
        %v1553 = vpack.c.b16 %v1518, %v1513
        %v1554 = vpack.c.b16 %v1519, %v1514
        %v1555 = vpack.c.b16 %v1525, %v1520
        %v1556 = vpack.c.b16 %v1526, %v1521
        %v1557 = vpack.c.b16 %v1527, %v1522
        %v1558 = vpack.c.b16 %v1528, %v1523
        %v1559 = vpack.c.b16 %v1529, %v1524
        %v1560 = vpack.c.b16 %v1535, %v1530
        %v1561 = vpack.c.b16 %v1536, %v1531
        %v1562 = vpack.c.b16 %v1537, %v1532
        %v1563 = vpack.c.b16 %v1538, %v1533
        %v1564 = vpack.c.b16 %v1539, %v1534
        %vm1590 = vcmask 654336
        %v1592 = vsel %vm1590, %v1417, 0
        %1594 = vmatpush.bf16.msra.mxu0 0
        %1595 = vmatpush.bf16.msra.mxu0 0
        %1596 = vmatpush.bf16.msra.mxu0 0
        %1597 = vmatpush.bf16.msra.mxu0 %v1560
        %1598 = vmatpush.bf16.msra.mxu0 %v1555
        %1599 = vmatpush.bf16.msra.mxu0 %v1550
        %1600 = vmatpush.bf16.msra.mxu0 %v1545
        %1601 = vmatpush.bf16.msra.mxu0 %v1540
        %1602 = vmatmul.bf16.gmra.mxu0 %v1592
        %v1603 = vpop.f32.mrf.mxu0
        %v1604 = vadd.f32 %v1453, %v1603
        %v1605 = vpop.f32.mrf.mxu0
        %v1606 = vadd.f32 %v1458, %v1605
        %1607 = vdwg.mxu0
        %1608 = vmatpush.bf16.msra.mxu0 0
        %1609 = vmatpush.bf16.msra.mxu0 0
        %1610 = vmatpush.bf16.msra.mxu0 0
        %1611 = vmatpush.bf16.msra.mxu0 %v1561
        %1612 = vmatpush.bf16.msra.mxu0 %v1556
        %1613 = vmatpush.bf16.msra.mxu0 %v1551
        %1614 = vmatpush.bf16.msra.mxu0 %v1546
        %1615 = vmatpush.bf16.msra.mxu0 %v1541
        %1616 = vmatmul.bf16.gmra.mxu0 %v1592
        %v1617 = vpop.f32.mrf.mxu0
        %v1618 = vadd.f32 %v1453, %v1617
        %v1619 = vpop.f32.mrf.mxu0
        %v1620 = vadd.f32 %v1458, %v1619
        %1621 = vdwg.mxu0
        %1622 = vmatpush.bf16.msra.mxu0 0
        %1623 = vmatpush.bf16.msra.mxu0 0
        %1624 = vmatpush.bf16.msra.mxu0 0
        %1625 = vmatpush.bf16.msra.mxu0 %v1562
        %1626 = vmatpush.bf16.msra.mxu0 %v1557
        %1627 = vmatpush.bf16.msra.mxu0 %v1552
        %1628 = vmatpush.bf16.msra.mxu0 %v1547
        %1629 = vmatpush.bf16.msra.mxu0 %v1542
        %1630 = vmatmul.bf16.gmra.mxu0 %v1592
        %v1631 = vpop.f32.mrf.mxu0
        %v1632 = vadd.f32 %v1453, %v1631
        %v1633 = vpop.f32.mrf.mxu0
        %v1634 = vadd.f32 %v1458, %v1633
        %1635 = vdwg.mxu0
        %1636 = vmatpush.bf16.msra.mxu0 0
        %1637 = vmatpush.bf16.msra.mxu0 0
        %1638 = vmatpush.bf16.msra.mxu0 0
        %1639 = vmatpush.bf16.msra.mxu0 %v1563
        %1640 = vmatpush.bf16.msra.mxu0 %v1558
        %1641 = vmatpush.bf16.msra.mxu0 %v1553
        %1642 = vmatpush.bf16.msra.mxu0 %v1548
        %1643 = vmatpush.bf16.msra.mxu0 %v1543
        %1644 = vmatmul.bf16.gmra.mxu0 %v1592
        %v1645 = vpop.f32.mrf.mxu0
        %v1646 = vadd.f32 %v1453, %v1645
        %v1647 = vpop.f32.mrf.mxu0
        %v1648 = vadd.f32 %v1458, %v1647
        %1649 = vdwg.mxu0
        %1650 = vmatpush.bf16.msra.mxu0 0
        %1651 = vmatpush.bf16.msra.mxu0 0
        %1652 = vmatpush.bf16.msra.mxu0 0
        %1653 = vmatpush.bf16.msra.mxu0 %v1564
        %1654 = vmatpush.bf16.msra.mxu0 %v1559
        %1655 = vmatpush.bf16.msra.mxu0 %v1554
        %1656 = vmatpush.bf16.msra.mxu0 %v1549
        %1657 = vmatpush.bf16.msra.mxu0 %v1544
        %1658 = vmatmul.bf16.gmra.mxu0 %v1592
        %v1659 = vpop.f32.mrf.mxu0
        %v1660 = vadd.f32 %v1453, %v1659
        %v1661 = vpop.f32.mrf.mxu0
        %v1662 = vadd.f32 %v1458, %v1661
        %1663 = vdwg.mxu0
        %v1664 = vmul.f32 %v1604, 0.5
        %v1665 = vmul.f32 %v1618, 0.5
        %v1666 = vmul.f32 %v1632, 0.5
        %v1667 = vmul.f32 %v1646, 0.5
        %v1668 = vmul.f32 %v1660, 0.5
        %v1669 = vmul.f32 %v1606, 0.5
        %v1670 = vmul.f32 %v1620, 0.5
        %v1671 = vmul.f32 %v1634, 0.5
        %v1672 = vmul.f32 %v1648, 0.5
        %v1673 = vmul.f32 %v1662, 0.5
        %v1674 = vmul.f32 %v1604, 0.70710677
        %v1675 = vmul.f32 %v1618, 0.70710677
        %v1676 = vmul.f32 %v1632, 0.70710677
        %v1677 = vmul.f32 %v1646, 0.70710677
        %v1678 = vmul.f32 %v1660, 0.70710677
        %v1679 = vmul.f32 %v1606, 0.70710677
        %v1680 = vmul.f32 %v1620, 0.70710677
        %v1681 = vmul.f32 %v1634, 0.70710677
        %v1682 = vmul.f32 %v1648, 0.70710677
        %v1683 = vmul.f32 %v1662, 0.70710677
        %vm1684 = vcmp.ge.f32.partialorder %v1674, 0.0
        %vm1685 = vcmp.ge.f32.partialorder %v1675, 0.0
        %vm1686 = vcmp.ge.f32.partialorder %v1676, 0.0
        %vm1687 = vcmp.ge.f32.partialorder %v1677, 0.0
        %vm1688 = vcmp.ge.f32.partialorder %v1678, 0.0
        %vm1689 = vcmp.ge.f32.partialorder %v1679, 0.0
        %vm1690 = vcmp.ge.f32.partialorder %v1680, 0.0
        %vm1691 = vcmp.ge.f32.partialorder %v1681, 0.0
        %vm1692 = vcmp.ge.f32.partialorder %v1682, 0.0
        %vm1693 = vcmp.ge.f32.partialorder %v1683, 0.0
        %v1694 = vsel %vm1684, 1.0, -1.0
        %v1695 = vsel %vm1685, 1.0, -1.0
        %v1696 = vsel %vm1686, 1.0, -1.0
        %v1697 = vsel %vm1687, 1.0, -1.0
        %v1698 = vsel %vm1688, 1.0, -1.0
        %v1699 = vsel %vm1689, 1.0, -1.0
        %v1700 = vsel %vm1690, 1.0, -1.0
        %v1701 = vsel %vm1691, 1.0, -1.0
        %v1702 = vsel %vm1692, 1.0, -1.0
        %v1703 = vsel %vm1693, 1.0, -1.0
        %v1704 = vand.u32 2147483647, %v1674
        %v1705 = vand.u32 2147483647, %v1675
        %v1706 = vand.u32 2147483647, %v1676
        %v1707 = vand.u32 2147483647, %v1677
        %v1708 = vand.u32 2147483647, %v1678
        %v1709 = vand.u32 2147483647, %v1679
        %v1710 = vand.u32 2147483647, %v1680
        %v1711 = vand.u32 2147483647, %v1681
        %v1712 = vand.u32 2147483647, %v1682
        %v1713 = vand.u32 2147483647, %v1683
        %v1714 = vmul.f32 %v1704, 0.3275911
        %v1715 = vmul.f32 %v1705, 0.3275911
        %v1716 = vmul.f32 %v1706, 0.3275911
        %v1717 = vmul.f32 %v1707, 0.3275911
        %v1718 = vmul.f32 %v1708, 0.3275911
        %v1719 = vmul.f32 %v1709, 0.3275911
        %v1720 = vmul.f32 %v1710, 0.3275911
        %v1721 = vmul.f32 %v1711, 0.3275911
        %v1722 = vmul.f32 %v1712, 0.3275911
        %v1723 = vmul.f32 %v1713, 0.3275911
        %v1724 = vadd.f32 %v1714, 1.0
        %v1725 = vadd.f32 %v1715, 1.0
        %v1726 = vadd.f32 %v1716, 1.0
        %v1727 = vadd.f32 %v1717, 1.0
        %v1728 = vadd.f32 %v1718, 1.0
        %v1729 = vadd.f32 %v1719, 1.0
        %v1730 = vadd.f32 %v1720, 1.0
        %v1731 = vadd.f32 %v1721, 1.0
        %v1732 = vadd.f32 %v1722, 1.0
        %v1733 = vadd.f32 %v1723, 1.0
        %v1734 = vrcp.pop %v1724
        %v1735 = vrcp.pop %v1725
        %v1736 = vrcp.pop %v1726
        %v1737 = vrcp.pop %v1727
        %v1738 = vrcp.pop %v1728
        %v1739 = vrcp.pop %v1729
        %v1740 = vrcp.pop %v1730
        %v1741 = vrcp.pop %v1731
        %v1742 = vrcp.pop %v1732
        %v1743 = vrcp.pop %v1733
        %v1744 = vmul.f32 %v1734, 1.0614054
        %v1745 = vmul.f32 %v1735, 1.0614054
        %v1746 = vmul.f32 %v1736, 1.0614054
        %v1747 = vmul.f32 %v1737, 1.0614054
        %v1748 = vmul.f32 %v1738, 1.0614054
        %v1749 = vmul.f32 %v1739, 1.0614054
        %v1750 = vmul.f32 %v1740, 1.0614054
        %v1751 = vmul.f32 %v1741, 1.0614054
        %v1752 = vmul.f32 %v1742, 1.0614054
        %v1753 = vmul.f32 %v1743, 1.0614054
        %v1754 = vadd.f32 %v1744, -1.4531521
        %v1755 = vadd.f32 %v1745, -1.4531521
        %v1756 = vadd.f32 %v1746, -1.4531521
        %v1757 = vadd.f32 %v1747, -1.4531521
        %v1758 = vadd.f32 %v1748, -1.4531521
        %v1759 = vadd.f32 %v1749, -1.4531521
        %v1760 = vadd.f32 %v1750, -1.4531521
        %v1761 = vadd.f32 %v1751, -1.4531521
        %v1762 = vadd.f32 %v1752, -1.4531521
        %v1763 = vadd.f32 %v1753, -1.4531521
        %v1764 = vmul.f32 %v1734, %v1754
        %v1765 = vmul.f32 %v1735, %v1755
        %v1766 = vmul.f32 %v1736, %v1756
        %v1767 = vmul.f32 %v1737, %v1757
        %v1768 = vmul.f32 %v1738, %v1758
        %v1769 = vmul.f32 %v1739, %v1759
        %v1770 = vmul.f32 %v1740, %v1760
        %v1771 = vmul.f32 %v1741, %v1761
        %v1772 = vmul.f32 %v1742, %v1762
        %v1773 = vmul.f32 %v1743, %v1763
        %v1774 = vadd.f32 %v1764, 1.4214138
        %v1775 = vadd.f32 %v1765, 1.4214138
        %v1776 = vadd.f32 %v1766, 1.4214138
        %v1777 = vadd.f32 %v1767, 1.4214138
        %v1778 = vadd.f32 %v1768, 1.4214138
        %v1779 = vadd.f32 %v1769, 1.4214138
        %v1780 = vadd.f32 %v1770, 1.4214138
        %v1781 = vadd.f32 %v1771, 1.4214138
        %v1782 = vadd.f32 %v1772, 1.4214138
        %v1783 = vadd.f32 %v1773, 1.4214138
        %v1784 = vmul.f32 %v1734, %v1774
        %v1785 = vmul.f32 %v1735, %v1775
        %v1786 = vmul.f32 %v1736, %v1776
        %v1787 = vmul.f32 %v1737, %v1777
        %v1788 = vmul.f32 %v1738, %v1778
        %v1789 = vmul.f32 %v1739, %v1779
        %v1790 = vmul.f32 %v1740, %v1780
        %v1791 = vmul.f32 %v1741, %v1781
        %v1792 = vmul.f32 %v1742, %v1782
        %v1793 = vmul.f32 %v1743, %v1783
        %v1794 = vadd.f32 %v1784, -0.28449672
        %v1795 = vadd.f32 %v1785, -0.28449672
        %v1796 = vadd.f32 %v1786, -0.28449672
        %v1797 = vadd.f32 %v1787, -0.28449672
        %v1798 = vadd.f32 %v1788, -0.28449672
        %v1799 = vadd.f32 %v1789, -0.28449672
        %v1800 = vadd.f32 %v1790, -0.28449672
        %v1801 = vadd.f32 %v1791, -0.28449672
        %v1802 = vadd.f32 %v1792, -0.28449672
        %v1803 = vadd.f32 %v1793, -0.28449672
        %v1804 = vmul.f32 %v1734, %v1794
        %v1805 = vmul.f32 %v1735, %v1795
        %v1806 = vmul.f32 %v1736, %v1796
        %v1807 = vmul.f32 %v1737, %v1797
        %v1808 = vmul.f32 %v1738, %v1798
        %v1809 = vmul.f32 %v1739, %v1799
        %v1810 = vmul.f32 %v1740, %v1800
        %v1811 = vmul.f32 %v1741, %v1801
        %v1812 = vmul.f32 %v1742, %v1802
        %v1813 = vmul.f32 %v1743, %v1803
        %v1814 = vadd.f32 %v1804, 0.2548296
        %v1815 = vadd.f32 %v1805, 0.2548296
        %v1816 = vadd.f32 %v1806, 0.2548296
        %v1817 = vadd.f32 %v1807, 0.2548296
        %v1818 = vadd.f32 %v1808, 0.2548296
        %v1819 = vadd.f32 %v1809, 0.2548296
        %v1820 = vadd.f32 %v1810, 0.2548296
        %v1821 = vadd.f32 %v1811, 0.2548296
        %v1822 = vadd.f32 %v1812, 0.2548296
        %v1823 = vadd.f32 %v1813, 0.2548296
        %v1824 = vmul.f32 %v1734, %v1814
        %v1825 = vmul.f32 %v1735, %v1815
        %v1826 = vmul.f32 %v1736, %v1816
        %v1827 = vmul.f32 %v1737, %v1817
        %v1828 = vmul.f32 %v1738, %v1818
        %v1829 = vmul.f32 %v1739, %v1819
        %v1830 = vmul.f32 %v1740, %v1820
        %v1831 = vmul.f32 %v1741, %v1821
        %v1832 = vmul.f32 %v1742, %v1822
        %v1833 = vmul.f32 %v1743, %v1823
        %v1834 = vsub.f32 0.0, %v1704
        %v1835 = vsub.f32 0.0, %v1705
        %v1836 = vsub.f32 0.0, %v1706
        %v1837 = vsub.f32 0.0, %v1707
        %v1838 = vsub.f32 0.0, %v1708
        %v1839 = vsub.f32 0.0, %v1709
        %v1840 = vsub.f32 0.0, %v1710
        %v1841 = vsub.f32 0.0, %v1711
        %v1842 = vsub.f32 0.0, %v1712
        %v1843 = vsub.f32 0.0, %v1713
        %v1844 = vmul.f32 %v1834, %v1704
        %v1845 = vmul.f32 %v1835, %v1705
        %v1846 = vmul.f32 %v1836, %v1706
        %v1847 = vmul.f32 %v1837, %v1707
        %v1848 = vmul.f32 %v1838, %v1708
        %v1849 = vmul.f32 %v1839, %v1709
        %v1850 = vmul.f32 %v1840, %v1710
        %v1851 = vmul.f32 %v1841, %v1711
        %v1852 = vmul.f32 %v1842, %v1712
        %v1853 = vmul.f32 %v1843, %v1713
        %v1854 = vmul.f32 %v1844, 1.442695
        %v1855 = vpow.pop %v1854
        %v1856 = vmul.f32 %v1845, 1.442695
        %v1857 = vpow.pop %v1856
        %v1858 = vmul.f32 %v1846, 1.442695
        %v1859 = vpow.pop %v1858
        %v1860 = vmul.f32 %v1847, 1.442695
        %v1861 = vpow.pop %v1860
        %v1862 = vmul.f32 %v1848, 1.442695
        %v1863 = vpow.pop %v1862
        %v1864 = vmul.f32 %v1849, 1.442695
        %v1865 = vpow.pop %v1864
        %v1866 = vmul.f32 %v1850, 1.442695
        %v1867 = vpow.pop %v1866
        %v1868 = vmul.f32 %v1851, 1.442695
        %v1869 = vpow.pop %v1868
        %v1870 = vmul.f32 %v1852, 1.442695
        %v1871 = vpow.pop %v1870
        %v1872 = vmul.f32 %v1853, 1.442695
        %v1873 = vpow.pop %v1872
        %v1874 = vmul.f32 %v1824, %v1855
        %v1875 = vmul.f32 %v1825, %v1857
        %v1876 = vmul.f32 %v1826, %v1859
        %v1877 = vmul.f32 %v1827, %v1861
        %v1878 = vmul.f32 %v1828, %v1863
        %v1879 = vmul.f32 %v1829, %v1865
        %v1880 = vmul.f32 %v1830, %v1867
        %v1881 = vmul.f32 %v1831, %v1869
        %v1882 = vmul.f32 %v1832, %v1871
        %v1883 = vmul.f32 %v1833, %v1873
        %v1884 = vsub.f32 1.0, %v1874
        %v1885 = vsub.f32 1.0, %v1875
        %v1886 = vsub.f32 1.0, %v1876
        %v1887 = vsub.f32 1.0, %v1877
        %v1888 = vsub.f32 1.0, %v1878
        %v1889 = vsub.f32 1.0, %v1879
        %v1890 = vsub.f32 1.0, %v1880
        %v1891 = vsub.f32 1.0, %v1881
        %v1892 = vsub.f32 1.0, %v1882
        %v1893 = vsub.f32 1.0, %v1883
        %v1894 = vmul.f32 %v1694, %v1884
        %v1895 = vmul.f32 %v1695, %v1885
        %v1896 = vmul.f32 %v1696, %v1886
        %v1897 = vmul.f32 %v1697, %v1887
        %v1898 = vmul.f32 %v1698, %v1888
        %v1899 = vmul.f32 %v1699, %v1889
        %v1900 = vmul.f32 %v1700, %v1890
        %v1901 = vmul.f32 %v1701, %v1891
        %v1902 = vmul.f32 %v1702, %v1892
        %v1903 = vmul.f32 %v1703, %v1893
        %v1904 = vadd.f32 %v1894, 1.0
        %v1905 = vadd.f32 %v1895, 1.0
        %v1906 = vadd.f32 %v1896, 1.0
        %v1907 = vadd.f32 %v1897, 1.0
        %v1908 = vadd.f32 %v1898, 1.0
        %v1909 = vadd.f32 %v1899, 1.0
        %v1910 = vadd.f32 %v1900, 1.0
        %v1911 = vadd.f32 %v1901, 1.0
        %v1912 = vadd.f32 %v1902, 1.0
        %v1913 = vadd.f32 %v1903, 1.0
        %v1914 = vmul.f32 %v1664, %v1904
        %v1915 = vmul.f32 %v1665, %v1905
        %v1916 = vmul.f32 %v1666, %v1906
        %v1917 = vmul.f32 %v1667, %v1907
        %v1918 = vmul.f32 %v1668, %v1908
        %v1919 = vmul.f32 %v1669, %v1909
        %v1920 = vmul.f32 %v1670, %v1910
        %v1921 = vmul.f32 %v1671, %v1911
        %v1922 = vmul.f32 %v1672, %v1912
        %v1923 = vmul.f32 %v1673, %v1913
        %v1924 = vpack.c.bf16 %v1915, %v1914
        %v1925 = vpack.c.bf16 %v1917, %v1916
        %v1926 = vpack.c.bf16 %v1918, %v1918
        %v1927 = vpack.c.bf16 %v1920, %v1919
        %v1928 = vpack.c.bf16 %v1922, %v1921
        %v1929 = vpack.c.bf16 %v1923, %v1923
        %1930 = vst [vmem:[#allocation2 + $0xa0] sm:$0xff] %v1924
        %1931 = vst [vmem:[#allocation2 + $0xa8] sm:$0xff] %v1925
        %1932 = vst [vmem:[#allocation2 + $0xb0] sm:$0xf] %v1926
        %1933 = vst [vmem:[#allocation2 + $0xb4] sm:$0xff] %v1927
        %1934 = vst [vmem:[#allocation2 + $0xbc] sm:$0xff] %v1928
        %1935 = vst [vmem:[#allocation2 + $0xc4] sm:$0xf] %v1929
        %v1942 = vunpack.c.l.b16 %v1924
        %v1943 = vunpack.c.h.b16 %v1924
        %v1944 = vunpack.c.l.b16 %v1925
        %v1945 = vunpack.c.h.b16 %v1925
        %v1946 = vunpack.c.l.b16 %v1926
        %v1947 = vunpack.c.l.b16 %v1927
        %v1948 = vunpack.c.h.b16 %v1927
        %v1949 = vunpack.c.l.b16 %v1928
        %v1950 = vunpack.c.h.b16 %v1928
        %v1951 = vunpack.c.l.b16 %v1929
        %v1952 = vpack.c.b16 %v1947, %v1942
        %v1953 = vpack.c.b16 %v1948, %v1943
        %v1954 = vpack.c.b16 %v1949, %v1944
        %v1955 = vpack.c.b16 %v1950, %v1945
        %v1956 = vpack.c.b16 %v1951, %v1946
        %1962 = vmatpush.bf16.msra.mxu0 %v952
        %1963 = vmatpush.bf16.msra.mxu0 %v951
        %1964 = vmatpush.bf16.msra.mxu0 %v950
        %1965 = vmatpush.bf16.msra.mxu0 %v949
        %1966 = vmatpush.bf16.msra.mxu0 %v948
        %1967 = vmatpush.bf16.msra.mxu0 %v947
        %1968 = vmatpush.bf16.msra.mxu0 %v946
        %1969 = vmatpush.bf16.msra.mxu0 %v945
        %1970 = vmatmul.bf16.gmra.mxu0 %v1952
        %v1971 = vpop.f32.mrf.mxu0
        %v1972 = vadd.f32 0.0, %v1971
        %v1973 = vpop.f32.mrf.mxu0
        %v1974 = vadd.f32 0.0, %v1973
        %1975 = vdwg.mxu0
        %1976 = vmatpush.bf16.msra.mxu0 %v960
        %1977 = vmatpush.bf16.msra.mxu0 %v959
        %1978 = vmatpush.bf16.msra.mxu0 %v958
        %1979 = vmatpush.bf16.msra.mxu0 %v957
        %1980 = vmatpush.bf16.msra.mxu0 %v956
        %1981 = vmatpush.bf16.msra.mxu0 %v955
        %1982 = vmatpush.bf16.msra.mxu0 %v954
        %1983 = vmatpush.bf16.msra.mxu0 %v953
        %1984 = vmatmul.bf16.gmra.mxu0 %v1953
        %v1985 = vpop.f32.mrf.mxu0
        %v1986 = vadd.f32 %v1972, %v1985
        %v1987 = vpop.f32.mrf.mxu0
        %v1988 = vadd.f32 %v1974, %v1987
        %1989 = vdwg.mxu0
        %1990 = vmatpush.bf16.msra.mxu0 %v968
        %1991 = vmatpush.bf16.msra.mxu0 %v967
        %1992 = vmatpush.bf16.msra.mxu0 %v966
        %1993 = vmatpush.bf16.msra.mxu0 %v965
        %1994 = vmatpush.bf16.msra.mxu0 %v964
        %1995 = vmatpush.bf16.msra.mxu0 %v963
        %1996 = vmatpush.bf16.msra.mxu0 %v962
        %1997 = vmatpush.bf16.msra.mxu0 %v961
        %1998 = vmatmul.bf16.gmra.mxu0 %v1954
        %v1999 = vpop.f32.mrf.mxu0
        %v2000 = vadd.f32 %v1986, %v1999
        %v2001 = vpop.f32.mrf.mxu0
        %v2002 = vadd.f32 %v1988, %v2001
        %2003 = vdwg.mxu0
        %2004 = vmatpush.bf16.msra.mxu0 %v976
        %2005 = vmatpush.bf16.msra.mxu0 %v975
        %2006 = vmatpush.bf16.msra.mxu0 %v974
        %2007 = vmatpush.bf16.msra.mxu0 %v973
        %2008 = vmatpush.bf16.msra.mxu0 %v972
        %2009 = vmatpush.bf16.msra.mxu0 %v971
        %2010 = vmatpush.bf16.msra.mxu0 %v970
        %2011 = vmatpush.bf16.msra.mxu0 %v969
        %2012 = vmatmul.bf16.gmra.mxu0 %v1955
        %v2013 = vpop.f32.mrf.mxu0
        %v2014 = vadd.f32 %v2000, %v2013
        %v2015 = vpop.f32.mrf.mxu0
        %v2016 = vadd.f32 %v2002, %v2015
        %2017 = vdwg.mxu0
        %2018 = vmatpush.bf16.msra.mxu0 %v984
        %2019 = vmatpush.bf16.msra.mxu0 %v983
        %2020 = vmatpush.bf16.msra.mxu0 %v982
        %2021 = vmatpush.bf16.msra.mxu0 %v981
        %2022 = vmatpush.bf16.msra.mxu0 %v980
        %2023 = vmatpush.bf16.msra.mxu0 %v979
        %2024 = vmatpush.bf16.msra.mxu0 %v978
        %2025 = vmatpush.bf16.msra.mxu0 %v977
        %2026 = vmatmul.bf16.gmra.mxu0 %v1956
        %v2027 = vpop.f32.mrf.mxu0
        %v2028 = vadd.f32 %v2014, %v2027
        %v2029 = vpop.f32.mrf.mxu0
        %v2030 = vadd.f32 %v2016, %v2029
        %2031 = vdwg.mxu0
        %s2032 = scalar_lea.vmem %s6, 256
        %v2033 = vld [vmem:[%s2032] sm:$0xff]
        %v2034 = vld [vmem:[%s2032 + $0x8] sm:$0xff]
        %v2035 = vld [vmem:[%s2032 + $0x10] sm:$0xff]
        %v2036 = vld [vmem:[%s2032 + $0x18] sm:$0xff]
        %v2037 = vld [vmem:[%s2032 + $0x20] sm:$0xff]
        %v2038 = vld [vmem:[%s2032 + $0x28] sm:$0xff]
        %v2039 = vld [vmem:[%s2032 + $0x30] sm:$0xff]
        %v2040 = vld [vmem:[%s2032 + $0x38] sm:$0xff]
        %v2041 = vld [vmem:[%s2032 + $0x40] sm:$0xff]
        %v2042 = vld [vmem:[%s2032 + $0x48] sm:$0xff]
        %v2043 = vld [vmem:[%s2032 + $0x50] sm:$0xff]
        %v2044 = vld [vmem:[%s2032 + $0x58] sm:$0xff]
        %v2045 = vld [vmem:[%s2032 + $0x60] sm:$0xff]
        %v2046 = vld [vmem:[%s2032 + $0x68] sm:$0xff]
        %v2047 = vld [vmem:[%s2032 + $0x70] sm:$0xff]
        %v2048 = vld [vmem:[%s2032 + $0x78] sm:$0xff]
        %v2049 = vld [vmem:[%s2032 + $0x80] sm:$0xff]
        %v2050 = vld [vmem:[%s2032 + $0x88] sm:$0xff]
        %v2051 = vld [vmem:[%s2032 + $0x90] sm:$0xff]
        %v2052 = vld [vmem:[%s2032 + $0x98] sm:$0xff]
        %v2053 = vld [vmem:[%s2032 + $0xa0] sm:$0xff]
        %v2054 = vld [vmem:[%s2032 + $0xa8] sm:$0xff]
        %v2055 = vld [vmem:[%s2032 + $0xb0] sm:$0xff]
        %v2056 = vld [vmem:[%s2032 + $0xb8] sm:$0xff]
        %v2057 = vld [vmem:[%s2032 + $0xc0] sm:$0xff]
        %v2058 = vld [vmem:[%s2032 + $0xc8] sm:$0xff]
        %v2059 = vld [vmem:[%s2032 + $0xd0] sm:$0xff]
        %v2060 = vld [vmem:[%s2032 + $0xd8] sm:$0xff]
        %v2061 = vld [vmem:[%s2032 + $0xe0] sm:$0xff]
        %v2062 = vld [vmem:[%s2032 + $0xe8] sm:$0xff]
        %v2063 = vld [vmem:[%s2032 + $0xf0] sm:$0xff]
        %v2064 = vld [vmem:[%s2032 + $0xf8] sm:$0xff]
        %v2065 = vmul.f32 %v2028, %v2033
        %v2066 = vmul.f32 %v2030, %v2034
        %v2067 = vmul.f32 %v2028, %v2035
        %v2068 = vmul.f32 %v2030, %v2036
        %v2069 = vmul.f32 %v2028, %v2037
        %v2070 = vmul.f32 %v2030, %v2038
        %v2071 = vmul.f32 %v2028, %v2039
        %v2072 = vmul.f32 %v2030, %v2040
        %v2073 = vmul.f32 %v2028, %v2041
        %v2074 = vmul.f32 %v2030, %v2042
        %v2075 = vmul.f32 %v2028, %v2043
        %v2076 = vmul.f32 %v2030, %v2044
        %v2077 = vmul.f32 %v2028, %v2045
        %v2078 = vmul.f32 %v2030, %v2046
        %v2079 = vmul.f32 %v2028, %v2047
        %v2080 = vmul.f32 %v2030, %v2048
        %v2081 = vmul.f32 %v2028, %v2049
        %v2082 = vmul.f32 %v2030, %v2050
        %v2083 = vmul.f32 %v2028, %v2051
        %v2084 = vmul.f32 %v2030, %v2052
        %v2085 = vmul.f32 %v2028, %v2053
        %v2086 = vmul.f32 %v2030, %v2054
        %v2087 = vmul.f32 %v2028, %v2055
        %v2088 = vmul.f32 %v2030, %v2056
        %v2089 = vmul.f32 %v2028, %v2057
        %v2090 = vmul.f32 %v2030, %v2058
        %v2091 = vmul.f32 %v2028, %v2059
        %v2092 = vmul.f32 %v2030, %v2060
        %v2093 = vmul.f32 %v2028, %v2061
        %v2094 = vmul.f32 %v2030, %v2062
        %v2095 = vmul.f32 %v2028, %v2063
        %v2096 = vmul.f32 %v2030, %v2064
        %v2097 = vadd.f32 %v2065, %v2066
        %v2098 = vrot.slane %v2097, 4
        %v2099 = vadd.f32 %v2097, %v2098
        %v2100 = vrot.slane %v2099, 2
        %v2101 = vadd.f32 %v2099, %v2100
        %v2102 = vrot.slane %v2101, 1
        %v2103 = vadd.f32 %v2101, %v2102
        %v2104 = vadd.f32 %v2067, %v2068
        %v2105 = vrot.slane %v2104, 4
        %v2106 = vadd.f32 %v2104, %v2105
        %v2107 = vrot.slane %v2106, 2
        %v2108 = vadd.f32 %v2106, %v2107
        %v2109 = vrot.slane %v2108, 1
        %v2110 = vadd.f32 %v2108, %v2109
        %v2111 = vadd.f32 %v2069, %v2070
        %v2112 = vrot.slane %v2111, 4
        %v2113 = vadd.f32 %v2111, %v2112
        %v2114 = vrot.slane %v2113, 2
        %v2115 = vadd.f32 %v2113, %v2114
        %v2116 = vrot.slane %v2115, 1
        %v2117 = vadd.f32 %v2115, %v2116
        %v2118 = vadd.f32 %v2071, %v2072
        %v2119 = vrot.slane %v2118, 4
        %v2120 = vadd.f32 %v2118, %v2119
        %v2121 = vrot.slane %v2120, 2
        %v2122 = vadd.f32 %v2120, %v2121
        %v2123 = vrot.slane %v2122, 1
        %v2124 = vadd.f32 %v2122, %v2123
        %v2125 = vadd.f32 %v2073, %v2074
        %v2126 = vrot.slane %v2125, 4
        %v2127 = vadd.f32 %v2125, %v2126
        %v2128 = vrot.slane %v2127, 2
        %v2129 = vadd.f32 %v2127, %v2128
        %v2130 = vrot.slane %v2129, 1
        %v2131 = vadd.f32 %v2129, %v2130
        %v2132 = vadd.f32 %v2075, %v2076
        %v2133 = vrot.slane %v2132, 4
        %v2134 = vadd.f32 %v2132, %v2133
        %v2135 = vrot.slane %v2134, 2
        %v2136 = vadd.f32 %v2134, %v2135
        %v2137 = vrot.slane %v2136, 1
        %v2138 = vadd.f32 %v2136, %v2137
        %v2139 = vadd.f32 %v2077, %v2078
        %v2140 = vrot.slane %v2139, 4
        %v2141 = vadd.f32 %v2139, %v2140
        %v2142 = vrot.slane %v2141, 2
        %v2143 = vadd.f32 %v2141, %v2142
        %v2144 = vrot.slane %v2143, 1
        %v2145 = vadd.f32 %v2143, %v2144
        %v2146 = vadd.f32 %v2079, %v2080
        %v2147 = vrot.slane %v2146, 4
        %v2148 = vadd.f32 %v2146, %v2147
        %v2149 = vrot.slane %v2148, 2
        %v2150 = vadd.f32 %v2148, %v2149
        %v2151 = vrot.slane %v2150, 1
        %v2152 = vadd.f32 %v2150, %v2151
        %v2153 = vadd.f32 %v2081, %v2082
        %v2154 = vrot.slane %v2153, 4
        %v2155 = vadd.f32 %v2153, %v2154
        %v2156 = vrot.slane %v2155, 2
        %v2157 = vadd.f32 %v2155, %v2156
        %v2158 = vrot.slane %v2157, 1
        %v2159 = vadd.f32 %v2157, %v2158
        %v2160 = vadd.f32 %v2083, %v2084
        %v2161 = vrot.slane %v2160, 4
        %v2162 = vadd.f32 %v2160, %v2161
        %v2163 = vrot.slane %v2162, 2
        %v2164 = vadd.f32 %v2162, %v2163
        %v2165 = vrot.slane %v2164, 1
        %v2166 = vadd.f32 %v2164, %v2165
        %v2167 = vadd.f32 %v2085, %v2086
        %v2168 = vrot.slane %v2167, 4
        %v2169 = vadd.f32 %v2167, %v2168
        %v2170 = vrot.slane %v2169, 2
        %v2171 = vadd.f32 %v2169, %v2170
        %v2172 = vrot.slane %v2171, 1
        %v2173 = vadd.f32 %v2171, %v2172
        %v2174 = vadd.f32 %v2087, %v2088
        %v2175 = vrot.slane %v2174, 4
        %v2176 = vadd.f32 %v2174, %v2175
        %v2177 = vrot.slane %v2176, 2
        %v2178 = vadd.f32 %v2176, %v2177
        %v2179 = vrot.slane %v2178, 1
        %v2180 = vadd.f32 %v2178, %v2179
        %v2181 = vadd.f32 %v2089, %v2090
        %v2182 = vrot.slane %v2181, 4
        %v2183 = vadd.f32 %v2181, %v2182
        %v2184 = vrot.slane %v2183, 2
        %v2185 = vadd.f32 %v2183, %v2184
        %v2186 = vrot.slane %v2185, 1
        %v2187 = vadd.f32 %v2185, %v2186
        %v2188 = vadd.f32 %v2091, %v2092
        %v2189 = vrot.slane %v2188, 4
        %v2190 = vadd.f32 %v2188, %v2189
        %v2191 = vrot.slane %v2190, 2
        %v2192 = vadd.f32 %v2190, %v2191
        %v2193 = vrot.slane %v2192, 1
        %v2194 = vadd.f32 %v2192, %v2193
        %v2195 = vadd.f32 %v2093, %v2094
        %v2196 = vrot.slane %v2195, 4
        %v2197 = vadd.f32 %v2195, %v2196
        %v2198 = vrot.slane %v2197, 2
        %v2199 = vadd.f32 %v2197, %v2198
        %v2200 = vrot.slane %v2199, 1
        %v2201 = vadd.f32 %v2199, %v2200
        %v2202 = vadd.f32 %v2095, %v2096
        %v2203 = vrot.slane %v2202, 4
        %v2204 = vadd.f32 %v2202, %v2203
        %v2205 = vrot.slane %v2204, 2
        %v2206 = vadd.f32 %v2204, %v2205
        %v2207 = vrot.slane %v2206, 1
        %v2208 = vadd.f32 %v2206, %v2207
        %2225 = vrot.lane.b32.xlu0 %v2103, 64
        %v2226 = vpop.permute.xlu0 %2225
        %2227 = vrot.lane.b32.xlu0 %v2110, 64
        %v2228 = vpop.permute.xlu0 %2227
        %2229 = vrot.lane.b32.xlu0 %v2117, 64
        %v2230 = vpop.permute.xlu0 %2229
        %2231 = vrot.lane.b32.xlu0 %v2124, 64
        %v2232 = vpop.permute.xlu0 %2231
        %2233 = vrot.lane.b32.xlu0 %v2131, 64
        %v2234 = vpop.permute.xlu0 %2233
        %2235 = vrot.lane.b32.xlu0 %v2138, 64
        %v2236 = vpop.permute.xlu0 %2235
        %2237 = vrot.lane.b32.xlu0 %v2145, 64
        %v2238 = vpop.permute.xlu0 %2237
        %2239 = vrot.lane.b32.xlu0 %v2152, 64
        %v2240 = vpop.permute.xlu0 %2239
        %2241 = vrot.lane.b32.xlu0 %v2159, 64
        %v2242 = vpop.permute.xlu0 %2241
        %2243 = vrot.lane.b32.xlu0 %v2166, 64
        %v2244 = vpop.permute.xlu0 %2243
        %2245 = vrot.lane.b32.xlu0 %v2173, 64
        %v2246 = vpop.permute.xlu0 %2245
        %2247 = vrot.lane.b32.xlu0 %v2180, 64
        %v2248 = vpop.permute.xlu0 %2247
        %2249 = vrot.lane.b32.xlu0 %v2187, 64
        %v2250 = vpop.permute.xlu0 %2249
        %2251 = vrot.lane.b32.xlu0 %v2194, 64
        %v2252 = vpop.permute.xlu0 %2251
        %2253 = vrot.lane.b32.xlu0 %v2201, 64
        %v2254 = vpop.permute.xlu0 %2253
        %2255 = vrot.lane.b32.xlu0 %v2208, 64
        %v2256 = vpop.permute.xlu0 %2255
        %v2273 = vadd.f32 %v2103, %v2226
        %v2274 = vadd.f32 %v2110, %v2228
        %v2275 = vadd.f32 %v2117, %v2230
        %v2276 = vadd.f32 %v2124, %v2232
        %v2277 = vadd.f32 %v2131, %v2234
        %v2278 = vadd.f32 %v2138, %v2236
        %v2279 = vadd.f32 %v2145, %v2238
        %v2280 = vadd.f32 %v2152, %v2240
        %v2281 = vadd.f32 %v2159, %v2242
        %v2282 = vadd.f32 %v2166, %v2244
        %v2283 = vadd.f32 %v2173, %v2246
        %v2284 = vadd.f32 %v2180, %v2248
        %v2285 = vadd.f32 %v2187, %v2250
        %v2286 = vadd.f32 %v2194, %v2252
        %v2287 = vadd.f32 %v2201, %v2254
        %v2288 = vadd.f32 %v2208, %v2256
        %s2289 = scalar_lea.vmem %s7, 16
        %v2290 = vld [vmem:[%s2289] sm:$0xff]
        %v2291 = vld [vmem:[%s2289 + $0x8] sm:$0xff]
        %v2308 = vrot.slane %v2274, 7
        %v2309 = vsel %vm1370, %v2308, %v2273
        %v2310 = vrot.slane %v2275, 6
        %v2311 = vsel %vm1373, %v2310, %v2309
        %v2312 = vrot.slane %v2276, 5
        %v2313 = vsel %vm1376, %v2312, %v2311
        %v2314 = vrot.slane %v2277, 4
        %v2315 = vsel %vm1379, %v2314, %v2313
        %v2316 = vrot.slane %v2278, 3
        %v2317 = vsel %vm1382, %v2316, %v2315
        %v2318 = vrot.slane %v2279, 2
        %v2319 = vsel %vm1385, %v2318, %v2317
        %v2320 = vrot.slane %v2280, 1
        %v2321 = vsel %vm1388, %v2320, %v2319
        %v2322 = vrot.slane %v2282, 7
        %v2323 = vsel %vm1370, %v2322, %v2281
        %v2324 = vrot.slane %v2283, 6
        %v2325 = vsel %vm1373, %v2324, %v2323
        %v2326 = vrot.slane %v2284, 5
        %v2327 = vsel %vm1376, %v2326, %v2325
        %v2328 = vrot.slane %v2285, 4
        %v2329 = vsel %vm1379, %v2328, %v2327
        %v2330 = vrot.slane %v2286, 3
        %v2331 = vsel %vm1382, %v2330, %v2329
        %v2332 = vrot.slane %v2287, 2
        %v2333 = vsel %vm1385, %v2332, %v2331
        %v2334 = vrot.slane %v2288, 1
        %v2335 = vsel %vm1388, %v2334, %v2333
        %2340 = vrot.lane.b32.xlu0 %v2290, 64
        %v2341 = vpop.permute.xlu0 %2340
        %2342 = vrot.lane.b32.xlu0 %v2291, 64
        %v2343 = vpop.permute.xlu0 %2342
        %v2346 = vsel %vm1414, %v2321, %v2341
        %v2347 = vsel %vm1414, %v2335, %v2343
        %v2348 = vpack.c.bf16 %v2347, %v2346
        %v2349 = vld [vmem:[#allocation2] sm:$0xff]
        %v2350 = vld [vmem:[#allocation2 + $0x8] sm:$0xff]
        %v2351 = vld [vmem:[#allocation2 + $0x10] sm:$0xf]
        %v2352 = vld [vmem:[#allocation2 + $0x14] sm:$0xff]
        %v2353 = vld [vmem:[#allocation2 + $0x1c] sm:$0xff]
        %v2354 = vld [vmem:[#allocation2 + $0x24] sm:$0xf]
        %v2355 = vld [vmem:[#allocation2 + $0x28] sm:$0xff]
        %v2356 = vld [vmem:[#allocation2 + $0x30] sm:$0xff]
        %v2357 = vld [vmem:[#allocation2 + $0x38] sm:$0xf]
        %v2358 = vld [vmem:[#allocation2 + $0x3c] sm:$0xff]
        %v2359 = vld [vmem:[#allocation2 + $0x44] sm:$0xff]
        %v2360 = vld [vmem:[#allocation2 + $0x4c] sm:$0xf]
        %v2361 = vld [vmem:[#allocation2 + $0x50] sm:$0xff]
        %v2362 = vld [vmem:[#allocation2 + $0x58] sm:$0xff]
        %v2363 = vld [vmem:[#allocation2 + $0x60] sm:$0xf]
        %v2364 = vld [vmem:[#allocation2 + $0x64] sm:$0xff]
        %v2365 = vld [vmem:[#allocation2 + $0x6c] sm:$0xff]
        %v2366 = vld [vmem:[#allocation2 + $0x74] sm:$0xf]
        %v2367 = vld [vmem:[#allocation2 + $0x78] sm:$0xff]
        %v2368 = vld [vmem:[#allocation2 + $0x80] sm:$0xff]
        %v2369 = vld [vmem:[#allocation2 + $0x88] sm:$0xf]
        %v2370 = vld [vmem:[#allocation2 + $0x8c] sm:$0xff]
        %v2371 = vld [vmem:[#allocation2 + $0x94] sm:$0xff]
        %v2372 = vld [vmem:[#allocation2 + $0x9c] sm:$0xf]
        %v2373 = vld [vmem:[#allocation2 + $0xa0] sm:$0xff]
        %v2374 = vld [vmem:[#allocation2 + $0xa8] sm:$0xff]
        %v2375 = vld [vmem:[#allocation2 + $0xb0] sm:$0xf]
        %v2376 = vld [vmem:[#allocation2 + $0xb4] sm:$0xff]
        %v2377 = vld [vmem:[#allocation2 + $0xbc] sm:$0xff]
        %v2378 = vld [vmem:[#allocation2 + $0xc4] sm:$0xf]
        %s2379 = scalar_lea.vmem %s8, 16
        %v2380 = vld [vmem:[%s2379] sm:$0xff]
        %v2381 = vld [vmem:[%s2379 + $0x8] sm:$0xff]
        %2383 = vset.pattern.permute.xlu0 0
        %2384 = vperm.xlu0 %2383, %v2380
        %v2385 = vpop.permute.xlu0 %2384
        %2388 = vset.pattern.permute.xlu0 0
        %2389 = vperm.xlu0 %2388, %v2381
        %v2390 = vpop.permute.xlu0 %2389
        %v2422 = vunpack.c.l.b16 %v2349
        %v2423 = vunpack.c.h.b16 %v2349
        %v2424 = vunpack.c.l.b16 %v2350
        %v2425 = vunpack.c.h.b16 %v2350
        %v2426 = vunpack.c.l.b16 %v2351
        %v2427 = vunpack.c.l.b16 %v2352
        %v2428 = vunpack.c.h.b16 %v2352
        %v2429 = vunpack.c.l.b16 %v2353
        %v2430 = vunpack.c.h.b16 %v2353
        %v2431 = vunpack.c.l.b16 %v2354
        %v2432 = vunpack.c.l.b16 %v2355
        %v2433 = vunpack.c.h.b16 %v2355
        %v2434 = vunpack.c.l.b16 %v2356
        %v2435 = vunpack.c.h.b16 %v2356
        %v2436 = vunpack.c.l.b16 %v2357
        %v2437 = vunpack.c.l.b16 %v2358
        %v2438 = vunpack.c.h.b16 %v2358
        %v2439 = vunpack.c.l.b16 %v2359
        %v2440 = vunpack.c.h.b16 %v2359
        %v2441 = vunpack.c.l.b16 %v2360
        %v2442 = vunpack.c.l.b16 %v2361
        %v2443 = vunpack.c.h.b16 %v2361
        %v2444 = vunpack.c.l.b16 %v2362
        %v2445 = vunpack.c.h.b16 %v2362
        %v2446 = vunpack.c.l.b16 %v2363
        %v2447 = vunpack.c.l.b16 %v2364
        %v2448 = vunpack.c.h.b16 %v2364
        %v2449 = vunpack.c.l.b16 %v2365
        %v2450 = vunpack.c.h.b16 %v2365
        %v2451 = vunpack.c.l.b16 %v2366
        %v2452 = vunpack.c.l.b16 %v2367
        %v2453 = vunpack.c.h.b16 %v2367
        %v2454 = vunpack.c.l.b16 %v2368
        %v2455 = vunpack.c.h.b16 %v2368
        %v2456 = vunpack.c.l.b16 %v2369
        %v2457 = vunpack.c.l.b16 %v2370
        %v2458 = vunpack.c.h.b16 %v2370
        %v2459 = vunpack.c.l.b16 %v2371
        %v2460 = vunpack.c.h.b16 %v2371
        %v2461 = vunpack.c.l.b16 %v2372
        %v2462 = vunpack.c.l.b16 %v2373
        %v2463 = vunpack.c.h.b16 %v2373
        %v2464 = vunpack.c.l.b16 %v2374
        %v2465 = vunpack.c.h.b16 %v2374
        %v2466 = vunpack.c.l.b16 %v2375
        %v2467 = vunpack.c.l.b16 %v2376
        %v2468 = vunpack.c.h.b16 %v2376
        %v2469 = vunpack.c.l.b16 %v2377
        %v2470 = vunpack.c.h.b16 %v2377
        %v2471 = vunpack.c.l.b16 %v2378
        %v2472 = vpack.c.b16 %v2427, %v2422
        %v2473 = vpack.c.b16 %v2428, %v2423
        %v2474 = vpack.c.b16 %v2429, %v2424
        %v2475 = vpack.c.b16 %v2430, %v2425
        %v2476 = vpack.c.b16 %v2431, %v2426
        %v2477 = vpack.c.b16 %v2437, %v2432
        %v2478 = vpack.c.b16 %v2438, %v2433
        %v2479 = vpack.c.b16 %v2439, %v2434
        %v2480 = vpack.c.b16 %v2440, %v2435
        %v2481 = vpack.c.b16 %v2441, %v2436
        %v2482 = vpack.c.b16 %v2447, %v2442
        %v2483 = vpack.c.b16 %v2448, %v2443
        %v2484 = vpack.c.b16 %v2449, %v2444
        %v2485 = vpack.c.b16 %v2450, %v2445
        %v2486 = vpack.c.b16 %v2451, %v2446
        %v2487 = vpack.c.b16 %v2457, %v2452
        %v2488 = vpack.c.b16 %v2458, %v2453
        %v2489 = vpack.c.b16 %v2459, %v2454
        %v2490 = vpack.c.b16 %v2460, %v2455
        %v2491 = vpack.c.b16 %v2461, %v2456
        %v2492 = vpack.c.b16 %v2467, %v2462
        %v2493 = vpack.c.b16 %v2468, %v2463
        %v2494 = vpack.c.b16 %v2469, %v2464
        %v2495 = vpack.c.b16 %v2470, %v2465
        %v2496 = vpack.c.b16 %v2471, %v2466
        %v2523 = vsel %vm1590, %v2348, 0
        %2525 = vmatpush.bf16.msra.mxu0 0
        %2526 = vmatpush.bf16.msra.mxu0 0
        %2527 = vmatpush.bf16.msra.mxu0 0
        %2528 = vmatpush.bf16.msra.mxu0 %v2492
        %2529 = vmatpush.bf16.msra.mxu0 %v2487
        %2530 = vmatpush.bf16.msra.mxu0 %v2482
        %2531 = vmatpush.bf16.msra.mxu0 %v2477
        %2532 = vmatpush.bf16.msra.mxu0 %v2472
        %2533 = vmatmul.bf16.gmra.mxu0 %v2523
        %v2534 = vpop.f32.mrf.mxu0
        %v2535 = vadd.f32 %v2385, %v2534
        %v2536 = vpop.f32.mrf.mxu0
        %v2537 = vadd.f32 %v2390, %v2536
        %2538 = vdwg.mxu0
        %2539 = vmatpush.bf16.msra.mxu0 0
        %2540 = vmatpush.bf16.msra.mxu0 0
        %2541 = vmatpush.bf16.msra.mxu0 0
        %2542 = vmatpush.bf16.msra.mxu0 %v2493
        %2543 = vmatpush.bf16.msra.mxu0 %v2488
        %2544 = vmatpush.bf16.msra.mxu0 %v2483
        %2545 = vmatpush.bf16.msra.mxu0 %v2478
        %2546 = vmatpush.bf16.msra.mxu0 %v2473
        %2547 = vmatmul.bf16.gmra.mxu0 %v2523
        %v2548 = vpop.f32.mrf.mxu0
        %v2549 = vadd.f32 %v2385, %v2548
        %v2550 = vpop.f32.mrf.mxu0
        %v2551 = vadd.f32 %v2390, %v2550
        %2552 = vdwg.mxu0
        %2553 = vmatpush.bf16.msra.mxu0 0
        %2554 = vmatpush.bf16.msra.mxu0 0
        %2555 = vmatpush.bf16.msra.mxu0 0
        %2556 = vmatpush.bf16.msra.mxu0 %v2494
        %2557 = vmatpush.bf16.msra.mxu0 %v2489
        %2558 = vmatpush.bf16.msra.mxu0 %v2484
        %2559 = vmatpush.bf16.msra.mxu0 %v2479
        %2560 = vmatpush.bf16.msra.mxu0 %v2474
        %2561 = vmatmul.bf16.gmra.mxu0 %v2523
        %v2562 = vpop.f32.mrf.mxu0
        %v2563 = vadd.f32 %v2385, %v2562
        %v2564 = vpop.f32.mrf.mxu0
        %v2565 = vadd.f32 %v2390, %v2564
        %2566 = vdwg.mxu0
        %2567 = vmatpush.bf16.msra.mxu0 0
        %2568 = vmatpush.bf16.msra.mxu0 0
        %2569 = vmatpush.bf16.msra.mxu0 0
        %2570 = vmatpush.bf16.msra.mxu0 %v2495
        %2571 = vmatpush.bf16.msra.mxu0 %v2490
        %2572 = vmatpush.bf16.msra.mxu0 %v2485
        %2573 = vmatpush.bf16.msra.mxu0 %v2480
        %2574 = vmatpush.bf16.msra.mxu0 %v2475
        %2575 = vmatmul.bf16.gmra.mxu0 %v2523
        %v2576 = vpop.f32.mrf.mxu0
        %v2577 = vadd.f32 %v2385, %v2576
        %v2578 = vpop.f32.mrf.mxu0
        %v2579 = vadd.f32 %v2390, %v2578
        %2580 = vdwg.mxu0
        %2581 = vmatpush.bf16.msra.mxu0 0
        %2582 = vmatpush.bf16.msra.mxu0 0
        %2583 = vmatpush.bf16.msra.mxu0 0
        %2584 = vmatpush.bf16.msra.mxu0 %v2496
        %2585 = vmatpush.bf16.msra.mxu0 %v2491
        %2586 = vmatpush.bf16.msra.mxu0 %v2486
        %2587 = vmatpush.bf16.msra.mxu0 %v2481
        %2588 = vmatpush.bf16.msra.mxu0 %v2476
        %2589 = vmatmul.bf16.gmra.mxu0 %v2523
        %v2590 = vpop.f32.mrf.mxu0
        %v2591 = vadd.f32 %v2385, %v2590
        %v2592 = vpop.f32.mrf.mxu0
        %v2593 = vadd.f32 %v2390, %v2592
        %2594 = vdwg.mxu0
        %v2595 = vmul.f32 %v2535, 0.5
        %v2596 = vmul.f32 %v2549, 0.5
        %v2597 = vmul.f32 %v2563, 0.5
        %v2598 = vmul.f32 %v2577, 0.5
        %v2599 = vmul.f32 %v2591, 0.5
        %v2600 = vmul.f32 %v2537, 0.5
        %v2601 = vmul.f32 %v2551, 0.5
        %v2602 = vmul.f32 %v2565, 0.5
        %v2603 = vmul.f32 %v2579, 0.5
        %v2604 = vmul.f32 %v2593, 0.5
        %v2605 = vmul.f32 %v2535, 0.70710677
        %v2606 = vmul.f32 %v2549, 0.70710677
        %v2607 = vmul.f32 %v2563, 0.70710677
        %v2608 = vmul.f32 %v2577, 0.70710677
        %v2609 = vmul.f32 %v2591, 0.70710677
        %v2610 = vmul.f32 %v2537, 0.70710677
        %v2611 = vmul.f32 %v2551, 0.70710677
        %v2612 = vmul.f32 %v2565, 0.70710677
        %v2613 = vmul.f32 %v2579, 0.70710677
        %v2614 = vmul.f32 %v2593, 0.70710677
        %vm2615 = vcmp.ge.f32.partialorder %v2605, 0.0
        %vm2616 = vcmp.ge.f32.partialorder %v2606, 0.0
        %vm2617 = vcmp.ge.f32.partialorder %v2607, 0.0
        %vm2618 = vcmp.ge.f32.partialorder %v2608, 0.0
        %vm2619 = vcmp.ge.f32.partialorder %v2609, 0.0
        %vm2620 = vcmp.ge.f32.partialorder %v2610, 0.0
        %vm2621 = vcmp.ge.f32.partialorder %v2611, 0.0
        %vm2622 = vcmp.ge.f32.partialorder %v2612, 0.0
        %vm2623 = vcmp.ge.f32.partialorder %v2613, 0.0
        %vm2624 = vcmp.ge.f32.partialorder %v2614, 0.0
        %v2625 = vsel %vm2615, 1.0, -1.0
        %v2626 = vsel %vm2616, 1.0, -1.0
        %v2627 = vsel %vm2617, 1.0, -1.0
        %v2628 = vsel %vm2618, 1.0, -1.0
        %v2629 = vsel %vm2619, 1.0, -1.0
        %v2630 = vsel %vm2620, 1.0, -1.0
        %v2631 = vsel %vm2621, 1.0, -1.0
        %v2632 = vsel %vm2622, 1.0, -1.0
        %v2633 = vsel %vm2623, 1.0, -1.0
        %v2634 = vsel %vm2624, 1.0, -1.0
        %v2635 = vand.u32 2147483647, %v2605
        %v2636 = vand.u32 2147483647, %v2606
        %v2637 = vand.u32 2147483647, %v2607
        %v2638 = vand.u32 2147483647, %v2608
        %v2639 = vand.u32 2147483647, %v2609
        %v2640 = vand.u32 2147483647, %v2610
        %v2641 = vand.u32 2147483647, %v2611
        %v2642 = vand.u32 2147483647, %v2612
        %v2643 = vand.u32 2147483647, %v2613
        %v2644 = vand.u32 2147483647, %v2614
        %v2645 = vmul.f32 %v2635, 0.3275911
        %v2646 = vmul.f32 %v2636, 0.3275911
        %v2647 = vmul.f32 %v2637, 0.3275911
        %v2648 = vmul.f32 %v2638, 0.3275911
        %v2649 = vmul.f32 %v2639, 0.3275911
        %v2650 = vmul.f32 %v2640, 0.3275911
        %v2651 = vmul.f32 %v2641, 0.3275911
        %v2652 = vmul.f32 %v2642, 0.3275911
        %v2653 = vmul.f32 %v2643, 0.3275911
        %v2654 = vmul.f32 %v2644, 0.3275911
        %v2655 = vadd.f32 %v2645, 1.0
        %v2656 = vadd.f32 %v2646, 1.0
        %v2657 = vadd.f32 %v2647, 1.0
        %v2658 = vadd.f32 %v2648, 1.0
        %v2659 = vadd.f32 %v2649, 1.0
        %v2660 = vadd.f32 %v2650, 1.0
        %v2661 = vadd.f32 %v2651, 1.0
        %v2662 = vadd.f32 %v2652, 1.0
        %v2663 = vadd.f32 %v2653, 1.0
        %v2664 = vadd.f32 %v2654, 1.0
        %v2665 = vrcp.pop %v2655
        %v2666 = vrcp.pop %v2656
        %v2667 = vrcp.pop %v2657
        %v2668 = vrcp.pop %v2658
        %v2669 = vrcp.pop %v2659
        %v2670 = vrcp.pop %v2660
        %v2671 = vrcp.pop %v2661
        %v2672 = vrcp.pop %v2662
        %v2673 = vrcp.pop %v2663
        %v2674 = vrcp.pop %v2664
        %v2675 = vmul.f32 %v2665, 1.0614054
        %v2676 = vmul.f32 %v2666, 1.0614054
        %v2677 = vmul.f32 %v2667, 1.0614054
        %v2678 = vmul.f32 %v2668, 1.0614054
        %v2679 = vmul.f32 %v2669, 1.0614054
        %v2680 = vmul.f32 %v2670, 1.0614054
        %v2681 = vmul.f32 %v2671, 1.0614054
        %v2682 = vmul.f32 %v2672, 1.0614054
        %v2683 = vmul.f32 %v2673, 1.0614054
        %v2684 = vmul.f32 %v2674, 1.0614054
        %v2685 = vadd.f32 %v2675, -1.4531521
        %v2686 = vadd.f32 %v2676, -1.4531521
        %v2687 = vadd.f32 %v2677, -1.4531521
        %v2688 = vadd.f32 %v2678, -1.4531521
        %v2689 = vadd.f32 %v2679, -1.4531521
        %v2690 = vadd.f32 %v2680, -1.4531521
        %v2691 = vadd.f32 %v2681, -1.4531521
        %v2692 = vadd.f32 %v2682, -1.4531521
        %v2693 = vadd.f32 %v2683, -1.4531521
        %v2694 = vadd.f32 %v2684, -1.4531521
        %v2695 = vmul.f32 %v2665, %v2685
        %v2696 = vmul.f32 %v2666, %v2686
        %v2697 = vmul.f32 %v2667, %v2687
        %v2698 = vmul.f32 %v2668, %v2688
        %v2699 = vmul.f32 %v2669, %v2689
        %v2700 = vmul.f32 %v2670, %v2690
        %v2701 = vmul.f32 %v2671, %v2691
        %v2702 = vmul.f32 %v2672, %v2692
        %v2703 = vmul.f32 %v2673, %v2693
        %v2704 = vmul.f32 %v2674, %v2694
        %v2705 = vadd.f32 %v2695, 1.4214138
        %v2706 = vadd.f32 %v2696, 1.4214138
        %v2707 = vadd.f32 %v2697, 1.4214138
        %v2708 = vadd.f32 %v2698, 1.4214138
        %v2709 = vadd.f32 %v2699, 1.4214138
        %v2710 = vadd.f32 %v2700, 1.4214138
        %v2711 = vadd.f32 %v2701, 1.4214138
        %v2712 = vadd.f32 %v2702, 1.4214138
        %v2713 = vadd.f32 %v2703, 1.4214138
        %v2714 = vadd.f32 %v2704, 1.4214138
        %v2715 = vmul.f32 %v2665, %v2705
        %v2716 = vmul.f32 %v2666, %v2706
        %v2717 = vmul.f32 %v2667, %v2707
        %v2718 = vmul.f32 %v2668, %v2708
        %v2719 = vmul.f32 %v2669, %v2709
        %v2720 = vmul.f32 %v2670, %v2710
        %v2721 = vmul.f32 %v2671, %v2711
        %v2722 = vmul.f32 %v2672, %v2712
        %v2723 = vmul.f32 %v2673, %v2713
        %v2724 = vmul.f32 %v2674, %v2714
        %v2725 = vadd.f32 %v2715, -0.28449672
        %v2726 = vadd.f32 %v2716, -0.28449672
        %v2727 = vadd.f32 %v2717, -0.28449672
        %v2728 = vadd.f32 %v2718, -0.28449672
        %v2729 = vadd.f32 %v2719, -0.28449672
        %v2730 = vadd.f32 %v2720, -0.28449672
        %v2731 = vadd.f32 %v2721, -0.28449672
        %v2732 = vadd.f32 %v2722, -0.28449672
        %v2733 = vadd.f32 %v2723, -0.28449672
        %v2734 = vadd.f32 %v2724, -0.28449672
        %v2735 = vmul.f32 %v2665, %v2725
        %v2736 = vmul.f32 %v2666, %v2726
        %v2737 = vmul.f32 %v2667, %v2727
        %v2738 = vmul.f32 %v2668, %v2728
        %v2739 = vmul.f32 %v2669, %v2729
        %v2740 = vmul.f32 %v2670, %v2730
        %v2741 = vmul.f32 %v2671, %v2731
        %v2742 = vmul.f32 %v2672, %v2732
        %v2743 = vmul.f32 %v2673, %v2733
        %v2744 = vmul.f32 %v2674, %v2734
        %v2745 = vadd.f32 %v2735, 0.2548296
        %v2746 = vadd.f32 %v2736, 0.2548296
        %v2747 = vadd.f32 %v2737, 0.2548296
        %v2748 = vadd.f32 %v2738, 0.2548296
        %v2749 = vadd.f32 %v2739, 0.2548296
        %v2750 = vadd.f32 %v2740, 0.2548296
        %v2751 = vadd.f32 %v2741, 0.2548296
        %v2752 = vadd.f32 %v2742, 0.2548296
        %v2753 = vadd.f32 %v2743, 0.2548296
        %v2754 = vadd.f32 %v2744, 0.2548296
        %v2755 = vmul.f32 %v2665, %v2745
        %v2756 = vmul.f32 %v2666, %v2746
        %v2757 = vmul.f32 %v2667, %v2747
        %v2758 = vmul.f32 %v2668, %v2748
        %v2759 = vmul.f32 %v2669, %v2749
        %v2760 = vmul.f32 %v2670, %v2750
        %v2761 = vmul.f32 %v2671, %v2751
        %v2762 = vmul.f32 %v2672, %v2752
        %v2763 = vmul.f32 %v2673, %v2753
        %v2764 = vmul.f32 %v2674, %v2754
        %v2765 = vsub.f32 0.0, %v2635
        %v2766 = vsub.f32 0.0, %v2636
        %v2767 = vsub.f32 0.0, %v2637
        %v2768 = vsub.f32 0.0, %v2638
        %v2769 = vsub.f32 0.0, %v2639
        %v2770 = vsub.f32 0.0, %v2640
        %v2771 = vsub.f32 0.0, %v2641
        %v2772 = vsub.f32 0.0, %v2642
        %v2773 = vsub.f32 0.0, %v2643
        %v2774 = vsub.f32 0.0, %v2644
        %v2775 = vmul.f32 %v2765, %v2635
        %v2776 = vmul.f32 %v2766, %v2636
        %v2777 = vmul.f32 %v2767, %v2637
        %v2778 = vmul.f32 %v2768, %v2638
        %v2779 = vmul.f32 %v2769, %v2639
        %v2780 = vmul.f32 %v2770, %v2640
        %v2781 = vmul.f32 %v2771, %v2641
        %v2782 = vmul.f32 %v2772, %v2642
        %v2783 = vmul.f32 %v2773, %v2643
        %v2784 = vmul.f32 %v2774, %v2644
        %v2785 = vmul.f32 %v2775, 1.442695
        %v2786 = vpow.pop %v2785
        %v2787 = vmul.f32 %v2776, 1.442695
        %v2788 = vpow.pop %v2787
        %v2789 = vmul.f32 %v2777, 1.442695
        %v2790 = vpow.pop %v2789
        %v2791 = vmul.f32 %v2778, 1.442695
        %v2792 = vpow.pop %v2791
        %v2793 = vmul.f32 %v2779, 1.442695
        %v2794 = vpow.pop %v2793
        %v2795 = vmul.f32 %v2780, 1.442695
        %v2796 = vpow.pop %v2795
        %v2797 = vmul.f32 %v2781, 1.442695
        %v2798 = vpow.pop %v2797
        %v2799 = vmul.f32 %v2782, 1.442695
        %v2800 = vpow.pop %v2799
        %v2801 = vmul.f32 %v2783, 1.442695
        %v2802 = vpow.pop %v2801
        %v2803 = vmul.f32 %v2784, 1.442695
        %v2804 = vpow.pop %v2803
        %v2805 = vmul.f32 %v2755, %v2786
        %v2806 = vmul.f32 %v2756, %v2788
        %v2807 = vmul.f32 %v2757, %v2790
        %v2808 = vmul.f32 %v2758, %v2792
        %v2809 = vmul.f32 %v2759, %v2794
        %v2810 = vmul.f32 %v2760, %v2796
        %v2811 = vmul.f32 %v2761, %v2798
        %v2812 = vmul.f32 %v2762, %v2800
        %v2813 = vmul.f32 %v2763, %v2802
        %v2814 = vmul.f32 %v2764, %v2804
        %v2815 = vsub.f32 1.0, %v2805
        %v2816 = vsub.f32 1.0, %v2806
        %v2817 = vsub.f32 1.0, %v2807
        %v2818 = vsub.f32 1.0, %v2808
        %v2819 = vsub.f32 1.0, %v2809
        %v2820 = vsub.f32 1.0, %v2810
        %v2821 = vsub.f32 1.0, %v2811
        %v2822 = vsub.f32 1.0, %v2812
        %v2823 = vsub.f32 1.0, %v2813
        %v2824 = vsub.f32 1.0, %v2814
        %v2825 = vmul.f32 %v2625, %v2815
        %v2826 = vmul.f32 %v2626, %v2816
        %v2827 = vmul.f32 %v2627, %v2817
        %v2828 = vmul.f32 %v2628, %v2818
        %v2829 = vmul.f32 %v2629, %v2819
        %v2830 = vmul.f32 %v2630, %v2820
        %v2831 = vmul.f32 %v2631, %v2821
        %v2832 = vmul.f32 %v2632, %v2822
        %v2833 = vmul.f32 %v2633, %v2823
        %v2834 = vmul.f32 %v2634, %v2824
        %v2835 = vadd.f32 %v2825, 1.0
        %v2836 = vadd.f32 %v2826, 1.0
        %v2837 = vadd.f32 %v2827, 1.0
        %v2838 = vadd.f32 %v2828, 1.0
        %v2839 = vadd.f32 %v2829, 1.0
        %v2840 = vadd.f32 %v2830, 1.0
        %v2841 = vadd.f32 %v2831, 1.0
        %v2842 = vadd.f32 %v2832, 1.0
        %v2843 = vadd.f32 %v2833, 1.0
        %v2844 = vadd.f32 %v2834, 1.0
        %v2845 = vmul.f32 %v2595, %v2835
        %v2846 = vmul.f32 %v2596, %v2836
        %v2847 = vmul.f32 %v2597, %v2837
        %v2848 = vmul.f32 %v2598, %v2838
        %v2849 = vmul.f32 %v2599, %v2839
        %v2850 = vmul.f32 %v2600, %v2840
        %v2851 = vmul.f32 %v2601, %v2841
        %v2852 = vmul.f32 %v2602, %v2842
        %v2853 = vmul.f32 %v2603, %v2843
        %v2854 = vmul.f32 %v2604, %v2844
        %v2855 = vpack.c.bf16 %v2846, %v2845
        %v2856 = vpack.c.bf16 %v2848, %v2847
        %v2857 = vpack.c.bf16 %v2849, %v2849
        %v2858 = vpack.c.bf16 %v2851, %v2850
        %v2859 = vpack.c.bf16 %v2853, %v2852
        %v2860 = vpack.c.bf16 %v2854, %v2854
        %2861 = vst [vmem:[#allocation2 + $0xa0] sm:$0xff] %v2855
        %2862 = vst [vmem:[#allocation2 + $0xa8] sm:$0xff] %v2856
        %2863 = vst [vmem:[#allocation2 + $0xb0] sm:$0xf] %v2857
        %2864 = vst [vmem:[#allocation2 + $0xb4] sm:$0xff] %v2858
        %2865 = vst [vmem:[#allocation2 + $0xbc] sm:$0xff] %v2859
        %2866 = vst [vmem:[#allocation2 + $0xc4] sm:$0xf] %v2860
        %v2873 = vunpack.c.l.b16 %v2855
        %v2874 = vunpack.c.h.b16 %v2855
        %v2875 = vunpack.c.l.b16 %v2856
        %v2876 = vunpack.c.h.b16 %v2856
        %v2877 = vunpack.c.l.b16 %v2857
        %v2878 = vunpack.c.l.b16 %v2858
        %v2879 = vunpack.c.h.b16 %v2858
        %v2880 = vunpack.c.l.b16 %v2859
        %v2881 = vunpack.c.h.b16 %v2859
        %v2882 = vunpack.c.l.b16 %v2860
        %v2883 = vpack.c.b16 %v2878, %v2873
        %v2884 = vpack.c.b16 %v2879, %v2874
        %v2885 = vpack.c.b16 %v2880, %v2875
        %v2886 = vpack.c.b16 %v2881, %v2876
        %v2887 = vpack.c.b16 %v2882, %v2877
        %2893 = vmatpush.bf16.msra.mxu0 %v952
        %2894 = vmatpush.bf16.msra.mxu0 %v951
        %2895 = vmatpush.bf16.msra.mxu0 %v950
        %2896 = vmatpush.bf16.msra.mxu0 %v949
        %2897 = vmatpush.bf16.msra.mxu0 %v948
        %2898 = vmatpush.bf16.msra.mxu0 %v947
        %2899 = vmatpush.bf16.msra.mxu0 %v946
        %2900 = vmatpush.bf16.msra.mxu0 %v945
        %2901 = vmatmul.bf16.gmra.mxu0 %v2883
        %v2902 = vpop.f32.mrf.mxu0
        %v2903 = vadd.f32 0.0, %v2902
        %v2904 = vpop.f32.mrf.mxu0
        %v2905 = vadd.f32 0.0, %v2904
        %2906 = vdwg.mxu0
        %2907 = vmatpush.bf16.msra.mxu0 %v960
        %2908 = vmatpush.bf16.msra.mxu0 %v959
        %2909 = vmatpush.bf16.msra.mxu0 %v958
        %2910 = vmatpush.bf16.msra.mxu0 %v957
        %2911 = vmatpush.bf16.msra.mxu0 %v956
        %2912 = vmatpush.bf16.msra.mxu0 %v955
        %2913 = vmatpush.bf16.msra.mxu0 %v954
        %2914 = vmatpush.bf16.msra.mxu0 %v953
        %2915 = vmatmul.bf16.gmra.mxu0 %v2884
        %v2916 = vpop.f32.mrf.mxu0
        %v2917 = vadd.f32 %v2903, %v2916
        %v2918 = vpop.f32.mrf.mxu0
        %v2919 = vadd.f32 %v2905, %v2918
        %2920 = vdwg.mxu0
        %2921 = vmatpush.bf16.msra.mxu0 %v968
        %2922 = vmatpush.bf16.msra.mxu0 %v967
        %2923 = vmatpush.bf16.msra.mxu0 %v966
        %2924 = vmatpush.bf16.msra.mxu0 %v965
        %2925 = vmatpush.bf16.msra.mxu0 %v964
        %2926 = vmatpush.bf16.msra.mxu0 %v963
        %2927 = vmatpush.bf16.msra.mxu0 %v962
        %2928 = vmatpush.bf16.msra.mxu0 %v961
        %2929 = vmatmul.bf16.gmra.mxu0 %v2885
        %v2930 = vpop.f32.mrf.mxu0
        %v2931 = vadd.f32 %v2917, %v2930
        %v2932 = vpop.f32.mrf.mxu0
        %v2933 = vadd.f32 %v2919, %v2932
        %2934 = vdwg.mxu0
        %2935 = vmatpush.bf16.msra.mxu0 %v976
        %2936 = vmatpush.bf16.msra.mxu0 %v975
        %2937 = vmatpush.bf16.msra.mxu0 %v974
        %2938 = vmatpush.bf16.msra.mxu0 %v973
        %2939 = vmatpush.bf16.msra.mxu0 %v972
        %2940 = vmatpush.bf16.msra.mxu0 %v971
        %2941 = vmatpush.bf16.msra.mxu0 %v970
        %2942 = vmatpush.bf16.msra.mxu0 %v969
        %2943 = vmatmul.bf16.gmra.mxu0 %v2886
        %v2944 = vpop.f32.mrf.mxu0
        %v2945 = vadd.f32 %v2931, %v2944
        %v2946 = vpop.f32.mrf.mxu0
        %v2947 = vadd.f32 %v2933, %v2946
        %2948 = vdwg.mxu0
        %2949 = vmatpush.bf16.msra.mxu0 %v984
        %2950 = vmatpush.bf16.msra.mxu0 %v983
        %2951 = vmatpush.bf16.msra.mxu0 %v982
        %2952 = vmatpush.bf16.msra.mxu0 %v981
        %2953 = vmatpush.bf16.msra.mxu0 %v980
        %2954 = vmatpush.bf16.msra.mxu0 %v979
        %2955 = vmatpush.bf16.msra.mxu0 %v978
        %2956 = vmatpush.bf16.msra.mxu0 %v977
        %2957 = vmatmul.bf16.gmra.mxu0 %v2887
        %v2958 = vpop.f32.mrf.mxu0
        %v2959 = vadd.f32 %v2945, %v2958
        %v2960 = vpop.f32.mrf.mxu0
        %v2961 = vadd.f32 %v2947, %v2960
        %2962 = vdwg.mxu0
        %s2963 = scalar_lea.vmem %s6, 512
        %v2964 = vld [vmem:[%s2963] sm:$0xff]
        %v2965 = vld [vmem:[%s2963 + $0x8] sm:$0xff]
        %v2966 = vld [vmem:[%s2963 + $0x10] sm:$0xff]
        %v2967 = vld [vmem:[%s2963 + $0x18] sm:$0xff]
        %v2968 = vld [vmem:[%s2963 + $0x20] sm:$0xff]
        %v2969 = vld [vmem:[%s2963 + $0x28] sm:$0xff]
        %v2970 = vld [vmem:[%s2963 + $0x30] sm:$0xff]
        %v2971 = vld [vmem:[%s2963 + $0x38] sm:$0xff]
        %v2972 = vld [vmem:[%s2963 + $0x40] sm:$0xff]
        %v2973 = vld [vmem:[%s2963 + $0x48] sm:$0xff]
        %v2974 = vld [vmem:[%s2963 + $0x50] sm:$0xff]
        %v2975 = vld [vmem:[%s2963 + $0x58] sm:$0xff]
        %v2976 = vld [vmem:[%s2963 + $0x60] sm:$0xff]
        %v2977 = vld [vmem:[%s2963 + $0x68] sm:$0xff]
        %v2978 = vld [vmem:[%s2963 + $0x70] sm:$0xff]
        %v2979 = vld [vmem:[%s2963 + $0x78] sm:$0xff]
        %v2980 = vld [vmem:[%s2963 + $0x80] sm:$0xff]
        %v2981 = vld [vmem:[%s2963 + $0x88] sm:$0xff]
        %v2982 = vld [vmem:[%s2963 + $0x90] sm:$0xff]
        %v2983 = vld [vmem:[%s2963 + $0x98] sm:$0xff]
        %v2984 = vld [vmem:[%s2963 + $0xa0] sm:$0xff]
        %v2985 = vld [vmem:[%s2963 + $0xa8] sm:$0xff]
        %v2986 = vld [vmem:[%s2963 + $0xb0] sm:$0xff]
        %v2987 = vld [vmem:[%s2963 + $0xb8] sm:$0xff]
        %v2988 = vld [vmem:[%s2963 + $0xc0] sm:$0xff]
        %v2989 = vld [vmem:[%s2963 + $0xc8] sm:$0xff]
        %v2990 = vld [vmem:[%s2963 + $0xd0] sm:$0xff]
        %v2991 = vld [vmem:[%s2963 + $0xd8] sm:$0xff]
        %v2992 = vld [vmem:[%s2963 + $0xe0] sm:$0xff]
        %v2993 = vld [vmem:[%s2963 + $0xe8] sm:$0xff]
        %v2994 = vld [vmem:[%s2963 + $0xf0] sm:$0xff]
        %v2995 = vld [vmem:[%s2963 + $0xf8] sm:$0xff]
        %v2996 = vmul.f32 %v2959, %v2964
        %v2997 = vmul.f32 %v2961, %v2965
        %v2998 = vmul.f32 %v2959, %v2966
        %v2999 = vmul.f32 %v2961, %v2967
        %v3000 = vmul.f32 %v2959, %v2968
        %v3001 = vmul.f32 %v2961, %v2969
        %v3002 = vmul.f32 %v2959, %v2970
        %v3003 = vmul.f32 %v2961, %v2971
        %v3004 = vmul.f32 %v2959, %v2972
        %v3005 = vmul.f32 %v2961, %v2973
        %v3006 = vmul.f32 %v2959, %v2974
        %v3007 = vmul.f32 %v2961, %v2975
        %v3008 = vmul.f32 %v2959, %v2976
        %v3009 = vmul.f32 %v2961, %v2977
        %v3010 = vmul.f32 %v2959, %v2978
        %v3011 = vmul.f32 %v2961, %v2979
        %v3012 = vmul.f32 %v2959, %v2980
        %v3013 = vmul.f32 %v2961, %v2981
        %v3014 = vmul.f32 %v2959, %v2982
        %v3015 = vmul.f32 %v2961, %v2983
        %v3016 = vmul.f32 %v2959, %v2984
        %v3017 = vmul.f32 %v2961, %v2985
        %v3018 = vmul.f32 %v2959, %v2986
        %v3019 = vmul.f32 %v2961, %v2987
        %v3020 = vmul.f32 %v2959, %v2988
        %v3021 = vmul.f32 %v2961, %v2989
        %v3022 = vmul.f32 %v2959, %v2990
        %v3023 = vmul.f32 %v2961, %v2991
        %v3024 = vmul.f32 %v2959, %v2992
        %v3025 = vmul.f32 %v2961, %v2993
        %v3026 = vmul.f32 %v2959, %v2994
        %v3027 = vmul.f32 %v2961, %v2995
        %v3028 = vadd.f32 %v2996, %v2997
        %v3029 = vrot.slane %v3028, 4
        %v3030 = vadd.f32 %v3028, %v3029
        %v3031 = vrot.slane %v3030, 2
        %v3032 = vadd.f32 %v3030, %v3031
        %v3033 = vrot.slane %v3032, 1
        %v3034 = vadd.f32 %v3032, %v3033
        %v3035 = vadd.f32 %v2998, %v2999
        %v3036 = vrot.slane %v3035, 4
        %v3037 = vadd.f32 %v3035, %v3036
        %v3038 = vrot.slane %v3037, 2
        %v3039 = vadd.f32 %v3037, %v3038
        %v3040 = vrot.slane %v3039, 1
        %v3041 = vadd.f32 %v3039, %v3040
        %v3042 = vadd.f32 %v3000, %v3001
        %v3043 = vrot.slane %v3042, 4
        %v3044 = vadd.f32 %v3042, %v3043
        %v3045 = vrot.slane %v3044, 2
        %v3046 = vadd.f32 %v3044, %v3045
        %v3047 = vrot.slane %v3046, 1
        %v3048 = vadd.f32 %v3046, %v3047
        %v3049 = vadd.f32 %v3002, %v3003
        %v3050 = vrot.slane %v3049, 4
        %v3051 = vadd.f32 %v3049, %v3050
        %v3052 = vrot.slane %v3051, 2
        %v3053 = vadd.f32 %v3051, %v3052
        %v3054 = vrot.slane %v3053, 1
        %v3055 = vadd.f32 %v3053, %v3054
        %v3056 = vadd.f32 %v3004, %v3005
        %v3057 = vrot.slane %v3056, 4
        %v3058 = vadd.f32 %v3056, %v3057
        %v3059 = vrot.slane %v3058, 2
        %v3060 = vadd.f32 %v3058, %v3059
        %v3061 = vrot.slane %v3060, 1
        %v3062 = vadd.f32 %v3060, %v3061
        %v3063 = vadd.f32 %v3006, %v3007
        %v3064 = vrot.slane %v3063, 4
        %v3065 = vadd.f32 %v3063, %v3064
        %v3066 = vrot.slane %v3065, 2
        %v3067 = vadd.f32 %v3065, %v3066
        %v3068 = vrot.slane %v3067, 1
        %v3069 = vadd.f32 %v3067, %v3068
        %v3070 = vadd.f32 %v3008, %v3009
        %v3071 = vrot.slane %v3070, 4
        %v3072 = vadd.f32 %v3070, %v3071
        %v3073 = vrot.slane %v3072, 2
        %v3074 = vadd.f32 %v3072, %v3073
        %v3075 = vrot.slane %v3074, 1
        %v3076 = vadd.f32 %v3074, %v3075
        %v3077 = vadd.f32 %v3010, %v3011
        %v3078 = vrot.slane %v3077, 4
        %v3079 = vadd.f32 %v3077, %v3078
        %v3080 = vrot.slane %v3079, 2
        %v3081 = vadd.f32 %v3079, %v3080
        %v3082 = vrot.slane %v3081, 1
        %v3083 = vadd.f32 %v3081, %v3082
        %v3084 = vadd.f32 %v3012, %v3013
        %v3085 = vrot.slane %v3084, 4
        %v3086 = vadd.f32 %v3084, %v3085
        %v3087 = vrot.slane %v3086, 2
        %v3088 = vadd.f32 %v3086, %v3087
        %v3089 = vrot.slane %v3088, 1
        %v3090 = vadd.f32 %v3088, %v3089
        %v3091 = vadd.f32 %v3014, %v3015
        %v3092 = vrot.slane %v3091, 4
        %v3093 = vadd.f32 %v3091, %v3092
        %v3094 = vrot.slane %v3093, 2
        %v3095 = vadd.f32 %v3093, %v3094
        %v3096 = vrot.slane %v3095, 1
        %v3097 = vadd.f32 %v3095, %v3096
        %v3098 = vadd.f32 %v3016, %v3017
        %v3099 = vrot.slane %v3098, 4
        %v3100 = vadd.f32 %v3098, %v3099
        %v3101 = vrot.slane %v3100, 2
        %v3102 = vadd.f32 %v3100, %v3101
        %v3103 = vrot.slane %v3102, 1
        %v3104 = vadd.f32 %v3102, %v3103
        %v3105 = vadd.f32 %v3018, %v3019
        %v3106 = vrot.slane %v3105, 4
        %v3107 = vadd.f32 %v3105, %v3106
        %v3108 = vrot.slane %v3107, 2
        %v3109 = vadd.f32 %v3107, %v3108
        %v3110 = vrot.slane %v3109, 1
        %v3111 = vadd.f32 %v3109, %v3110
        %v3112 = vadd.f32 %v3020, %v3021
        %v3113 = vrot.slane %v3112, 4
        %v3114 = vadd.f32 %v3112, %v3113
        %v3115 = vrot.slane %v3114, 2
        %v3116 = vadd.f32 %v3114, %v3115
        %v3117 = vrot.slane %v3116, 1
        %v3118 = vadd.f32 %v3116, %v3117
        %v3119 = vadd.f32 %v3022, %v3023
        %v3120 = vrot.slane %v3119, 4
        %v3121 = vadd.f32 %v3119, %v3120
        %v3122 = vrot.slane %v3121, 2
        %v3123 = vadd.f32 %v3121, %v3122
        %v3124 = vrot.slane %v3123, 1
        %v3125 = vadd.f32 %v3123, %v3124
        %v3126 = vadd.f32 %v3024, %v3025
        %v3127 = vrot.slane %v3126, 4
        %v3128 = vadd.f32 %v3126, %v3127
        %v3129 = vrot.slane %v3128, 2
        %v3130 = vadd.f32 %v3128, %v3129
        %v3131 = vrot.slane %v3130, 1
        %v3132 = vadd.f32 %v3130, %v3131
        %v3133 = vadd.f32 %v3026, %v3027
        %v3134 = vrot.slane %v3133, 4
        %v3135 = vadd.f32 %v3133, %v3134
        %v3136 = vrot.slane %v3135, 2
        %v3137 = vadd.f32 %v3135, %v3136
        %v3138 = vrot.slane %v3137, 1
        %v3139 = vadd.f32 %v3137, %v3138
        %3156 = vrot.lane.b32.xlu0 %v3034, 64
        %v3157 = vpop.permute.xlu0 %3156
        %3158 = vrot.lane.b32.xlu0 %v3041, 64
        %v3159 = vpop.permute.xlu0 %3158
        %3160 = vrot.lane.b32.xlu0 %v3048, 64
        %v3161 = vpop.permute.xlu0 %3160
        %3162 = vrot.lane.b32.xlu0 %v3055, 64
        %v3163 = vpop.permute.xlu0 %3162
        %3164 = vrot.lane.b32.xlu0 %v3062, 64
        %v3165 = vpop.permute.xlu0 %3164
        %3166 = vrot.lane.b32.xlu0 %v3069, 64
        %v3167 = vpop.permute.xlu0 %3166
        %3168 = vrot.lane.b32.xlu0 %v3076, 64
        %v3169 = vpop.permute.xlu0 %3168
        %3170 = vrot.lane.b32.xlu0 %v3083, 64
        %v3171 = vpop.permute.xlu0 %3170
        %3172 = vrot.lane.b32.xlu0 %v3090, 64
        %v3173 = vpop.permute.xlu0 %3172
        %3174 = vrot.lane.b32.xlu0 %v3097, 64
        %v3175 = vpop.permute.xlu0 %3174
        %3176 = vrot.lane.b32.xlu0 %v3104, 64
        %v3177 = vpop.permute.xlu0 %3176
        %3178 = vrot.lane.b32.xlu0 %v3111, 64
        %v3179 = vpop.permute.xlu0 %3178
        %3180 = vrot.lane.b32.xlu0 %v3118, 64
        %v3181 = vpop.permute.xlu0 %3180
        %3182 = vrot.lane.b32.xlu0 %v3125, 64
        %v3183 = vpop.permute.xlu0 %3182
        %3184 = vrot.lane.b32.xlu0 %v3132, 64
        %v3185 = vpop.permute.xlu0 %3184
        %3186 = vrot.lane.b32.xlu0 %v3139, 64
        %v3187 = vpop.permute.xlu0 %3186
        %v3204 = vadd.f32 %v3034, %v3157
        %v3205 = vadd.f32 %v3041, %v3159
        %v3206 = vadd.f32 %v3048, %v3161
        %v3207 = vadd.f32 %v3055, %v3163
        %v3208 = vadd.f32 %v3062, %v3165
        %v3209 = vadd.f32 %v3069, %v3167
        %v3210 = vadd.f32 %v3076, %v3169
        %v3211 = vadd.f32 %v3083, %v3171
        %v3212 = vadd.f32 %v3090, %v3173
        %v3213 = vadd.f32 %v3097, %v3175
        %v3214 = vadd.f32 %v3104, %v3177
        %v3215 = vadd.f32 %v3111, %v3179
        %v3216 = vadd.f32 %v3118, %v3181
        %v3217 = vadd.f32 %v3125, %v3183
        %v3218 = vadd.f32 %v3132, %v3185
        %v3219 = vadd.f32 %v3139, %v3187
        %s3220 = scalar_lea.vmem %s7, 32
        %v3221 = vld [vmem:[%s3220] sm:$0xff]
        %v3222 = vld [vmem:[%s3220 + $0x8] sm:$0xff]
        %v3239 = vrot.slane %v3205, 7
        %v3240 = vsel %vm1370, %v3239, %v3204
        %v3241 = vrot.slane %v3206, 6
        %v3242 = vsel %vm1373, %v3241, %v3240
        %v3243 = vrot.slane %v3207, 5
        %v3244 = vsel %vm1376, %v3243, %v3242
        %v3245 = vrot.slane %v3208, 4
        %v3246 = vsel %vm1379, %v3245, %v3244
        %v3247 = vrot.slane %v3209, 3
        %v3248 = vsel %vm1382, %v3247, %v3246
        %v3249 = vrot.slane %v3210, 2
        %v3250 = vsel %vm1385, %v3249, %v3248
        %v3251 = vrot.slane %v3211, 1
        %v3252 = vsel %vm1388, %v3251, %v3250
        %v3253 = vrot.slane %v3213, 7
        %v3254 = vsel %vm1370, %v3253, %v3212
        %v3255 = vrot.slane %v3214, 6
        %v3256 = vsel %vm1373, %v3255, %v3254
        %v3257 = vrot.slane %v3215, 5
        %v3258 = vsel %vm1376, %v3257, %v3256
        %v3259 = vrot.slane %v3216, 4
        %v3260 = vsel %vm1379, %v3259, %v3258
        %v3261 = vrot.slane %v3217, 3
        %v3262 = vsel %vm1382, %v3261, %v3260
        %v3263 = vrot.slane %v3218, 2
        %v3264 = vsel %vm1385, %v3263, %v3262
        %v3265 = vrot.slane %v3219, 1
        %v3266 = vsel %vm1388, %v3265, %v3264
        %3271 = vrot.lane.b32.xlu0 %v3221, 64
        %v3272 = vpop.permute.xlu0 %3271
        %3273 = vrot.lane.b32.xlu0 %v3222, 64
        %v3274 = vpop.permute.xlu0 %3273
        %v3277 = vsel %vm1414, %v3252, %v3272
        %v3278 = vsel %vm1414, %v3266, %v3274
        %v3279 = vpack.c.bf16 %v3278, %v3277
        %v3280 = vld [vmem:[#allocation2] sm:$0xff]
        %v3281 = vld [vmem:[#allocation2 + $0x8] sm:$0xff]
        %v3282 = vld [vmem:[#allocation2 + $0x10] sm:$0xf]
        %v3283 = vld [vmem:[#allocation2 + $0x14] sm:$0xff]
        %v3284 = vld [vmem:[#allocation2 + $0x1c] sm:$0xff]
        %v3285 = vld [vmem:[#allocation2 + $0x24] sm:$0xf]
        %v3286 = vld [vmem:[#allocation2 + $0x28] sm:$0xff]
        %v3287 = vld [vmem:[#allocation2 + $0x30] sm:$0xff]
        %v3288 = vld [vmem:[#allocation2 + $0x38] sm:$0xf]
        %v3289 = vld [vmem:[#allocation2 + $0x3c] sm:$0xff]
        %v3290 = vld [vmem:[#allocation2 + $0x44] sm:$0xff]
        %v3291 = vld [vmem:[#allocation2 + $0x4c] sm:$0xf]
        %v3292 = vld [vmem:[#allocation2 + $0x50] sm:$0xff]
        %v3293 = vld [vmem:[#allocation2 + $0x58] sm:$0xff]
        %v3294 = vld [vmem:[#allocation2 + $0x60] sm:$0xf]
        %v3295 = vld [vmem:[#allocation2 + $0x64] sm:$0xff]
        %v3296 = vld [vmem:[#allocation2 + $0x6c] sm:$0xff]
        %v3297 = vld [vmem:[#allocation2 + $0x74] sm:$0xf]
        %v3298 = vld [vmem:[#allocation2 + $0x78] sm:$0xff]
        %v3299 = vld [vmem:[#allocation2 + $0x80] sm:$0xff]
        %v3300 = vld [vmem:[#allocation2 + $0x88] sm:$0xf]
        %v3301 = vld [vmem:[#allocation2 + $0x8c] sm:$0xff]
        %v3302 = vld [vmem:[#allocation2 + $0x94] sm:$0xff]
        %v3303 = vld [vmem:[#allocation2 + $0x9c] sm:$0xf]
        %v3304 = vld [vmem:[#allocation2 + $0xa0] sm:$0xff]
        %v3305 = vld [vmem:[#allocation2 + $0xa8] sm:$0xff]
        %v3306 = vld [vmem:[#allocation2 + $0xb0] sm:$0xf]
        %v3307 = vld [vmem:[#allocation2 + $0xb4] sm:$0xff]
        %v3308 = vld [vmem:[#allocation2 + $0xbc] sm:$0xff]
        %v3309 = vld [vmem:[#allocation2 + $0xc4] sm:$0xf]
        %s3310 = scalar_lea.vmem %s8, 32
        %v3311 = vld [vmem:[%s3310] sm:$0xff]
        %v3312 = vld [vmem:[%s3310 + $0x8] sm:$0xff]
        %3314 = vset.pattern.permute.xlu0 0
        %3315 = vperm.xlu0 %3314, %v3311
        %v3316 = vpop.permute.xlu0 %3315
        %3319 = vset.pattern.permute.xlu0 0
        %3320 = vperm.xlu0 %3319, %v3312
        %v3321 = vpop.permute.xlu0 %3320
        %v3353 = vunpack.c.l.b16 %v3280
        %v3354 = vunpack.c.h.b16 %v3280
        %v3355 = vunpack.c.l.b16 %v3281
        %v3356 = vunpack.c.h.b16 %v3281
        %v3357 = vunpack.c.l.b16 %v3282
        %v3358 = vunpack.c.l.b16 %v3283
        %v3359 = vunpack.c.h.b16 %v3283
        %v3360 = vunpack.c.l.b16 %v3284
        %v3361 = vunpack.c.h.b16 %v3284
        %v3362 = vunpack.c.l.b16 %v3285
        %v3363 = vunpack.c.l.b16 %v3286
        %v3364 = vunpack.c.h.b16 %v3286
        %v3365 = vunpack.c.l.b16 %v3287
        %v3366 = vunpack.c.h.b16 %v3287
        %v3367 = vunpack.c.l.b16 %v3288
        %v3368 = vunpack.c.l.b16 %v3289
        %v3369 = vunpack.c.h.b16 %v3289
        %v3370 = vunpack.c.l.b16 %v3290
        %v3371 = vunpack.c.h.b16 %v3290
        %v3372 = vunpack.c.l.b16 %v3291
        %v3373 = vunpack.c.l.b16 %v3292
        %v3374 = vunpack.c.h.b16 %v3292
        %v3375 = vunpack.c.l.b16 %v3293
        %v3376 = vunpack.c.h.b16 %v3293
        %v3377 = vunpack.c.l.b16 %v3294
        %v3378 = vunpack.c.l.b16 %v3295
        %v3379 = vunpack.c.h.b16 %v3295
        %v3380 = vunpack.c.l.b16 %v3296
        %v3381 = vunpack.c.h.b16 %v3296
        %v3382 = vunpack.c.l.b16 %v3297
        %v3383 = vunpack.c.l.b16 %v3298
        %v3384 = vunpack.c.h.b16 %v3298
        %v3385 = vunpack.c.l.b16 %v3299
        %v3386 = vunpack.c.h.b16 %v3299
        %v3387 = vunpack.c.l.b16 %v3300
        %v3388 = vunpack.c.l.b16 %v3301
        %v3389 = vunpack.c.h.b16 %v3301
        %v3390 = vunpack.c.l.b16 %v3302
        %v3391 = vunpack.c.h.b16 %v3302
        %v3392 = vunpack.c.l.b16 %v3303
        %v3393 = vunpack.c.l.b16 %v3304
        %v3394 = vunpack.c.h.b16 %v3304
        %v3395 = vunpack.c.l.b16 %v3305
        %v3396 = vunpack.c.h.b16 %v3305
        %v3397 = vunpack.c.l.b16 %v3306
        %v3398 = vunpack.c.l.b16 %v3307
        %v3399 = vunpack.c.h.b16 %v3307
        %v3400 = vunpack.c.l.b16 %v3308
        %v3401 = vunpack.c.h.b16 %v3308
        %v3402 = vunpack.c.l.b16 %v3309
        %v3403 = vpack.c.b16 %v3358, %v3353
        %v3404 = vpack.c.b16 %v3359, %v3354
        %v3405 = vpack.c.b16 %v3360, %v3355
        %v3406 = vpack.c.b16 %v3361, %v3356
        %v3407 = vpack.c.b16 %v3362, %v3357
        %v3408 = vpack.c.b16 %v3368, %v3363
        %v3409 = vpack.c.b16 %v3369, %v3364
        %v3410 = vpack.c.b16 %v3370, %v3365
        %v3411 = vpack.c.b16 %v3371, %v3366
        %v3412 = vpack.c.b16 %v3372, %v3367
        %v3413 = vpack.c.b16 %v3378, %v3373
        %v3414 = vpack.c.b16 %v3379, %v3374
        %v3415 = vpack.c.b16 %v3380, %v3375
        %v3416 = vpack.c.b16 %v3381, %v3376
        %v3417 = vpack.c.b16 %v3382, %v3377
        %v3418 = vpack.c.b16 %v3388, %v3383
        %v3419 = vpack.c.b16 %v3389, %v3384
        %v3420 = vpack.c.b16 %v3390, %v3385
        %v3421 = vpack.c.b16 %v3391, %v3386
        %v3422 = vpack.c.b16 %v3392, %v3387
        %v3423 = vpack.c.b16 %v3398, %v3393
        %v3424 = vpack.c.b16 %v3399, %v3394
        %v3425 = vpack.c.b16 %v3400, %v3395
        %v3426 = vpack.c.b16 %v3401, %v3396
        %v3427 = vpack.c.b16 %v3402, %v3397
        %v3454 = vsel %vm1590, %v3279, 0
        %3456 = vmatpush.bf16.msra.mxu0 0
        %3457 = vmatpush.bf16.msra.mxu0 0
        %3458 = vmatpush.bf16.msra.mxu0 0
        %3459 = vmatpush.bf16.msra.mxu0 %v3423
        %3460 = vmatpush.bf16.msra.mxu0 %v3418
        %3461 = vmatpush.bf16.msra.mxu0 %v3413
        %3462 = vmatpush.bf16.msra.mxu0 %v3408
        %3463 = vmatpush.bf16.msra.mxu0 %v3403
        %3464 = vmatmul.bf16.gmra.mxu0 %v3454
        %v3465 = vpop.f32.mrf.mxu0
        %v3466 = vadd.f32 %v3316, %v3465
        %v3467 = vpop.f32.mrf.mxu0
        %v3468 = vadd.f32 %v3321, %v3467
        %3469 = vdwg.mxu0
        %3470 = vmatpush.bf16.msra.mxu0 0
        %3471 = vmatpush.bf16.msra.mxu0 0
        %3472 = vmatpush.bf16.msra.mxu0 0
        %3473 = vmatpush.bf16.msra.mxu0 %v3424
        %3474 = vmatpush.bf16.msra.mxu0 %v3419
        %3475 = vmatpush.bf16.msra.mxu0 %v3414
        %3476 = vmatpush.bf16.msra.mxu0 %v3409
        %3477 = vmatpush.bf16.msra.mxu0 %v3404
        %3478 = vmatmul.bf16.gmra.mxu0 %v3454
        %v3479 = vpop.f32.mrf.mxu0
        %v3480 = vadd.f32 %v3316, %v3479
        %v3481 = vpop.f32.mrf.mxu0
        %v3482 = vadd.f32 %v3321, %v3481
        %3483 = vdwg.mxu0
        %3484 = vmatpush.bf16.msra.mxu0 0
        %3485 = vmatpush.bf16.msra.mxu0 0
        %3486 = vmatpush.bf16.msra.mxu0 0
        %3487 = vmatpush.bf16.msra.mxu0 %v3425
        %3488 = vmatpush.bf16.msra.mxu0 %v3420
        %3489 = vmatpush.bf16.msra.mxu0 %v3415
        %3490 = vmatpush.bf16.msra.mxu0 %v3410
        %3491 = vmatpush.bf16.msra.mxu0 %v3405
        %3492 = vmatmul.bf16.gmra.mxu0 %v3454
        %v3493 = vpop.f32.mrf.mxu0
        %v3494 = vadd.f32 %v3316, %v3493
        %v3495 = vpop.f32.mrf.mxu0
        %v3496 = vadd.f32 %v3321, %v3495
        %3497 = vdwg.mxu0
        %3498 = vmatpush.bf16.msra.mxu0 0
        %3499 = vmatpush.bf16.msra.mxu0 0
        %3500 = vmatpush.bf16.msra.mxu0 0
        %3501 = vmatpush.bf16.msra.mxu0 %v3426
        %3502 = vmatpush.bf16.msra.mxu0 %v3421
        %3503 = vmatpush.bf16.msra.mxu0 %v3416
        %3504 = vmatpush.bf16.msra.mxu0 %v3411
        %3505 = vmatpush.bf16.msra.mxu0 %v3406
        %3506 = vmatmul.bf16.gmra.mxu0 %v3454
        %v3507 = vpop.f32.mrf.mxu0
        %v3508 = vadd.f32 %v3316, %v3507
        %v3509 = vpop.f32.mrf.mxu0
        %v3510 = vadd.f32 %v3321, %v3509
        %3511 = vdwg.mxu0
        %3512 = vmatpush.bf16.msra.mxu0 0
        %3513 = vmatpush.bf16.msra.mxu0 0
        %3514 = vmatpush.bf16.msra.mxu0 0
        %3515 = vmatpush.bf16.msra.mxu0 %v3427
        %3516 = vmatpush.bf16.msra.mxu0 %v3422
        %3517 = vmatpush.bf16.msra.mxu0 %v3417
        %3518 = vmatpush.bf16.msra.mxu0 %v3412
        %3519 = vmatpush.bf16.msra.mxu0 %v3407
        %3520 = vmatmul.bf16.gmra.mxu0 %v3454
        %v3521 = vpop.f32.mrf.mxu0
        %v3522 = vadd.f32 %v3316, %v3521
        %v3523 = vpop.f32.mrf.mxu0
        %v3524 = vadd.f32 %v3321, %v3523
        %3525 = vdwg.mxu0
        %v3526 = vmul.f32 %v3466, 0.5
        %v3527 = vmul.f32 %v3480, 0.5
        %v3528 = vmul.f32 %v3494, 0.5
        %v3529 = vmul.f32 %v3508, 0.5
        %v3530 = vmul.f32 %v3522, 0.5
        %v3531 = vmul.f32 %v3468, 0.5
        %v3532 = vmul.f32 %v3482, 0.5
        %v3533 = vmul.f32 %v3496, 0.5
        %v3534 = vmul.f32 %v3510, 0.5
        %v3535 = vmul.f32 %v3524, 0.5
        %v3536 = vmul.f32 %v3466, 0.70710677
        %v3537 = vmul.f32 %v3480, 0.70710677
        %v3538 = vmul.f32 %v3494, 0.70710677
        %v3539 = vmul.f32 %v3508, 0.70710677
        %v3540 = vmul.f32 %v3522, 0.70710677
        %v3541 = vmul.f32 %v3468, 0.70710677
        %v3542 = vmul.f32 %v3482, 0.70710677
        %v3543 = vmul.f32 %v3496, 0.70710677
        %v3544 = vmul.f32 %v3510, 0.70710677
        %v3545 = vmul.f32 %v3524, 0.70710677
        %vm3546 = vcmp.ge.f32.partialorder %v3536, 0.0
        %vm3547 = vcmp.ge.f32.partialorder %v3537, 0.0
        %vm3548 = vcmp.ge.f32.partialorder %v3538, 0.0
        %vm3549 = vcmp.ge.f32.partialorder %v3539, 0.0
        %vm3550 = vcmp.ge.f32.partialorder %v3540, 0.0
        %vm3551 = vcmp.ge.f32.partialorder %v3541, 0.0
        %vm3552 = vcmp.ge.f32.partialorder %v3542, 0.0
        %vm3553 = vcmp.ge.f32.partialorder %v3543, 0.0
        %vm3554 = vcmp.ge.f32.partialorder %v3544, 0.0
        %vm3555 = vcmp.ge.f32.partialorder %v3545, 0.0
        %v3556 = vsel %vm3546, 1.0, -1.0
        %v3557 = vsel %vm3547, 1.0, -1.0
        %v3558 = vsel %vm3548, 1.0, -1.0
        %v3559 = vsel %vm3549, 1.0, -1.0
        %v3560 = vsel %vm3550, 1.0, -1.0
        %v3561 = vsel %vm3551, 1.0, -1.0
        %v3562 = vsel %vm3552, 1.0, -1.0
        %v3563 = vsel %vm3553, 1.0, -1.0
        %v3564 = vsel %vm3554, 1.0, -1.0
        %v3565 = vsel %vm3555, 1.0, -1.0
        %v3566 = vand.u32 2147483647, %v3536
        %v3567 = vand.u32 2147483647, %v3537
        %v3568 = vand.u32 2147483647, %v3538
        %v3569 = vand.u32 2147483647, %v3539
        %v3570 = vand.u32 2147483647, %v3540
        %v3571 = vand.u32 2147483647, %v3541
        %v3572 = vand.u32 2147483647, %v3542
        %v3573 = vand.u32 2147483647, %v3543
        %v3574 = vand.u32 2147483647, %v3544
        %v3575 = vand.u32 2147483647, %v3545
        %v3576 = vmul.f32 %v3566, 0.3275911
        %v3577 = vmul.f32 %v3567, 0.3275911
        %v3578 = vmul.f32 %v3568, 0.3275911
        %v3579 = vmul.f32 %v3569, 0.3275911
        %v3580 = vmul.f32 %v3570, 0.3275911
        %v3581 = vmul.f32 %v3571, 0.3275911
        %v3582 = vmul.f32 %v3572, 0.3275911
        %v3583 = vmul.f32 %v3573, 0.3275911
        %v3584 = vmul.f32 %v3574, 0.3275911
        %v3585 = vmul.f32 %v3575, 0.3275911
        %v3586 = vadd.f32 %v3576, 1.0
        %v3587 = vadd.f32 %v3577, 1.0
        %v3588 = vadd.f32 %v3578, 1.0
        %v3589 = vadd.f32 %v3579, 1.0
        %v3590 = vadd.f32 %v3580, 1.0
        %v3591 = vadd.f32 %v3581, 1.0
        %v3592 = vadd.f32 %v3582, 1.0
        %v3593 = vadd.f32 %v3583, 1.0
        %v3594 = vadd.f32 %v3584, 1.0
        %v3595 = vadd.f32 %v3585, 1.0
        %v3596 = vrcp.pop %v3586
        %v3597 = vrcp.pop %v3587
        %v3598 = vrcp.pop %v3588
        %v3599 = vrcp.pop %v3589
        %v3600 = vrcp.pop %v3590
        %v3601 = vrcp.pop %v3591
        %v3602 = vrcp.pop %v3592
        %v3603 = vrcp.pop %v3593
        %v3604 = vrcp.pop %v3594
        %v3605 = vrcp.pop %v3595
        %v3606 = vmul.f32 %v3596, 1.0614054
        %v3607 = vmul.f32 %v3597, 1.0614054
        %v3608 = vmul.f32 %v3598, 1.0614054
        %v3609 = vmul.f32 %v3599, 1.0614054
        %v3610 = vmul.f32 %v3600, 1.0614054
        %v3611 = vmul.f32 %v3601, 1.0614054
        %v3612 = vmul.f32 %v3602, 1.0614054
        %v3613 = vmul.f32 %v3603, 1.0614054
        %v3614 = vmul.f32 %v3604, 1.0614054
        %v3615 = vmul.f32 %v3605, 1.0614054
        %v3616 = vadd.f32 %v3606, -1.4531521
        %v3617 = vadd.f32 %v3607, -1.4531521
        %v3618 = vadd.f32 %v3608, -1.4531521
        %v3619 = vadd.f32 %v3609, -1.4531521
        %v3620 = vadd.f32 %v3610, -1.4531521
        %v3621 = vadd.f32 %v3611, -1.4531521
        %v3622 = vadd.f32 %v3612, -1.4531521
        %v3623 = vadd.f32 %v3613, -1.4531521
        %v3624 = vadd.f32 %v3614, -1.4531521
        %v3625 = vadd.f32 %v3615, -1.4531521
        %v3626 = vmul.f32 %v3596, %v3616
        %v3627 = vmul.f32 %v3597, %v3617
        %v3628 = vmul.f32 %v3598, %v3618
        %v3629 = vmul.f32 %v3599, %v3619
        %v3630 = vmul.f32 %v3600, %v3620
        %v3631 = vmul.f32 %v3601, %v3621
        %v3632 = vmul.f32 %v3602, %v3622
        %v3633 = vmul.f32 %v3603, %v3623
        %v3634 = vmul.f32 %v3604, %v3624
        %v3635 = vmul.f32 %v3605, %v3625
        %v3636 = vadd.f32 %v3626, 1.4214138
        %v3637 = vadd.f32 %v3627, 1.4214138
        %v3638 = vadd.f32 %v3628, 1.4214138
        %v3639 = vadd.f32 %v3629, 1.4214138
        %v3640 = vadd.f32 %v3630, 1.4214138
        %v3641 = vadd.f32 %v3631, 1.4214138
        %v3642 = vadd.f32 %v3632, 1.4214138
        %v3643 = vadd.f32 %v3633, 1.4214138
        %v3644 = vadd.f32 %v3634, 1.4214138
        %v3645 = vadd.f32 %v3635, 1.4214138
        %v3646 = vmul.f32 %v3596, %v3636
        %v3647 = vmul.f32 %v3597, %v3637
        %v3648 = vmul.f32 %v3598, %v3638
        %v3649 = vmul.f32 %v3599, %v3639
        %v3650 = vmul.f32 %v3600, %v3640
        %v3651 = vmul.f32 %v3601, %v3641
        %v3652 = vmul.f32 %v3602, %v3642
        %v3653 = vmul.f32 %v3603, %v3643
        %v3654 = vmul.f32 %v3604, %v3644
        %v3655 = vmul.f32 %v3605, %v3645
        %v3656 = vadd.f32 %v3646, -0.28449672
        %v3657 = vadd.f32 %v3647, -0.28449672
        %v3658 = vadd.f32 %v3648, -0.28449672
        %v3659 = vadd.f32 %v3649, -0.28449672
        %v3660 = vadd.f32 %v3650, -0.28449672
        %v3661 = vadd.f32 %v3651, -0.28449672
        %v3662 = vadd.f32 %v3652, -0.28449672
        %v3663 = vadd.f32 %v3653, -0.28449672
        %v3664 = vadd.f32 %v3654, -0.28449672
        %v3665 = vadd.f32 %v3655, -0.28449672
        %v3666 = vmul.f32 %v3596, %v3656
        %v3667 = vmul.f32 %v3597, %v3657
        %v3668 = vmul.f32 %v3598, %v3658
        %v3669 = vmul.f32 %v3599, %v3659
        %v3670 = vmul.f32 %v3600, %v3660
        %v3671 = vmul.f32 %v3601, %v3661
        %v3672 = vmul.f32 %v3602, %v3662
        %v3673 = vmul.f32 %v3603, %v3663
        %v3674 = vmul.f32 %v3604, %v3664
        %v3675 = vmul.f32 %v3605, %v3665
        %v3676 = vadd.f32 %v3666, 0.2548296
        %v3677 = vadd.f32 %v3667, 0.2548296
        %v3678 = vadd.f32 %v3668, 0.2548296
        %v3679 = vadd.f32 %v3669, 0.2548296
        %v3680 = vadd.f32 %v3670, 0.2548296
        %v3681 = vadd.f32 %v3671, 0.2548296
        %v3682 = vadd.f32 %v3672, 0.2548296
        %v3683 = vadd.f32 %v3673, 0.2548296
        %v3684 = vadd.f32 %v3674, 0.2548296
        %v3685 = vadd.f32 %v3675, 0.2548296
        %v3686 = vmul.f32 %v3596, %v3676
        %v3687 = vmul.f32 %v3597, %v3677
        %v3688 = vmul.f32 %v3598, %v3678
        %v3689 = vmul.f32 %v3599, %v3679
        %v3690 = vmul.f32 %v3600, %v3680
        %v3691 = vmul.f32 %v3601, %v3681
        %v3692 = vmul.f32 %v3602, %v3682
        %v3693 = vmul.f32 %v3603, %v3683
        %v3694 = vmul.f32 %v3604, %v3684
        %v3695 = vmul.f32 %v3605, %v3685
        %v3696 = vsub.f32 0.0, %v3566
        %v3697 = vsub.f32 0.0, %v3567
        %v3698 = vsub.f32 0.0, %v3568
        %v3699 = vsub.f32 0.0, %v3569
        %v3700 = vsub.f32 0.0, %v3570
        %v3701 = vsub.f32 0.0, %v3571
        %v3702 = vsub.f32 0.0, %v3572
        %v3703 = vsub.f32 0.0, %v3573
        %v3704 = vsub.f32 0.0, %v3574
        %v3705 = vsub.f32 0.0, %v3575
        %v3706 = vmul.f32 %v3696, %v3566
        %v3707 = vmul.f32 %v3697, %v3567
        %v3708 = vmul.f32 %v3698, %v3568
        %v3709 = vmul.f32 %v3699, %v3569
        %v3710 = vmul.f32 %v3700, %v3570
        %v3711 = vmul.f32 %v3701, %v3571
        %v3712 = vmul.f32 %v3702, %v3572
        %v3713 = vmul.f32 %v3703, %v3573
        %v3714 = vmul.f32 %v3704, %v3574
        %v3715 = vmul.f32 %v3705, %v3575
        %v3716 = vmul.f32 %v3706, 1.442695
        %v3717 = vpow.pop %v3716
        %v3718 = vmul.f32 %v3707, 1.442695
        %v3719 = vpow.pop %v3718
        %v3720 = vmul.f32 %v3708, 1.442695
        %v3721 = vpow.pop %v3720
        %v3722 = vmul.f32 %v3709, 1.442695
        %v3723 = vpow.pop %v3722
        %v3724 = vmul.f32 %v3710, 1.442695
        %v3725 = vpow.pop %v3724
        %v3726 = vmul.f32 %v3711, 1.442695
        %v3727 = vpow.pop %v3726
        %v3728 = vmul.f32 %v3712, 1.442695
        %v3729 = vpow.pop %v3728
        %v3730 = vmul.f32 %v3713, 1.442695
        %v3731 = vpow.pop %v3730
        %v3732 = vmul.f32 %v3714, 1.442695
        %v3733 = vpow.pop %v3732
        %v3734 = vmul.f32 %v3715, 1.442695
        %v3735 = vpow.pop %v3734
        %v3736 = vmul.f32 %v3686, %v3717
        %v3737 = vmul.f32 %v3687, %v3719
        %v3738 = vmul.f32 %v3688, %v3721
        %v3739 = vmul.f32 %v3689, %v3723
        %v3740 = vmul.f32 %v3690, %v3725
        %v3741 = vmul.f32 %v3691, %v3727
        %v3742 = vmul.f32 %v3692, %v3729
        %v3743 = vmul.f32 %v3693, %v3731
        %v3744 = vmul.f32 %v3694, %v3733
        %v3745 = vmul.f32 %v3695, %v3735
        %v3746 = vsub.f32 1.0, %v3736
        %v3747 = vsub.f32 1.0, %v3737
        %v3748 = vsub.f32 1.0, %v3738
        %v3749 = vsub.f32 1.0, %v3739
        %v3750 = vsub.f32 1.0, %v3740
        %v3751 = vsub.f32 1.0, %v3741
        %v3752 = vsub.f32 1.0, %v3742
        %v3753 = vsub.f32 1.0, %v3743
        %v3754 = vsub.f32 1.0, %v3744
        %v3755 = vsub.f32 1.0, %v3745
        %v3756 = vmul.f32 %v3556, %v3746
        %v3757 = vmul.f32 %v3557, %v3747
        %v3758 = vmul.f32 %v3558, %v3748
        %v3759 = vmul.f32 %v3559, %v3749
        %v3760 = vmul.f32 %v3560, %v3750
        %v3761 = vmul.f32 %v3561, %v3751
        %v3762 = vmul.f32 %v3562, %v3752
        %v3763 = vmul.f32 %v3563, %v3753
        %v3764 = vmul.f32 %v3564, %v3754
        %v3765 = vmul.f32 %v3565, %v3755
        %v3766 = vadd.f32 %v3756, 1.0
        %v3767 = vadd.f32 %v3757, 1.0
        %v3768 = vadd.f32 %v3758, 1.0
        %v3769 = vadd.f32 %v3759, 1.0
        %v3770 = vadd.f32 %v3760, 1.0
        %v3771 = vadd.f32 %v3761, 1.0
        %v3772 = vadd.f32 %v3762, 1.0
        %v3773 = vadd.f32 %v3763, 1.0
        %v3774 = vadd.f32 %v3764, 1.0
        %v3775 = vadd.f32 %v3765, 1.0
        %v3776 = vmul.f32 %v3526, %v3766
        %v3777 = vmul.f32 %v3527, %v3767
        %v3778 = vmul.f32 %v3528, %v3768
        %v3779 = vmul.f32 %v3529, %v3769
        %v3780 = vmul.f32 %v3530, %v3770
        %v3781 = vmul.f32 %v3531, %v3771
        %v3782 = vmul.f32 %v3532, %v3772
        %v3783 = vmul.f32 %v3533, %v3773
        %v3784 = vmul.f32 %v3534, %v3774
        %v3785 = vmul.f32 %v3535, %v3775
        %v3786 = vpack.c.bf16 %v3777, %v3776
        %v3787 = vpack.c.bf16 %v3779, %v3778
        %v3788 = vpack.c.bf16 %v3780, %v3780
        %v3789 = vpack.c.bf16 %v3782, %v3781
        %v3790 = vpack.c.bf16 %v3784, %v3783
        %v3791 = vpack.c.bf16 %v3785, %v3785
        %3792 = vst [vmem:[#allocation2 + $0xa0] sm:$0xff] %v3786
        %3793 = vst [vmem:[#allocation2 + $0xa8] sm:$0xff] %v3787
        %3794 = vst [vmem:[#allocation2 + $0xb0] sm:$0xf] %v3788
        %3795 = vst [vmem:[#allocation2 + $0xb4] sm:$0xff] %v3789
        %3796 = vst [vmem:[#allocation2 + $0xbc] sm:$0xff] %v3790
        %3797 = vst [vmem:[#allocation2 + $0xc4] sm:$0xf] %v3791
        %v3804 = vunpack.c.l.b16 %v3786
        %v3805 = vunpack.c.h.b16 %v3786
        %v3806 = vunpack.c.l.b16 %v3787
        %v3807 = vunpack.c.h.b16 %v3787
        %v3808 = vunpack.c.l.b16 %v3788
        %v3809 = vunpack.c.l.b16 %v3789
        %v3810 = vunpack.c.h.b16 %v3789
        %v3811 = vunpack.c.l.b16 %v3790
        %v3812 = vunpack.c.h.b16 %v3790
        %v3813 = vunpack.c.l.b16 %v3791
        %v3814 = vpack.c.b16 %v3809, %v3804
        %v3815 = vpack.c.b16 %v3810, %v3805
        %v3816 = vpack.c.b16 %v3811, %v3806
        %v3817 = vpack.c.b16 %v3812, %v3807
        %v3818 = vpack.c.b16 %v3813, %v3808
        %3824 = vmatpush.bf16.msra.mxu0 %v952
        %3825 = vmatpush.bf16.msra.mxu0 %v951
        %3826 = vmatpush.bf16.msra.mxu0 %v950
        %3827 = vmatpush.bf16.msra.mxu0 %v949
        %3828 = vmatpush.bf16.msra.mxu0 %v948
        %3829 = vmatpush.bf16.msra.mxu0 %v947
        %3830 = vmatpush.bf16.msra.mxu0 %v946
        %3831 = vmatpush.bf16.msra.mxu0 %v945
        %3832 = vmatmul.bf16.gmra.mxu0 %v3814
        %v3833 = vpop.f32.mrf.mxu0
        %v3834 = vadd.f32 0.0, %v3833
        %v3835 = vpop.f32.mrf.mxu0
        %v3836 = vadd.f32 0.0, %v3835
        %3837 = vdwg.mxu0
        %3838 = vmatpush.bf16.msra.mxu0 %v960
        %3839 = vmatpush.bf16.msra.mxu0 %v959
        %3840 = vmatpush.bf16.msra.mxu0 %v958
        %3841 = vmatpush.bf16.msra.mxu0 %v957
        %3842 = vmatpush.bf16.msra.mxu0 %v956
        %3843 = vmatpush.bf16.msra.mxu0 %v955
        %3844 = vmatpush.bf16.msra.mxu0 %v954
        %3845 = vmatpush.bf16.msra.mxu0 %v953
        %3846 = vmatmul.bf16.gmra.mxu0 %v3815
        %v3847 = vpop.f32.mrf.mxu0
        %v3848 = vadd.f32 %v3834, %v3847
        %v3849 = vpop.f32.mrf.mxu0
        %v3850 = vadd.f32 %v3836, %v3849
        %3851 = vdwg.mxu0
        %3852 = vmatpush.bf16.msra.mxu0 %v968
        %3853 = vmatpush.bf16.msra.mxu0 %v967
        %3854 = vmatpush.bf16.msra.mxu0 %v966
        %3855 = vmatpush.bf16.msra.mxu0 %v965
        %3856 = vmatpush.bf16.msra.mxu0 %v964
        %3857 = vmatpush.bf16.msra.mxu0 %v963
        %3858 = vmatpush.bf16.msra.mxu0 %v962
        %3859 = vmatpush.bf16.msra.mxu0 %v961
        %3860 = vmatmul.bf16.gmra.mxu0 %v3816
        %v3861 = vpop.f32.mrf.mxu0
        %v3862 = vadd.f32 %v3848, %v3861
        %v3863 = vpop.f32.mrf.mxu0
        %v3864 = vadd.f32 %v3850, %v3863
        %3865 = vdwg.mxu0
        %3866 = vmatpush.bf16.msra.mxu0 %v976
        %3867 = vmatpush.bf16.msra.mxu0 %v975
        %3868 = vmatpush.bf16.msra.mxu0 %v974
        %3869 = vmatpush.bf16.msra.mxu0 %v973
        %3870 = vmatpush.bf16.msra.mxu0 %v972
        %3871 = vmatpush.bf16.msra.mxu0 %v971
        %3872 = vmatpush.bf16.msra.mxu0 %v970
        %3873 = vmatpush.bf16.msra.mxu0 %v969
        %3874 = vmatmul.bf16.gmra.mxu0 %v3817
        %v3875 = vpop.f32.mrf.mxu0
        %v3876 = vadd.f32 %v3862, %v3875
        %v3877 = vpop.f32.mrf.mxu0
        %v3878 = vadd.f32 %v3864, %v3877
        %3879 = vdwg.mxu0
        %3880 = vmatpush.bf16.msra.mxu0 %v984
        %3881 = vmatpush.bf16.msra.mxu0 %v983
        %3882 = vmatpush.bf16.msra.mxu0 %v982
        %3883 = vmatpush.bf16.msra.mxu0 %v981
        %3884 = vmatpush.bf16.msra.mxu0 %v980
        %3885 = vmatpush.bf16.msra.mxu0 %v979
        %3886 = vmatpush.bf16.msra.mxu0 %v978
        %3887 = vmatpush.bf16.msra.mxu0 %v977
        %3888 = vmatmul.bf16.gmra.mxu0 %v3818
        %v3889 = vpop.f32.mrf.mxu0
        %v3890 = vadd.f32 %v3876, %v3889
        %v3891 = vpop.f32.mrf.mxu0
        %v3892 = vadd.f32 %v3878, %v3891
        %3893 = vdwg.mxu0
        %s3894 = scalar_lea.vmem %s6, 768
        %v3895 = vld [vmem:[%s3894] sm:$0xff]
        %v3896 = vld [vmem:[%s3894 + $0x8] sm:$0xff]
        %v3897 = vld [vmem:[%s3894 + $0x10] sm:$0xff]
        %v3898 = vld [vmem:[%s3894 + $0x18] sm:$0xff]
        %v3899 = vld [vmem:[%s3894 + $0x20] sm:$0xff]
        %v3900 = vld [vmem:[%s3894 + $0x28] sm:$0xff]
        %v3901 = vld [vmem:[%s3894 + $0x30] sm:$0xff]
        %v3902 = vld [vmem:[%s3894 + $0x38] sm:$0xff]
        %v3903 = vld [vmem:[%s3894 + $0x40] sm:$0xff]
        %v3904 = vld [vmem:[%s3894 + $0x48] sm:$0xff]
        %v3905 = vld [vmem:[%s3894 + $0x50] sm:$0xff]
        %v3906 = vld [vmem:[%s3894 + $0x58] sm:$0xff]
        %v3907 = vld [vmem:[%s3894 + $0x60] sm:$0xff]
        %v3908 = vld [vmem:[%s3894 + $0x68] sm:$0xff]
        %v3909 = vld [vmem:[%s3894 + $0x70] sm:$0xff]
        %v3910 = vld [vmem:[%s3894 + $0x78] sm:$0xff]
        %v3911 = vld [vmem:[%s3894 + $0x80] sm:$0xff]
        %v3912 = vld [vmem:[%s3894 + $0x88] sm:$0xff]
        %v3913 = vld [vmem:[%s3894 + $0x90] sm:$0xff]
        %v3914 = vld [vmem:[%s3894 + $0x98] sm:$0xff]
        %v3915 = vld [vmem:[%s3894 + $0xa0] sm:$0xff]
        %v3916 = vld [vmem:[%s3894 + $0xa8] sm:$0xff]
        %v3917 = vld [vmem:[%s3894 + $0xb0] sm:$0xff]
        %v3918 = vld [vmem:[%s3894 + $0xb8] sm:$0xff]
        %v3919 = vld [vmem:[%s3894 + $0xc0] sm:$0xff]
        %v3920 = vld [vmem:[%s3894 + $0xc8] sm:$0xff]
        %v3921 = vld [vmem:[%s3894 + $0xd0] sm:$0xff]
        %v3922 = vld [vmem:[%s3894 + $0xd8] sm:$0xff]
        %v3923 = vld [vmem:[%s3894 + $0xe0] sm:$0xff]
        %v3924 = vld [vmem:[%s3894 + $0xe8] sm:$0xff]
        %v3925 = vld [vmem:[%s3894 + $0xf0] sm:$0xff]
        %v3926 = vld [vmem:[%s3894 + $0xf8] sm:$0xff]
        %v3927 = vmul.f32 %v3890, %v3895
        %v3928 = vmul.f32 %v3892, %v3896
        %v3929 = vmul.f32 %v3890, %v3897
        %v3930 = vmul.f32 %v3892, %v3898
        %v3931 = vmul.f32 %v3890, %v3899
        %v3932 = vmul.f32 %v3892, %v3900
        %v3933 = vmul.f32 %v3890, %v3901
        %v3934 = vmul.f32 %v3892, %v3902
        %v3935 = vmul.f32 %v3890, %v3903
        %v3936 = vmul.f32 %v3892, %v3904
        %v3937 = vmul.f32 %v3890, %v3905
        %v3938 = vmul.f32 %v3892, %v3906
        %v3939 = vmul.f32 %v3890, %v3907
        %v3940 = vmul.f32 %v3892, %v3908
        %v3941 = vmul.f32 %v3890, %v3909
        %v3942 = vmul.f32 %v3892, %v3910
        %v3943 = vmul.f32 %v3890, %v3911
        %v3944 = vmul.f32 %v3892, %v3912
        %v3945 = vmul.f32 %v3890, %v3913
        %v3946 = vmul.f32 %v3892, %v3914
        %v3947 = vmul.f32 %v3890, %v3915
        %v3948 = vmul.f32 %v3892, %v3916
        %v3949 = vmul.f32 %v3890, %v3917
        %v3950 = vmul.f32 %v3892, %v3918
        %v3951 = vmul.f32 %v3890, %v3919
        %v3952 = vmul.f32 %v3892, %v3920
        %v3953 = vmul.f32 %v3890, %v3921
        %v3954 = vmul.f32 %v3892, %v3922
        %v3955 = vmul.f32 %v3890, %v3923
        %v3956 = vmul.f32 %v3892, %v3924
        %v3957 = vmul.f32 %v3890, %v3925
        %v3958 = vmul.f32 %v3892, %v3926
        %v3959 = vadd.f32 %v3927, %v3928
        %v3960 = vrot.slane %v3959, 4
        %v3961 = vadd.f32 %v3959, %v3960
        %v3962 = vrot.slane %v3961, 2
        %v3963 = vadd.f32 %v3961, %v3962
        %v3964 = vrot.slane %v3963, 1
        %v3965 = vadd.f32 %v3963, %v3964
        %v3966 = vadd.f32 %v3929, %v3930
        %v3967 = vrot.slane %v3966, 4
        %v3968 = vadd.f32 %v3966, %v3967
        %v3969 = vrot.slane %v3968, 2
        %v3970 = vadd.f32 %v3968, %v3969
        %v3971 = vrot.slane %v3970, 1
        %v3972 = vadd.f32 %v3970, %v3971
        %v3973 = vadd.f32 %v3931, %v3932
        %v3974 = vrot.slane %v3973, 4
        %v3975 = vadd.f32 %v3973, %v3974
        %v3976 = vrot.slane %v3975, 2
        %v3977 = vadd.f32 %v3975, %v3976
        %v3978 = vrot.slane %v3977, 1
        %v3979 = vadd.f32 %v3977, %v3978
        %v3980 = vadd.f32 %v3933, %v3934
        %v3981 = vrot.slane %v3980, 4
        %v3982 = vadd.f32 %v3980, %v3981
        %v3983 = vrot.slane %v3982, 2
        %v3984 = vadd.f32 %v3982, %v3983
        %v3985 = vrot.slane %v3984, 1
        %v3986 = vadd.f32 %v3984, %v3985
        %v3987 = vadd.f32 %v3935, %v3936
        %v3988 = vrot.slane %v3987, 4
        %v3989 = vadd.f32 %v3987, %v3988
        %v3990 = vrot.slane %v3989, 2
        %v3991 = vadd.f32 %v3989, %v3990
        %v3992 = vrot.slane %v3991, 1
        %v3993 = vadd.f32 %v3991, %v3992
        %v3994 = vadd.f32 %v3937, %v3938
        %v3995 = vrot.slane %v3994, 4
        %v3996 = vadd.f32 %v3994, %v3995
        %v3997 = vrot.slane %v3996, 2
        %v3998 = vadd.f32 %v3996, %v3997
        %v3999 = vrot.slane %v3998, 1
        %v4000 = vadd.f32 %v3998, %v3999
        %v4001 = vadd.f32 %v3939, %v3940
        %v4002 = vrot.slane %v4001, 4
        %v4003 = vadd.f32 %v4001, %v4002
        %v4004 = vrot.slane %v4003, 2
        %v4005 = vadd.f32 %v4003, %v4004
        %v4006 = vrot.slane %v4005, 1
        %v4007 = vadd.f32 %v4005, %v4006
        %v4008 = vadd.f32 %v3941, %v3942
        %v4009 = vrot.slane %v4008, 4
        %v4010 = vadd.f32 %v4008, %v4009
        %v4011 = vrot.slane %v4010, 2
        %v4012 = vadd.f32 %v4010, %v4011
        %v4013 = vrot.slane %v4012, 1
        %v4014 = vadd.f32 %v4012, %v4013
        %v4015 = vadd.f32 %v3943, %v3944
        %v4016 = vrot.slane %v4015, 4
        %v4017 = vadd.f32 %v4015, %v4016
        %v4018 = vrot.slane %v4017, 2
        %v4019 = vadd.f32 %v4017, %v4018
        %v4020 = vrot.slane %v4019, 1
        %v4021 = vadd.f32 %v4019, %v4020
        %v4022 = vadd.f32 %v3945, %v3946
        %v4023 = vrot.slane %v4022, 4
        %v4024 = vadd.f32 %v4022, %v4023
        %v4025 = vrot.slane %v4024, 2
        %v4026 = vadd.f32 %v4024, %v4025
        %v4027 = vrot.slane %v4026, 1
        %v4028 = vadd.f32 %v4026, %v4027
        %v4029 = vadd.f32 %v3947, %v3948
        %v4030 = vrot.slane %v4029, 4
        %v4031 = vadd.f32 %v4029, %v4030
        %v4032 = vrot.slane %v4031, 2
        %v4033 = vadd.f32 %v4031, %v4032
        %v4034 = vrot.slane %v4033, 1
        %v4035 = vadd.f32 %v4033, %v4034
        %v4036 = vadd.f32 %v3949, %v3950
        %v4037 = vrot.slane %v4036, 4
        %v4038 = vadd.f32 %v4036, %v4037
        %v4039 = vrot.slane %v4038, 2
        %v4040 = vadd.f32 %v4038, %v4039
        %v4041 = vrot.slane %v4040, 1
        %v4042 = vadd.f32 %v4040, %v4041
        %v4043 = vadd.f32 %v3951, %v3952
        %v4044 = vrot.slane %v4043, 4
        %v4045 = vadd.f32 %v4043, %v4044
        %v4046 = vrot.slane %v4045, 2
        %v4047 = vadd.f32 %v4045, %v4046
        %v4048 = vrot.slane %v4047, 1
        %v4049 = vadd.f32 %v4047, %v4048
        %v4050 = vadd.f32 %v3953, %v3954
        %v4051 = vrot.slane %v4050, 4
        %v4052 = vadd.f32 %v4050, %v4051
        %v4053 = vrot.slane %v4052, 2
        %v4054 = vadd.f32 %v4052, %v4053
        %v4055 = vrot.slane %v4054, 1
        %v4056 = vadd.f32 %v4054, %v4055
        %v4057 = vadd.f32 %v3955, %v3956
        %v4058 = vrot.slane %v4057, 4
        %v4059 = vadd.f32 %v4057, %v4058
        %v4060 = vrot.slane %v4059, 2
        %v4061 = vadd.f32 %v4059, %v4060
        %v4062 = vrot.slane %v4061, 1
        %v4063 = vadd.f32 %v4061, %v4062
        %v4064 = vadd.f32 %v3957, %v3958
        %v4065 = vrot.slane %v4064, 4
        %v4066 = vadd.f32 %v4064, %v4065
        %v4067 = vrot.slane %v4066, 2
        %v4068 = vadd.f32 %v4066, %v4067
        %v4069 = vrot.slane %v4068, 1
        %v4070 = vadd.f32 %v4068, %v4069
        %4087 = vrot.lane.b32.xlu0 %v3965, 64
        %v4088 = vpop.permute.xlu0 %4087
        %4089 = vrot.lane.b32.xlu0 %v3972, 64
        %v4090 = vpop.permute.xlu0 %4089
        %4091 = vrot.lane.b32.xlu0 %v3979, 64
        %v4092 = vpop.permute.xlu0 %4091
        %4093 = vrot.lane.b32.xlu0 %v3986, 64
        %v4094 = vpop.permute.xlu0 %4093
        %4095 = vrot.lane.b32.xlu0 %v3993, 64
        %v4096 = vpop.permute.xlu0 %4095
        %4097 = vrot.lane.b32.xlu0 %v4000, 64
        %v4098 = vpop.permute.xlu0 %4097
        %4099 = vrot.lane.b32.xlu0 %v4007, 64
        %v4100 = vpop.permute.xlu0 %4099
        %4101 = vrot.lane.b32.xlu0 %v4014, 64
        %v4102 = vpop.permute.xlu0 %4101
        %4103 = vrot.lane.b32.xlu0 %v4021, 64
        %v4104 = vpop.permute.xlu0 %4103
        %4105 = vrot.lane.b32.xlu0 %v4028, 64
        %v4106 = vpop.permute.xlu0 %4105
        %4107 = vrot.lane.b32.xlu0 %v4035, 64
        %v4108 = vpop.permute.xlu0 %4107
        %4109 = vrot.lane.b32.xlu0 %v4042, 64
        %v4110 = vpop.permute.xlu0 %4109
        %4111 = vrot.lane.b32.xlu0 %v4049, 64
        %v4112 = vpop.permute.xlu0 %4111
        %4113 = vrot.lane.b32.xlu0 %v4056, 64
        %v4114 = vpop.permute.xlu0 %4113
        %4115 = vrot.lane.b32.xlu0 %v4063, 64
        %v4116 = vpop.permute.xlu0 %4115
        %4117 = vrot.lane.b32.xlu0 %v4070, 64
        %v4118 = vpop.permute.xlu0 %4117
        %v4135 = vadd.f32 %v3965, %v4088
        %v4136 = vadd.f32 %v3972, %v4090
        %v4137 = vadd.f32 %v3979, %v4092
        %v4138 = vadd.f32 %v3986, %v4094
        %v4139 = vadd.f32 %v3993, %v4096
        %v4140 = vadd.f32 %v4000, %v4098
        %v4141 = vadd.f32 %v4007, %v4100
        %v4142 = vadd.f32 %v4014, %v4102
        %v4143 = vadd.f32 %v4021, %v4104
        %v4144 = vadd.f32 %v4028, %v4106
        %v4145 = vadd.f32 %v4035, %v4108
        %v4146 = vadd.f32 %v4042, %v4110
        %v4147 = vadd.f32 %v4049, %v4112
        %v4148 = vadd.f32 %v4056, %v4114
        %v4149 = vadd.f32 %v4063, %v4116
        %v4150 = vadd.f32 %v4070, %v4118
        %s4151 = scalar_lea.vmem %s7, 48
        %v4152 = vld [vmem:[%s4151] sm:$0xff]
        %v4153 = vld [vmem:[%s4151 + $0x8] sm:$0xff]
        %v4170 = vrot.slane %v4136, 7
        %v4171 = vsel %vm1370, %v4170, %v4135
        %v4172 = vrot.slane %v4137, 6
        %v4173 = vsel %vm1373, %v4172, %v4171
        %v4174 = vrot.slane %v4138, 5
        %v4175 = vsel %vm1376, %v4174, %v4173
        %v4176 = vrot.slane %v4139, 4
        %v4177 = vsel %vm1379, %v4176, %v4175
        %v4178 = vrot.slane %v4140, 3
        %v4179 = vsel %vm1382, %v4178, %v4177
        %v4180 = vrot.slane %v4141, 2
        %v4181 = vsel %vm1385, %v4180, %v4179
        %v4182 = vrot.slane %v4142, 1
        %v4183 = vsel %vm1388, %v4182, %v4181
        %v4184 = vrot.slane %v4144, 7
        %v4185 = vsel %vm1370, %v4184, %v4143
        %v4186 = vrot.slane %v4145, 6
        %v4187 = vsel %vm1373, %v4186, %v4185
        %v4188 = vrot.slane %v4146, 5
        %v4189 = vsel %vm1376, %v4188, %v4187
        %v4190 = vrot.slane %v4147, 4
        %v4191 = vsel %vm1379, %v4190, %v4189
        %v4192 = vrot.slane %v4148, 3
        %v4193 = vsel %vm1382, %v4192, %v4191
        %v4194 = vrot.slane %v4149, 2
        %v4195 = vsel %vm1385, %v4194, %v4193
        %v4196 = vrot.slane %v4150, 1
        %v4197 = vsel %vm1388, %v4196, %v4195
        %4202 = vrot.lane.b32.xlu0 %v4152, 64
        %v4203 = vpop.permute.xlu0 %4202
        %4204 = vrot.lane.b32.xlu0 %v4153, 64
        %v4205 = vpop.permute.xlu0 %4204
        %v4208 = vsel %vm1414, %v4183, %v4203
        %v4209 = vsel %vm1414, %v4197, %v4205
        %v4210 = vpack.c.bf16 %v4209, %v4208
        %v4211 = vld [vmem:[#allocation2] sm:$0xff]
        %v4212 = vld [vmem:[#allocation2 + $0x8] sm:$0xff]
        %v4213 = vld [vmem:[#allocation2 + $0x10] sm:$0xf]
        %v4214 = vld [vmem:[#allocation2 + $0x14] sm:$0xff]
        %v4215 = vld [vmem:[#allocation2 + $0x1c] sm:$0xff]
        %v4216 = vld [vmem:[#allocation2 + $0x24] sm:$0xf]
        %v4217 = vld [vmem:[#allocation2 + $0x28] sm:$0xff]
        %v4218 = vld [vmem:[#allocation2 + $0x30] sm:$0xff]
        %v4219 = vld [vmem:[#allocation2 + $0x38] sm:$0xf]
        %v4220 = vld [vmem:[#allocation2 + $0x3c] sm:$0xff]
        %v4221 = vld [vmem:[#allocation2 + $0x44] sm:$0xff]
        %v4222 = vld [vmem:[#allocation2 + $0x4c] sm:$0xf]
        %v4223 = vld [vmem:[#allocation2 + $0x50] sm:$0xff]
        %v4224 = vld [vmem:[#allocation2 + $0x58] sm:$0xff]
        %v4225 = vld [vmem:[#allocation2 + $0x60] sm:$0xf]
        %v4226 = vld [vmem:[#allocation2 + $0x64] sm:$0xff]
        %v4227 = vld [vmem:[#allocation2 + $0x6c] sm:$0xff]
        %v4228 = vld [vmem:[#allocation2 + $0x74] sm:$0xf]
        %v4229 = vld [vmem:[#allocation2 + $0x78] sm:$0xff]
        %v4230 = vld [vmem:[#allocation2 + $0x80] sm:$0xff]
        %v4231 = vld [vmem:[#allocation2 + $0x88] sm:$0xf]
        %v4232 = vld [vmem:[#allocation2 + $0x8c] sm:$0xff]
        %v4233 = vld [vmem:[#allocation2 + $0x94] sm:$0xff]
        %v4234 = vld [vmem:[#allocation2 + $0x9c] sm:$0xf]
        %v4235 = vld [vmem:[#allocation2 + $0xa0] sm:$0xff]
        %v4236 = vld [vmem:[#allocation2 + $0xa8] sm:$0xff]
        %v4237 = vld [vmem:[#allocation2 + $0xb0] sm:$0xf]
        %v4238 = vld [vmem:[#allocation2 + $0xb4] sm:$0xff]
        %v4239 = vld [vmem:[#allocation2 + $0xbc] sm:$0xff]
        %v4240 = vld [vmem:[#allocation2 + $0xc4] sm:$0xf]
        %s4241 = scalar_lea.vmem %s8, 48
        %v4242 = vld [vmem:[%s4241] sm:$0xff]
        %v4243 = vld [vmem:[%s4241 + $0x8] sm:$0xff]
        %4245 = vset.pattern.permute.xlu0 0
        %4246 = vperm.xlu0 %4245, %v4242
        %v4247 = vpop.permute.xlu0 %4246
        %4250 = vset.pattern.permute.xlu0 0
        %4251 = vperm.xlu0 %4250, %v4243
        %v4252 = vpop.permute.xlu0 %4251
        %v4284 = vunpack.c.l.b16 %v4211
        %v4285 = vunpack.c.h.b16 %v4211
        %v4286 = vunpack.c.l.b16 %v4212
        %v4287 = vunpack.c.h.b16 %v4212
        %v4288 = vunpack.c.l.b16 %v4213
        %v4289 = vunpack.c.l.b16 %v4214
        %v4290 = vunpack.c.h.b16 %v4214
        %v4291 = vunpack.c.l.b16 %v4215
        %v4292 = vunpack.c.h.b16 %v4215
        %v4293 = vunpack.c.l.b16 %v4216
        %v4294 = vunpack.c.l.b16 %v4217
        %v4295 = vunpack.c.h.b16 %v4217
        %v4296 = vunpack.c.l.b16 %v4218
        %v4297 = vunpack.c.h.b16 %v4218
        %v4298 = vunpack.c.l.b16 %v4219
        %v4299 = vunpack.c.l.b16 %v4220
        %v4300 = vunpack.c.h.b16 %v4220
        %v4301 = vunpack.c.l.b16 %v4221
        %v4302 = vunpack.c.h.b16 %v4221
        %v4303 = vunpack.c.l.b16 %v4222
        %v4304 = vunpack.c.l.b16 %v4223
        %v4305 = vunpack.c.h.b16 %v4223
        %v4306 = vunpack.c.l.b16 %v4224
        %v4307 = vunpack.c.h.b16 %v4224
        %v4308 = vunpack.c.l.b16 %v4225
        %v4309 = vunpack.c.l.b16 %v4226
        %v4310 = vunpack.c.h.b16 %v4226
        %v4311 = vunpack.c.l.b16 %v4227
        %v4312 = vunpack.c.h.b16 %v4227
        %v4313 = vunpack.c.l.b16 %v4228
        %v4314 = vunpack.c.l.b16 %v4229
        %v4315 = vunpack.c.h.b16 %v4229
        %v4316 = vunpack.c.l.b16 %v4230
        %v4317 = vunpack.c.h.b16 %v4230
        %v4318 = vunpack.c.l.b16 %v4231
        %v4319 = vunpack.c.l.b16 %v4232
        %v4320 = vunpack.c.h.b16 %v4232
        %v4321 = vunpack.c.l.b16 %v4233
        %v4322 = vunpack.c.h.b16 %v4233
        %v4323 = vunpack.c.l.b16 %v4234
        %v4324 = vunpack.c.l.b16 %v4235
        %v4325 = vunpack.c.h.b16 %v4235
        %v4326 = vunpack.c.l.b16 %v4236
        %v4327 = vunpack.c.h.b16 %v4236
        %v4328 = vunpack.c.l.b16 %v4237
        %v4329 = vunpack.c.l.b16 %v4238
        %v4330 = vunpack.c.h.b16 %v4238
        %v4331 = vunpack.c.l.b16 %v4239
        %v4332 = vunpack.c.h.b16 %v4239
        %v4333 = vunpack.c.l.b16 %v4240
        %v4334 = vpack.c.b16 %v4289, %v4284
        %v4335 = vpack.c.b16 %v4290, %v4285
        %v4336 = vpack.c.b16 %v4291, %v4286
        %v4337 = vpack.c.b16 %v4292, %v4287
        %v4338 = vpack.c.b16 %v4293, %v4288
        %v4339 = vpack.c.b16 %v4299, %v4294
        %v4340 = vpack.c.b16 %v4300, %v4295
        %v4341 = vpack.c.b16 %v4301, %v4296
        %v4342 = vpack.c.b16 %v4302, %v4297
        %v4343 = vpack.c.b16 %v4303, %v4298
        %v4344 = vpack.c.b16 %v4309, %v4304
        %v4345 = vpack.c.b16 %v4310, %v4305
        %v4346 = vpack.c.b16 %v4311, %v4306
        %v4347 = vpack.c.b16 %v4312, %v4307
        %v4348 = vpack.c.b16 %v4313, %v4308
        %v4349 = vpack.c.b16 %v4319, %v4314
        %v4350 = vpack.c.b16 %v4320, %v4315
        %v4351 = vpack.c.b16 %v4321, %v4316
        %v4352 = vpack.c.b16 %v4322, %v4317
        %v4353 = vpack.c.b16 %v4323, %v4318
        %v4354 = vpack.c.b16 %v4329, %v4324
        %v4355 = vpack.c.b16 %v4330, %v4325
        %v4356 = vpack.c.b16 %v4331, %v4326
        %v4357 = vpack.c.b16 %v4332, %v4327
        %v4358 = vpack.c.b16 %v4333, %v4328
        %v4385 = vsel %vm1590, %v4210, 0
        %4387 = vmatpush.bf16.msra.mxu0 0
        %4388 = vmatpush.bf16.msra.mxu0 0
        %4389 = vmatpush.bf16.msra.mxu0 0
        %4390 = vmatpush.bf16.msra.mxu0 %v4354
        %4391 = vmatpush.bf16.msra.mxu0 %v4349
        %4392 = vmatpush.bf16.msra.mxu0 %v4344
        %4393 = vmatpush.bf16.msra.mxu0 %v4339
        %4394 = vmatpush.bf16.msra.mxu0 %v4334
        %4395 = vmatmul.bf16.gmra.mxu0 %v4385
        %v4396 = vpop.f32.mrf.mxu0
        %v4397 = vadd.f32 %v4247, %v4396
        %v4398 = vpop.f32.mrf.mxu0
        %v4399 = vadd.f32 %v4252, %v4398
        %4400 = vdwg.mxu0
        %4401 = vmatpush.bf16.msra.mxu0 0
        %4402 = vmatpush.bf16.msra.mxu0 0
        %4403 = vmatpush.bf16.msra.mxu0 0
        %4404 = vmatpush.bf16.msra.mxu0 %v4355
        %4405 = vmatpush.bf16.msra.mxu0 %v4350
        %4406 = vmatpush.bf16.msra.mxu0 %v4345
        %4407 = vmatpush.bf16.msra.mxu0 %v4340
        %4408 = vmatpush.bf16.msra.mxu0 %v4335
        %4409 = vmatmul.bf16.gmra.mxu0 %v4385
        %v4410 = vpop.f32.mrf.mxu0
        %v4411 = vadd.f32 %v4247, %v4410
        %v4412 = vpop.f32.mrf.mxu0
        %v4413 = vadd.f32 %v4252, %v4412
        %4414 = vdwg.mxu0
        %4415 = vmatpush.bf16.msra.mxu0 0
        %4416 = vmatpush.bf16.msra.mxu0 0
        %4417 = vmatpush.bf16.msra.mxu0 0
        %4418 = vmatpush.bf16.msra.mxu0 %v4356
        %4419 = vmatpush.bf16.msra.mxu0 %v4351
        %4420 = vmatpush.bf16.msra.mxu0 %v4346
        %4421 = vmatpush.bf16.msra.mxu0 %v4341
        %4422 = vmatpush.bf16.msra.mxu0 %v4336
        %4423 = vmatmul.bf16.gmra.mxu0 %v4385
        %v4424 = vpop.f32.mrf.mxu0
        %v4425 = vadd.f32 %v4247, %v4424
        %v4426 = vpop.f32.mrf.mxu0
        %v4427 = vadd.f32 %v4252, %v4426
        %4428 = vdwg.mxu0
        %4429 = vmatpush.bf16.msra.mxu0 0
        %4430 = vmatpush.bf16.msra.mxu0 0
        %4431 = vmatpush.bf16.msra.mxu0 0
        %4432 = vmatpush.bf16.msra.mxu0 %v4357
        %4433 = vmatpush.bf16.msra.mxu0 %v4352
        %4434 = vmatpush.bf16.msra.mxu0 %v4347
        %4435 = vmatpush.bf16.msra.mxu0 %v4342
        %4436 = vmatpush.bf16.msra.mxu0 %v4337
        %4437 = vmatmul.bf16.gmra.mxu0 %v4385
        %v4438 = vpop.f32.mrf.mxu0
        %v4439 = vadd.f32 %v4247, %v4438
        %v4440 = vpop.f32.mrf.mxu0
        %v4441 = vadd.f32 %v4252, %v4440
        %4442 = vdwg.mxu0
        %4443 = vmatpush.bf16.msra.mxu0 0
        %4444 = vmatpush.bf16.msra.mxu0 0
        %4445 = vmatpush.bf16.msra.mxu0 0
        %4446 = vmatpush.bf16.msra.mxu0 %v4358
        %4447 = vmatpush.bf16.msra.mxu0 %v4353
        %4448 = vmatpush.bf16.msra.mxu0 %v4348
        %4449 = vmatpush.bf16.msra.mxu0 %v4343
        %4450 = vmatpush.bf16.msra.mxu0 %v4338
        %4451 = vmatmul.bf16.gmra.mxu0 %v4385
        %v4452 = vpop.f32.mrf.mxu0
        %v4453 = vadd.f32 %v4247, %v4452
        %v4454 = vpop.f32.mrf.mxu0
        %v4455 = vadd.f32 %v4252, %v4454
        %4456 = vdwg.mxu0
        %v4457 = vld [vmem:[%s9] sm:$0xf]
        %v4458 = vld [vmem:[%s9 + $0x4] sm:$0xf]
        %v4459 = vld [vmem:[%s9 + $0x8] sm:$0xf]
        %v4460 = vld [vmem:[%s9 + $0xc] sm:$0xf]
        %v4461 = vld [vmem:[%s9 + $0x10] sm:$0xf]
        %v4462 = vld [vmem:[%s9 + $0x14] sm:$0xf]
        %v4463 = vld [vmem:[%s9 + $0x18] sm:$0xf]
        %v4464 = vld [vmem:[%s9 + $0x1c] sm:$0xf]
        %v4465 = vld [vmem:[%s9 + $0x20] sm:$0xf]
        %v4466 = vld [vmem:[%s9 + $0x24] sm:$0xf]
        %v4467 = vld [vmem:[%s9 + $0x28] sm:$0xf]
        %v4468 = vld [vmem:[%s9 + $0x2c] sm:$0xf]
        %v4469 = vld [vmem:[%s9 + $0x30] sm:$0xf]
        %v4470 = vld [vmem:[%s9 + $0x34] sm:$0xf]
        %v4471 = vld [vmem:[%s9 + $0x38] sm:$0xf]
        %v4472 = vld [vmem:[%s9 + $0x3c] sm:$0xf]
        %v4473 = vld [vmem:[%s11] sm:$0x1]
        %v4474 = vpack.c.bf16 %v4399, %v4397
        %v4475 = vpack.c.bf16 %v4413, %v4411
        %v4476 = vpack.c.bf16 %v4427, %v4425
        %v4477 = vpack.c.bf16 %v4441, %v4439
        %v4478 = vpack.c.bf16 %v4455, %v4453
        %v4479 = vld [vmem:[%s10] sm:$0xff]
        %v4480 = vld [vmem:[%s10 + $0x8] sm:$0xff]
        %v4481 = vld [vmem:[%s10 + $0x10] sm:$0xff]
        %v4482 = vld [vmem:[%s10 + $0x18] sm:$0xff]
        %v4483 = vld [vmem:[%s10 + $0x20] sm:$0xff]
        %v4484 = vld [vmem:[%s10 + $0x28] sm:$0xff]
        %v4485 = vld [vmem:[%s10 + $0x30] sm:$0xff]
        %v4486 = vld [vmem:[%s10 + $0x38] sm:$0xff]
        %v4487 = vld [vmem:[%s10 + $0x40] sm:$0xff]
        %v4488 = vld [vmem:[%s10 + $0x48] sm:$0xff]
        %v4489 = vld [vmem:[%s10 + $0x50] sm:$0xff]
        %v4490 = vld [vmem:[%s10 + $0x58] sm:$0xff]
        %v4491 = vld [vmem:[%s10 + $0x60] sm:$0xff]
        %v4492 = vld [vmem:[%s10 + $0x68] sm:$0xff]
        %v4493 = vld [vmem:[%s10 + $0x70] sm:$0xff]
        %v4494 = vld [vmem:[%s10 + $0x78] sm:$0xff]
        %4496 = vset.pattern.permute.xlu0 0
        %4497 = vperm.xlu0 %4496, %v4479
        %v4498 = vpop.permute.xlu0 %4497
        %4501 = vset.pattern.permute.xlu0 0
        %4502 = vperm.xlu0 %4501, %v4480
        %v4503 = vpop.permute.xlu0 %4502
        %4506 = vset.pattern.permute.xlu0 0
        %4507 = vperm.xlu0 %4506, %v4481
        %v4508 = vpop.permute.xlu0 %4507
        %4511 = vset.pattern.permute.xlu0 0
        %4512 = vperm.xlu0 %4511, %v4482
        %v4513 = vpop.permute.xlu0 %4512
        %4516 = vset.pattern.permute.xlu0 0
        %4517 = vperm.xlu0 %4516, %v4483
        %v4518 = vpop.permute.xlu0 %4517
        %4521 = vset.pattern.permute.xlu0 0
        %4522 = vperm.xlu0 %4521, %v4484
        %v4523 = vpop.permute.xlu0 %4522
        %4526 = vset.pattern.permute.xlu0 0
        %4527 = vperm.xlu0 %4526, %v4485
        %v4528 = vpop.permute.xlu0 %4527
        %4531 = vset.pattern.permute.xlu0 0
        %4532 = vperm.xlu0 %4531, %v4486
        %v4533 = vpop.permute.xlu0 %4532
        %4536 = vset.pattern.permute.xlu0 0
        %4537 = vperm.xlu0 %4536, %v4487
        %v4538 = vpop.permute.xlu0 %4537
        %4541 = vset.pattern.permute.xlu0 0
        %4542 = vperm.xlu0 %4541, %v4488
        %v4543 = vpop.permute.xlu0 %4542
        %4546 = vset.pattern.permute.xlu0 0
        %4547 = vperm.xlu0 %4546, %v4489
        %v4548 = vpop.permute.xlu0 %4547
        %4551 = vset.pattern.permute.xlu0 0
        %4552 = vperm.xlu0 %4551, %v4490
        %v4553 = vpop.permute.xlu0 %4552
        %4556 = vset.pattern.permute.xlu0 0
        %4557 = vperm.xlu0 %4556, %v4491
        %v4558 = vpop.permute.xlu0 %4557
        %4561 = vset.pattern.permute.xlu0 0
        %4562 = vperm.xlu0 %4561, %v4492
        %v4563 = vpop.permute.xlu0 %4562
        %4566 = vset.pattern.permute.xlu0 0
        %4567 = vperm.xlu0 %4566, %v4493
        %v4568 = vpop.permute.xlu0 %4567
        %4571 = vset.pattern.permute.xlu0 0
        %4572 = vperm.xlu0 %4571, %v4494
        %v4573 = vpop.permute.xlu0 %4572
        %v4591 = vunpack.c.l.b16 %v4457
        %v4592 = vunpack.c.l.b16 %v4458
        %v4593 = vunpack.c.l.b16 %v4459
        %v4594 = vunpack.c.l.b16 %v4460
        %v4595 = vunpack.c.l.b16 %v4461
        %v4596 = vunpack.c.l.b16 %v4462
        %v4597 = vunpack.c.l.b16 %v4463
        %v4598 = vunpack.c.l.b16 %v4464
        %v4599 = vunpack.c.l.b16 %v4465
        %v4600 = vunpack.c.l.b16 %v4466
        %v4601 = vunpack.c.l.b16 %v4467
        %v4602 = vunpack.c.l.b16 %v4468
        %v4603 = vunpack.c.l.b16 %v4469
        %v4604 = vunpack.c.l.b16 %v4470
        %v4605 = vunpack.c.l.b16 %v4471
        %v4606 = vunpack.c.l.b16 %v4472
        %v4607 = vpack.c.b16 %v4592, %v4591
        %v4608 = vpack.c.b16 %v4594, %v4593
        %v4609 = vpack.c.b16 %v4596, %v4595
        %v4610 = vpack.c.b16 %v4598, %v4597
        %v4611 = vpack.c.b16 %v4600, %v4599
        %v4612 = vpack.c.b16 %v4602, %v4601
        %v4613 = vpack.c.b16 %v4604, %v4603
        %v4614 = vpack.c.b16 %v4606, %v4605
        %vm4615 = vcmask 130048
        %v4617 = vsel %vm4615, %v4607, 0
        %v4620 = vsel %vm4615, %v4608, 0
        %v4623 = vsel %vm4615, %v4609, 0
        %v4626 = vsel %vm4615, %v4610, 0
        %v4629 = vsel %vm4615, %v4611, 0
        %v4632 = vsel %vm4615, %v4612, 0
        %v4635 = vsel %vm4615, %v4613, 0
        %v4638 = vsel %vm4615, %v4614, 0
        %4640 = vmatpush.bf16.msra.mxu0 0
        %4641 = vmatpush.bf16.msra.mxu0 0
        %4642 = vmatpush.bf16.msra.mxu0 0
        %4643 = vmatpush.bf16.msra.mxu0 0
        %4644 = vmatpush.bf16.msra.mxu0 0
        %4645 = vmatpush.bf16.msra.mxu0 0
        %4646 = vmatpush.bf16.msra.mxu0 0
        %4647 = vmatpush.bf16.msra.mxu0 %v4474
        %4648 = vmatmul.bf16.gmra.mxu0 %v4617
        %v4649 = vpop.f32.mrf.mxu0
        %v4650 = vadd.f32 %v4498, %v4649
        %v4651 = vpop.f32.mrf.mxu0
        %v4652 = vadd.f32 %v4503, %v4651
        %4653 = vmatmul.bf16.gmra.mxu0 %v4620
        %v4654 = vpop.f32.mrf.mxu0
        %v4655 = vadd.f32 %v4508, %v4654
        %v4656 = vpop.f32.mrf.mxu0
        %v4657 = vadd.f32 %v4513, %v4656
        %4658 = vmatmul.bf16.gmra.mxu0 %v4623
        %v4659 = vpop.f32.mrf.mxu0
        %v4660 = vadd.f32 %v4518, %v4659
        %v4661 = vpop.f32.mrf.mxu0
        %v4662 = vadd.f32 %v4523, %v4661
        %4663 = vmatmul.bf16.gmra.mxu0 %v4626
        %v4664 = vpop.f32.mrf.mxu0
        %v4665 = vadd.f32 %v4528, %v4664
        %v4666 = vpop.f32.mrf.mxu0
        %v4667 = vadd.f32 %v4533, %v4666
        %4668 = vmatmul.bf16.gmra.mxu0 %v4629
        %v4669 = vpop.f32.mrf.mxu0
        %v4670 = vadd.f32 %v4538, %v4669
        %v4671 = vpop.f32.mrf.mxu0
        %v4672 = vadd.f32 %v4543, %v4671
        %4673 = vmatmul.bf16.gmra.mxu0 %v4632
        %v4674 = vpop.f32.mrf.mxu0
        %v4675 = vadd.f32 %v4548, %v4674
        %v4676 = vpop.f32.mrf.mxu0
        %v4677 = vadd.f32 %v4553, %v4676
        %4678 = vmatmul.bf16.gmra.mxu0 %v4635
        %v4679 = vpop.f32.mrf.mxu0
        %v4680 = vadd.f32 %v4558, %v4679
        %v4681 = vpop.f32.mrf.mxu0
        %v4682 = vadd.f32 %v4563, %v4681
        %4683 = vmatmul.bf16.gmra.mxu0 %v4638
        %v4684 = vpop.f32.mrf.mxu0
        %v4685 = vadd.f32 %v4568, %v4684
        %v4686 = vpop.f32.mrf.mxu0
        %v4687 = vadd.f32 %v4573, %v4686
        %4688 = vdwg.mxu0
        %4689 = vmatpush.bf16.msra.mxu0 0
        %4690 = vmatpush.bf16.msra.mxu0 0
        %4691 = vmatpush.bf16.msra.mxu0 0
        %4692 = vmatpush.bf16.msra.mxu0 0
        %4693 = vmatpush.bf16.msra.mxu0 0
        %4694 = vmatpush.bf16.msra.mxu0 0
        %4695 = vmatpush.bf16.msra.mxu0 0
        %4696 = vmatpush.bf16.msra.mxu0 %v4475
        %4697 = vmatmul.bf16.gmra.mxu0 %v4617
        %v4698 = vpop.f32.mrf.mxu0
        %v4699 = vadd.f32 %v4498, %v4698
        %v4700 = vpop.f32.mrf.mxu0
        %v4701 = vadd.f32 %v4503, %v4700
        %4702 = vmatmul.bf16.gmra.mxu0 %v4620
        %v4703 = vpop.f32.mrf.mxu0
        %v4704 = vadd.f32 %v4508, %v4703
        %v4705 = vpop.f32.mrf.mxu0
        %v4706 = vadd.f32 %v4513, %v4705
        %4707 = vmatmul.bf16.gmra.mxu0 %v4623
        %v4708 = vpop.f32.mrf.mxu0
        %v4709 = vadd.f32 %v4518, %v4708
        %v4710 = vpop.f32.mrf.mxu0
        %v4711 = vadd.f32 %v4523, %v4710
        %4712 = vmatmul.bf16.gmra.mxu0 %v4626
        %v4713 = vpop.f32.mrf.mxu0
        %v4714 = vadd.f32 %v4528, %v4713
        %v4715 = vpop.f32.mrf.mxu0
        %v4716 = vadd.f32 %v4533, %v4715
        %4717 = vmatmul.bf16.gmra.mxu0 %v4629
        %v4718 = vpop.f32.mrf.mxu0
        %v4719 = vadd.f32 %v4538, %v4718
        %v4720 = vpop.f32.mrf.mxu0
        %v4721 = vadd.f32 %v4543, %v4720
        %4722 = vmatmul.bf16.gmra.mxu0 %v4632
        %v4723 = vpop.f32.mrf.mxu0
        %v4724 = vadd.f32 %v4548, %v4723
        %v4725 = vpop.f32.mrf.mxu0
        %v4726 = vadd.f32 %v4553, %v4725
        %4727 = vmatmul.bf16.gmra.mxu0 %v4635
        %v4728 = vpop.f32.mrf.mxu0
        %v4729 = vadd.f32 %v4558, %v4728
        %v4730 = vpop.f32.mrf.mxu0
        %v4731 = vadd.f32 %v4563, %v4730
        %4732 = vmatmul.bf16.gmra.mxu0 %v4638
        %v4733 = vpop.f32.mrf.mxu0
        %v4734 = vadd.f32 %v4568, %v4733
        %v4735 = vpop.f32.mrf.mxu0
        %v4736 = vadd.f32 %v4573, %v4735
        %4737 = vdwg.mxu0
        %4738 = vmatpush.bf16.msra.mxu0 0
        %4739 = vmatpush.bf16.msra.mxu0 0
        %4740 = vmatpush.bf16.msra.mxu0 0
        %4741 = vmatpush.bf16.msra.mxu0 0
        %4742 = vmatpush.bf16.msra.mxu0 0
        %4743 = vmatpush.bf16.msra.mxu0 0
        %4744 = vmatpush.bf16.msra.mxu0 0
        %4745 = vmatpush.bf16.msra.mxu0 %v4476
        %4746 = vmatmul.bf16.gmra.mxu0 %v4617
        %v4747 = vpop.f32.mrf.mxu0
        %v4748 = vadd.f32 %v4498, %v4747
        %v4749 = vpop.f32.mrf.mxu0
        %v4750 = vadd.f32 %v4503, %v4749
        %4751 = vmatmul.bf16.gmra.mxu0 %v4620
        %v4752 = vpop.f32.mrf.mxu0
        %v4753 = vadd.f32 %v4508, %v4752
        %v4754 = vpop.f32.mrf.mxu0
        %v4755 = vadd.f32 %v4513, %v4754
        %4756 = vmatmul.bf16.gmra.mxu0 %v4623
        %v4757 = vpop.f32.mrf.mxu0
        %v4758 = vadd.f32 %v4518, %v4757
        %v4759 = vpop.f32.mrf.mxu0
        %v4760 = vadd.f32 %v4523, %v4759
        %4761 = vmatmul.bf16.gmra.mxu0 %v4626
        %v4762 = vpop.f32.mrf.mxu0
        %v4763 = vadd.f32 %v4528, %v4762
        %v4764 = vpop.f32.mrf.mxu0
        %v4765 = vadd.f32 %v4533, %v4764
        %4766 = vmatmul.bf16.gmra.mxu0 %v4629
        %v4767 = vpop.f32.mrf.mxu0
        %v4768 = vadd.f32 %v4538, %v4767
        %v4769 = vpop.f32.mrf.mxu0
        %v4770 = vadd.f32 %v4543, %v4769
        %4771 = vmatmul.bf16.gmra.mxu0 %v4632
        %v4772 = vpop.f32.mrf.mxu0
        %v4773 = vadd.f32 %v4548, %v4772
        %v4774 = vpop.f32.mrf.mxu0
        %v4775 = vadd.f32 %v4553, %v4774
        %4776 = vmatmul.bf16.gmra.mxu0 %v4635
        %v4777 = vpop.f32.mrf.mxu0
        %v4778 = vadd.f32 %v4558, %v4777
        %v4779 = vpop.f32.mrf.mxu0
        %v4780 = vadd.f32 %v4563, %v4779
        %4781 = vmatmul.bf16.gmra.mxu0 %v4638
        %v4782 = vpop.f32.mrf.mxu0
        %v4783 = vadd.f32 %v4568, %v4782
        %v4784 = vpop.f32.mrf.mxu0
        %v4785 = vadd.f32 %v4573, %v4784
        %4786 = vdwg.mxu0
        %4787 = vmatpush.bf16.msra.mxu0 0
        %4788 = vmatpush.bf16.msra.mxu0 0
        %4789 = vmatpush.bf16.msra.mxu0 0
        %4790 = vmatpush.bf16.msra.mxu0 0
        %4791 = vmatpush.bf16.msra.mxu0 0
        %4792 = vmatpush.bf16.msra.mxu0 0
        %4793 = vmatpush.bf16.msra.mxu0 0
        %4794 = vmatpush.bf16.msra.mxu0 %v4477
        %4795 = vmatmul.bf16.gmra.mxu0 %v4617
        %v4796 = vpop.f32.mrf.mxu0
        %v4797 = vadd.f32 %v4498, %v4796
        %v4798 = vpop.f32.mrf.mxu0
        %v4799 = vadd.f32 %v4503, %v4798
        %4800 = vmatmul.bf16.gmra.mxu0 %v4620
        %v4801 = vpop.f32.mrf.mxu0
        %v4802 = vadd.f32 %v4508, %v4801
        %v4803 = vpop.f32.mrf.mxu0
        %v4804 = vadd.f32 %v4513, %v4803
        %4805 = vmatmul.bf16.gmra.mxu0 %v4623
        %v4806 = vpop.f32.mrf.mxu0
        %v4807 = vadd.f32 %v4518, %v4806
        %v4808 = vpop.f32.mrf.mxu0
        %v4809 = vadd.f32 %v4523, %v4808
        %4810 = vmatmul.bf16.gmra.mxu0 %v4626
        %v4811 = vpop.f32.mrf.mxu0
        %v4812 = vadd.f32 %v4528, %v4811
        %v4813 = vpop.f32.mrf.mxu0
        %v4814 = vadd.f32 %v4533, %v4813
        %4815 = vmatmul.bf16.gmra.mxu0 %v4629
        %v4816 = vpop.f32.mrf.mxu0
        %v4817 = vadd.f32 %v4538, %v4816
        %v4818 = vpop.f32.mrf.mxu0
        %v4819 = vadd.f32 %v4543, %v4818
        %4820 = vmatmul.bf16.gmra.mxu0 %v4632
        %v4821 = vpop.f32.mrf.mxu0
        %v4822 = vadd.f32 %v4548, %v4821
        %v4823 = vpop.f32.mrf.mxu0
        %v4824 = vadd.f32 %v4553, %v4823
        %4825 = vmatmul.bf16.gmra.mxu0 %v4635
        %v4826 = vpop.f32.mrf.mxu0
        %v4827 = vadd.f32 %v4558, %v4826
        %v4828 = vpop.f32.mrf.mxu0
        %v4829 = vadd.f32 %v4563, %v4828
        %4830 = vmatmul.bf16.gmra.mxu0 %v4638
        %v4831 = vpop.f32.mrf.mxu0
        %v4832 = vadd.f32 %v4568, %v4831
        %v4833 = vpop.f32.mrf.mxu0
        %v4834 = vadd.f32 %v4573, %v4833
        %4835 = vdwg.mxu0
        %4836 = vmatpush.bf16.msra.mxu0 0
        %4837 = vmatpush.bf16.msra.mxu0 0
        %4838 = vmatpush.bf16.msra.mxu0 0
        %4839 = vmatpush.bf16.msra.mxu0 0
        %4840 = vmatpush.bf16.msra.mxu0 0
        %4841 = vmatpush.bf16.msra.mxu0 0
        %4842 = vmatpush.bf16.msra.mxu0 0
        %4843 = vmatpush.bf16.msra.mxu0 %v4478
        %4844 = vmatmul.bf16.gmra.mxu0 %v4617
        %v4845 = vpop.f32.mrf.mxu0
        %v4846 = vadd.f32 %v4498, %v4845
        %v4847 = vpop.f32.mrf.mxu0
        %v4848 = vadd.f32 %v4503, %v4847
        %4849 = vmatmul.bf16.gmra.mxu0 %v4620
        %v4850 = vpop.f32.mrf.mxu0
        %v4851 = vadd.f32 %v4508, %v4850
        %v4852 = vpop.f32.mrf.mxu0
        %v4853 = vadd.f32 %v4513, %v4852
        %4854 = vmatmul.bf16.gmra.mxu0 %v4623
        %v4855 = vpop.f32.mrf.mxu0
        %v4856 = vadd.f32 %v4518, %v4855
        %v4857 = vpop.f32.mrf.mxu0
        %v4858 = vadd.f32 %v4523, %v4857
        %4859 = vmatmul.bf16.gmra.mxu0 %v4626
        %v4860 = vpop.f32.mrf.mxu0
        %v4861 = vadd.f32 %v4528, %v4860
        %v4862 = vpop.f32.mrf.mxu0
        %v4863 = vadd.f32 %v4533, %v4862
        %4864 = vmatmul.bf16.gmra.mxu0 %v4629
        %v4865 = vpop.f32.mrf.mxu0
        %v4866 = vadd.f32 %v4538, %v4865
        %v4867 = vpop.f32.mrf.mxu0
        %v4868 = vadd.f32 %v4543, %v4867
        %4869 = vmatmul.bf16.gmra.mxu0 %v4632
        %v4870 = vpop.f32.mrf.mxu0
        %v4871 = vadd.f32 %v4548, %v4870
        %v4872 = vpop.f32.mrf.mxu0
        %v4873 = vadd.f32 %v4553, %v4872
        %4874 = vmatmul.bf16.gmra.mxu0 %v4635
        %v4875 = vpop.f32.mrf.mxu0
        %v4876 = vadd.f32 %v4558, %v4875
        %v4877 = vpop.f32.mrf.mxu0
        %v4878 = vadd.f32 %v4563, %v4877
        %4879 = vmatmul.bf16.gmra.mxu0 %v4638
        %v4880 = vpop.f32.mrf.mxu0
        %v4881 = vadd.f32 %v4568, %v4880
        %v4882 = vpop.f32.mrf.mxu0
        %v4883 = vadd.f32 %v4573, %v4882
        %4884 = vdwg.mxu0
        %v4885 = vmul.f32 %v4650, 0.5
        %v4886 = vmul.f32 %v4699, 0.5
        %v4887 = vmul.f32 %v4748, 0.5
        %v4888 = vmul.f32 %v4797, 0.5
        %v4889 = vmul.f32 %v4846, 0.5
        %v4890 = vmul.f32 %v4652, 0.5
        %v4891 = vmul.f32 %v4701, 0.5
        %v4892 = vmul.f32 %v4750, 0.5
        %v4893 = vmul.f32 %v4799, 0.5
        %v4894 = vmul.f32 %v4848, 0.5
        %v4895 = vmul.f32 %v4655, 0.5
        %v4896 = vmul.f32 %v4704, 0.5
        %v4897 = vmul.f32 %v4753, 0.5
        %v4898 = vmul.f32 %v4802, 0.5
        %v4899 = vmul.f32 %v4851, 0.5
        %v4900 = vmul.f32 %v4657, 0.5
        %v4901 = vmul.f32 %v4706, 0.5
        %v4902 = vmul.f32 %v4755, 0.5
        %v4903 = vmul.f32 %v4804, 0.5
        %v4904 = vmul.f32 %v4853, 0.5
        %v4905 = vmul.f32 %v4660, 0.5
        %v4906 = vmul.f32 %v4709, 0.5
        %v4907 = vmul.f32 %v4758, 0.5
        %v4908 = vmul.f32 %v4807, 0.5
        %v4909 = vmul.f32 %v4856, 0.5
        %v4910 = vmul.f32 %v4662, 0.5
        %v4911 = vmul.f32 %v4711, 0.5
        %v4912 = vmul.f32 %v4760, 0.5
        %v4913 = vmul.f32 %v4809, 0.5
        %v4914 = vmul.f32 %v4858, 0.5
        %v4915 = vmul.f32 %v4665, 0.5
        %v4916 = vmul.f32 %v4714, 0.5
        %v4917 = vmul.f32 %v4763, 0.5
        %v4918 = vmul.f32 %v4812, 0.5
        %v4919 = vmul.f32 %v4861, 0.5
        %v4920 = vmul.f32 %v4667, 0.5
        %v4921 = vmul.f32 %v4716, 0.5
        %v4922 = vmul.f32 %v4765, 0.5
        %v4923 = vmul.f32 %v4814, 0.5
        %v4924 = vmul.f32 %v4863, 0.5
        %v4925 = vmul.f32 %v4670, 0.5
        %v4926 = vmul.f32 %v4719, 0.5
        %v4927 = vmul.f32 %v4768, 0.5
        %v4928 = vmul.f32 %v4817, 0.5
        %v4929 = vmul.f32 %v4866, 0.5
        %v4930 = vmul.f32 %v4672, 0.5
        %v4931 = vmul.f32 %v4721, 0.5
        %v4932 = vmul.f32 %v4770, 0.5
        %v4933 = vmul.f32 %v4819, 0.5
        %v4934 = vmul.f32 %v4868, 0.5
        %v4935 = vmul.f32 %v4675, 0.5
        %v4936 = vmul.f32 %v4724, 0.5
        %v4937 = vmul.f32 %v4773, 0.5
        %v4938 = vmul.f32 %v4822, 0.5
        %v4939 = vmul.f32 %v4871, 0.5
        %v4940 = vmul.f32 %v4677, 0.5
        %v4941 = vmul.f32 %v4726, 0.5
        %v4942 = vmul.f32 %v4775, 0.5
        %v4943 = vmul.f32 %v4824, 0.5
        %v4944 = vmul.f32 %v4873, 0.5
        %v4945 = vmul.f32 %v4680, 0.5
        %v4946 = vmul.f32 %v4729, 0.5
        %v4947 = vmul.f32 %v4778, 0.5
        %v4948 = vmul.f32 %v4827, 0.5
        %v4949 = vmul.f32 %v4876, 0.5
        %v4950 = vmul.f32 %v4682, 0.5
        %v4951 = vmul.f32 %v4731, 0.5
        %v4952 = vmul.f32 %v4780, 0.5
        %v4953 = vmul.f32 %v4829, 0.5
        %v4954 = vmul.f32 %v4878, 0.5
        %v4955 = vmul.f32 %v4685, 0.5
        %v4956 = vmul.f32 %v4734, 0.5
        %v4957 = vmul.f32 %v4783, 0.5
        %v4958 = vmul.f32 %v4832, 0.5
        %v4959 = vmul.f32 %v4881, 0.5
        %v4960 = vmul.f32 %v4687, 0.5
        %v4961 = vmul.f32 %v4736, 0.5
        %v4962 = vmul.f32 %v4785, 0.5
        %v4963 = vmul.f32 %v4834, 0.5
        %v4964 = vmul.f32 %v4883, 0.5
        %v4965 = vmul.f32 %v4650, 0.70710677
        %v4966 = vmul.f32 %v4699, 0.70710677
        %v4967 = vmul.f32 %v4748, 0.70710677
        %v4968 = vmul.f32 %v4797, 0.70710677
        %v4969 = vmul.f32 %v4846, 0.70710677
        %v4970 = vmul.f32 %v4652, 0.70710677
        %v4971 = vmul.f32 %v4701, 0.70710677
        %v4972 = vmul.f32 %v4750, 0.70710677
        %v4973 = vmul.f32 %v4799, 0.70710677
        %v4974 = vmul.f32 %v4848, 0.70710677
        %v4975 = vmul.f32 %v4655, 0.70710677
        %v4976 = vmul.f32 %v4704, 0.70710677
        %v4977 = vmul.f32 %v4753, 0.70710677
        %v4978 = vmul.f32 %v4802, 0.70710677
        %v4979 = vmul.f32 %v4851, 0.70710677
        %v4980 = vmul.f32 %v4657, 0.70710677
        %v4981 = vmul.f32 %v4706, 0.70710677
        %v4982 = vmul.f32 %v4755, 0.70710677
        %v4983 = vmul.f32 %v4804, 0.70710677
        %v4984 = vmul.f32 %v4853, 0.70710677
        %v4985 = vmul.f32 %v4660, 0.70710677
        %v4986 = vmul.f32 %v4709, 0.70710677
        %v4987 = vmul.f32 %v4758, 0.70710677
        %v4988 = vmul.f32 %v4807, 0.70710677
        %v4989 = vmul.f32 %v4856, 0.70710677
        %v4990 = vmul.f32 %v4662, 0.70710677
        %v4991 = vmul.f32 %v4711, 0.70710677
        %v4992 = vmul.f32 %v4760, 0.70710677
        %v4993 = vmul.f32 %v4809, 0.70710677
        %v4994 = vmul.f32 %v4858, 0.70710677
        %v4995 = vmul.f32 %v4665, 0.70710677
        %v4996 = vmul.f32 %v4714, 0.70710677
        %v4997 = vmul.f32 %v4763, 0.70710677
        %v4998 = vmul.f32 %v4812, 0.70710677
        %v4999 = vmul.f32 %v4861, 0.70710677
        %v5000 = vmul.f32 %v4667, 0.70710677
        %v5001 = vmul.f32 %v4716, 0.70710677
        %v5002 = vmul.f32 %v4765, 0.70710677
        %v5003 = vmul.f32 %v4814, 0.70710677
        %v5004 = vmul.f32 %v4863, 0.70710677
        %v5005 = vmul.f32 %v4670, 0.70710677
        %v5006 = vmul.f32 %v4719, 0.70710677
        %v5007 = vmul.f32 %v4768, 0.70710677
        %v5008 = vmul.f32 %v4817, 0.70710677
        %v5009 = vmul.f32 %v4866, 0.70710677
        %v5010 = vmul.f32 %v4672, 0.70710677
        %v5011 = vmul.f32 %v4721, 0.70710677
        %v5012 = vmul.f32 %v4770, 0.70710677
        %v5013 = vmul.f32 %v4819, 0.70710677
        %v5014 = vmul.f32 %v4868, 0.70710677
        %v5015 = vmul.f32 %v4675, 0.70710677
        %v5016 = vmul.f32 %v4724, 0.70710677
        %v5017 = vmul.f32 %v4773, 0.70710677
        %v5018 = vmul.f32 %v4822, 0.70710677
        %v5019 = vmul.f32 %v4871, 0.70710677
        %v5020 = vmul.f32 %v4677, 0.70710677
        %v5021 = vmul.f32 %v4726, 0.70710677
        %v5022 = vmul.f32 %v4775, 0.70710677
        %v5023 = vmul.f32 %v4824, 0.70710677
        %v5024 = vmul.f32 %v4873, 0.70710677
        %v5025 = vmul.f32 %v4680, 0.70710677
        %v5026 = vmul.f32 %v4729, 0.70710677
        %v5027 = vmul.f32 %v4778, 0.70710677
        %v5028 = vmul.f32 %v4827, 0.70710677
        %v5029 = vmul.f32 %v4876, 0.70710677
        %v5030 = vmul.f32 %v4682, 0.70710677
        %v5031 = vmul.f32 %v4731, 0.70710677
        %v5032 = vmul.f32 %v4780, 0.70710677
        %v5033 = vmul.f32 %v4829, 0.70710677
        %v5034 = vmul.f32 %v4878, 0.70710677
        %v5035 = vmul.f32 %v4685, 0.70710677
        %v5036 = vmul.f32 %v4734, 0.70710677
        %v5037 = vmul.f32 %v4783, 0.70710677
        %v5038 = vmul.f32 %v4832, 0.70710677
        %v5039 = vmul.f32 %v4881, 0.70710677
        %v5040 = vmul.f32 %v4687, 0.70710677
        %v5041 = vmul.f32 %v4736, 0.70710677
        %v5042 = vmul.f32 %v4785, 0.70710677
        %v5043 = vmul.f32 %v4834, 0.70710677
        %v5044 = vmul.f32 %v4883, 0.70710677
        %vm5045 = vcmp.ge.f32.partialorder %v4965, 0.0
        %vm5046 = vcmp.ge.f32.partialorder %v4966, 0.0
        %vm5047 = vcmp.ge.f32.partialorder %v4967, 0.0
        %vm5048 = vcmp.ge.f32.partialorder %v4968, 0.0
        %vm5049 = vcmp.ge.f32.partialorder %v4969, 0.0
        %vm5050 = vcmp.ge.f32.partialorder %v4970, 0.0
        %vm5051 = vcmp.ge.f32.partialorder %v4971, 0.0
        %vm5052 = vcmp.ge.f32.partialorder %v4972, 0.0
        %vm5053 = vcmp.ge.f32.partialorder %v4973, 0.0
        %vm5054 = vcmp.ge.f32.partialorder %v4974, 0.0
        %vm5055 = vcmp.ge.f32.partialorder %v4975, 0.0
        %vm5056 = vcmp.ge.f32.partialorder %v4976, 0.0
        %vm5057 = vcmp.ge.f32.partialorder %v4977, 0.0
        %vm5058 = vcmp.ge.f32.partialorder %v4978, 0.0
        %vm5059 = vcmp.ge.f32.partialorder %v4979, 0.0
        %vm5060 = vcmp.ge.f32.partialorder %v4980, 0.0
        %vm5061 = vcmp.ge.f32.partialorder %v4981, 0.0
        %vm5062 = vcmp.ge.f32.partialorder %v4982, 0.0
        %vm5063 = vcmp.ge.f32.partialorder %v4983, 0.0
        %vm5064 = vcmp.ge.f32.partialorder %v4984, 0.0
        %vm5065 = vcmp.ge.f32.partialorder %v4985, 0.0
        %vm5066 = vcmp.ge.f32.partialorder %v4986, 0.0
        %vm5067 = vcmp.ge.f32.partialorder %v4987, 0.0
        %vm5068 = vcmp.ge.f32.partialorder %v4988, 0.0
        %vm5069 = vcmp.ge.f32.partialorder %v4989, 0.0
        %vm5070 = vcmp.ge.f32.partialorder %v4990, 0.0
        %vm5071 = vcmp.ge.f32.partialorder %v4991, 0.0
        %vm5072 = vcmp.ge.f32.partialorder %v4992, 0.0
        %vm5073 = vcmp.ge.f32.partialorder %v4993, 0.0
        %vm5074 = vcmp.ge.f32.partialorder %v4994, 0.0
        %vm5075 = vcmp.ge.f32.partialorder %v4995, 0.0
        %vm5076 = vcmp.ge.f32.partialorder %v4996, 0.0
        %vm5077 = vcmp.ge.f32.partialorder %v4997, 0.0
        %vm5078 = vcmp.ge.f32.partialorder %v4998, 0.0
        %vm5079 = vcmp.ge.f32.partialorder %v4999, 0.0
        %vm5080 = vcmp.ge.f32.partialorder %v5000, 0.0
        %vm5081 = vcmp.ge.f32.partialorder %v5001, 0.0
        %vm5082 = vcmp.ge.f32.partialorder %v5002, 0.0
        %vm5083 = vcmp.ge.f32.partialorder %v5003, 0.0
        %vm5084 = vcmp.ge.f32.partialorder %v5004, 0.0
        %vm5085 = vcmp.ge.f32.partialorder %v5005, 0.0
        %vm5086 = vcmp.ge.f32.partialorder %v5006, 0.0
        %vm5087 = vcmp.ge.f32.partialorder %v5007, 0.0
        %vm5088 = vcmp.ge.f32.partialorder %v5008, 0.0
        %vm5089 = vcmp.ge.f32.partialorder %v5009, 0.0
        %vm5090 = vcmp.ge.f32.partialorder %v5010, 0.0
        %vm5091 = vcmp.ge.f32.partialorder %v5011, 0.0
        %vm5092 = vcmp.ge.f32.partialorder %v5012, 0.0
        %vm5093 = vcmp.ge.f32.partialorder %v5013, 0.0
        %vm5094 = vcmp.ge.f32.partialorder %v5014, 0.0
        %vm5095 = vcmp.ge.f32.partialorder %v5015, 0.0
        %vm5096 = vcmp.ge.f32.partialorder %v5016, 0.0
        %vm5097 = vcmp.ge.f32.partialorder %v5017, 0.0
        %vm5098 = vcmp.ge.f32.partialorder %v5018, 0.0
        %vm5099 = vcmp.ge.f32.partialorder %v5019, 0.0
        %vm5100 = vcmp.ge.f32.partialorder %v5020, 0.0
        %vm5101 = vcmp.ge.f32.partialorder %v5021, 0.0
        %vm5102 = vcmp.ge.f32.partialorder %v5022, 0.0
        %vm5103 = vcmp.ge.f32.partialorder %v5023, 0.0
        %vm5104 = vcmp.ge.f32.partialorder %v5024, 0.0
        %vm5105 = vcmp.ge.f32.partialorder %v5025, 0.0
        %vm5106 = vcmp.ge.f32.partialorder %v5026, 0.0
        %vm5107 = vcmp.ge.f32.partialorder %v5027, 0.0
        %vm5108 = vcmp.ge.f32.partialorder %v5028, 0.0
        %vm5109 = vcmp.ge.f32.partialorder %v5029, 0.0
        %vm5110 = vcmp.ge.f32.partialorder %v5030, 0.0
        %vm5111 = vcmp.ge.f32.partialorder %v5031, 0.0
        %vm5112 = vcmp.ge.f32.partialorder %v5032, 0.0
        %vm5113 = vcmp.ge.f32.partialorder %v5033, 0.0
        %vm5114 = vcmp.ge.f32.partialorder %v5034, 0.0
        %vm5115 = vcmp.ge.f32.partialorder %v5035, 0.0
        %vm5116 = vcmp.ge.f32.partialorder %v5036, 0.0
        %vm5117 = vcmp.ge.f32.partialorder %v5037, 0.0
        %vm5118 = vcmp.ge.f32.partialorder %v5038, 0.0
        %vm5119 = vcmp.ge.f32.partialorder %v5039, 0.0
        %vm5120 = vcmp.ge.f32.partialorder %v5040, 0.0
        %vm5121 = vcmp.ge.f32.partialorder %v5041, 0.0
        %vm5122 = vcmp.ge.f32.partialorder %v5042, 0.0
        %vm5123 = vcmp.ge.f32.partialorder %v5043, 0.0
        %vm5124 = vcmp.ge.f32.partialorder %v5044, 0.0
        %v5125 = vsel %vm5045, 1.0, -1.0
        %v5126 = vsel %vm5046, 1.0, -1.0
        %v5127 = vsel %vm5047, 1.0, -1.0
        %v5128 = vsel %vm5048, 1.0, -1.0
        %v5129 = vsel %vm5049, 1.0, -1.0
        %v5130 = vsel %vm5050, 1.0, -1.0
        %v5131 = vsel %vm5051, 1.0, -1.0
        %v5132 = vsel %vm5052, 1.0, -1.0
        %v5133 = vsel %vm5053, 1.0, -1.0
        %v5134 = vsel %vm5054, 1.0, -1.0
        %v5135 = vsel %vm5055, 1.0, -1.0
        %v5136 = vsel %vm5056, 1.0, -1.0
        %v5137 = vsel %vm5057, 1.0, -1.0
        %v5138 = vsel %vm5058, 1.0, -1.0
        %v5139 = vsel %vm5059, 1.0, -1.0
        %v5140 = vsel %vm5060, 1.0, -1.0
        %v5141 = vsel %vm5061, 1.0, -1.0
        %v5142 = vsel %vm5062, 1.0, -1.0
        %v5143 = vsel %vm5063, 1.0, -1.0
        %v5144 = vsel %vm5064, 1.0, -1.0
        %v5145 = vsel %vm5065, 1.0, -1.0
        %v5146 = vsel %vm5066, 1.0, -1.0
        %v5147 = vsel %vm5067, 1.0, -1.0
        %v5148 = vsel %vm5068, 1.0, -1.0
        %v5149 = vsel %vm5069, 1.0, -1.0
        %v5150 = vsel %vm5070, 1.0, -1.0
        %v5151 = vsel %vm5071, 1.0, -1.0
        %v5152 = vsel %vm5072, 1.0, -1.0
        %v5153 = vsel %vm5073, 1.0, -1.0
        %v5154 = vsel %vm5074, 1.0, -1.0
        %v5155 = vsel %vm5075, 1.0, -1.0
        %v5156 = vsel %vm5076, 1.0, -1.0
        %v5157 = vsel %vm5077, 1.0, -1.0
        %v5158 = vsel %vm5078, 1.0, -1.0
        %v5159 = vsel %vm5079, 1.0, -1.0
        %v5160 = vsel %vm5080, 1.0, -1.0
        %v5161 = vsel %vm5081, 1.0, -1.0
        %v5162 = vsel %vm5082, 1.0, -1.0
        %v5163 = vsel %vm5083, 1.0, -1.0
        %v5164 = vsel %vm5084, 1.0, -1.0
        %v5165 = vsel %vm5085, 1.0, -1.0
        %v5166 = vsel %vm5086, 1.0, -1.0
        %v5167 = vsel %vm5087, 1.0, -1.0
        %v5168 = vsel %vm5088, 1.0, -1.0
        %v5169 = vsel %vm5089, 1.0, -1.0
        %v5170 = vsel %vm5090, 1.0, -1.0
        %v5171 = vsel %vm5091, 1.0, -1.0
        %v5172 = vsel %vm5092, 1.0, -1.0
        %v5173 = vsel %vm5093, 1.0, -1.0
        %v5174 = vsel %vm5094, 1.0, -1.0
        %v5175 = vsel %vm5095, 1.0, -1.0
        %v5176 = vsel %vm5096, 1.0, -1.0
        %v5177 = vsel %vm5097, 1.0, -1.0
        %v5178 = vsel %vm5098, 1.0, -1.0
        %v5179 = vsel %vm5099, 1.0, -1.0
        %v5180 = vsel %vm5100, 1.0, -1.0
        %v5181 = vsel %vm5101, 1.0, -1.0
        %v5182 = vsel %vm5102, 1.0, -1.0
        %v5183 = vsel %vm5103, 1.0, -1.0
        %v5184 = vsel %vm5104, 1.0, -1.0
        %v5185 = vsel %vm5105, 1.0, -1.0
        %v5186 = vsel %vm5106, 1.0, -1.0
        %v5187 = vsel %vm5107, 1.0, -1.0
        %v5188 = vsel %vm5108, 1.0, -1.0
        %v5189 = vsel %vm5109, 1.0, -1.0
        %v5190 = vsel %vm5110, 1.0, -1.0
        %v5191 = vsel %vm5111, 1.0, -1.0
        %v5192 = vsel %vm5112, 1.0, -1.0
        %v5193 = vsel %vm5113, 1.0, -1.0
        %v5194 = vsel %vm5114, 1.0, -1.0
        %v5195 = vsel %vm5115, 1.0, -1.0
        %v5196 = vsel %vm5116, 1.0, -1.0
        %v5197 = vsel %vm5117, 1.0, -1.0
        %v5198 = vsel %vm5118, 1.0, -1.0
        %v5199 = vsel %vm5119, 1.0, -1.0
        %v5200 = vsel %vm5120, 1.0, -1.0
        %v5201 = vsel %vm5121, 1.0, -1.0
        %v5202 = vsel %vm5122, 1.0, -1.0
        %v5203 = vsel %vm5123, 1.0, -1.0
        %v5204 = vsel %vm5124, 1.0, -1.0
        %v5205 = vand.u32 2147483647, %v4965
        %v5206 = vand.u32 2147483647, %v4966
        %v5207 = vand.u32 2147483647, %v4967
        %v5208 = vand.u32 2147483647, %v4968
        %v5209 = vand.u32 2147483647, %v4969
        %v5210 = vand.u32 2147483647, %v4970
        %v5211 = vand.u32 2147483647, %v4971
        %v5212 = vand.u32 2147483647, %v4972
        %v5213 = vand.u32 2147483647, %v4973
        %v5214 = vand.u32 2147483647, %v4974
        %v5215 = vand.u32 2147483647, %v4975
        %v5216 = vand.u32 2147483647, %v4976
        %v5217 = vand.u32 2147483647, %v4977
        %v5218 = vand.u32 2147483647, %v4978
        %v5219 = vand.u32 2147483647, %v4979
        %v5220 = vand.u32 2147483647, %v4980
        %v5221 = vand.u32 2147483647, %v4981
        %v5222 = vand.u32 2147483647, %v4982
        %v5223 = vand.u32 2147483647, %v4983
        %v5224 = vand.u32 2147483647, %v4984
        %v5225 = vand.u32 2147483647, %v4985
        %v5226 = vand.u32 2147483647, %v4986
        %v5227 = vand.u32 2147483647, %v4987
        %v5228 = vand.u32 2147483647, %v4988
        %v5229 = vand.u32 2147483647, %v4989
        %v5230 = vand.u32 2147483647, %v4990
        %v5231 = vand.u32 2147483647, %v4991
        %v5232 = vand.u32 2147483647, %v4992
        %v5233 = vand.u32 2147483647, %v4993
        %v5234 = vand.u32 2147483647, %v4994
        %v5235 = vand.u32 2147483647, %v4995
        %v5236 = vand.u32 2147483647, %v4996
        %v5237 = vand.u32 2147483647, %v4997
        %v5238 = vand.u32 2147483647, %v4998
        %v5239 = vand.u32 2147483647, %v4999
        %v5240 = vand.u32 2147483647, %v5000
        %v5241 = vand.u32 2147483647, %v5001
        %v5242 = vand.u32 2147483647, %v5002
        %v5243 = vand.u32 2147483647, %v5003
        %v5244 = vand.u32 2147483647, %v5004
        %v5245 = vand.u32 2147483647, %v5005
        %v5246 = vand.u32 2147483647, %v5006
        %v5247 = vand.u32 2147483647, %v5007
        %v5248 = vand.u32 2147483647, %v5008
        %v5249 = vand.u32 2147483647, %v5009
        %v5250 = vand.u32 2147483647, %v5010
        %v5251 = vand.u32 2147483647, %v5011
        %v5252 = vand.u32 2147483647, %v5012
        %v5253 = vand.u32 2147483647, %v5013
        %v5254 = vand.u32 2147483647, %v5014
        %v5255 = vand.u32 2147483647, %v5015
        %v5256 = vand.u32 2147483647, %v5016
        %v5257 = vand.u32 2147483647, %v5017
        %v5258 = vand.u32 2147483647, %v5018
        %v5259 = vand.u32 2147483647, %v5019
        %v5260 = vand.u32 2147483647, %v5020
        %v5261 = vand.u32 2147483647, %v5021
        %v5262 = vand.u32 2147483647, %v5022
        %v5263 = vand.u32 2147483647, %v5023
        %v5264 = vand.u32 2147483647, %v5024
        %v5265 = vand.u32 2147483647, %v5025
        %v5266 = vand.u32 2147483647, %v5026
        %v5267 = vand.u32 2147483647, %v5027
        %v5268 = vand.u32 2147483647, %v5028
        %v5269 = vand.u32 2147483647, %v5029
        %v5270 = vand.u32 2147483647, %v5030
        %v5271 = vand.u32 2147483647, %v5031
        %v5272 = vand.u32 2147483647, %v5032
        %v5273 = vand.u32 2147483647, %v5033
        %v5274 = vand.u32 2147483647, %v5034
        %v5275 = vand.u32 2147483647, %v5035
        %v5276 = vand.u32 2147483647, %v5036
        %v5277 = vand.u32 2147483647, %v5037
        %v5278 = vand.u32 2147483647, %v5038
        %v5279 = vand.u32 2147483647, %v5039
        %v5280 = vand.u32 2147483647, %v5040
        %v5281 = vand.u32 2147483647, %v5041
        %v5282 = vand.u32 2147483647, %v5042
        %v5283 = vand.u32 2147483647, %v5043
        %v5284 = vand.u32 2147483647, %v5044
        %v5285 = vmul.f32 %v5205, 0.3275911
        %v5286 = vmul.f32 %v5206, 0.3275911
        %v5287 = vmul.f32 %v5207, 0.3275911
        %v5288 = vmul.f32 %v5208, 0.3275911
        %v5289 = vmul.f32 %v5209, 0.3275911
        %v5290 = vmul.f32 %v5210, 0.3275911
        %v5291 = vmul.f32 %v5211, 0.3275911
        %v5292 = vmul.f32 %v5212, 0.3275911
        %v5293 = vmul.f32 %v5213, 0.3275911
        %v5294 = vmul.f32 %v5214, 0.3275911
        %v5295 = vmul.f32 %v5215, 0.3275911
        %v5296 = vmul.f32 %v5216, 0.3275911
        %v5297 = vmul.f32 %v5217, 0.3275911
        %v5298 = vmul.f32 %v5218, 0.3275911
        %v5299 = vmul.f32 %v5219, 0.3275911
        %v5300 = vmul.f32 %v5220, 0.3275911
        %v5301 = vmul.f32 %v5221, 0.3275911
        %v5302 = vmul.f32 %v5222, 0.3275911
        %v5303 = vmul.f32 %v5223, 0.3275911
        %v5304 = vmul.f32 %v5224, 0.3275911
        %v5305 = vmul.f32 %v5225, 0.3275911
        %v5306 = vmul.f32 %v5226, 0.3275911
        %v5307 = vmul.f32 %v5227, 0.3275911
        %v5308 = vmul.f32 %v5228, 0.3275911
        %v5309 = vmul.f32 %v5229, 0.3275911
        %v5310 = vmul.f32 %v5230, 0.3275911
        %v5311 = vmul.f32 %v5231, 0.3275911
        %v5312 = vmul.f32 %v5232, 0.3275911
        %v5313 = vmul.f32 %v5233, 0.3275911
        %v5314 = vmul.f32 %v5234, 0.3275911
        %v5315 = vmul.f32 %v5235, 0.3275911
        %v5316 = vmul.f32 %v5236, 0.3275911
        %v5317 = vmul.f32 %v5237, 0.3275911
        %v5318 = vmul.f32 %v5238, 0.3275911
        %v5319 = vmul.f32 %v5239, 0.3275911
        %v5320 = vmul.f32 %v5240, 0.3275911
        %v5321 = vmul.f32 %v5241, 0.3275911
        %v5322 = vmul.f32 %v5242, 0.3275911
        %v5323 = vmul.f32 %v5243, 0.3275911
        %v5324 = vmul.f32 %v5244, 0.3275911
        %v5325 = vmul.f32 %v5245, 0.3275911
        %v5326 = vmul.f32 %v5246, 0.3275911
        %v5327 = vmul.f32 %v5247, 0.3275911
        %v5328 = vmul.f32 %v5248, 0.3275911
        %v5329 = vmul.f32 %v5249, 0.3275911
        %v5330 = vmul.f32 %v5250, 0.3275911
        %v5331 = vmul.f32 %v5251, 0.3275911
        %v5332 = vmul.f32 %v5252, 0.3275911
        %v5333 = vmul.f32 %v5253, 0.3275911
        %v5334 = vmul.f32 %v5254, 0.3275911
        %v5335 = vmul.f32 %v5255, 0.3275911
        %v5336 = vmul.f32 %v5256, 0.3275911
        %v5337 = vmul.f32 %v5257, 0.3275911
        %v5338 = vmul.f32 %v5258, 0.3275911
        %v5339 = vmul.f32 %v5259, 0.3275911
        %v5340 = vmul.f32 %v5260, 0.3275911
        %v5341 = vmul.f32 %v5261, 0.3275911
        %v5342 = vmul.f32 %v5262, 0.3275911
        %v5343 = vmul.f32 %v5263, 0.3275911
        %v5344 = vmul.f32 %v5264, 0.3275911
        %v5345 = vmul.f32 %v5265, 0.3275911
        %v5346 = vmul.f32 %v5266, 0.3275911
        %v5347 = vmul.f32 %v5267, 0.3275911
        %v5348 = vmul.f32 %v5268, 0.3275911
        %v5349 = vmul.f32 %v5269, 0.3275911
        %v5350 = vmul.f32 %v5270, 0.3275911
        %v5351 = vmul.f32 %v5271, 0.3275911
        %v5352 = vmul.f32 %v5272, 0.3275911
        %v5353 = vmul.f32 %v5273, 0.3275911
        %v5354 = vmul.f32 %v5274, 0.3275911
        %v5355 = vmul.f32 %v5275, 0.3275911
        %v5356 = vmul.f32 %v5276, 0.3275911
        %v5357 = vmul.f32 %v5277, 0.3275911
        %v5358 = vmul.f32 %v5278, 0.3275911
        %v5359 = vmul.f32 %v5279, 0.3275911
        %v5360 = vmul.f32 %v5280, 0.3275911
        %v5361 = vmul.f32 %v5281, 0.3275911
        %v5362 = vmul.f32 %v5282, 0.3275911
        %v5363 = vmul.f32 %v5283, 0.3275911
        %v5364 = vmul.f32 %v5284, 0.3275911
        %v5365 = vadd.f32 %v5285, 1.0
        %v5366 = vadd.f32 %v5286, 1.0
        %v5367 = vadd.f32 %v5287, 1.0
        %v5368 = vadd.f32 %v5288, 1.0
        %v5369 = vadd.f32 %v5289, 1.0
        %v5370 = vadd.f32 %v5290, 1.0
        %v5371 = vadd.f32 %v5291, 1.0
        %v5372 = vadd.f32 %v5292, 1.0
        %v5373 = vadd.f32 %v5293, 1.0
        %v5374 = vadd.f32 %v5294, 1.0
        %v5375 = vadd.f32 %v5295, 1.0
        %v5376 = vadd.f32 %v5296, 1.0
        %v5377 = vadd.f32 %v5297, 1.0
        %v5378 = vadd.f32 %v5298, 1.0
        %v5379 = vadd.f32 %v5299, 1.0
        %v5380 = vadd.f32 %v5300, 1.0
        %v5381 = vadd.f32 %v5301, 1.0
        %v5382 = vadd.f32 %v5302, 1.0
        %v5383 = vadd.f32 %v5303, 1.0
        %v5384 = vadd.f32 %v5304, 1.0
        %v5385 = vadd.f32 %v5305, 1.0
        %v5386 = vadd.f32 %v5306, 1.0
        %v5387 = vadd.f32 %v5307, 1.0
        %v5388 = vadd.f32 %v5308, 1.0
        %v5389 = vadd.f32 %v5309, 1.0
        %v5390 = vadd.f32 %v5310, 1.0
        %v5391 = vadd.f32 %v5311, 1.0
        %v5392 = vadd.f32 %v5312, 1.0
        %v5393 = vadd.f32 %v5313, 1.0
        %v5394 = vadd.f32 %v5314, 1.0
        %v5395 = vadd.f32 %v5315, 1.0
        %v5396 = vadd.f32 %v5316, 1.0
        %v5397 = vadd.f32 %v5317, 1.0
        %v5398 = vadd.f32 %v5318, 1.0
        %v5399 = vadd.f32 %v5319, 1.0
        %v5400 = vadd.f32 %v5320, 1.0
        %v5401 = vadd.f32 %v5321, 1.0
        %v5402 = vadd.f32 %v5322, 1.0
        %v5403 = vadd.f32 %v5323, 1.0
        %v5404 = vadd.f32 %v5324, 1.0
        %v5405 = vadd.f32 %v5325, 1.0
        %v5406 = vadd.f32 %v5326, 1.0
        %v5407 = vadd.f32 %v5327, 1.0
        %v5408 = vadd.f32 %v5328, 1.0
        %v5409 = vadd.f32 %v5329, 1.0
        %v5410 = vadd.f32 %v5330, 1.0
        %v5411 = vadd.f32 %v5331, 1.0
        %v5412 = vadd.f32 %v5332, 1.0
        %v5413 = vadd.f32 %v5333, 1.0
        %v5414 = vadd.f32 %v5334, 1.0
        %v5415 = vadd.f32 %v5335, 1.0
        %v5416 = vadd.f32 %v5336, 1.0
        %v5417 = vadd.f32 %v5337, 1.0
        %v5418 = vadd.f32 %v5338, 1.0
        %v5419 = vadd.f32 %v5339, 1.0
        %v5420 = vadd.f32 %v5340, 1.0
        %v5421 = vadd.f32 %v5341, 1.0
        %v5422 = vadd.f32 %v5342, 1.0
        %v5423 = vadd.f32 %v5343, 1.0
        %v5424 = vadd.f32 %v5344, 1.0
        %v5425 = vadd.f32 %v5345, 1.0
        %v5426 = vadd.f32 %v5346, 1.0
        %v5427 = vadd.f32 %v5347, 1.0
        %v5428 = vadd.f32 %v5348, 1.0
        %v5429 = vadd.f32 %v5349, 1.0
        %v5430 = vadd.f32 %v5350, 1.0
        %v5431 = vadd.f32 %v5351, 1.0
        %v5432 = vadd.f32 %v5352, 1.0
        %v5433 = vadd.f32 %v5353, 1.0
        %v5434 = vadd.f32 %v5354, 1.0
        %v5435 = vadd.f32 %v5355, 1.0
        %v5436 = vadd.f32 %v5356, 1.0
        %v5437 = vadd.f32 %v5357, 1.0
        %v5438 = vadd.f32 %v5358, 1.0
        %v5439 = vadd.f32 %v5359, 1.0
        %v5440 = vadd.f32 %v5360, 1.0
        %v5441 = vadd.f32 %v5361, 1.0
        %v5442 = vadd.f32 %v5362, 1.0
        %v5443 = vadd.f32 %v5363, 1.0
        %v5444 = vadd.f32 %v5364, 1.0
        %v5445 = vrcp.pop %v5365
        %v5446 = vrcp.pop %v5366
        %v5447 = vrcp.pop %v5367
        %v5448 = vrcp.pop %v5368
        %v5449 = vrcp.pop %v5369
        %v5450 = vrcp.pop %v5370
        %v5451 = vrcp.pop %v5371
        %v5452 = vrcp.pop %v5372
        %v5453 = vrcp.pop %v5373
        %v5454 = vrcp.pop %v5374
        %v5455 = vrcp.pop %v5375
        %v5456 = vrcp.pop %v5376
        %v5457 = vrcp.pop %v5377
        %v5458 = vrcp.pop %v5378
        %v5459 = vrcp.pop %v5379
        %v5460 = vrcp.pop %v5380
        %v5461 = vrcp.pop %v5381
        %v5462 = vrcp.pop %v5382
        %v5463 = vrcp.pop %v5383
        %v5464 = vrcp.pop %v5384
        %v5465 = vrcp.pop %v5385
        %v5466 = vrcp.pop %v5386
        %v5467 = vrcp.pop %v5387
        %v5468 = vrcp.pop %v5388
        %v5469 = vrcp.pop %v5389
        %v5470 = vrcp.pop %v5390
        %v5471 = vrcp.pop %v5391
        %v5472 = vrcp.pop %v5392
        %v5473 = vrcp.pop %v5393
        %v5474 = vrcp.pop %v5394
        %v5475 = vrcp.pop %v5395
        %v5476 = vrcp.pop %v5396
        %v5477 = vrcp.pop %v5397
        %v5478 = vrcp.pop %v5398
        %v5479 = vrcp.pop %v5399
        %v5480 = vrcp.pop %v5400
        %v5481 = vrcp.pop %v5401
        %v5482 = vrcp.pop %v5402
        %v5483 = vrcp.pop %v5403
        %v5484 = vrcp.pop %v5404
        %v5485 = vrcp.pop %v5405
        %v5486 = vrcp.pop %v5406
        %v5487 = vrcp.pop %v5407
        %v5488 = vrcp.pop %v5408
        %v5489 = vrcp.pop %v5409
        %v5490 = vrcp.pop %v5410
        %v5491 = vrcp.pop %v5411
        %v5492 = vrcp.pop %v5412
        %v5493 = vrcp.pop %v5413
        %v5494 = vrcp.pop %v5414
        %v5495 = vrcp.pop %v5415
        %v5496 = vrcp.pop %v5416
        %v5497 = vrcp.pop %v5417
        %v5498 = vrcp.pop %v5418
        %v5499 = vrcp.pop %v5419
        %v5500 = vrcp.pop %v5420
        %v5501 = vrcp.pop %v5421
        %v5502 = vrcp.pop %v5422
        %v5503 = vrcp.pop %v5423
        %v5504 = vrcp.pop %v5424
        %v5505 = vrcp.pop %v5425
        %v5506 = vrcp.pop %v5426
        %v5507 = vrcp.pop %v5427
        %v5508 = vrcp.pop %v5428
        %v5509 = vrcp.pop %v5429
        %v5510 = vrcp.pop %v5430
        %v5511 = vrcp.pop %v5431
        %v5512 = vrcp.pop %v5432
        %v5513 = vrcp.pop %v5433
        %v5514 = vrcp.pop %v5434
        %v5515 = vrcp.pop %v5435
        %v5516 = vrcp.pop %v5436
        %v5517 = vrcp.pop %v5437
        %v5518 = vrcp.pop %v5438
        %v5519 = vrcp.pop %v5439
        %v5520 = vrcp.pop %v5440
        %v5521 = vrcp.pop %v5441
        %v5522 = vrcp.pop %v5442
        %v5523 = vrcp.pop %v5443
        %v5524 = vrcp.pop %v5444
        %v5525 = vmul.f32 %v5445, 1.0614054
        %v5526 = vmul.f32 %v5446, 1.0614054
        %v5527 = vmul.f32 %v5447, 1.0614054
        %v5528 = vmul.f32 %v5448, 1.0614054
        %v5529 = vmul.f32 %v5449, 1.0614054
        %v5530 = vmul.f32 %v5450, 1.0614054
        %v5531 = vmul.f32 %v5451, 1.0614054
        %v5532 = vmul.f32 %v5452, 1.0614054
        %v5533 = vmul.f32 %v5453, 1.0614054
        %v5534 = vmul.f32 %v5454, 1.0614054
        %v5535 = vmul.f32 %v5455, 1.0614054
        %v5536 = vmul.f32 %v5456, 1.0614054
        %v5537 = vmul.f32 %v5457, 1.0614054
        %v5538 = vmul.f32 %v5458, 1.0614054
        %v5539 = vmul.f32 %v5459, 1.0614054
        %v5540 = vmul.f32 %v5460, 1.0614054
        %v5541 = vmul.f32 %v5461, 1.0614054
        %v5542 = vmul.f32 %v5462, 1.0614054
        %v5543 = vmul.f32 %v5463, 1.0614054
        %v5544 = vmul.f32 %v5464, 1.0614054
        %v5545 = vmul.f32 %v5465, 1.0614054
        %v5546 = vmul.f32 %v5466, 1.0614054
        %v5547 = vmul.f32 %v5467, 1.0614054
        %v5548 = vmul.f32 %v5468, 1.0614054
        %v5549 = vmul.f32 %v5469, 1.0614054
        %v5550 = vmul.f32 %v5470, 1.0614054
        %v5551 = vmul.f32 %v5471, 1.0614054
        %v5552 = vmul.f32 %v5472, 1.0614054
        %v5553 = vmul.f32 %v5473, 1.0614054
        %v5554 = vmul.f32 %v5474, 1.0614054
        %v5555 = vmul.f32 %v5475, 1.0614054
        %v5556 = vmul.f32 %v5476, 1.0614054
        %v5557 = vmul.f32 %v5477, 1.0614054
        %v5558 = vmul.f32 %v5478, 1.0614054
        %v5559 = vmul.f32 %v5479, 1.0614054
        %v5560 = vmul.f32 %v5480, 1.0614054
        %v5561 = vmul.f32 %v5481, 1.0614054
        %v5562 = vmul.f32 %v5482, 1.0614054
        %v5563 = vmul.f32 %v5483, 1.0614054
        %v5564 = vmul.f32 %v5484, 1.0614054
        %v5565 = vmul.f32 %v5485, 1.0614054
        %v5566 = vmul.f32 %v5486, 1.0614054
        %v5567 = vmul.f32 %v5487, 1.0614054
        %v5568 = vmul.f32 %v5488, 1.0614054
        %v5569 = vmul.f32 %v5489, 1.0614054
        %v5570 = vmul.f32 %v5490, 1.0614054
        %v5571 = vmul.f32 %v5491, 1.0614054
        %v5572 = vmul.f32 %v5492, 1.0614054
        %v5573 = vmul.f32 %v5493, 1.0614054
        %v5574 = vmul.f32 %v5494, 1.0614054
        %v5575 = vmul.f32 %v5495, 1.0614054
        %v5576 = vmul.f32 %v5496, 1.0614054
        %v5577 = vmul.f32 %v5497, 1.0614054
        %v5578 = vmul.f32 %v5498, 1.0614054
        %v5579 = vmul.f32 %v5499, 1.0614054
        %v5580 = vmul.f32 %v5500, 1.0614054
        %v5581 = vmul.f32 %v5501, 1.0614054
        %v5582 = vmul.f32 %v5502, 1.0614054
        %v5583 = vmul.f32 %v5503, 1.0614054
        %v5584 = vmul.f32 %v5504, 1.0614054
        %v5585 = vmul.f32 %v5505, 1.0614054
        %v5586 = vmul.f32 %v5506, 1.0614054
        %v5587 = vmul.f32 %v5507, 1.0614054
        %v5588 = vmul.f32 %v5508, 1.0614054
        %v5589 = vmul.f32 %v5509, 1.0614054
        %v5590 = vmul.f32 %v5510, 1.0614054
        %v5591 = vmul.f32 %v5511, 1.0614054
        %v5592 = vmul.f32 %v5512, 1.0614054
        %v5593 = vmul.f32 %v5513, 1.0614054
        %v5594 = vmul.f32 %v5514, 1.0614054
        %v5595 = vmul.f32 %v5515, 1.0614054
        %v5596 = vmul.f32 %v5516, 1.0614054
        %v5597 = vmul.f32 %v5517, 1.0614054
        %v5598 = vmul.f32 %v5518, 1.0614054
        %v5599 = vmul.f32 %v5519, 1.0614054
        %v5600 = vmul.f32 %v5520, 1.0614054
        %v5601 = vmul.f32 %v5521, 1.0614054
        %v5602 = vmul.f32 %v5522, 1.0614054
        %v5603 = vmul.f32 %v5523, 1.0614054
        %v5604 = vmul.f32 %v5524, 1.0614054
        %v5605 = vadd.f32 %v5525, -1.4531521
        %v5606 = vadd.f32 %v5526, -1.4531521
        %v5607 = vadd.f32 %v5527, -1.4531521
        %v5608 = vadd.f32 %v5528, -1.4531521
        %v5609 = vadd.f32 %v5529, -1.4531521
        %v5610 = vadd.f32 %v5530, -1.4531521
        %v5611 = vadd.f32 %v5531, -1.4531521
        %v5612 = vadd.f32 %v5532, -1.4531521
        %v5613 = vadd.f32 %v5533, -1.4531521
        %v5614 = vadd.f32 %v5534, -1.4531521
        %v5615 = vadd.f32 %v5535, -1.4531521
        %v5616 = vadd.f32 %v5536, -1.4531521
        %v5617 = vadd.f32 %v5537, -1.4531521
        %v5618 = vadd.f32 %v5538, -1.4531521
        %v5619 = vadd.f32 %v5539, -1.4531521
        %v5620 = vadd.f32 %v5540, -1.4531521
        %v5621 = vadd.f32 %v5541, -1.4531521
        %v5622 = vadd.f32 %v5542, -1.4531521
        %v5623 = vadd.f32 %v5543, -1.4531521
        %v5624 = vadd.f32 %v5544, -1.4531521
        %v5625 = vadd.f32 %v5545, -1.4531521
        %v5626 = vadd.f32 %v5546, -1.4531521
        %v5627 = vadd.f32 %v5547, -1.4531521
        %v5628 = vadd.f32 %v5548, -1.4531521
        %v5629 = vadd.f32 %v5549, -1.4531521
        %v5630 = vadd.f32 %v5550, -1.4531521
        %v5631 = vadd.f32 %v5551, -1.4531521
        %v5632 = vadd.f32 %v5552, -1.4531521
        %v5633 = vadd.f32 %v5553, -1.4531521
        %v5634 = vadd.f32 %v5554, -1.4531521
        %v5635 = vadd.f32 %v5555, -1.4531521
        %v5636 = vadd.f32 %v5556, -1.4531521
        %v5637 = vadd.f32 %v5557, -1.4531521
        %v5638 = vadd.f32 %v5558, -1.4531521
        %v5639 = vadd.f32 %v5559, -1.4531521
        %v5640 = vadd.f32 %v5560, -1.4531521
        %v5641 = vadd.f32 %v5561, -1.4531521
        %v5642 = vadd.f32 %v5562, -1.4531521
        %v5643 = vadd.f32 %v5563, -1.4531521
        %v5644 = vadd.f32 %v5564, -1.4531521
        %v5645 = vadd.f32 %v5565, -1.4531521
        %v5646 = vadd.f32 %v5566, -1.4531521
        %v5647 = vadd.f32 %v5567, -1.4531521
        %v5648 = vadd.f32 %v5568, -1.4531521
        %v5649 = vadd.f32 %v5569, -1.4531521
        %v5650 = vadd.f32 %v5570, -1.4531521
        %v5651 = vadd.f32 %v5571, -1.4531521
        %v5652 = vadd.f32 %v5572, -1.4531521
        %v5653 = vadd.f32 %v5573, -1.4531521
        %v5654 = vadd.f32 %v5574, -1.4531521
        %v5655 = vadd.f32 %v5575, -1.4531521
        %v5656 = vadd.f32 %v5576, -1.4531521
        %v5657 = vadd.f32 %v5577, -1.4531521
        %v5658 = vadd.f32 %v5578, -1.4531521
        %v5659 = vadd.f32 %v5579, -1.4531521
        %v5660 = vadd.f32 %v5580, -1.4531521
        %v5661 = vadd.f32 %v5581, -1.4531521
        %v5662 = vadd.f32 %v5582, -1.4531521
        %v5663 = vadd.f32 %v5583, -1.4531521
        %v5664 = vadd.f32 %v5584, -1.4531521
        %v5665 = vadd.f32 %v5585, -1.4531521
        %v5666 = vadd.f32 %v5586, -1.4531521
        %v5667 = vadd.f32 %v5587, -1.4531521
        %v5668 = vadd.f32 %v5588, -1.4531521
        %v5669 = vadd.f32 %v5589, -1.4531521
        %v5670 = vadd.f32 %v5590, -1.4531521
        %v5671 = vadd.f32 %v5591, -1.4531521
        %v5672 = vadd.f32 %v5592, -1.4531521
        %v5673 = vadd.f32 %v5593, -1.4531521
        %v5674 = vadd.f32 %v5594, -1.4531521
        %v5675 = vadd.f32 %v5595, -1.4531521
        %v5676 = vadd.f32 %v5596, -1.4531521
        %v5677 = vadd.f32 %v5597, -1.4531521
        %v5678 = vadd.f32 %v5598, -1.4531521
        %v5679 = vadd.f32 %v5599, -1.4531521
        %v5680 = vadd.f32 %v5600, -1.4531521
        %v5681 = vadd.f32 %v5601, -1.4531521
        %v5682 = vadd.f32 %v5602, -1.4531521
        %v5683 = vadd.f32 %v5603, -1.4531521
        %v5684 = vadd.f32 %v5604, -1.4531521
        %v5685 = vmul.f32 %v5445, %v5605
        %v5686 = vmul.f32 %v5446, %v5606
        %v5687 = vmul.f32 %v5447, %v5607
        %v5688 = vmul.f32 %v5448, %v5608
        %v5689 = vmul.f32 %v5449, %v5609
        %v5690 = vmul.f32 %v5450, %v5610
        %v5691 = vmul.f32 %v5451, %v5611
        %v5692 = vmul.f32 %v5452, %v5612
        %v5693 = vmul.f32 %v5453, %v5613
        %v5694 = vmul.f32 %v5454, %v5614
        %v5695 = vmul.f32 %v5455, %v5615
        %v5696 = vmul.f32 %v5456, %v5616
        %v5697 = vmul.f32 %v5457, %v5617
        %v5698 = vmul.f32 %v5458, %v5618
        %v5699 = vmul.f32 %v5459, %v5619
        %v5700 = vmul.f32 %v5460, %v5620
        %v5701 = vmul.f32 %v5461, %v5621
        %v5702 = vmul.f32 %v5462, %v5622
        %v5703 = vmul.f32 %v5463, %v5623
        %v5704 = vmul.f32 %v5464, %v5624
        %v5705 = vmul.f32 %v5465, %v5625
        %v5706 = vmul.f32 %v5466, %v5626
        %v5707 = vmul.f32 %v5467, %v5627
        %v5708 = vmul.f32 %v5468, %v5628
        %v5709 = vmul.f32 %v5469, %v5629
        %v5710 = vmul.f32 %v5470, %v5630
        %v5711 = vmul.f32 %v5471, %v5631
        %v5712 = vmul.f32 %v5472, %v5632
        %v5713 = vmul.f32 %v5473, %v5633
        %v5714 = vmul.f32 %v5474, %v5634
        %v5715 = vmul.f32 %v5475, %v5635
        %v5716 = vmul.f32 %v5476, %v5636
        %v5717 = vmul.f32 %v5477, %v5637
        %v5718 = vmul.f32 %v5478, %v5638
        %v5719 = vmul.f32 %v5479, %v5639
        %v5720 = vmul.f32 %v5480, %v5640
        %v5721 = vmul.f32 %v5481, %v5641
        %v5722 = vmul.f32 %v5482, %v5642
        %v5723 = vmul.f32 %v5483, %v5643
        %v5724 = vmul.f32 %v5484, %v5644
        %v5725 = vmul.f32 %v5485, %v5645
        %v5726 = vmul.f32 %v5486, %v5646
        %v5727 = vmul.f32 %v5487, %v5647
        %v5728 = vmul.f32 %v5488, %v5648
        %v5729 = vmul.f32 %v5489, %v5649
        %v5730 = vmul.f32 %v5490, %v5650
        %v5731 = vmul.f32 %v5491, %v5651
        %v5732 = vmul.f32 %v5492, %v5652
        %v5733 = vmul.f32 %v5493, %v5653
        %v5734 = vmul.f32 %v5494, %v5654
        %v5735 = vmul.f32 %v5495, %v5655
        %v5736 = vmul.f32 %v5496, %v5656
        %v5737 = vmul.f32 %v5497, %v5657
        %v5738 = vmul.f32 %v5498, %v5658
        %v5739 = vmul.f32 %v5499, %v5659
        %v5740 = vmul.f32 %v5500, %v5660
        %v5741 = vmul.f32 %v5501, %v5661
        %v5742 = vmul.f32 %v5502, %v5662
        %v5743 = vmul.f32 %v5503, %v5663
        %v5744 = vmul.f32 %v5504, %v5664
        %v5745 = vmul.f32 %v5505, %v5665
        %v5746 = vmul.f32 %v5506, %v5666
        %v5747 = vmul.f32 %v5507, %v5667
        %v5748 = vmul.f32 %v5508, %v5668
        %v5749 = vmul.f32 %v5509, %v5669
        %v5750 = vmul.f32 %v5510, %v5670
        %v5751 = vmul.f32 %v5511, %v5671
        %v5752 = vmul.f32 %v5512, %v5672
        %v5753 = vmul.f32 %v5513, %v5673
        %v5754 = vmul.f32 %v5514, %v5674
        %v5755 = vmul.f32 %v5515, %v5675
        %v5756 = vmul.f32 %v5516, %v5676
        %v5757 = vmul.f32 %v5517, %v5677
        %v5758 = vmul.f32 %v5518, %v5678
        %v5759 = vmul.f32 %v5519, %v5679
        %v5760 = vmul.f32 %v5520, %v5680
        %v5761 = vmul.f32 %v5521, %v5681
        %v5762 = vmul.f32 %v5522, %v5682
        %v5763 = vmul.f32 %v5523, %v5683
        %v5764 = vmul.f32 %v5524, %v5684
        %v5765 = vadd.f32 %v5685, 1.4214138
        %v5766 = vadd.f32 %v5686, 1.4214138
        %v5767 = vadd.f32 %v5687, 1.4214138
        %v5768 = vadd.f32 %v5688, 1.4214138
        %v5769 = vadd.f32 %v5689, 1.4214138
        %v5770 = vadd.f32 %v5690, 1.4214138
        %v5771 = vadd.f32 %v5691, 1.4214138
        %v5772 = vadd.f32 %v5692, 1.4214138
        %v5773 = vadd.f32 %v5693, 1.4214138
        %v5774 = vadd.f32 %v5694, 1.4214138
        %v5775 = vadd.f32 %v5695, 1.4214138
        %v5776 = vadd.f32 %v5696, 1.4214138
        %v5777 = vadd.f32 %v5697, 1.4214138
        %v5778 = vadd.f32 %v5698, 1.4214138
        %v5779 = vadd.f32 %v5699, 1.4214138
        %v5780 = vadd.f32 %v5700, 1.4214138
        %v5781 = vadd.f32 %v5701, 1.4214138
        %v5782 = vadd.f32 %v5702, 1.4214138
        %v5783 = vadd.f32 %v5703, 1.4214138
        %v5784 = vadd.f32 %v5704, 1.4214138
        %v5785 = vadd.f32 %v5705, 1.4214138
        %v5786 = vadd.f32 %v5706, 1.4214138
        %v5787 = vadd.f32 %v5707, 1.4214138
        %v5788 = vadd.f32 %v5708, 1.4214138
        %v5789 = vadd.f32 %v5709, 1.4214138
        %v5790 = vadd.f32 %v5710, 1.4214138
        %v5791 = vadd.f32 %v5711, 1.4214138
        %v5792 = vadd.f32 %v5712, 1.4214138
        %v5793 = vadd.f32 %v5713, 1.4214138
        %v5794 = vadd.f32 %v5714, 1.4214138
        %v5795 = vadd.f32 %v5715, 1.4214138
        %v5796 = vadd.f32 %v5716, 1.4214138
        %v5797 = vadd.f32 %v5717, 1.4214138
        %v5798 = vadd.f32 %v5718, 1.4214138
        %v5799 = vadd.f32 %v5719, 1.4214138
        %v5800 = vadd.f32 %v5720, 1.4214138
        %v5801 = vadd.f32 %v5721, 1.4214138
        %v5802 = vadd.f32 %v5722, 1.4214138
        %v5803 = vadd.f32 %v5723, 1.4214138
        %v5804 = vadd.f32 %v5724, 1.4214138
        %v5805 = vadd.f32 %v5725, 1.4214138
        %v5806 = vadd.f32 %v5726, 1.4214138
        %v5807 = vadd.f32 %v5727, 1.4214138
        %v5808 = vadd.f32 %v5728, 1.4214138
        %v5809 = vadd.f32 %v5729, 1.4214138
        %v5810 = vadd.f32 %v5730, 1.4214138
        %v5811 = vadd.f32 %v5731, 1.4214138
        %v5812 = vadd.f32 %v5732, 1.4214138
        %v5813 = vadd.f32 %v5733, 1.4214138
        %v5814 = vadd.f32 %v5734, 1.4214138
        %v5815 = vadd.f32 %v5735, 1.4214138
        %v5816 = vadd.f32 %v5736, 1.4214138
        %v5817 = vadd.f32 %v5737, 1.4214138
        %v5818 = vadd.f32 %v5738, 1.4214138
        %v5819 = vadd.f32 %v5739, 1.4214138
        %v5820 = vadd.f32 %v5740, 1.4214138
        %v5821 = vadd.f32 %v5741, 1.4214138
        %v5822 = vadd.f32 %v5742, 1.4214138
        %v5823 = vadd.f32 %v5743, 1.4214138
        %v5824 = vadd.f32 %v5744, 1.4214138
        %v5825 = vadd.f32 %v5745, 1.4214138
        %v5826 = vadd.f32 %v5746, 1.4214138
        %v5827 = vadd.f32 %v5747, 1.4214138
        %v5828 = vadd.f32 %v5748, 1.4214138
        %v5829 = vadd.f32 %v5749, 1.4214138
        %v5830 = vadd.f32 %v5750, 1.4214138
        %v5831 = vadd.f32 %v5751, 1.4214138
        %v5832 = vadd.f32 %v5752, 1.4214138
        %v5833 = vadd.f32 %v5753, 1.4214138
        %v5834 = vadd.f32 %v5754, 1.4214138
        %v5835 = vadd.f32 %v5755, 1.4214138
        %v5836 = vadd.f32 %v5756, 1.4214138
        %v5837 = vadd.f32 %v5757, 1.4214138
        %v5838 = vadd.f32 %v5758, 1.4214138
        %v5839 = vadd.f32 %v5759, 1.4214138
        %v5840 = vadd.f32 %v5760, 1.4214138
        %v5841 = vadd.f32 %v5761, 1.4214138
        %v5842 = vadd.f32 %v5762, 1.4214138
        %v5843 = vadd.f32 %v5763, 1.4214138
        %v5844 = vadd.f32 %v5764, 1.4214138
        %v5845 = vmul.f32 %v5445, %v5765
        %v5846 = vmul.f32 %v5446, %v5766
        %v5847 = vmul.f32 %v5447, %v5767
        %v5848 = vmul.f32 %v5448, %v5768
        %v5849 = vmul.f32 %v5449, %v5769
        %v5850 = vmul.f32 %v5450, %v5770
        %v5851 = vmul.f32 %v5451, %v5771
        %v5852 = vmul.f32 %v5452, %v5772
        %v5853 = vmul.f32 %v5453, %v5773
        %v5854 = vmul.f32 %v5454, %v5774
        %v5855 = vmul.f32 %v5455, %v5775
        %v5856 = vmul.f32 %v5456, %v5776
        %v5857 = vmul.f32 %v5457, %v5777
        %v5858 = vmul.f32 %v5458, %v5778
        %v5859 = vmul.f32 %v5459, %v5779
        %v5860 = vmul.f32 %v5460, %v5780
        %v5861 = vmul.f32 %v5461, %v5781
        %v5862 = vmul.f32 %v5462, %v5782
        %v5863 = vmul.f32 %v5463, %v5783
        %v5864 = vmul.f32 %v5464, %v5784
        %v5865 = vmul.f32 %v5465, %v5785
        %v5866 = vmul.f32 %v5466, %v5786
        %v5867 = vmul.f32 %v5467, %v5787
        %v5868 = vmul.f32 %v5468, %v5788
        %v5869 = vmul.f32 %v5469, %v5789
        %v5870 = vmul.f32 %v5470, %v5790
        %v5871 = vmul.f32 %v5471, %v5791
        %v5872 = vmul.f32 %v5472, %v5792
        %v5873 = vmul.f32 %v5473, %v5793
        %v5874 = vmul.f32 %v5474, %v5794
        %v5875 = vmul.f32 %v5475, %v5795
        %v5876 = vmul.f32 %v5476, %v5796
        %v5877 = vmul.f32 %v5477, %v5797
        %v5878 = vmul.f32 %v5478, %v5798
        %v5879 = vmul.f32 %v5479, %v5799
        %v5880 = vmul.f32 %v5480, %v5800
        %v5881 = vmul.f32 %v5481, %v5801
        %v5882 = vmul.f32 %v5482, %v5802
        %v5883 = vmul.f32 %v5483, %v5803
        %v5884 = vmul.f32 %v5484, %v5804
        %v5885 = vmul.f32 %v5485, %v5805
        %v5886 = vmul.f32 %v5486, %v5806
        %v5887 = vmul.f32 %v5487, %v5807
        %v5888 = vmul.f32 %v5488, %v5808
        %v5889 = vmul.f32 %v5489, %v5809
        %v5890 = vmul.f32 %v5490, %v5810
        %v5891 = vmul.f32 %v5491, %v5811
        %v5892 = vmul.f32 %v5492, %v5812
        %v5893 = vmul.f32 %v5493, %v5813
        %v5894 = vmul.f32 %v5494, %v5814
        %v5895 = vmul.f32 %v5495, %v5815
        %v5896 = vmul.f32 %v5496, %v5816
        %v5897 = vmul.f32 %v5497, %v5817
        %v5898 = vmul.f32 %v5498, %v5818
        %v5899 = vmul.f32 %v5499, %v5819
        %v5900 = vmul.f32 %v5500, %v5820
        %v5901 = vmul.f32 %v5501, %v5821
        %v5902 = vmul.f32 %v5502, %v5822
        %v5903 = vmul.f32 %v5503, %v5823
        %v5904 = vmul.f32 %v5504, %v5824
        %v5905 = vmul.f32 %v5505, %v5825
        %v5906 = vmul.f32 %v5506, %v5826
        %v5907 = vmul.f32 %v5507, %v5827
        %v5908 = vmul.f32 %v5508, %v5828
        %v5909 = vmul.f32 %v5509, %v5829
        %v5910 = vmul.f32 %v5510, %v5830
        %v5911 = vmul.f32 %v5511, %v5831
        %v5912 = vmul.f32 %v5512, %v5832
        %v5913 = vmul.f32 %v5513, %v5833
        %v5914 = vmul.f32 %v5514, %v5834
        %v5915 = vmul.f32 %v5515, %v5835
        %v5916 = vmul.f32 %v5516, %v5836
        %v5917 = vmul.f32 %v5517, %v5837
        %v5918 = vmul.f32 %v5518, %v5838
        %v5919 = vmul.f32 %v5519, %v5839
        %v5920 = vmul.f32 %v5520, %v5840
        %v5921 = vmul.f32 %v5521, %v5841
        %v5922 = vmul.f32 %v5522, %v5842
        %v5923 = vmul.f32 %v5523, %v5843
        %v5924 = vmul.f32 %v5524, %v5844
        %v5925 = vadd.f32 %v5845, -0.28449672
        %v5926 = vadd.f32 %v5846, -0.28449672
        %v5927 = vadd.f32 %v5847, -0.28449672
        %v5928 = vadd.f32 %v5848, -0.28449672
        %v5929 = vadd.f32 %v5849, -0.28449672
        %v5930 = vadd.f32 %v5850, -0.28449672
        %v5931 = vadd.f32 %v5851, -0.28449672
        %v5932 = vadd.f32 %v5852, -0.28449672
        %v5933 = vadd.f32 %v5853, -0.28449672
        %v5934 = vadd.f32 %v5854, -0.28449672
        %v5935 = vadd.f32 %v5855, -0.28449672
        %v5936 = vadd.f32 %v5856, -0.28449672
        %v5937 = vadd.f32 %v5857, -0.28449672
        %v5938 = vadd.f32 %v5858, -0.28449672
        %v5939 = vadd.f32 %v5859, -0.28449672
        %v5940 = vadd.f32 %v5860, -0.28449672
        %v5941 = vadd.f32 %v5861, -0.28449672
        %v5942 = vadd.f32 %v5862, -0.28449672
        %v5943 = vadd.f32 %v5863, -0.28449672
        %v5944 = vadd.f32 %v5864, -0.28449672
        %v5945 = vadd.f32 %v5865, -0.28449672
        %v5946 = vadd.f32 %v5866, -0.28449672
        %v5947 = vadd.f32 %v5867, -0.28449672
        %v5948 = vadd.f32 %v5868, -0.28449672
        %v5949 = vadd.f32 %v5869, -0.28449672
        %v5950 = vadd.f32 %v5870, -0.28449672
        %v5951 = vadd.f32 %v5871, -0.28449672
        %v5952 = vadd.f32 %v5872, -0.28449672
        %v5953 = vadd.f32 %v5873, -0.28449672
        %v5954 = vadd.f32 %v5874, -0.28449672
        %v5955 = vadd.f32 %v5875, -0.28449672
        %v5956 = vadd.f32 %v5876, -0.28449672
        %v5957 = vadd.f32 %v5877, -0.28449672
        %v5958 = vadd.f32 %v5878, -0.28449672
        %v5959 = vadd.f32 %v5879, -0.28449672
        %v5960 = vadd.f32 %v5880, -0.28449672
        %v5961 = vadd.f32 %v5881, -0.28449672
        %v5962 = vadd.f32 %v5882, -0.28449672
        %v5963 = vadd.f32 %v5883, -0.28449672
        %v5964 = vadd.f32 %v5884, -0.28449672
        %v5965 = vadd.f32 %v5885, -0.28449672
        %v5966 = vadd.f32 %v5886, -0.28449672
        %v5967 = vadd.f32 %v5887, -0.28449672
        %v5968 = vadd.f32 %v5888, -0.28449672
        %v5969 = vadd.f32 %v5889, -0.28449672
        %v5970 = vadd.f32 %v5890, -0.28449672
        %v5971 = vadd.f32 %v5891, -0.28449672
        %v5972 = vadd.f32 %v5892, -0.28449672
        %v5973 = vadd.f32 %v5893, -0.28449672
        %v5974 = vadd.f32 %v5894, -0.28449672
        %v5975 = vadd.f32 %v5895, -0.28449672
        %v5976 = vadd.f32 %v5896, -0.28449672
        %v5977 = vadd.f32 %v5897, -0.28449672
        %v5978 = vadd.f32 %v5898, -0.28449672
        %v5979 = vadd.f32 %v5899, -0.28449672
        %v5980 = vadd.f32 %v5900, -0.28449672
        %v5981 = vadd.f32 %v5901, -0.28449672
        %v5982 = vadd.f32 %v5902, -0.28449672
        %v5983 = vadd.f32 %v5903, -0.28449672
        %v5984 = vadd.f32 %v5904, -0.28449672
        %v5985 = vadd.f32 %v5905, -0.28449672
        %v5986 = vadd.f32 %v5906, -0.28449672
        %v5987 = vadd.f32 %v5907, -0.28449672
        %v5988 = vadd.f32 %v5908, -0.28449672
        %v5989 = vadd.f32 %v5909, -0.28449672
        %v5990 = vadd.f32 %v5910, -0.28449672
        %v5991 = vadd.f32 %v5911, -0.28449672
        %v5992 = vadd.f32 %v5912, -0.28449672
        %v5993 = vadd.f32 %v5913, -0.28449672
        %v5994 = vadd.f32 %v5914, -0.28449672
        %v5995 = vadd.f32 %v5915, -0.28449672
        %v5996 = vadd.f32 %v5916, -0.28449672
        %v5997 = vadd.f32 %v5917, -0.28449672
        %v5998 = vadd.f32 %v5918, -0.28449672
        %v5999 = vadd.f32 %v5919, -0.28449672
        %v6000 = vadd.f32 %v5920, -0.28449672
        %v6001 = vadd.f32 %v5921, -0.28449672
        %v6002 = vadd.f32 %v5922, -0.28449672
        %v6003 = vadd.f32 %v5923, -0.28449672
        %v6004 = vadd.f32 %v5924, -0.28449672
        %v6005 = vmul.f32 %v5445, %v5925
        %v6006 = vmul.f32 %v5446, %v5926
        %v6007 = vmul.f32 %v5447, %v5927
        %v6008 = vmul.f32 %v5448, %v5928
        %v6009 = vmul.f32 %v5449, %v5929
        %v6010 = vmul.f32 %v5450, %v5930
        %v6011 = vmul.f32 %v5451, %v5931
        %v6012 = vmul.f32 %v5452, %v5932
        %v6013 = vmul.f32 %v5453, %v5933
        %v6014 = vmul.f32 %v5454, %v5934
        %v6015 = vmul.f32 %v5455, %v5935
        %v6016 = vmul.f32 %v5456, %v5936
        %v6017 = vmul.f32 %v5457, %v5937
        %v6018 = vmul.f32 %v5458, %v5938
        %v6019 = vmul.f32 %v5459, %v5939
        %v6020 = vmul.f32 %v5460, %v5940
        %v6021 = vmul.f32 %v5461, %v5941
        %v6022 = vmul.f32 %v5462, %v5942
        %v6023 = vmul.f32 %v5463, %v5943
        %v6024 = vmul.f32 %v5464, %v5944
        %v6025 = vmul.f32 %v5465, %v5945
        %v6026 = vmul.f32 %v5466, %v5946
        %v6027 = vmul.f32 %v5467, %v5947
        %v6028 = vmul.f32 %v5468, %v5948
        %v6029 = vmul.f32 %v5469, %v5949
        %v6030 = vmul.f32 %v5470, %v5950
        %v6031 = vmul.f32 %v5471, %v5951
        %v6032 = vmul.f32 %v5472, %v5952
        %v6033 = vmul.f32 %v5473, %v5953
        %v6034 = vmul.f32 %v5474, %v5954
        %v6035 = vmul.f32 %v5475, %v5955
        %v6036 = vmul.f32 %v5476, %v5956
        %v6037 = vmul.f32 %v5477, %v5957
        %v6038 = vmul.f32 %v5478, %v5958
        %v6039 = vmul.f32 %v5479, %v5959
        %v6040 = vmul.f32 %v5480, %v5960
        %v6041 = vmul.f32 %v5481, %v5961
        %v6042 = vmul.f32 %v5482, %v5962
        %v6043 = vmul.f32 %v5483, %v5963
        %v6044 = vmul.f32 %v5484, %v5964
        %v6045 = vmul.f32 %v5485, %v5965
        %v6046 = vmul.f32 %v5486, %v5966
        %v6047 = vmul.f32 %v5487, %v5967
        %v6048 = vmul.f32 %v5488, %v5968
        %v6049 = vmul.f32 %v5489, %v5969
        %v6050 = vmul.f32 %v5490, %v5970
        %v6051 = vmul.f32 %v5491, %v5971
        %v6052 = vmul.f32 %v5492, %v5972
        %v6053 = vmul.f32 %v5493, %v5973
        %v6054 = vmul.f32 %v5494, %v5974
        %v6055 = vmul.f32 %v5495, %v5975
        %v6056 = vmul.f32 %v5496, %v5976
        %v6057 = vmul.f32 %v5497, %v5977
        %v6058 = vmul.f32 %v5498, %v5978
        %v6059 = vmul.f32 %v5499, %v5979
        %v6060 = vmul.f32 %v5500, %v5980
        %v6061 = vmul.f32 %v5501, %v5981
        %v6062 = vmul.f32 %v5502, %v5982
        %v6063 = vmul.f32 %v5503, %v5983
        %v6064 = vmul.f32 %v5504, %v5984
        %v6065 = vmul.f32 %v5505, %v5985
        %v6066 = vmul.f32 %v5506, %v5986
        %v6067 = vmul.f32 %v5507, %v5987
        %v6068 = vmul.f32 %v5508, %v5988
        %v6069 = vmul.f32 %v5509, %v5989
        %v6070 = vmul.f32 %v5510, %v5990
        %v6071 = vmul.f32 %v5511, %v5991
        %v6072 = vmul.f32 %v5512, %v5992
        %v6073 = vmul.f32 %v5513, %v5993
        %v6074 = vmul.f32 %v5514, %v5994
        %v6075 = vmul.f32 %v5515, %v5995
        %v6076 = vmul.f32 %v5516, %v5996
        %v6077 = vmul.f32 %v5517, %v5997
        %v6078 = vmul.f32 %v5518, %v5998
        %v6079 = vmul.f32 %v5519, %v5999
        %v6080 = vmul.f32 %v5520, %v6000
        %v6081 = vmul.f32 %v5521, %v6001
        %v6082 = vmul.f32 %v5522, %v6002
        %v6083 = vmul.f32 %v5523, %v6003
        %v6084 = vmul.f32 %v5524, %v6004
        %v6085 = vadd.f32 %v6005, 0.2548296
        %v6086 = vadd.f32 %v6006, 0.2548296
        %v6087 = vadd.f32 %v6007, 0.2548296
        %v6088 = vadd.f32 %v6008, 0.2548296
        %v6089 = vadd.f32 %v6009, 0.2548296
        %v6090 = vadd.f32 %v6010, 0.2548296
        %v6091 = vadd.f32 %v6011, 0.2548296
        %v6092 = vadd.f32 %v6012, 0.2548296
        %v6093 = vadd.f32 %v6013, 0.2548296
        %v6094 = vadd.f32 %v6014, 0.2548296
        %v6095 = vadd.f32 %v6015, 0.2548296
        %v6096 = vadd.f32 %v6016, 0.2548296
        %v6097 = vadd.f32 %v6017, 0.2548296
        %v6098 = vadd.f32 %v6018, 0.2548296
        %v6099 = vadd.f32 %v6019, 0.2548296
        %v6100 = vadd.f32 %v6020, 0.2548296
        %v6101 = vadd.f32 %v6021, 0.2548296
        %v6102 = vadd.f32 %v6022, 0.2548296
        %v6103 = vadd.f32 %v6023, 0.2548296
        %v6104 = vadd.f32 %v6024, 0.2548296
        %v6105 = vadd.f32 %v6025, 0.2548296
        %v6106 = vadd.f32 %v6026, 0.2548296
        %v6107 = vadd.f32 %v6027, 0.2548296
        %v6108 = vadd.f32 %v6028, 0.2548296
        %v6109 = vadd.f32 %v6029, 0.2548296
        %v6110 = vadd.f32 %v6030, 0.2548296
        %v6111 = vadd.f32 %v6031, 0.2548296
        %v6112 = vadd.f32 %v6032, 0.2548296
        %v6113 = vadd.f32 %v6033, 0.2548296
        %v6114 = vadd.f32 %v6034, 0.2548296
        %v6115 = vadd.f32 %v6035, 0.2548296
        %v6116 = vadd.f32 %v6036, 0.2548296
        %v6117 = vadd.f32 %v6037, 0.2548296
        %v6118 = vadd.f32 %v6038, 0.2548296
        %v6119 = vadd.f32 %v6039, 0.2548296
        %v6120 = vadd.f32 %v6040, 0.2548296
        %v6121 = vadd.f32 %v6041, 0.2548296
        %v6122 = vadd.f32 %v6042, 0.2548296
        %v6123 = vadd.f32 %v6043, 0.2548296
        %v6124 = vadd.f32 %v6044, 0.2548296
        %v6125 = vadd.f32 %v6045, 0.2548296
        %v6126 = vadd.f32 %v6046, 0.2548296
        %v6127 = vadd.f32 %v6047, 0.2548296
        %v6128 = vadd.f32 %v6048, 0.2548296
        %v6129 = vadd.f32 %v6049, 0.2548296
        %v6130 = vadd.f32 %v6050, 0.2548296
        %v6131 = vadd.f32 %v6051, 0.2548296
        %v6132 = vadd.f32 %v6052, 0.2548296
        %v6133 = vadd.f32 %v6053, 0.2548296
        %v6134 = vadd.f32 %v6054, 0.2548296
        %v6135 = vadd.f32 %v6055, 0.2548296
        %v6136 = vadd.f32 %v6056, 0.2548296
        %v6137 = vadd.f32 %v6057, 0.2548296
        %v6138 = vadd.f32 %v6058, 0.2548296
        %v6139 = vadd.f32 %v6059, 0.2548296
        %v6140 = vadd.f32 %v6060, 0.2548296
        %v6141 = vadd.f32 %v6061, 0.2548296
        %v6142 = vadd.f32 %v6062, 0.2548296
        %v6143 = vadd.f32 %v6063, 0.2548296
        %v6144 = vadd.f32 %v6064, 0.2548296
        %v6145 = vadd.f32 %v6065, 0.2548296
        %v6146 = vadd.f32 %v6066, 0.2548296
        %v6147 = vadd.f32 %v6067, 0.2548296
        %v6148 = vadd.f32 %v6068, 0.2548296
        %v6149 = vadd.f32 %v6069, 0.2548296
        %v6150 = vadd.f32 %v6070, 0.2548296
        %v6151 = vadd.f32 %v6071, 0.2548296
        %v6152 = vadd.f32 %v6072, 0.2548296
        %v6153 = vadd.f32 %v6073, 0.2548296
        %v6154 = vadd.f32 %v6074, 0.2548296
        %v6155 = vadd.f32 %v6075, 0.2548296
        %v6156 = vadd.f32 %v6076, 0.2548296
        %v6157 = vadd.f32 %v6077, 0.2548296
        %v6158 = vadd.f32 %v6078, 0.2548296
        %v6159 = vadd.f32 %v6079, 0.2548296
        %v6160 = vadd.f32 %v6080, 0.2548296
        %v6161 = vadd.f32 %v6081, 0.2548296
        %v6162 = vadd.f32 %v6082, 0.2548296
        %v6163 = vadd.f32 %v6083, 0.2548296
        %v6164 = vadd.f32 %v6084, 0.2548296
        %v6165 = vmul.f32 %v5445, %v6085
        %v6166 = vmul.f32 %v5446, %v6086
        %v6167 = vmul.f32 %v5447, %v6087
        %v6168 = vmul.f32 %v5448, %v6088
        %v6169 = vmul.f32 %v5449, %v6089
        %v6170 = vmul.f32 %v5450, %v6090
        %v6171 = vmul.f32 %v5451, %v6091
        %v6172 = vmul.f32 %v5452, %v6092
        %v6173 = vmul.f32 %v5453, %v6093
        %v6174 = vmul.f32 %v5454, %v6094
        %v6175 = vmul.f32 %v5455, %v6095
        %v6176 = vmul.f32 %v5456, %v6096
        %v6177 = vmul.f32 %v5457, %v6097
        %v6178 = vmul.f32 %v5458, %v6098
        %v6179 = vmul.f32 %v5459, %v6099
        %v6180 = vmul.f32 %v5460, %v6100
        %v6181 = vmul.f32 %v5461, %v6101
        %v6182 = vmul.f32 %v5462, %v6102
        %v6183 = vmul.f32 %v5463, %v6103
        %v6184 = vmul.f32 %v5464, %v6104
        %v6185 = vmul.f32 %v5465, %v6105
        %v6186 = vmul.f32 %v5466, %v6106
        %v6187 = vmul.f32 %v5467, %v6107
        %v6188 = vmul.f32 %v5468, %v6108
        %v6189 = vmul.f32 %v5469, %v6109
        %v6190 = vmul.f32 %v5470, %v6110
        %v6191 = vmul.f32 %v5471, %v6111
        %v6192 = vmul.f32 %v5472, %v6112
        %v6193 = vmul.f32 %v5473, %v6113
        %v6194 = vmul.f32 %v5474, %v6114
        %v6195 = vmul.f32 %v5475, %v6115
        %v6196 = vmul.f32 %v5476, %v6116
        %v6197 = vmul.f32 %v5477, %v6117
        %v6198 = vmul.f32 %v5478, %v6118
        %v6199 = vmul.f32 %v5479, %v6119
        %v6200 = vmul.f32 %v5480, %v6120
        %v6201 = vmul.f32 %v5481, %v6121
        %v6202 = vmul.f32 %v5482, %v6122
        %v6203 = vmul.f32 %v5483, %v6123
        %v6204 = vmul.f32 %v5484, %v6124
        %v6205 = vmul.f32 %v5485, %v6125
        %v6206 = vmul.f32 %v5486, %v6126
        %v6207 = vmul.f32 %v5487, %v6127
        %v6208 = vmul.f32 %v5488, %v6128
        %v6209 = vmul.f32 %v5489, %v6129
        %v6210 = vmul.f32 %v5490, %v6130
        %v6211 = vmul.f32 %v5491, %v6131
        %v6212 = vmul.f32 %v5492, %v6132
        %v6213 = vmul.f32 %v5493, %v6133
        %v6214 = vmul.f32 %v5494, %v6134
        %v6215 = vmul.f32 %v5495, %v6135
        %v6216 = vmul.f32 %v5496, %v6136
        %v6217 = vmul.f32 %v5497, %v6137
        %v6218 = vmul.f32 %v5498, %v6138
        %v6219 = vmul.f32 %v5499, %v6139
        %v6220 = vmul.f32 %v5500, %v6140
        %v6221 = vmul.f32 %v5501, %v6141
        %v6222 = vmul.f32 %v5502, %v6142
        %v6223 = vmul.f32 %v5503, %v6143
        %v6224 = vmul.f32 %v5504, %v6144
        %v6225 = vmul.f32 %v5505, %v6145
        %v6226 = vmul.f32 %v5506, %v6146
        %v6227 = vmul.f32 %v5507, %v6147
        %v6228 = vmul.f32 %v5508, %v6148
        %v6229 = vmul.f32 %v5509, %v6149
        %v6230 = vmul.f32 %v5510, %v6150
        %v6231 = vmul.f32 %v5511, %v6151
        %v6232 = vmul.f32 %v5512, %v6152
        %v6233 = vmul.f32 %v5513, %v6153
        %v6234 = vmul.f32 %v5514, %v6154
        %v6235 = vmul.f32 %v5515, %v6155
        %v6236 = vmul.f32 %v5516, %v6156
        %v6237 = vmul.f32 %v5517, %v6157
        %v6238 = vmul.f32 %v5518, %v6158
        %v6239 = vmul.f32 %v5519, %v6159
        %v6240 = vmul.f32 %v5520, %v6160
        %v6241 = vmul.f32 %v5521, %v6161
        %v6242 = vmul.f32 %v5522, %v6162
        %v6243 = vmul.f32 %v5523, %v6163
        %v6244 = vmul.f32 %v5524, %v6164
        %v6245 = vsub.f32 0.0, %v5205
        %v6246 = vsub.f32 0.0, %v5206
        %v6247 = vsub.f32 0.0, %v5207
        %v6248 = vsub.f32 0.0, %v5208
        %v6249 = vsub.f32 0.0, %v5209
        %v6250 = vsub.f32 0.0, %v5210
        %v6251 = vsub.f32 0.0, %v5211
        %v6252 = vsub.f32 0.0, %v5212
        %v6253 = vsub.f32 0.0, %v5213
        %v6254 = vsub.f32 0.0, %v5214
        %v6255 = vsub.f32 0.0, %v5215
        %v6256 = vsub.f32 0.0, %v5216
        %v6257 = vsub.f32 0.0, %v5217
        %v6258 = vsub.f32 0.0, %v5218
        %v6259 = vsub.f32 0.0, %v5219
        %v6260 = vsub.f32 0.0, %v5220
        %v6261 = vsub.f32 0.0, %v5221
        %v6262 = vsub.f32 0.0, %v5222
        %v6263 = vsub.f32 0.0, %v5223
        %v6264 = vsub.f32 0.0, %v5224
        %v6265 = vsub.f32 0.0, %v5225
        %v6266 = vsub.f32 0.0, %v5226
        %v6267 = vsub.f32 0.0, %v5227
        %v6268 = vsub.f32 0.0, %v5228
        %v6269 = vsub.f32 0.0, %v5229
        %v6270 = vsub.f32 0.0, %v5230
        %v6271 = vsub.f32 0.0, %v5231
        %v6272 = vsub.f32 0.0, %v5232
        %v6273 = vsub.f32 0.0, %v5233
        %v6274 = vsub.f32 0.0, %v5234
        %v6275 = vsub.f32 0.0, %v5235
        %v6276 = vsub.f32 0.0, %v5236
        %v6277 = vsub.f32 0.0, %v5237
        %v6278 = vsub.f32 0.0, %v5238
        %v6279 = vsub.f32 0.0, %v5239
        %v6280 = vsub.f32 0.0, %v5240
        %v6281 = vsub.f32 0.0, %v5241
        %v6282 = vsub.f32 0.0, %v5242
        %v6283 = vsub.f32 0.0, %v5243
        %v6284 = vsub.f32 0.0, %v5244
        %v6285 = vsub.f32 0.0, %v5245
        %v6286 = vsub.f32 0.0, %v5246
        %v6287 = vsub.f32 0.0, %v5247
        %v6288 = vsub.f32 0.0, %v5248
        %v6289 = vsub.f32 0.0, %v5249
        %v6290 = vsub.f32 0.0, %v5250
        %v6291 = vsub.f32 0.0, %v5251
        %v6292 = vsub.f32 0.0, %v5252
        %v6293 = vsub.f32 0.0, %v5253
        %v6294 = vsub.f32 0.0, %v5254
        %v6295 = vsub.f32 0.0, %v5255
        %v6296 = vsub.f32 0.0, %v5256
        %v6297 = vsub.f32 0.0, %v5257
        %v6298 = vsub.f32 0.0, %v5258
        %v6299 = vsub.f32 0.0, %v5259
        %v6300 = vsub.f32 0.0, %v5260
        %v6301 = vsub.f32 0.0, %v5261
        %v6302 = vsub.f32 0.0, %v5262
        %v6303 = vsub.f32 0.0, %v5263
        %v6304 = vsub.f32 0.0, %v5264
        %v6305 = vsub.f32 0.0, %v5265
        %v6306 = vsub.f32 0.0, %v5266
        %v6307 = vsub.f32 0.0, %v5267
        %v6308 = vsub.f32 0.0, %v5268
        %v6309 = vsub.f32 0.0, %v5269
        %v6310 = vsub.f32 0.0, %v5270
        %v6311 = vsub.f32 0.0, %v5271
        %v6312 = vsub.f32 0.0, %v5272
        %v6313 = vsub.f32 0.0, %v5273
        %v6314 = vsub.f32 0.0, %v5274
        %v6315 = vsub.f32 0.0, %v5275
        %v6316 = vsub.f32 0.0, %v5276
        %v6317 = vsub.f32 0.0, %v5277
        %v6318 = vsub.f32 0.0, %v5278
        %v6319 = vsub.f32 0.0, %v5279
        %v6320 = vsub.f32 0.0, %v5280
        %v6321 = vsub.f32 0.0, %v5281
        %v6322 = vsub.f32 0.0, %v5282
        %v6323 = vsub.f32 0.0, %v5283
        %v6324 = vsub.f32 0.0, %v5284
        %v6325 = vmul.f32 %v6245, %v5205
        %v6326 = vmul.f32 %v6246, %v5206
        %v6327 = vmul.f32 %v6247, %v5207
        %v6328 = vmul.f32 %v6248, %v5208
        %v6329 = vmul.f32 %v6249, %v5209
        %v6330 = vmul.f32 %v6250, %v5210
        %v6331 = vmul.f32 %v6251, %v5211
        %v6332 = vmul.f32 %v6252, %v5212
        %v6333 = vmul.f32 %v6253, %v5213
        %v6334 = vmul.f32 %v6254, %v5214
        %v6335 = vmul.f32 %v6255, %v5215
        %v6336 = vmul.f32 %v6256, %v5216
        %v6337 = vmul.f32 %v6257, %v5217
        %v6338 = vmul.f32 %v6258, %v5218
        %v6339 = vmul.f32 %v6259, %v5219
        %v6340 = vmul.f32 %v6260, %v5220
        %v6341 = vmul.f32 %v6261, %v5221
        %v6342 = vmul.f32 %v6262, %v5222
        %v6343 = vmul.f32 %v6263, %v5223
        %v6344 = vmul.f32 %v6264, %v5224
        %v6345 = vmul.f32 %v6265, %v5225
        %v6346 = vmul.f32 %v6266, %v5226
        %v6347 = vmul.f32 %v6267, %v5227
        %v6348 = vmul.f32 %v6268, %v5228
        %v6349 = vmul.f32 %v6269, %v5229
        %v6350 = vmul.f32 %v6270, %v5230
        %v6351 = vmul.f32 %v6271, %v5231
        %v6352 = vmul.f32 %v6272, %v5232
        %v6353 = vmul.f32 %v6273, %v5233
        %v6354 = vmul.f32 %v6274, %v5234
        %v6355 = vmul.f32 %v6275, %v5235
        %v6356 = vmul.f32 %v6276, %v5236
        %v6357 = vmul.f32 %v6277, %v5237
        %v6358 = vmul.f32 %v6278, %v5238
        %v6359 = vmul.f32 %v6279, %v5239
        %v6360 = vmul.f32 %v6280, %v5240
        %v6361 = vmul.f32 %v6281, %v5241
        %v6362 = vmul.f32 %v6282, %v5242
        %v6363 = vmul.f32 %v6283, %v5243
        %v6364 = vmul.f32 %v6284, %v5244
        %v6365 = vmul.f32 %v6285, %v5245
        %v6366 = vmul.f32 %v6286, %v5246
        %v6367 = vmul.f32 %v6287, %v5247
        %v6368 = vmul.f32 %v6288, %v5248
        %v6369 = vmul.f32 %v6289, %v5249
        %v6370 = vmul.f32 %v6290, %v5250
        %v6371 = vmul.f32 %v6291, %v5251
        %v6372 = vmul.f32 %v6292, %v5252
        %v6373 = vmul.f32 %v6293, %v5253
        %v6374 = vmul.f32 %v6294, %v5254
        %v6375 = vmul.f32 %v6295, %v5255
        %v6376 = vmul.f32 %v6296, %v5256
        %v6377 = vmul.f32 %v6297, %v5257
        %v6378 = vmul.f32 %v6298, %v5258
        %v6379 = vmul.f32 %v6299, %v5259
        %v6380 = vmul.f32 %v6300, %v5260
        %v6381 = vmul.f32 %v6301, %v5261
        %v6382 = vmul.f32 %v6302, %v5262
        %v6383 = vmul.f32 %v6303, %v5263
        %v6384 = vmul.f32 %v6304, %v5264
        %v6385 = vmul.f32 %v6305, %v5265
        %v6386 = vmul.f32 %v6306, %v5266
        %v6387 = vmul.f32 %v6307, %v5267
        %v6388 = vmul.f32 %v6308, %v5268
        %v6389 = vmul.f32 %v6309, %v5269
        %v6390 = vmul.f32 %v6310, %v5270
        %v6391 = vmul.f32 %v6311, %v5271
        %v6392 = vmul.f32 %v6312, %v5272
        %v6393 = vmul.f32 %v6313, %v5273
        %v6394 = vmul.f32 %v6314, %v5274
        %v6395 = vmul.f32 %v6315, %v5275
        %v6396 = vmul.f32 %v6316, %v5276
        %v6397 = vmul.f32 %v6317, %v5277
        %v6398 = vmul.f32 %v6318, %v5278
        %v6399 = vmul.f32 %v6319, %v5279
        %v6400 = vmul.f32 %v6320, %v5280
        %v6401 = vmul.f32 %v6321, %v5281
        %v6402 = vmul.f32 %v6322, %v5282
        %v6403 = vmul.f32 %v6323, %v5283
        %v6404 = vmul.f32 %v6324, %v5284
        %v6405 = vmul.f32 %v6325, 1.442695
        %v6406 = vpow.pop %v6405
        %v6407 = vmul.f32 %v6326, 1.442695
        %v6408 = vpow.pop %v6407
        %v6409 = vmul.f32 %v6327, 1.442695
        %v6410 = vpow.pop %v6409
        %v6411 = vmul.f32 %v6328, 1.442695
        %v6412 = vpow.pop %v6411
        %v6413 = vmul.f32 %v6329, 1.442695
        %v6414 = vpow.pop %v6413
        %v6415 = vmul.f32 %v6330, 1.442695
        %v6416 = vpow.pop %v6415
        %v6417 = vmul.f32 %v6331, 1.442695
        %v6418 = vpow.pop %v6417
        %v6419 = vmul.f32 %v6332, 1.442695
        %v6420 = vpow.pop %v6419
        %v6421 = vmul.f32 %v6333, 1.442695
        %v6422 = vpow.pop %v6421
        %v6423 = vmul.f32 %v6334, 1.442695
        %v6424 = vpow.pop %v6423
        %v6425 = vmul.f32 %v6335, 1.442695
        %v6426 = vpow.pop %v6425
        %v6427 = vmul.f32 %v6336, 1.442695
        %v6428 = vpow.pop %v6427
        %v6429 = vmul.f32 %v6337, 1.442695
        %v6430 = vpow.pop %v6429
        %v6431 = vmul.f32 %v6338, 1.442695
        %v6432 = vpow.pop %v6431
        %v6433 = vmul.f32 %v6339, 1.442695
        %v6434 = vpow.pop %v6433
        %v6435 = vmul.f32 %v6340, 1.442695
        %v6436 = vpow.pop %v6435
        %v6437 = vmul.f32 %v6341, 1.442695
        %v6438 = vpow.pop %v6437
        %v6439 = vmul.f32 %v6342, 1.442695
        %v6440 = vpow.pop %v6439
        %v6441 = vmul.f32 %v6343, 1.442695
        %v6442 = vpow.pop %v6441
        %v6443 = vmul.f32 %v6344, 1.442695
        %v6444 = vpow.pop %v6443
        %v6445 = vmul.f32 %v6345, 1.442695
        %v6446 = vpow.pop %v6445
        %v6447 = vmul.f32 %v6346, 1.442695
        %v6448 = vpow.pop %v6447
        %v6449 = vmul.f32 %v6347, 1.442695
        %v6450 = vpow.pop %v6449
        %v6451 = vmul.f32 %v6348, 1.442695
        %v6452 = vpow.pop %v6451
        %v6453 = vmul.f32 %v6349, 1.442695
        %v6454 = vpow.pop %v6453
        %v6455 = vmul.f32 %v6350, 1.442695
        %v6456 = vpow.pop %v6455
        %v6457 = vmul.f32 %v6351, 1.442695
        %v6458 = vpow.pop %v6457
        %v6459 = vmul.f32 %v6352, 1.442695
        %v6460 = vpow.pop %v6459
        %v6461 = vmul.f32 %v6353, 1.442695
        %v6462 = vpow.pop %v6461
        %v6463 = vmul.f32 %v6354, 1.442695
        %v6464 = vpow.pop %v6463
        %v6465 = vmul.f32 %v6355, 1.442695
        %v6466 = vpow.pop %v6465
        %v6467 = vmul.f32 %v6356, 1.442695
        %v6468 = vpow.pop %v6467
        %v6469 = vmul.f32 %v6357, 1.442695
        %v6470 = vpow.pop %v6469
        %v6471 = vmul.f32 %v6358, 1.442695
        %v6472 = vpow.pop %v6471
        %v6473 = vmul.f32 %v6359, 1.442695
        %v6474 = vpow.pop %v6473
        %v6475 = vmul.f32 %v6360, 1.442695
        %v6476 = vpow.pop %v6475
        %v6477 = vmul.f32 %v6361, 1.442695
        %v6478 = vpow.pop %v6477
        %v6479 = vmul.f32 %v6362, 1.442695
        %v6480 = vpow.pop %v6479
        %v6481 = vmul.f32 %v6363, 1.442695
        %v6482 = vpow.pop %v6481
        %v6483 = vmul.f32 %v6364, 1.442695
        %v6484 = vpow.pop %v6483
        %v6485 = vmul.f32 %v6365, 1.442695
        %v6486 = vpow.pop %v6485
        %v6487 = vmul.f32 %v6366, 1.442695
        %v6488 = vpow.pop %v6487
        %v6489 = vmul.f32 %v6367, 1.442695
        %v6490 = vpow.pop %v6489
        %v6491 = vmul.f32 %v6368, 1.442695
        %v6492 = vpow.pop %v6491
        %v6493 = vmul.f32 %v6369, 1.442695
        %v6494 = vpow.pop %v6493
        %v6495 = vmul.f32 %v6370, 1.442695
        %v6496 = vpow.pop %v6495
        %v6497 = vmul.f32 %v6371, 1.442695
        %v6498 = vpow.pop %v6497
        %v6499 = vmul.f32 %v6372, 1.442695
        %v6500 = vpow.pop %v6499
        %v6501 = vmul.f32 %v6373, 1.442695
        %v6502 = vpow.pop %v6501
        %v6503 = vmul.f32 %v6374, 1.442695
        %v6504 = vpow.pop %v6503
        %v6505 = vmul.f32 %v6375, 1.442695
        %v6506 = vpow.pop %v6505
        %v6507 = vmul.f32 %v6376, 1.442695
        %v6508 = vpow.pop %v6507
        %v6509 = vmul.f32 %v6377, 1.442695
        %v6510 = vpow.pop %v6509
        %v6511 = vmul.f32 %v6378, 1.442695
        %v6512 = vpow.pop %v6511
        %v6513 = vmul.f32 %v6379, 1.442695
        %v6514 = vpow.pop %v6513
        %v6515 = vmul.f32 %v6380, 1.442695
        %v6516 = vpow.pop %v6515
        %v6517 = vmul.f32 %v6381, 1.442695
        %v6518 = vpow.pop %v6517
        %v6519 = vmul.f32 %v6382, 1.442695
        %v6520 = vpow.pop %v6519
        %v6521 = vmul.f32 %v6383, 1.442695
        %v6522 = vpow.pop %v6521
        %v6523 = vmul.f32 %v6384, 1.442695
        %v6524 = vpow.pop %v6523
        %v6525 = vmul.f32 %v6385, 1.442695
        %v6526 = vpow.pop %v6525
        %v6527 = vmul.f32 %v6386, 1.442695
        %v6528 = vpow.pop %v6527
        %v6529 = vmul.f32 %v6387, 1.442695
        %v6530 = vpow.pop %v6529
        %v6531 = vmul.f32 %v6388, 1.442695
        %v6532 = vpow.pop %v6531
        %v6533 = vmul.f32 %v6389, 1.442695
        %v6534 = vpow.pop %v6533
        %v6535 = vmul.f32 %v6390, 1.442695
        %v6536 = vpow.pop %v6535
        %v6537 = vmul.f32 %v6391, 1.442695
        %v6538 = vpow.pop %v6537
        %v6539 = vmul.f32 %v6392, 1.442695
        %v6540 = vpow.pop %v6539
        %v6541 = vmul.f32 %v6393, 1.442695
        %v6542 = vpow.pop %v6541
        %v6543 = vmul.f32 %v6394, 1.442695
        %v6544 = vpow.pop %v6543
        %v6545 = vmul.f32 %v6395, 1.442695
        %v6546 = vpow.pop %v6545
        %v6547 = vmul.f32 %v6396, 1.442695
        %v6548 = vpow.pop %v6547
        %v6549 = vmul.f32 %v6397, 1.442695
        %v6550 = vpow.pop %v6549
        %v6551 = vmul.f32 %v6398, 1.442695
        %v6552 = vpow.pop %v6551
        %v6553 = vmul.f32 %v6399, 1.442695
        %v6554 = vpow.pop %v6553
        %v6555 = vmul.f32 %v6400, 1.442695
        %v6556 = vpow.pop %v6555
        %v6557 = vmul.f32 %v6401, 1.442695
        %v6558 = vpow.pop %v6557
        %v6559 = vmul.f32 %v6402, 1.442695
        %v6560 = vpow.pop %v6559
        %v6561 = vmul.f32 %v6403, 1.442695
        %v6562 = vpow.pop %v6561
        %v6563 = vmul.f32 %v6404, 1.442695
        %v6564 = vpow.pop %v6563
        %v6565 = vmul.f32 %v6165, %v6406
        %v6566 = vmul.f32 %v6166, %v6408
        %v6567 = vmul.f32 %v6167, %v6410
        %v6568 = vmul.f32 %v6168, %v6412
        %v6569 = vmul.f32 %v6169, %v6414
        %v6570 = vmul.f32 %v6170, %v6416
        %v6571 = vmul.f32 %v6171, %v6418
        %v6572 = vmul.f32 %v6172, %v6420
        %v6573 = vmul.f32 %v6173, %v6422
        %v6574 = vmul.f32 %v6174, %v6424
        %v6575 = vmul.f32 %v6175, %v6426
        %v6576 = vmul.f32 %v6176, %v6428
        %v6577 = vmul.f32 %v6177, %v6430
        %v6578 = vmul.f32 %v6178, %v6432
        %v6579 = vmul.f32 %v6179, %v6434
        %v6580 = vmul.f32 %v6180, %v6436
        %v6581 = vmul.f32 %v6181, %v6438
        %v6582 = vmul.f32 %v6182, %v6440
        %v6583 = vmul.f32 %v6183, %v6442
        %v6584 = vmul.f32 %v6184, %v6444
        %v6585 = vmul.f32 %v6185, %v6446
        %v6586 = vmul.f32 %v6186, %v6448
        %v6587 = vmul.f32 %v6187, %v6450
        %v6588 = vmul.f32 %v6188, %v6452
        %v6589 = vmul.f32 %v6189, %v6454
        %v6590 = vmul.f32 %v6190, %v6456
        %v6591 = vmul.f32 %v6191, %v6458
        %v6592 = vmul.f32 %v6192, %v6460
        %v6593 = vmul.f32 %v6193, %v6462
        %v6594 = vmul.f32 %v6194, %v6464
        %v6595 = vmul.f32 %v6195, %v6466
        %v6596 = vmul.f32 %v6196, %v6468
        %v6597 = vmul.f32 %v6197, %v6470
        %v6598 = vmul.f32 %v6198, %v6472
        %v6599 = vmul.f32 %v6199, %v6474
        %v6600 = vmul.f32 %v6200, %v6476
        %v6601 = vmul.f32 %v6201, %v6478
        %v6602 = vmul.f32 %v6202, %v6480
        %v6603 = vmul.f32 %v6203, %v6482
        %v6604 = vmul.f32 %v6204, %v6484
        %v6605 = vmul.f32 %v6205, %v6486
        %v6606 = vmul.f32 %v6206, %v6488
        %v6607 = vmul.f32 %v6207, %v6490
        %v6608 = vmul.f32 %v6208, %v6492
        %v6609 = vmul.f32 %v6209, %v6494
        %v6610 = vmul.f32 %v6210, %v6496
        %v6611 = vmul.f32 %v6211, %v6498
        %v6612 = vmul.f32 %v6212, %v6500
        %v6613 = vmul.f32 %v6213, %v6502
        %v6614 = vmul.f32 %v6214, %v6504
        %v6615 = vmul.f32 %v6215, %v6506
        %v6616 = vmul.f32 %v6216, %v6508
        %v6617 = vmul.f32 %v6217, %v6510
        %v6618 = vmul.f32 %v6218, %v6512
        %v6619 = vmul.f32 %v6219, %v6514
        %v6620 = vmul.f32 %v6220, %v6516
        %v6621 = vmul.f32 %v6221, %v6518
        %v6622 = vmul.f32 %v6222, %v6520
        %v6623 = vmul.f32 %v6223, %v6522
        %v6624 = vmul.f32 %v6224, %v6524
        %v6625 = vmul.f32 %v6225, %v6526
        %v6626 = vmul.f32 %v6226, %v6528
        %v6627 = vmul.f32 %v6227, %v6530
        %v6628 = vmul.f32 %v6228, %v6532
        %v6629 = vmul.f32 %v6229, %v6534
        %v6630 = vmul.f32 %v6230, %v6536
        %v6631 = vmul.f32 %v6231, %v6538
        %v6632 = vmul.f32 %v6232, %v6540
        %v6633 = vmul.f32 %v6233, %v6542
        %v6634 = vmul.f32 %v6234, %v6544
        %v6635 = vmul.f32 %v6235, %v6546
        %v6636 = vmul.f32 %v6236, %v6548
        %v6637 = vmul.f32 %v6237, %v6550
        %v6638 = vmul.f32 %v6238, %v6552
        %v6639 = vmul.f32 %v6239, %v6554
        %v6640 = vmul.f32 %v6240, %v6556
        %v6641 = vmul.f32 %v6241, %v6558
        %v6642 = vmul.f32 %v6242, %v6560
        %v6643 = vmul.f32 %v6243, %v6562
        %v6644 = vmul.f32 %v6244, %v6564
        %v6645 = vsub.f32 1.0, %v6565
        %v6646 = vsub.f32 1.0, %v6566
        %v6647 = vsub.f32 1.0, %v6567
        %v6648 = vsub.f32 1.0, %v6568
        %v6649 = vsub.f32 1.0, %v6569
        %v6650 = vsub.f32 1.0, %v6570
        %v6651 = vsub.f32 1.0, %v6571
        %v6652 = vsub.f32 1.0, %v6572
        %v6653 = vsub.f32 1.0, %v6573
        %v6654 = vsub.f32 1.0, %v6574
        %v6655 = vsub.f32 1.0, %v6575
        %v6656 = vsub.f32 1.0, %v6576
        %v6657 = vsub.f32 1.0, %v6577
        %v6658 = vsub.f32 1.0, %v6578
        %v6659 = vsub.f32 1.0, %v6579
        %v6660 = vsub.f32 1.0, %v6580
        %v6661 = vsub.f32 1.0, %v6581
        %v6662 = vsub.f32 1.0, %v6582
        %v6663 = vsub.f32 1.0, %v6583
        %v6664 = vsub.f32 1.0, %v6584
        %v6665 = vsub.f32 1.0, %v6585
        %v6666 = vsub.f32 1.0, %v6586
        %v6667 = vsub.f32 1.0, %v6587
        %v6668 = vsub.f32 1.0, %v6588
        %v6669 = vsub.f32 1.0, %v6589
        %v6670 = vsub.f32 1.0, %v6590
        %v6671 = vsub.f32 1.0, %v6591
        %v6672 = vsub.f32 1.0, %v6592
        %v6673 = vsub.f32 1.0, %v6593
        %v6674 = vsub.f32 1.0, %v6594
        %v6675 = vsub.f32 1.0, %v6595
        %v6676 = vsub.f32 1.0, %v6596
        %v6677 = vsub.f32 1.0, %v6597
        %v6678 = vsub.f32 1.0, %v6598
        %v6679 = vsub.f32 1.0, %v6599
        %v6680 = vsub.f32 1.0, %v6600
        %v6681 = vsub.f32 1.0, %v6601
        %v6682 = vsub.f32 1.0, %v6602
        %v6683 = vsub.f32 1.0, %v6603
        %v6684 = vsub.f32 1.0, %v6604
        %v6685 = vsub.f32 1.0, %v6605
        %v6686 = vsub.f32 1.0, %v6606
        %v6687 = vsub.f32 1.0, %v6607
        %v6688 = vsub.f32 1.0, %v6608
        %v6689 = vsub.f32 1.0, %v6609
        %v6690 = vsub.f32 1.0, %v6610
        %v6691 = vsub.f32 1.0, %v6611
        %v6692 = vsub.f32 1.0, %v6612
        %v6693 = vsub.f32 1.0, %v6613
        %v6694 = vsub.f32 1.0, %v6614
        %v6695 = vsub.f32 1.0, %v6615
        %v6696 = vsub.f32 1.0, %v6616
        %v6697 = vsub.f32 1.0, %v6617
        %v6698 = vsub.f32 1.0, %v6618
        %v6699 = vsub.f32 1.0, %v6619
        %v6700 = vsub.f32 1.0, %v6620
        %v6701 = vsub.f32 1.0, %v6621
        %v6702 = vsub.f32 1.0, %v6622
        %v6703 = vsub.f32 1.0, %v6623
        %v6704 = vsub.f32 1.0, %v6624
        %v6705 = vsub.f32 1.0, %v6625
        %v6706 = vsub.f32 1.0, %v6626
        %v6707 = vsub.f32 1.0, %v6627
        %v6708 = vsub.f32 1.0, %v6628
        %v6709 = vsub.f32 1.0, %v6629
        %v6710 = vsub.f32 1.0, %v6630
        %v6711 = vsub.f32 1.0, %v6631
        %v6712 = vsub.f32 1.0, %v6632
        %v6713 = vsub.f32 1.0, %v6633
        %v6714 = vsub.f32 1.0, %v6634
        %v6715 = vsub.f32 1.0, %v6635
        %v6716 = vsub.f32 1.0, %v6636
        %v6717 = vsub.f32 1.0, %v6637
        %v6718 = vsub.f32 1.0, %v6638
        %v6719 = vsub.f32 1.0, %v6639
        %v6720 = vsub.f32 1.0, %v6640
        %v6721 = vsub.f32 1.0, %v6641
        %v6722 = vsub.f32 1.0, %v6642
        %v6723 = vsub.f32 1.0, %v6643
        %v6724 = vsub.f32 1.0, %v6644
        %v6725 = vmul.f32 %v5125, %v6645
        %v6726 = vmul.f32 %v5126, %v6646
        %v6727 = vmul.f32 %v5127, %v6647
        %v6728 = vmul.f32 %v5128, %v6648
        %v6729 = vmul.f32 %v5129, %v6649
        %v6730 = vmul.f32 %v5130, %v6650
        %v6731 = vmul.f32 %v5131, %v6651
        %v6732 = vmul.f32 %v5132, %v6652
        %v6733 = vmul.f32 %v5133, %v6653
        %v6734 = vmul.f32 %v5134, %v6654
        %v6735 = vmul.f32 %v5135, %v6655
        %v6736 = vmul.f32 %v5136, %v6656
        %v6737 = vmul.f32 %v5137, %v6657
        %v6738 = vmul.f32 %v5138, %v6658
        %v6739 = vmul.f32 %v5139, %v6659
        %v6740 = vmul.f32 %v5140, %v6660
        %v6741 = vmul.f32 %v5141, %v6661
        %v6742 = vmul.f32 %v5142, %v6662
        %v6743 = vmul.f32 %v5143, %v6663
        %v6744 = vmul.f32 %v5144, %v6664
        %v6745 = vmul.f32 %v5145, %v6665
        %v6746 = vmul.f32 %v5146, %v6666
        %v6747 = vmul.f32 %v5147, %v6667
        %v6748 = vmul.f32 %v5148, %v6668
        %v6749 = vmul.f32 %v5149, %v6669
        %v6750 = vmul.f32 %v5150, %v6670
        %v6751 = vmul.f32 %v5151, %v6671
        %v6752 = vmul.f32 %v5152, %v6672
        %v6753 = vmul.f32 %v5153, %v6673
        %v6754 = vmul.f32 %v5154, %v6674
        %v6755 = vmul.f32 %v5155, %v6675
        %v6756 = vmul.f32 %v5156, %v6676
        %v6757 = vmul.f32 %v5157, %v6677
        %v6758 = vmul.f32 %v5158, %v6678
        %v6759 = vmul.f32 %v5159, %v6679
        %v6760 = vmul.f32 %v5160, %v6680
        %v6761 = vmul.f32 %v5161, %v6681
        %v6762 = vmul.f32 %v5162, %v6682
        %v6763 = vmul.f32 %v5163, %v6683
        %v6764 = vmul.f32 %v5164, %v6684
        %v6765 = vmul.f32 %v5165, %v6685
        %v6766 = vmul.f32 %v5166, %v6686
        %v6767 = vmul.f32 %v5167, %v6687
        %v6768 = vmul.f32 %v5168, %v6688
        %v6769 = vmul.f32 %v5169, %v6689
        %v6770 = vmul.f32 %v5170, %v6690
        %v6771 = vmul.f32 %v5171, %v6691
        %v6772 = vmul.f32 %v5172, %v6692
        %v6773 = vmul.f32 %v5173, %v6693
        %v6774 = vmul.f32 %v5174, %v6694
        %v6775 = vmul.f32 %v5175, %v6695
        %v6776 = vmul.f32 %v5176, %v6696
        %v6777 = vmul.f32 %v5177, %v6697
        %v6778 = vmul.f32 %v5178, %v6698
        %v6779 = vmul.f32 %v5179, %v6699
        %v6780 = vmul.f32 %v5180, %v6700
        %v6781 = vmul.f32 %v5181, %v6701
        %v6782 = vmul.f32 %v5182, %v6702
        %v6783 = vmul.f32 %v5183, %v6703
        %v6784 = vmul.f32 %v5184, %v6704
        %v6785 = vmul.f32 %v5185, %v6705
        %v6786 = vmul.f32 %v5186, %v6706
        %v6787 = vmul.f32 %v5187, %v6707
        %v6788 = vmul.f32 %v5188, %v6708
        %v6789 = vmul.f32 %v5189, %v6709
        %v6790 = vmul.f32 %v5190, %v6710
        %v6791 = vmul.f32 %v5191, %v6711
        %v6792 = vmul.f32 %v5192, %v6712
        %v6793 = vmul.f32 %v5193, %v6713
        %v6794 = vmul.f32 %v5194, %v6714
        %v6795 = vmul.f32 %v5195, %v6715
        %v6796 = vmul.f32 %v5196, %v6716
        %v6797 = vmul.f32 %v5197, %v6717
        %v6798 = vmul.f32 %v5198, %v6718
        %v6799 = vmul.f32 %v5199, %v6719
        %v6800 = vmul.f32 %v5200, %v6720
        %v6801 = vmul.f32 %v5201, %v6721
        %v6802 = vmul.f32 %v5202, %v6722
        %v6803 = vmul.f32 %v5203, %v6723
        %v6804 = vmul.f32 %v5204, %v6724
        %v6805 = vadd.f32 %v6725, 1.0
        %v6806 = vadd.f32 %v6726, 1.0
        %v6807 = vadd.f32 %v6727, 1.0
        %v6808 = vadd.f32 %v6728, 1.0
        %v6809 = vadd.f32 %v6729, 1.0
        %v6810 = vadd.f32 %v6730, 1.0
        %v6811 = vadd.f32 %v6731, 1.0
        %v6812 = vadd.f32 %v6732, 1.0
        %v6813 = vadd.f32 %v6733, 1.0
        %v6814 = vadd.f32 %v6734, 1.0
        %v6815 = vadd.f32 %v6735, 1.0
        %v6816 = vadd.f32 %v6736, 1.0
        %v6817 = vadd.f32 %v6737, 1.0
        %v6818 = vadd.f32 %v6738, 1.0
        %v6819 = vadd.f32 %v6739, 1.0
        %v6820 = vadd.f32 %v6740, 1.0
        %v6821 = vadd.f32 %v6741, 1.0
        %v6822 = vadd.f32 %v6742, 1.0
        %v6823 = vadd.f32 %v6743, 1.0
        %v6824 = vadd.f32 %v6744, 1.0
        %v6825 = vadd.f32 %v6745, 1.0
        %v6826 = vadd.f32 %v6746, 1.0
        %v6827 = vadd.f32 %v6747, 1.0
        %v6828 = vadd.f32 %v6748, 1.0
        %v6829 = vadd.f32 %v6749, 1.0
        %v6830 = vadd.f32 %v6750, 1.0
        %v6831 = vadd.f32 %v6751, 1.0
        %v6832 = vadd.f32 %v6752, 1.0
        %v6833 = vadd.f32 %v6753, 1.0
        %v6834 = vadd.f32 %v6754, 1.0
        %v6835 = vadd.f32 %v6755, 1.0
        %v6836 = vadd.f32 %v6756, 1.0
        %v6837 = vadd.f32 %v6757, 1.0
        %v6838 = vadd.f32 %v6758, 1.0
        %v6839 = vadd.f32 %v6759, 1.0
        %v6840 = vadd.f32 %v6760, 1.0
        %v6841 = vadd.f32 %v6761, 1.0
        %v6842 = vadd.f32 %v6762, 1.0
        %v6843 = vadd.f32 %v6763, 1.0
        %v6844 = vadd.f32 %v6764, 1.0
        %v6845 = vadd.f32 %v6765, 1.0
        %v6846 = vadd.f32 %v6766, 1.0
        %v6847 = vadd.f32 %v6767, 1.0
        %v6848 = vadd.f32 %v6768, 1.0
        %v6849 = vadd.f32 %v6769, 1.0
        %v6850 = vadd.f32 %v6770, 1.0
        %v6851 = vadd.f32 %v6771, 1.0
        %v6852 = vadd.f32 %v6772, 1.0
        %v6853 = vadd.f32 %v6773, 1.0
        %v6854 = vadd.f32 %v6774, 1.0
        %v6855 = vadd.f32 %v6775, 1.0
        %v6856 = vadd.f32 %v6776, 1.0
        %v6857 = vadd.f32 %v6777, 1.0
        %v6858 = vadd.f32 %v6778, 1.0
        %v6859 = vadd.f32 %v6779, 1.0
        %v6860 = vadd.f32 %v6780, 1.0
        %v6861 = vadd.f32 %v6781, 1.0
        %v6862 = vadd.f32 %v6782, 1.0
        %v6863 = vadd.f32 %v6783, 1.0
        %v6864 = vadd.f32 %v6784, 1.0
        %v6865 = vadd.f32 %v6785, 1.0
        %v6866 = vadd.f32 %v6786, 1.0
        %v6867 = vadd.f32 %v6787, 1.0
        %v6868 = vadd.f32 %v6788, 1.0
        %v6869 = vadd.f32 %v6789, 1.0
        %v6870 = vadd.f32 %v6790, 1.0
        %v6871 = vadd.f32 %v6791, 1.0
        %v6872 = vadd.f32 %v6792, 1.0
        %v6873 = vadd.f32 %v6793, 1.0
        %v6874 = vadd.f32 %v6794, 1.0
        %v6875 = vadd.f32 %v6795, 1.0
        %v6876 = vadd.f32 %v6796, 1.0
        %v6877 = vadd.f32 %v6797, 1.0
        %v6878 = vadd.f32 %v6798, 1.0
        %v6879 = vadd.f32 %v6799, 1.0
        %v6880 = vadd.f32 %v6800, 1.0
        %v6881 = vadd.f32 %v6801, 1.0
        %v6882 = vadd.f32 %v6802, 1.0
        %v6883 = vadd.f32 %v6803, 1.0
        %v6884 = vadd.f32 %v6804, 1.0
        %v6885 = vmul.f32 %v4885, %v6805
        %v6886 = vmul.f32 %v4886, %v6806
        %v6887 = vmul.f32 %v4887, %v6807
        %v6888 = vmul.f32 %v4888, %v6808
        %v6889 = vmul.f32 %v4889, %v6809
        %v6890 = vmul.f32 %v4890, %v6810
        %v6891 = vmul.f32 %v4891, %v6811
        %v6892 = vmul.f32 %v4892, %v6812
        %v6893 = vmul.f32 %v4893, %v6813
        %v6894 = vmul.f32 %v4894, %v6814
        %v6895 = vmul.f32 %v4895, %v6815
        %v6896 = vmul.f32 %v4896, %v6816
        %v6897 = vmul.f32 %v4897, %v6817
        %v6898 = vmul.f32 %v4898, %v6818
        %v6899 = vmul.f32 %v4899, %v6819
        %v6900 = vmul.f32 %v4900, %v6820
        %v6901 = vmul.f32 %v4901, %v6821
        %v6902 = vmul.f32 %v4902, %v6822
        %v6903 = vmul.f32 %v4903, %v6823
        %v6904 = vmul.f32 %v4904, %v6824
        %v6905 = vmul.f32 %v4905, %v6825
        %v6906 = vmul.f32 %v4906, %v6826
        %v6907 = vmul.f32 %v4907, %v6827
        %v6908 = vmul.f32 %v4908, %v6828
        %v6909 = vmul.f32 %v4909, %v6829
        %v6910 = vmul.f32 %v4910, %v6830
        %v6911 = vmul.f32 %v4911, %v6831
        %v6912 = vmul.f32 %v4912, %v6832
        %v6913 = vmul.f32 %v4913, %v6833
        %v6914 = vmul.f32 %v4914, %v6834
        %v6915 = vmul.f32 %v4915, %v6835
        %v6916 = vmul.f32 %v4916, %v6836
        %v6917 = vmul.f32 %v4917, %v6837
        %v6918 = vmul.f32 %v4918, %v6838
        %v6919 = vmul.f32 %v4919, %v6839
        %v6920 = vmul.f32 %v4920, %v6840
        %v6921 = vmul.f32 %v4921, %v6841
        %v6922 = vmul.f32 %v4922, %v6842
        %v6923 = vmul.f32 %v4923, %v6843
        %v6924 = vmul.f32 %v4924, %v6844
        %v6925 = vmul.f32 %v4925, %v6845
        %v6926 = vmul.f32 %v4926, %v6846
        %v6927 = vmul.f32 %v4927, %v6847
        %v6928 = vmul.f32 %v4928, %v6848
        %v6929 = vmul.f32 %v4929, %v6849
        %v6930 = vmul.f32 %v4930, %v6850
        %v6931 = vmul.f32 %v4931, %v6851
        %v6932 = vmul.f32 %v4932, %v6852
        %v6933 = vmul.f32 %v4933, %v6853
        %v6934 = vmul.f32 %v4934, %v6854
        %v6935 = vmul.f32 %v4935, %v6855
        %v6936 = vmul.f32 %v4936, %v6856
        %v6937 = vmul.f32 %v4937, %v6857
        %v6938 = vmul.f32 %v4938, %v6858
        %v6939 = vmul.f32 %v4939, %v6859
        %v6940 = vmul.f32 %v4940, %v6860
        %v6941 = vmul.f32 %v4941, %v6861
        %v6942 = vmul.f32 %v4942, %v6862
        %v6943 = vmul.f32 %v4943, %v6863
        %v6944 = vmul.f32 %v4944, %v6864
        %v6945 = vmul.f32 %v4945, %v6865
        %v6946 = vmul.f32 %v4946, %v6866
        %v6947 = vmul.f32 %v4947, %v6867
        %v6948 = vmul.f32 %v4948, %v6868
        %v6949 = vmul.f32 %v4949, %v6869
        %v6950 = vmul.f32 %v4950, %v6870
        %v6951 = vmul.f32 %v4951, %v6871
        %v6952 = vmul.f32 %v4952, %v6872
        %v6953 = vmul.f32 %v4953, %v6873
        %v6954 = vmul.f32 %v4954, %v6874
        %v6955 = vmul.f32 %v4955, %v6875
        %v6956 = vmul.f32 %v4956, %v6876
        %v6957 = vmul.f32 %v4957, %v6877
        %v6958 = vmul.f32 %v4958, %v6878
        %v6959 = vmul.f32 %v4959, %v6879
        %v6960 = vmul.f32 %v4960, %v6880
        %v6961 = vmul.f32 %v4961, %v6881
        %v6962 = vmul.f32 %v4962, %v6882
        %v6963 = vmul.f32 %v4963, %v6883
        %v6964 = vmul.f32 %v4964, %v6884
        %v6965 = vpack.c.bf16 %v6890, %v6885
        %v6966 = vpack.c.bf16 %v6891, %v6886
        %v6967 = vpack.c.bf16 %v6892, %v6887
        %v6968 = vpack.c.bf16 %v6893, %v6888
        %v6969 = vpack.c.bf16 %v6894, %v6889
        %v6970 = vpack.c.bf16 %v6900, %v6895
        %v6971 = vpack.c.bf16 %v6901, %v6896
        %v6972 = vpack.c.bf16 %v6902, %v6897
        %v6973 = vpack.c.bf16 %v6903, %v6898
        %v6974 = vpack.c.bf16 %v6904, %v6899
        %v6975 = vpack.c.bf16 %v6910, %v6905
        %v6976 = vpack.c.bf16 %v6911, %v6906
        %v6977 = vpack.c.bf16 %v6912, %v6907
        %v6978 = vpack.c.bf16 %v6913, %v6908
        %v6979 = vpack.c.bf16 %v6914, %v6909
        %v6980 = vpack.c.bf16 %v6920, %v6915
        %v6981 = vpack.c.bf16 %v6921, %v6916
        %v6982 = vpack.c.bf16 %v6922, %v6917
        %v6983 = vpack.c.bf16 %v6923, %v6918
        %v6984 = vpack.c.bf16 %v6924, %v6919
        %v6985 = vpack.c.bf16 %v6930, %v6925
        %v6986 = vpack.c.bf16 %v6931, %v6926
        %v6987 = vpack.c.bf16 %v6932, %v6927
        %v6988 = vpack.c.bf16 %v6933, %v6928
        %v6989 = vpack.c.bf16 %v6934, %v6929
        %v6990 = vpack.c.bf16 %v6940, %v6935
        %v6991 = vpack.c.bf16 %v6941, %v6936
        %v6992 = vpack.c.bf16 %v6942, %v6937
        %v6993 = vpack.c.bf16 %v6943, %v6938
        %v6994 = vpack.c.bf16 %v6944, %v6939
        %v6995 = vpack.c.bf16 %v6950, %v6945
        %v6996 = vpack.c.bf16 %v6951, %v6946
        %v6997 = vpack.c.bf16 %v6952, %v6947
        %v6998 = vpack.c.bf16 %v6953, %v6948
        %v6999 = vpack.c.bf16 %v6954, %v6949
        %v7000 = vpack.c.bf16 %v6960, %v6955
        %v7001 = vpack.c.bf16 %v6961, %v6956
        %v7002 = vpack.c.bf16 %v6962, %v6957
        %v7003 = vpack.c.bf16 %v6963, %v6958
        %v7004 = vpack.c.bf16 %v6964, %v6959
        %v7005 = vld [vmem:[#allocation3] sm:$0x1]
        %7007 = vset.pattern.permute.xlu0 0
        %7008 = vperm.xlu0 %7007, %v7005
        %v7009 = vpop.permute.xlu0 %7008
        %v7011 = vperm.slane %v7009, 0
        %7012 = vmatpush.bf16.msra.mxu0 %v7000
        %7013 = vmatpush.bf16.msra.mxu0 %v6995
        %7014 = vmatpush.bf16.msra.mxu0 %v6990
        %7015 = vmatpush.bf16.msra.mxu0 %v6985
        %7016 = vmatpush.bf16.msra.mxu0 %v6980
        %7017 = vmatpush.bf16.msra.mxu0 %v6975
        %7018 = vmatpush.bf16.msra.mxu0 %v6970
        %7019 = vmatpush.bf16.msra.mxu0 %v6965
        %7020 = vmatmul.bf16.gmra.mxu0 %v4473
        %v7021 = vpop.f32.mrf.mxu0
        %v7022 = vadd.f32 %v7011, %v7021
        %v7023 = vpop.f32.mrf.mxu0
        %7024 = vdwg.mxu0
        %7025 = vmatpush.bf16.msra.mxu0 %v7001
        %7026 = vmatpush.bf16.msra.mxu0 %v6996
        %7027 = vmatpush.bf16.msra.mxu0 %v6991
        %7028 = vmatpush.bf16.msra.mxu0 %v6986
        %7029 = vmatpush.bf16.msra.mxu0 %v6981
        %7030 = vmatpush.bf16.msra.mxu0 %v6976
        %7031 = vmatpush.bf16.msra.mxu0 %v6971
        %7032 = vmatpush.bf16.msra.mxu0 %v6966
        %7033 = vmatmul.bf16.gmra.mxu0 %v4473
        %v7034 = vpop.f32.mrf.mxu0
        %v7035 = vadd.f32 %v7011, %v7034
        %v7036 = vpop.f32.mrf.mxu0
        %7037 = vdwg.mxu0
        %7038 = vmatpush.bf16.msra.mxu0 %v7002
        %7039 = vmatpush.bf16.msra.mxu0 %v6997
        %7040 = vmatpush.bf16.msra.mxu0 %v6992
        %7041 = vmatpush.bf16.msra.mxu0 %v6987
        %7042 = vmatpush.bf16.msra.mxu0 %v6982
        %7043 = vmatpush.bf16.msra.mxu0 %v6977
        %7044 = vmatpush.bf16.msra.mxu0 %v6972
        %7045 = vmatpush.bf16.msra.mxu0 %v6967
        %7046 = vmatmul.bf16.gmra.mxu0 %v4473
        %v7047 = vpop.f32.mrf.mxu0
        %v7048 = vadd.f32 %v7011, %v7047
        %v7049 = vpop.f32.mrf.mxu0
        %7050 = vdwg.mxu0
        %7051 = vmatpush.bf16.msra.mxu0 %v7003
        %7052 = vmatpush.bf16.msra.mxu0 %v6998
        %7053 = vmatpush.bf16.msra.mxu0 %v6993
        %7054 = vmatpush.bf16.msra.mxu0 %v6988
        %7055 = vmatpush.bf16.msra.mxu0 %v6983
        %7056 = vmatpush.bf16.msra.mxu0 %v6978
        %7057 = vmatpush.bf16.msra.mxu0 %v6973
        %7058 = vmatpush.bf16.msra.mxu0 %v6968
        %7059 = vmatmul.bf16.gmra.mxu0 %v4473
        %v7060 = vpop.f32.mrf.mxu0
        %v7061 = vadd.f32 %v7011, %v7060
        %v7062 = vpop.f32.mrf.mxu0
        %7063 = vdwg.mxu0
        %7064 = vmatpush.bf16.msra.mxu0 %v7004
        %7065 = vmatpush.bf16.msra.mxu0 %v6999
        %7066 = vmatpush.bf16.msra.mxu0 %v6994
        %7067 = vmatpush.bf16.msra.mxu0 %v6989
        %7068 = vmatpush.bf16.msra.mxu0 %v6984
        %7069 = vmatpush.bf16.msra.mxu0 %v6979
        %7070 = vmatpush.bf16.msra.mxu0 %v6974
        %7071 = vmatpush.bf16.msra.mxu0 %v6969
        %7072 = vmatmul.bf16.gmra.mxu0 %v4473
        %v7073 = vpop.f32.mrf.mxu0
        %v7074 = vadd.f32 %v7011, %v7073
        %v7075 = vpop.f32.mrf.mxu0
        %7076 = vdwg.mxu0
        %v7082 = vrot.slane %v7035, 7
        %v7083 = vrot.slane %v7048, 6
        %v7084 = vrot.slane %v7061, 5
        %v7085 = vrot.slane %v7074, 4
        %v7086 = vsel %vm508, %v7022, %v7082
        %v7087 = vsel %vm509, %v7086, %v7083
        %v7088 = vsel %vm1376, %v7084, %v7085
        %vm7089 = vcmask 1042432
        %v7090 = vsel %vm7089, %v7087, %v7088
        %v7092 = vlaneseq
        %vm7093 = vcmp.ge.s32.totalorder %v7092, 0
        %vm7094 = vcmp.lt.s32.totalorder %v7092, 640
        %vm7095 = vmand %vm7093, %vm7094
        %7096 = vst.msk [vmem:[%s457] sm:$0x1f] %vm7095, %v7090
        %p7097 = scmp.lt.s32.totalorder %s27, 1
        %s7098 = scalar_select %p7097, %s27, 1
        %s7099 = smul.addr %s7098, 5
        %s7100 = scalar_lea.vmem %s13, %s7099
        // Predicated region
        $region77: #{forward.1} parent=71 // pred_check
          %p7101 = pneg %p323
        $region78: #{forward.1} parent=71 // pred_check_branch
          %7103 = sbr.rel (%p7101) target = $region80
        $region79: #{forward.1} parent=71 // pred_region
          _
        $region80: #{forward.1} parent=71 // pred_fallthru
          _
      $region72: #{forward.1} parent=5 // pred_fallthru
        _
      %p7104 = scmp.le.s32.totalorder 2, %s22
      // Predicated region
      $region81: #{forward.1} parent=5 // pred_check
        %p7105 = pneg %p7104
      $region82: #{forward.1} parent=5 // pred_check_branch
        %7107 = sbr.rel (%p7105) target = $region84
      $region83: #{forward.1} parent=5 // pred_region
        %s7108 = ssub.s32 %s22, 2
        // Predicated region
        $region85: #{forward.1} parent=83 // pred_check
          %p7109 = pneg %p329
        $region86: #{forward.1} parent=83 // pred_check_branch
          %7111 = sbr.rel (%p7109) target = $region88
        $region87: #{forward.1} parent=83 // pred_region
          %p7112 = scmp.lt.s32.totalorder %s28, 1
          %s7113 = scalar_select %p7112, %s28, 1
          %s7114 = smul.addr %s7113, 5
          %s7115 = scalar_lea.vmem %s13, %s7114
        $region88: #{forward.1} parent=83 // pred_fallthru
          _
      $region84: #{forward.1} parent=5 // pred_fallthru
        _
    $region6: #{forward.1} parent=1 // loop_footer
      %s26 = sadd.s32 1, %s22
    $region7: #{forward.1} parent=1 // loop_footer_branch
      %21 = sbr.rel target = $region3
    $region8: #{forward.1} parent=1 // loop_exit
      _
    %7116 = vsyncpa [#allocation5], 1
    %s7117 = scalar_lea.sflag [#allocation5], 1
    %7118 = vsyncpa %s7117, 1

</llo_original>
